<compile_context>
chip_gen: v5e
topology: v5e:2x2
jax: 0.10.0
libtpu: 0.0.40
codegen_flags: <defaults>
</compile_context>

<pallas_src>
import jax
import jax.numpy as jnp
from jax import lax
from jax.experimental import pallas as pl
from jax.experimental.pallas import tpu as pltpu


def _fused_lstm2_kernel(x_ref, wih1_ref, b1_ref, whh1_ref,
                        wih2_ref, whh2_ref, b2_ref, out_ref,
                        g1_sc, h1_sc, g2_sc, h2_sc):
    """Single-invocation fused 2-layer LSTM over the whole sequence.

    x_ref    : (T, D_in)   bf16  full input sequence
    wih1_ref : (D_in, 4H1) bf16  layer1 input->gates  (pre-transposed)
    b1_ref   : (1, 4H1)    f32   layer1 b_ih + b_hh
    whh1_ref : (H1, 4H1)   bf16  layer1 hidden->gates (pre-transposed)
    wih2_ref : (H1, 4H2)   bf16  layer2 input->gates  (pre-transposed)
    whh2_ref : (H2, 4H2)   bf16  layer2 hidden->gates (pre-transposed)
    b2_ref   : (1, 4H2)    f32   layer2 b_ih + b_hh
    out_ref  : (T, H2)     f32   layer2 hidden states (the module's output)
    g1_sc    : (T, 4H1)    f32   hoisted layer-1 x-projection
    h1_sc    : (T, H1)     f32   layer-1 hidden states (feeds layer-2 GEMM)
    g2_sc    : (T, 4H2)    f32   hoisted layer-2 input projection
    h2_sc    : (T, H2)     f32   layer-2 hidden states (block-stored at end)
    Gate order follows PyTorch: [i, f, g, o].
    """
    T = x_ref.shape[0]
    H1 = whh1_ref.shape[0]
    H2 = whh2_ref.shape[0]

    def gate_math(gates, c_prev, H):
        # Lane-aligned gate slices (H is a multiple of 128 at these shapes).
        i_g = jax.nn.sigmoid(gates[:, 0 * H:1 * H])
        f_g = jax.nn.sigmoid(gates[:, 1 * H:2 * H])
        g_g = jnp.tanh(gates[:, 2 * H:3 * H])
        o_g = jax.nn.sigmoid(gates[:, 3 * H:4 * H])
        c_new = f_g * c_prev + i_g * g_g
        h_new = o_g * jnp.tanh(c_new)
        return h_new, c_new

    # Shape-dependent unroll: full unroll only while the (1, 4H) f32 gate
    # vectors fit comfortably in the 64-vreg file; cap at the real scale.
    unroll1 = True if 4 * H1 <= 4096 else 2
    unroll2 = True if 4 * H2 <= 4096 else 2

    # ---- Layer 1: hoisted x-projection (one dense bf16 GEMM, M=T) ----
    g1_sc[...] = (
        jnp.dot(x_ref[...], wih1_ref[...], preferred_element_type=jnp.float32)
        + b1_ref[...]
    )

    # ---- Layer 1 recurrence: only the h-side GEMV per step ----
    def step1(t, carry):
        h1, c1 = carry
        gates1 = g1_sc[pl.ds(t, 1), :] + jnp.dot(
            h1.astype(jnp.bfloat16), whh1_ref[...],
            preferred_element_type=jnp.float32)
        h1_new, c1_new = gate_math(gates1, c1, H1)
        h1_sc[pl.ds(t, 1), :] = h1_new
        return (h1_new, c1_new)

    init1 = (jnp.zeros((1, H1), jnp.float32), jnp.zeros((1, H1), jnp.float32))
    lax.fori_loop(0, T, step1, init1, unroll=unroll1)

    # ---- Layer 2: hoisted input projection over ALL timesteps (one GEMM) ----
    g2_sc[...] = (
        jnp.dot(h1_sc[...].astype(jnp.bfloat16), wih2_ref[...],
                preferred_element_type=jnp.float32)
        + b2_ref[...]
    )

    # ---- Layer 2 recurrence ----
    def step2(t, carry):
        h2, c2 = carry
        gates2 = g2_sc[pl.ds(t, 1), :] + jnp.dot(
            h2.astype(jnp.bfloat16), whh2_ref[...],
            preferred_element_type=jnp.float32)
        h2_new, c2_new = gate_math(gates2, c2, H2)
        h2_sc[pl.ds(t, 1), :] = h2_new
        return (h2_new, c2_new)

    init2 = (jnp.zeros((1, H2), jnp.float32), jnp.zeros((1, H2), jnp.float32))
    lax.fori_loop(0, T, step2, init2, unroll=unroll2)

    # Single sublane-dense block store instead of T masked 1-row stores.
    out_ref[...] = h2_sc[...].astype(out_ref.dtype)


def net_forward(x, params, view_shape):
    """Mirrors Net.forward: lstm1 -> lstm2 -> view(seq, C, Hh, Ww)."""
    T, D_in = x.shape
    H1 = params["w_hh1"].shape[1]
    H2 = params["w_hh2"].shape[1]

    # Pre-transpose PyTorch-layout weights once, cast MXU operands to bf16
    # (f32 accumulation in-kernel), fold the bias pairs (kept f32).
    cdt = jnp.bfloat16
    wih1_t = jnp.asarray(params["w_ih1"].T, cdt)                   # (D_in, 4H1)
    whh1_t = jnp.asarray(params["w_hh1"].T, cdt)                   # (H1, 4H1)
    b1 = (params["b_ih1"] + params["b_hh1"]).astype(jnp.float32).reshape(1, 4 * H1)
    wih2_t = jnp.asarray(params["w_ih2"].T, cdt)                   # (H1, 4H2)
    whh2_t = jnp.asarray(params["w_hh2"].T, cdt)                   # (H2, 4H2)
    b2 = (params["b_ih2"] + params["b_hh2"]).astype(jnp.float32).reshape(1, 4 * H2)
    x_bf = x.astype(cdt)

    # NOTE: grid=(1,) — every operand is fetched exactly once, so the default
    # double-buffering never fills its second buffer; at toy scale the extra
    # footprint is irrelevant.
    # TODO(synk): at original scale mark the resident weight specs with
    # pipeline_mode=pl.Buffered(1) (or stream whh2 tiles) to halve their VMEM.
    out = pl.pallas_call(
        _fused_lstm2_kernel,
        out_shape=jax.ShapeDtypeStruct((T, H2), jnp.float32),
        grid_spec=pltpu.PrefetchScalarGridSpec(
            num_scalar_prefetch=0,
            grid=(1,),  # everything resident; time loops live inside the kernel
            in_specs=[
                pl.BlockSpec((T, D_in), lambda i: (0, 0)),
                pl.BlockSpec((D_in, 4 * H1), lambda i: (0, 0)),
                pl.BlockSpec((1, 4 * H1), lambda i: (0, 0)),
                pl.BlockSpec((H1, 4 * H1), lambda i: (0, 0)),
                pl.BlockSpec((H1, 4 * H2), lambda i: (0, 0)),
                pl.BlockSpec((H2, 4 * H2), lambda i: (0, 0)),
                pl.BlockSpec((1, 4 * H2), lambda i: (0, 0)),
            ],
            out_specs=pl.BlockSpec((T, H2), lambda i: (0, 0)),
            scratch_shapes=[
                pltpu.VMEM((T, 4 * H1), jnp.float32),   # g1: hoisted x-proj
                pltpu.VMEM((T, H1), jnp.float32),       # h1 sequence
                pltpu.VMEM((T, 4 * H2), jnp.float32),   # g2: hoisted h1-proj
                pltpu.VMEM((T, H2), jnp.float32),       # h2 sequence
            ],
        ),
        compiler_params=pltpu.CompilerParams(
            dimension_semantics=("arbitrary",),      # sequential recurrence
            vmem_limit_bytes=32 * 1024 * 1024,       # explicit, ample headroom
        ),
    )(x_bf, wih1_t, b1, whh1_t, wih2_t, whh2_t, b2)

    return out.reshape((T,) + view_shape)


# ---------------- pure-JAX reference (for correctness check) ----------------
def _lstm_layer_ref(x, w_ih, w_hh, b_ih, b_hh):
    H = w_hh.shape[1]

    def step(carry, x_t):
        h, c = carry
        gates = x_t @ w_ih.T + h @ w_hh.T + b_ih + b_hh
        i_g = jax.nn.sigmoid(gates[0 * H:1 * H])
        f_g = jax.nn.sigmoid(gates[1 * H:2 * H])
        g_g = jnp.tanh(gates[2 * H:3 * H])
        o_g = jax.nn.sigmoid(gates[3 * H:4 * H])
        c_new = f_g * c + i_g * g_g
        h_new = o_g * jnp.tanh(c_new)
        return (h_new, c_new), h_new

    init = (jnp.zeros((H,), x.dtype), jnp.zeros((H,), x.dtype))
    _, hs = jax.lax.scan(step, init, x)
    return hs


def net_forward_ref(x, params, view_shape):
    h1 = _lstm_layer_ref(x, params["w_ih1"], params["w_hh1"],
                         params["b_ih1"], params["b_hh1"])
    h2 = _lstm_layer_ref(h1, params["w_ih2"], params["w_hh2"],
                         params["b_ih2"], params["b_hh2"])
    return h2.reshape((x.shape[0],) + view_shape)


if __name__ == "__main__":
    # Scaled-down shapes consistent with the module's structure.
    SEQ = 8           # sequence_length (orig 50)
    D_IN = 256        # lstm1 input_size (orig 6210)
    H1 = 128          # lstm1 hidden_size (orig 3105 = 6210/2)
    H2 = 256          # lstm2 hidden_size (orig 6210)
    VIEW = (4, 8, 8)  # 4*8*8 == H2  (orig view (6, 23, 45), 6*23*45 == 6210)

    key = jax.random.PRNGKey(0)
    keys = jax.random.split(key, 9)

    def uinit(k, shape, hidden):
        bound = 1.0 / jnp.sqrt(jnp.float32(hidden))
        return jax.random.uniform(k, shape, jnp.float32, -bound, bound)

    params = {
        # lstm1: input D_IN -> hidden H1
        "w_ih1": uinit(keys[0], (4 * H1, D_IN), H1),
        "w_hh1": uinit(keys[1], (4 * H1, H1), H1),
        "b_ih1": uinit(keys[2], (4 * H1,), H1),
        "b_hh1": uinit(keys[3], (4 * H1,), H1),
        # lstm2: input H1 -> hidden H2
        "w_ih2": uinit(keys[4], (4 * H2, H1), H2),
        "w_hh2": uinit(keys[5], (4 * H2, H2), H2),
        "b_ih2": uinit(keys[6], (4 * H2,), H2),
        "b_hh2": uinit(keys[7], (4 * H2,), H2),
    }

    x = jax.random.normal(keys[8], (SEQ, D_IN), jnp.float32)

    out = jax.block_until_ready(net_forward(x, params, VIEW))
    ref = jax.block_until_ready(net_forward_ref(x, params, VIEW))

    assert out.shape == (SEQ,) + VIEW, out.shape
    # Kernel uses bf16 matmul operands (f32 accumulate); tolerance reflects
    # bf16 rounding compounded over 2 layers x 8 steps (values bounded by 1).
    assert jnp.allclose(out, ref, atol=5e-2, rtol=5e-2), (
        "mismatch vs reference, max abs diff = "
        + str(float(jnp.max(jnp.abs(out - ref)))))

    print("KERNEL_OK")
</pallas_src>

<mosaic_0001>
module attributes {stable_mosaic.version = 11 : i64} {
  func.func @_fused_lstm2_kernel(%arg0: i32, %arg1: memref<8x256xbf16, #tpu.memory_space<vmem>>, %arg2: memref<256x512xbf16, #tpu.memory_space<vmem>>, %arg3: memref<1x512xf32, #tpu.memory_space<vmem>>, %arg4: memref<128x512xbf16, #tpu.memory_space<vmem>>, %arg5: memref<128x1024xbf16, #tpu.memory_space<vmem>>, %arg6: memref<256x1024xbf16, #tpu.memory_space<vmem>>, %arg7: memref<1x1024xf32, #tpu.memory_space<vmem>>, %arg8: memref<8x256xf32, #tpu.memory_space<vmem>>, %arg9: memref<8x512xf32, #tpu.memory_space<vmem>>, %arg10: memref<8x128xf32, #tpu.memory_space<vmem>>, %arg11: memref<8x1024xf32, #tpu.memory_space<vmem>>, %arg12: memref<8x256xf32, #tpu.memory_space<vmem>>) attributes {dimension_semantics = [#tpu.dimension_semantics<arbitrary>], iteration_bounds = array<i64: 1>, scalar_prefetch = 0 : i64, scratch_operands = 4 : i64, tpu.core_type = #tpu.core_type<tc>, window_params = [{pipeline_mode = #tpu.pipeline_mode<synchronous>, transform_indices = @transform_0, window_bounds = array<i64: 8, 256>}, {pipeline_mode = #tpu.pipeline_mode<synchronous>, transform_indices = @transform_1, window_bounds = array<i64: 256, 512>}, {pipeline_mode = #tpu.pipeline_mode<synchronous>, transform_indices = @transform_2, window_bounds = array<i64: 1, 512>}, {pipeline_mode = #tpu.pipeline_mode<synchronous>, transform_indices = @transform_3, window_bounds = array<i64: 128, 512>}, {pipeline_mode = #tpu.pipeline_mode<synchronous>, transform_indices = @transform_4, window_bounds = array<i64: 128, 1024>}, {pipeline_mode = #tpu.pipeline_mode<synchronous>, transform_indices = @transform_5, window_bounds = array<i64: 256, 1024>}, {pipeline_mode = #tpu.pipeline_mode<synchronous>, transform_indices = @transform_6, window_bounds = array<i64: 1, 1024>}, {pipeline_mode = #tpu.pipeline_mode<synchronous>, transform_indices = @transform_7, window_bounds = array<i64: 8, 256>}]} {
    %c0 = arith.constant 0 : index
    %c0_0 = arith.constant 0 : index
    %0 = vector.load %arg1[%c0, %c0_0] : memref<8x256xbf16, #tpu.memory_space<vmem>>, vector<8x256xbf16>
    %c0_1 = arith.constant 0 : index
    %c0_2 = arith.constant 0 : index
    %1 = vector.load %arg2[%c0_1, %c0_2] : memref<256x512xbf16, #tpu.memory_space<vmem>>, vector<256x512xbf16>
    %cst = arith.constant dense<0.000000e+00> : vector<8x512xf32>
    %2 = tpu.matmul %0, %1, %cst {dimension_numbers = #tpu.dot_dimension_numbers<[1], [0], [0], [1], [0, 0, 1, 1], [], []>} : vector<8x256xbf16>, vector<256x512xbf16>, vector<8x512xf32> -> vector<8x512xf32>
    %c0_3 = arith.constant 0 : index
    %c0_4 = arith.constant 0 : index
    %3 = vector.load %arg3[%c0_3, %c0_4] : memref<1x512xf32, #tpu.memory_space<vmem>>, vector<1x512xf32>
    %4 = vector.broadcast %3 : vector<1x512xf32> to vector<8x512xf32>
    %5 = arith.addf %2, %4 : vector<8x512xf32>
    %c0_5 = arith.constant 0 : index
    %c0_6 = arith.constant 0 : index
    %6 = vector.load %arg9[%c0_5, %c0_6] : memref<8x512xf32, #tpu.memory_space<vmem>>, vector<8x512xf32>
    tpu.vector_store %arg9[%c0_5, %c0_6], %5 {strides = array<i32>} : memref<8x512xf32, #tpu.memory_space<vmem>>, vector<8x512xf32>,
    %cst_7 = arith.constant 0.000000e+00 : f32
    %7 = vector.broadcast %cst_7 : f32 to vector<1x128xf32>
    %cst_8 = arith.constant 0.000000e+00 : f32
    %8 = vector.broadcast %cst_8 : f32 to vector<1x128xf32>
    %c0_i32 = arith.constant 0 : i32
    %9 = arith.index_cast %c0_i32 : i32 to index
    %c0_9 = arith.constant 0 : index
    %10 = vector.load %arg9[%9, %c0_9] : memref<8x512xf32, #tpu.memory_space<vmem>>, vector<1x512xf32>
    %11 = arith.truncf %7 : vector<1x128xf32> to vector<1x128xbf16>
    %c0_10 = arith.constant 0 : index
    %c0_11 = arith.constant 0 : index
    %12 = vector.load %arg4[%c0_10, %c0_11] : memref<128x512xbf16, #tpu.memory_space<vmem>>, vector<128x512xbf16>
    %cst_12 = arith.constant dense<0.000000e+00> : vector<1x512xf32>
    %13 = tpu.matmul %11, %12, %cst_12 {dimension_numbers = #tpu.dot_dimension_numbers<[1], [0], [0], [1], [0, 0, 1, 1], [], []>} : vector<1x128xbf16>, vector<128x512xbf16>, vector<1x512xf32> -> vector<1x512xf32>
    %14 = arith.addf %10, %13 : vector<1x512xf32>
    %15 = vector.extract_strided_slice %14 {offsets = [0, 0], sizes = [1, 128], strides = [1, 1]} : vector<1x512xf32> to vector<1x128xf32>
    %16 = arith.negf %15 : vector<1x128xf32>
    %17 = math.exp %16 : vector<1x128xf32>
    %cst_13 = arith.constant 1.000000e+00 : f32
    %18 = vector.broadcast %cst_13 : f32 to vector<1x128xf32>
    %19 = arith.addf %18, %17 : vector<1x128xf32>
    %20 = arith.divf %18, %19 : vector<1x128xf32>
    %21 = vector.extract_strided_slice %14 {offsets = [0, 128], sizes = [1, 128], strides = [1, 1]} : vector<1x512xf32> to vector<1x128xf32>
    %22 = arith.negf %21 : vector<1x128xf32>
    %23 = math.exp %22 : vector<1x128xf32>
    %cst_14 = arith.constant 1.000000e+00 : f32
    %24 = vector.broadcast %cst_14 : f32 to vector<1x128xf32>
    %25 = arith.addf %24, %23 : vector<1x128xf32>
    %26 = arith.divf %24, %25 : vector<1x128xf32>
    %27 = vector.extract_strided_slice %14 {offsets = [0, 256], sizes = [1, 128], strides = [1, 1]} : vector<1x512xf32> to vector<1x128xf32>
    %28 = math.tanh %27 : vector<1x128xf32>
    %29 = vector.extract_strided_slice %14 {offsets = [0, 384], sizes = [1, 128], strides = [1, 1]} : vector<1x512xf32> to vector<1x128xf32>
    %30 = arith.negf %29 : vector<1x128xf32>
    %31 = math.exp %30 : vector<1x128xf32>
    %cst_15 = arith.constant 1.000000e+00 : f32
    %32 = vector.broadcast %cst_15 : f32 to vector<1x128xf32>
    %33 = arith.addf %32, %31 : vector<1x128xf32>
    %34 = arith.divf %32, %33 : vector<1x128xf32>
    %35 = arith.mulf %26, %8 : vector<1x128xf32>
    %36 = arith.mulf %20, %28 : vector<1x128xf32>
    %37 = arith.addf %35, %36 : vector<1x128xf32>
    %38 = math.tanh %37 : vector<1x128xf32>
    %39 = arith.mulf %34, %38 : vector<1x128xf32>
    %40 = arith.index_cast %c0_i32 : i32 to index
    %c0_16 = arith.constant 0 : index
    %41 = vector.load %arg10[%40, %c0_16] : memref<8x128xf32, #tpu.memory_space<vmem>>, vector<1x128xf32>
    tpu.vector_store %arg10[%40, %c0_16], %39 {strides = array<i32>} : memref<8x128xf32, #tpu.memory_space<vmem>>, vector<1x128xf32>,
    %c1_i32 = arith.constant 1 : i32
    %42 = arith.index_cast %c1_i32 : i32 to index
    %c0_17 = arith.constant 0 : index
    %43 = vector.load %arg9[%42, %c0_17] : memref<8x512xf32, #tpu.memory_space<vmem>>, vector<1x512xf32>
    %44 = arith.truncf %39 : vector<1x128xf32> to vector<1x128xbf16>
    %c0_18 = arith.constant 0 : index
    %c0_19 = arith.constant 0 : index
    %45 = vector.load %arg4[%c0_18, %c0_19] : memref<128x512xbf16, #tpu.memory_space<vmem>>, vector<128x512xbf16>
    %cst_20 = arith.constant dense<0.000000e+00> : vector<1x512xf32>
    %46 = tpu.matmul %44, %45, %cst_20 {dimension_numbers = #tpu.dot_dimension_numbers<[1], [0], [0], [1], [0, 0, 1, 1], [], []>} : vector<1x128xbf16>, vector<128x512xbf16>, vector<1x512xf32> -> vector<1x512xf32>
    %47 = arith.addf %43, %46 : vector<1x512xf32>
    %48 = vector.extract_strided_slice %47 {offsets = [0, 0], sizes = [1, 128], strides = [1, 1]} : vector<1x512xf32> to vector<1x128xf32>
    %49 = arith.negf %48 : vector<1x128xf32>
    %50 = math.exp %49 : vector<1x128xf32>
    %cst_21 = arith.constant 1.000000e+00 : f32
    %51 = vector.broadcast %cst_21 : f32 to vector<1x128xf32>
    %52 = arith.addf %51, %50 : vector<1x128xf32>
    %53 = arith.divf %51, %52 : vector<1x128xf32>
    %54 = vector.extract_strided_slice %47 {offsets = [0, 128], sizes = [1, 128], strides = [1, 1]} : vector<1x512xf32> to vector<1x128xf32>
    %55 = arith.negf %54 : vector<1x128xf32>
    %56 = math.exp %55 : vector<1x128xf32>
    %cst_22 = arith.constant 1.000000e+00 : f32
    %57 = vector.broadcast %cst_22 : f32 to vector<1x128xf32>
    %58 = arith.addf %57, %56 : vector<1x128xf32>
    %59 = arith.divf %57, %58 : vector<1x128xf32>
    %60 = vector.extract_strided_slice %47 {offsets = [0, 256], sizes = [1, 128], strides = [1, 1]} : vector<1x512xf32> to vector<1x128xf32>
    %61 = math.tanh %60 : vector<1x128xf32>
    %62 = vector.extract_strided_slice %47 {offsets = [0, 384], sizes = [1, 128], strides = [1, 1]} : vector<1x512xf32> to vector<1x128xf32>
    %63 = arith.negf %62 : vector<1x128xf32>
    %64 = math.exp %63 : vector<1x128xf32>
    %cst_23 = arith.constant 1.000000e+00 : f32
    %65 = vector.broadcast %cst_23 : f32 to vector<1x128xf32>
    %66 = arith.addf %65, %64 : vector<1x128xf32>
    %67 = arith.divf %65, %66 : vector<1x128xf32>
    %68 = arith.mulf %59, %37 : vector<1x128xf32>
    %69 = arith.mulf %53, %61 : vector<1x128xf32>
    %70 = arith.addf %68, %69 : vector<1x128xf32>
    %71 = math.tanh %70 : vector<1x128xf32>
    %72 = arith.mulf %67, %71 : vector<1x128xf32>
    %73 = arith.index_cast %c1_i32 : i32 to index
    %c0_24 = arith.constant 0 : index
    %74 = vector.load %arg10[%73, %c0_24] : memref<8x128xf32, #tpu.memory_space<vmem>>, vector<1x128xf32>
    tpu.vector_store %arg10[%73, %c0_24], %72 {strides = array<i32>} : memref<8x128xf32, #tpu.memory_space<vmem>>, vector<1x128xf32>,
    %c2_i32 = arith.constant 2 : i32
    %75 = arith.index_cast %c2_i32 : i32 to index
    %c0_25 = arith.constant 0 : index
    %76 = vector.load %arg9[%75, %c0_25] : memref<8x512xf32, #tpu.memory_space<vmem>>, vector<1x512xf32>
    %77 = arith.truncf %72 : vector<1x128xf32> to vector<1x128xbf16>
    %c0_26 = arith.constant 0 : index
    %c0_27 = arith.constant 0 : index
    %78 = vector.load %arg4[%c0_26, %c0_27] : memref<128x512xbf16, #tpu.memory_space<vmem>>, vector<128x512xbf16>
    %cst_28 = arith.constant dense<0.000000e+00> : vector<1x512xf32>
    %79 = tpu.matmul %77, %78, %cst_28 {dimension_numbers = #tpu.dot_dimension_numbers<[1], [0], [0], [1], [0, 0, 1, 1], [], []>} : vector<1x128xbf16>, vector<128x512xbf16>, vector<1x512xf32> -> vector<1x512xf32>
    %80 = arith.addf %76, %79 : vector<1x512xf32>
    %81 = vector.extract_strided_slice %80 {offsets = [0, 0], sizes = [1, 128], strides = [1, 1]} : vector<1x512xf32> to vector<1x128xf32>
    %82 = arith.negf %81 : vector<1x128xf32>
    %83 = math.exp %82 : vector<1x128xf32>
    %cst_29 = arith.constant 1.000000e+00 : f32
    %84 = vector.broadcast %cst_29 : f32 to vector<1x128xf32>
    %85 = arith.addf %84, %83 : vector<1x128xf32>
    %86 = arith.divf %84, %85 : vector<1x128xf32>
    %87 = vector.extract_strided_slice %80 {offsets = [0, 128], sizes = [1, 128], strides = [1, 1]} : vector<1x512xf32> to vector<1x128xf32>
    %88 = arith.negf %87 : vector<1x128xf32>
    %89 = math.exp %88 : vector<1x128xf32>
    %cst_30 = arith.constant 1.000000e+00 : f32
    %90 = vector.broadcast %cst_30 : f32 to vector<1x128xf32>
    %91 = arith.addf %90, %89 : vector<1x128xf32>
    %92 = arith.divf %90, %91 : vector<1x128xf32>
    %93 = vector.extract_strided_slice %80 {offsets = [0, 256], sizes = [1, 128], strides = [1, 1]} : vector<1x512xf32> to vector<1x128xf32>
    %94 = math.tanh %93 : vector<1x128xf32>
    %95 = vector.extract_strided_slice %80 {offsets = [0, 384], sizes = [1, 128], strides = [1, 1]} : vector<1x512xf32> to vector<1x128xf32>
    %96 = arith.negf %95 : vector<1x128xf32>
    %97 = math.exp %96 : vector<1x128xf32>
    %cst_31 = arith.constant 1.000000e+00 : f32
    %98 = vector.broadcast %cst_31 : f32 to vector<1x128xf32>
    %99 = arith.addf %98, %97 : vector<1x128xf32>
    %100 = arith.divf %98, %99 : vector<1x128xf32>
    %101 = arith.mulf %92, %70 : vector<1x128xf32>
    %102 = arith.mulf %86, %94 : vector<1x128xf32>
    %103 = arith.addf %101, %102 : vector<1x128xf32>
    %104 = math.tanh %103 : vector<1x128xf32>
    %105 = arith.mulf %100, %104 : vector<1x128xf32>
    %106 = arith.index_cast %c2_i32 : i32 to index
    %c0_32 = arith.constant 0 : index
    %107 = vector.load %arg10[%106, %c0_32] : memref<8x128xf32, #tpu.memory_space<vmem>>, vector<1x128xf32>
    tpu.vector_store %arg10[%106, %c0_32], %105 {strides = array<i32>} : memref<8x128xf32, #tpu.memory_space<vmem>>, vector<1x128xf32>,
    %c3_i32 = arith.constant 3 : i32
    %108 = arith.index_cast %c3_i32 : i32 to index
    %c0_33 = arith.constant 0 : index
    %109 = vector.load %arg9[%108, %c0_33] : memref<8x512xf32, #tpu.memory_space<vmem>>, vector<1x512xf32>
    %110 = arith.truncf %105 : vector<1x128xf32> to vector<1x128xbf16>
    %c0_34 = arith.constant 0 : index
    %c0_35 = arith.constant 0 : index
    %111 = vector.load %arg4[%c0_34, %c0_35] : memref<128x512xbf16, #tpu.memory_space<vmem>>, vector<128x512xbf16>
    %cst_36 = arith.constant dense<0.000000e+00> : vector<1x512xf32>
    %112 = tpu.matmul %110, %111, %cst_36 {dimension_numbers = #tpu.dot_dimension_numbers<[1], [0], [0], [1], [0, 0, 1, 1], [], []>} : vector<1x128xbf16>, vector<128x512xbf16>, vector<1x512xf32> -> vector<1x512xf32>
    %113 = arith.addf %109, %112 : vector<1x512xf32>
    %114 = vector.extract_strided_slice %113 {offsets = [0, 0], sizes = [1, 128], strides = [1, 1]} : vector<1x512xf32> to vector<1x128xf32>
    %115 = arith.negf %114 : vector<1x128xf32>
    %116 = math.exp %115 : vector<1x128xf32>
    %cst_37 = arith.constant 1.000000e+00 : f32
    %117 = vector.broadcast %cst_37 : f32 to vector<1x128xf32>
    %118 = arith.addf %117, %116 : vector<1x128xf32>
    %119 = arith.divf %117, %118 : vector<1x128xf32>
    %120 = vector.extract_strided_slice %113 {offsets = [0, 128], sizes = [1, 128], strides = [1, 1]} : vector<1x512xf32> to vector<1x128xf32>
    %121 = arith.negf %120 : vector<1x128xf32>
    %122 = math.exp %121 : vector<1x128xf32>
    %cst_38 = arith.constant 1.000000e+00 : f32
    %123 = vector.broadcast %cst_38 : f32 to vector<1x128xf32>
    %124 = arith.addf %123, %122 : vector<1x128xf32>
    %125 = arith.divf %123, %124 : vector<1x128xf32>
    %126 = vector.extract_strided_slice %113 {offsets = [0, 256], sizes = [1, 128], strides = [1, 1]} : vector<1x512xf32> to vector<1x128xf32>
    %127 = math.tanh %126 : vector<1x128xf32>
    %128 = vector.extract_strided_slice %113 {offsets = [0, 384], sizes = [1, 128], strides = [1, 1]} : vector<1x512xf32> to vector<1x128xf32>
    %129 = arith.negf %128 : vector<1x128xf32>
    %130 = math.exp %129 : vector<1x128xf32>
    %cst_39 = arith.constant 1.000000e+00 : f32
    %131 = vector.broadcast %cst_39 : f32 to vector<1x128xf32>
    %132 = arith.addf %131, %130 : vector<1x128xf32>
    %133 = arith.divf %131, %132 : vector<1x128xf32>
    %134 = arith.mulf %125, %103 : vector<1x128xf32>
    %135 = arith.mulf %119, %127 : vector<1x128xf32>
    %136 = arith.addf %134, %135 : vector<1x128xf32>
    %137 = math.tanh %136 : vector<1x128xf32>
    %138 = arith.mulf %133, %137 : vector<1x128xf32>
    %139 = arith.index_cast %c3_i32 : i32 to index
    %c0_40 = arith.constant 0 : index
    %140 = vector.load %arg10[%139, %c0_40] : memref<8x128xf32, #tpu.memory_space<vmem>>, vector<1x128xf32>
    tpu.vector_store %arg10[%139, %c0_40], %138 {strides = array<i32>} : memref<8x128xf32, #tpu.memory_space<vmem>>, vector<1x128xf32>,
    %c4_i32 = arith.constant 4 : i32
    %141 = arith.index_cast %c4_i32 : i32 to index
    %c0_41 = arith.constant 0 : index
    %142 = vector.load %arg9[%141, %c0_41] : memref<8x512xf32, #tpu.memory_space<vmem>>, vector<1x512xf32>
    %143 = arith.truncf %138 : vector<1x128xf32> to vector<1x128xbf16>
    %c0_42 = arith.constant 0 : index
    %c0_43 = arith.constant 0 : index
    %144 = vector.load %arg4[%c0_42, %c0_43] : memref<128x512xbf16, #tpu.memory_space<vmem>>, vector<128x512xbf16>
    %cst_44 = arith.constant dense<0.000000e+00> : vector<1x512xf32>
    %145 = tpu.matmul %143, %144, %cst_44 {dimension_numbers = #tpu.dot_dimension_numbers<[1], [0], [0], [1], [0, 0, 1, 1], [], []>} : vector<1x128xbf16>, vector<128x512xbf16>, vector<1x512xf32> -> vector<1x512xf32>
    %146 = arith.addf %142, %145 : vector<1x512xf32>
    %147 = vector.extract_strided_slice %146 {offsets = [0, 0], sizes = [1, 128], strides = [1, 1]} : vector<1x512xf32> to vector<1x128xf32>
    %148 = arith.negf %147 : vector<1x128xf32>
    %149 = math.exp %148 : vector<1x128xf32>
    %cst_45 = arith.constant 1.000000e+00 : f32
    %150 = vector.broadcast %cst_45 : f32 to vector<1x128xf32>
    %151 = arith.addf %150, %149 : vector<1x128xf32>
    %152 = arith.divf %150, %151 : vector<1x128xf32>
    %153 = vector.extract_strided_slice %146 {offsets = [0, 128], sizes = [1, 128], strides = [1, 1]} : vector<1x512xf32> to vector<1x128xf32>
    %154 = arith.negf %153 : vector<1x128xf32>
    %155 = math.exp %154 : vector<1x128xf32>
    %cst_46 = arith.constant 1.000000e+00 : f32
    %156 = vector.broadcast %cst_46 : f32 to vector<1x128xf32>
    %157 = arith.addf %156, %155 : vector<1x128xf32>
    %158 = arith.divf %156, %157 : vector<1x128xf32>
    %159 = vector.extract_strided_slice %146 {offsets = [0, 256], sizes = [1, 128], strides = [1, 1]} : vector<1x512xf32> to vector<1x128xf32>
    %160 = math.tanh %159 : vector<1x128xf32>
    %161 = vector.extract_strided_slice %146 {offsets = [0, 384], sizes = [1, 128], strides = [1, 1]} : vector<1x512xf32> to vector<1x128xf32>
    %162 = arith.negf %161 : vector<1x128xf32>
    %163 = math.exp %162 : vector<1x128xf32>
    %cst_47 = arith.constant 1.000000e+00 : f32
    %164 = vector.broadcast %cst_47 : f32 to vector<1x128xf32>
    %165 = arith.addf %164, %163 : vector<1x128xf32>
    %166 = arith.divf %164, %165 : vector<1x128xf32>
    %167 = arith.mulf %158, %136 : vector<1x128xf32>
    %168 = arith.mulf %152, %160 : vector<1x128xf32>
    %169 = arith.addf %167, %168 : vector<1x128xf32>
    %170 = math.tanh %169 : vector<1x128xf32>
    %171 = arith.mulf %166, %170 : vector<1x128xf32>
    %172 = arith.index_cast %c4_i32 : i32 to index
    %c0_48 = arith.constant 0 : index
    %173 = vector.load %arg10[%172, %c0_48] : memref<8x128xf32, #tpu.memory_space<vmem>>, vector<1x128xf32>
    tpu.vector_store %arg10[%172, %c0_48], %171 {strides = array<i32>} : memref<8x128xf32, #tpu.memory_space<vmem>>, vector<1x128xf32>,
    %c5_i32 = arith.constant 5 : i32
    %174 = arith.index_cast %c5_i32 : i32 to index
    %c0_49 = arith.constant 0 : index
    %175 = vector.load %arg9[%174, %c0_49] : memref<8x512xf32, #tpu.memory_space<vmem>>, vector<1x512xf32>
    %176 = arith.truncf %171 : vector<1x128xf32> to vector<1x128xbf16>
    %c0_50 = arith.constant 0 : index
    %c0_51 = arith.constant 0 : index
    %177 = vector.load %arg4[%c0_50, %c0_51] : memref<128x512xbf16, #tpu.memory_space<vmem>>, vector<128x512xbf16>
    %cst_52 = arith.constant dense<0.000000e+00> : vector<1x512xf32>
    %178 = tpu.matmul %176, %177, %cst_52 {dimension_numbers = #tpu.dot_dimension_numbers<[1], [0], [0], [1], [0, 0, 1, 1], [], []>} : vector<1x128xbf16>, vector<128x512xbf16>, vector<1x512xf32> -> vector<1x512xf32>
    %179 = arith.addf %175, %178 : vector<1x512xf32>
    %180 = vector.extract_strided_slice %179 {offsets = [0, 0], sizes = [1, 128], strides = [1, 1]} : vector<1x512xf32> to vector<1x128xf32>
    %181 = arith.negf %180 : vector<1x128xf32>
    %182 = math.exp %181 : vector<1x128xf32>
    %cst_53 = arith.constant 1.000000e+00 : f32
    %183 = vector.broadcast %cst_53 : f32 to vector<1x128xf32>
    %184 = arith.addf %183, %182 : vector<1x128xf32>
    %185 = arith.divf %183, %184 : vector<1x128xf32>
    %186 = vector.extract_strided_slice %179 {offsets = [0, 128], sizes = [1, 128], strides = [1, 1]} : vector<1x512xf32> to vector<1x128xf32>
    %187 = arith.negf %186 : vector<1x128xf32>
    %188 = math.exp %187 : vector<1x128xf32>
    %cst_54 = arith.constant 1.000000e+00 : f32
    %189 = vector.broadcast %cst_54 : f32 to vector<1x128xf32>
    %190 = arith.addf %189, %188 : vector<1x128xf32>
    %191 = arith.divf %189, %190 : vector<1x128xf32>
    %192 = vector.extract_strided_slice %179 {offsets = [0, 256], sizes = [1, 128], strides = [1, 1]} : vector<1x512xf32> to vector<1x128xf32>
    %193 = math.tanh %192 : vector<1x128xf32>
    %194 = vector.extract_strided_slice %179 {offsets = [0, 384], sizes = [1, 128], strides = [1, 1]} : vector<1x512xf32> to vector<1x128xf32>
    %195 = arith.negf %194 : vector<1x128xf32>
    %196 = math.exp %195 : vector<1x128xf32>
    %cst_55 = arith.constant 1.000000e+00 : f32
    %197 = vector.broadcast %cst_55 : f32 to vector<1x128xf32>
    %198 = arith.addf %197, %196 : vector<1x128xf32>
    %199 = arith.divf %197, %198 : vector<1x128xf32>
    %200 = arith.mulf %191, %169 : vector<1x128xf32>
    %201 = arith.mulf %185, %193 : vector<1x128xf32>
    %202 = arith.addf %200, %201 : vector<1x128xf32>
    %203 = math.tanh %202 : vector<1x128xf32>
    %204 = arith.mulf %199, %203 : vector<1x128xf32>
    %205 = arith.index_cast %c5_i32 : i32 to index
    %c0_56 = arith.constant 0 : index
    %206 = vector.load %arg10[%205, %c0_56] : memref<8x128xf32, #tpu.memory_space<vmem>>, vector<1x128xf32>
    tpu.vector_store %arg10[%205, %c0_56], %204 {strides = array<i32>} : memref<8x128xf32, #tpu.memory_space<vmem>>, vector<1x128xf32>,
    %c6_i32 = arith.constant 6 : i32
    %207 = arith.index_cast %c6_i32 : i32 to index
    %c0_57 = arith.constant 0 : index
    %208 = vector.load %arg9[%207, %c0_57] : memref<8x512xf32, #tpu.memory_space<vmem>>, vector<1x512xf32>
    %209 = arith.truncf %204 : vector<1x128xf32> to vector<1x128xbf16>
    %c0_58 = arith.constant 0 : index
    %c0_59 = arith.constant 0 : index
    %210 = vector.load %arg4[%c0_58, %c0_59] : memref<128x512xbf16, #tpu.memory_space<vmem>>, vector<128x512xbf16>
    %cst_60 = arith.constant dense<0.000000e+00> : vector<1x512xf32>
    %211 = tpu.matmul %209, %210, %cst_60 {dimension_numbers = #tpu.dot_dimension_numbers<[1], [0], [0], [1], [0, 0, 1, 1], [], []>} : vector<1x128xbf16>, vector<128x512xbf16>, vector<1x512xf32> -> vector<1x512xf32>
    %212 = arith.addf %208, %211 : vector<1x512xf32>
    %213 = vector.extract_strided_slice %212 {offsets = [0, 0], sizes = [1, 128], strides = [1, 1]} : vector<1x512xf32> to vector<1x128xf32>
    %214 = arith.negf %213 : vector<1x128xf32>
    %215 = math.exp %214 : vector<1x128xf32>
    %cst_61 = arith.constant 1.000000e+00 : f32
    %216 = vector.broadcast %cst_61 : f32 to vector<1x128xf32>
    %217 = arith.addf %216, %215 : vector<1x128xf32>
    %218 = arith.divf %216, %217 : vector<1x128xf32>
    %219 = vector.extract_strided_slice %212 {offsets = [0, 128], sizes = [1, 128], strides = [1, 1]} : vector<1x512xf32> to vector<1x128xf32>
    %220 = arith.negf %219 : vector<1x128xf32>
    %221 = math.exp %220 : vector<1x128xf32>
    %cst_62 = arith.constant 1.000000e+00 : f32
    %222 = vector.broadcast %cst_62 : f32 to vector<1x128xf32>
    %223 = arith.addf %222, %221 : vector<1x128xf32>
    %224 = arith.divf %222, %223 : vector<1x128xf32>
    %225 = vector.extract_strided_slice %212 {offsets = [0, 256], sizes = [1, 128], strides = [1, 1]} : vector<1x512xf32> to vector<1x128xf32>
    %226 = math.tanh %225 : vector<1x128xf32>
    %227 = vector.extract_strided_slice %212 {offsets = [0, 384], sizes = [1, 128], strides = [1, 1]} : vector<1x512xf32> to vector<1x128xf32>
    %228 = arith.negf %227 : vector<1x128xf32>
    %229 = math.exp %228 : vector<1x128xf32>
    %cst_63 = arith.constant 1.000000e+00 : f32
    %230 = vector.broadcast %cst_63 : f32 to vector<1x128xf32>
    %231 = arith.addf %230, %229 : vector<1x128xf32>
    %232 = arith.divf %230, %231 : vector<1x128xf32>
    %233 = arith.mulf %224, %202 : vector<1x128xf32>
    %234 = arith.mulf %218, %226 : vector<1x128xf32>
    %235 = arith.addf %233, %234 : vector<1x128xf32>
    %236 = math.tanh %235 : vector<1x128xf32>
    %237 = arith.mulf %232, %236 : vector<1x128xf32>
    %238 = arith.index_cast %c6_i32 : i32 to index
    %c0_64 = arith.constant 0 : index
    %239 = vector.load %arg10[%238, %c0_64] : memref<8x128xf32, #tpu.memory_space<vmem>>, vector<1x128xf32>
    tpu.vector_store %arg10[%238, %c0_64], %237 {strides = array<i32>} : memref<8x128xf32, #tpu.memory_space<vmem>>, vector<1x128xf32>,
    %c7_i32 = arith.constant 7 : i32
    %240 = arith.index_cast %c7_i32 : i32 to index
    %c0_65 = arith.constant 0 : index
    %241 = vector.load %arg9[%240, %c0_65] : memref<8x512xf32, #tpu.memory_space<vmem>>, vector<1x512xf32>
    %242 = arith.truncf %237 : vector<1x128xf32> to vector<1x128xbf16>
    %c0_66 = arith.constant 0 : index
    %c0_67 = arith.constant 0 : index
    %243 = vector.load %arg4[%c0_66, %c0_67] : memref<128x512xbf16, #tpu.memory_space<vmem>>, vector<128x512xbf16>
    %cst_68 = arith.constant dense<0.000000e+00> : vector<1x512xf32>
    %244 = tpu.matmul %242, %243, %cst_68 {dimension_numbers = #tpu.dot_dimension_numbers<[1], [0], [0], [1], [0, 0, 1, 1], [], []>} : vector<1x128xbf16>, vector<128x512xbf16>, vector<1x512xf32> -> vector<1x512xf32>
    %245 = arith.addf %241, %244 : vector<1x512xf32>
    %246 = vector.extract_strided_slice %245 {offsets = [0, 0], sizes = [1, 128], strides = [1, 1]} : vector<1x512xf32> to vector<1x128xf32>
    %247 = arith.negf %246 : vector<1x128xf32>
    %248 = math.exp %247 : vector<1x128xf32>
    %cst_69 = arith.constant 1.000000e+00 : f32
    %249 = vector.broadcast %cst_69 : f32 to vector<1x128xf32>
    %250 = arith.addf %249, %248 : vector<1x128xf32>
    %251 = arith.divf %249, %250 : vector<1x128xf32>
    %252 = vector.extract_strided_slice %245 {offsets = [0, 128], sizes = [1, 128], strides = [1, 1]} : vector<1x512xf32> to vector<1x128xf32>
    %253 = arith.negf %252 : vector<1x128xf32>
    %254 = math.exp %253 : vector<1x128xf32>
    %cst_70 = arith.constant 1.000000e+00 : f32
    %255 = vector.broadcast %cst_70 : f32 to vector<1x128xf32>
    %256 = arith.addf %255, %254 : vector<1x128xf32>
    %257 = arith.divf %255, %256 : vector<1x128xf32>
    %258 = vector.extract_strided_slice %245 {offsets = [0, 256], sizes = [1, 128], strides = [1, 1]} : vector<1x512xf32> to vector<1x128xf32>
    %259 = math.tanh %258 : vector<1x128xf32>
    %260 = vector.extract_strided_slice %245 {offsets = [0, 384], sizes = [1, 128], strides = [1, 1]} : vector<1x512xf32> to vector<1x128xf32>
    %261 = arith.negf %260 : vector<1x128xf32>
    %262 = math.exp %261 : vector<1x128xf32>
    %cst_71 = arith.constant 1.000000e+00 : f32
    %263 = vector.broadcast %cst_71 : f32 to vector<1x128xf32>
    %264 = arith.addf %263, %262 : vector<1x128xf32>
    %265 = arith.divf %263, %264 : vector<1x128xf32>
    %266 = arith.mulf %257, %235 : vector<1x128xf32>
    %267 = arith.mulf %251, %259 : vector<1x128xf32>
    %268 = arith.addf %266, %267 : vector<1x128xf32>
    %269 = math.tanh %268 : vector<1x128xf32>
    %270 = arith.mulf %265, %269 : vector<1x128xf32>
    %271 = arith.index_cast %c7_i32 : i32 to index
    %c0_72 = arith.constant 0 : index
    %272 = vector.load %arg10[%271, %c0_72] : memref<8x128xf32, #tpu.memory_space<vmem>>, vector<1x128xf32>
    tpu.vector_store %arg10[%271, %c0_72], %270 {strides = array<i32>} : memref<8x128xf32, #tpu.memory_space<vmem>>, vector<1x128xf32>,
    %c8_i32 = arith.constant 8 : i32
    %c0_73 = arith.constant 0 : index
    %c0_74 = arith.constant 0 : index
    %273 = vector.load %arg10[%c0_73, %c0_74] : memref<8x128xf32, #tpu.memory_space<vmem>>, vector<8x128xf32>
    %274 = arith.truncf %273 : vector<8x128xf32> to vector<8x128xbf16>
    %c0_75 = arith.constant 0 : index
    %c0_76 = arith.constant 0 : index
    %275 = vector.load %arg5[%c0_75, %c0_76] : memref<128x1024xbf16, #tpu.memory_space<vmem>>, vector<128x1024xbf16>
    %cst_77 = arith.constant dense<0.000000e+00> : vector<8x1024xf32>
    %276 = tpu.matmul %274, %275, %cst_77 {dimension_numbers = #tpu.dot_dimension_numbers<[1], [0], [0], [1], [0, 0, 1, 1], [], []>} : vector<8x128xbf16>, vector<128x1024xbf16>, vector<8x1024xf32> -> vector<8x1024xf32>
    %c0_78 = arith.constant 0 : index
    %c0_79 = arith.constant 0 : index
    %277 = vector.load %arg7[%c0_78, %c0_79] : memref<1x1024xf32, #tpu.memory_space<vmem>>, vector<1x1024xf32>
    %278 = vector.broadcast %277 : vector<1x1024xf32> to vector<8x1024xf32>
    %279 = arith.addf %276, %278 : vector<8x1024xf32>
    %c0_80 = arith.constant 0 : index
    %c0_81 = arith.constant 0 : index
    %280 = vector.load %arg11[%c0_80, %c0_81] : memref<8x1024xf32, #tpu.memory_space<vmem>>, vector<8x1024xf32>
    tpu.vector_store %arg11[%c0_80, %c0_81], %279 {strides = array<i32>} : memref<8x1024xf32, #tpu.memory_space<vmem>>, vector<8x1024xf32>,
    %cst_82 = arith.constant 0.000000e+00 : f32
    %281 = vector.broadcast %cst_82 : f32 to vector<1x256xf32>
    %cst_83 = arith.constant 0.000000e+00 : f32
    %282 = vector.broadcast %cst_83 : f32 to vector<1x256xf32>
    %c0_i32_84 = arith.constant 0 : i32
    %283 = arith.index_cast %c0_i32_84 : i32 to index
    %c0_85 = arith.constant 0 : index
    %284 = vector.load %arg11[%283, %c0_85] : memref<8x1024xf32, #tpu.memory_space<vmem>>, vector<1x1024xf32>
    %285 = arith.truncf %281 : vector<1x256xf32> to vector<1x256xbf16>
    %c0_86 = arith.constant 0 : index
    %c0_87 = arith.constant 0 : index
    %286 = vector.load %arg6[%c0_86, %c0_87] : memref<256x1024xbf16, #tpu.memory_space<vmem>>, vector<256x1024xbf16>
    %cst_88 = arith.constant dense<0.000000e+00> : vector<1x1024xf32>
    %287 = tpu.matmul %285, %286, %cst_88 {dimension_numbers = #tpu.dot_dimension_numbers<[1], [0], [0], [1], [0, 0, 1, 1], [], []>} : vector<1x256xbf16>, vector<256x1024xbf16>, vector<1x1024xf32> -> vector<1x1024xf32>
    %288 = arith.addf %284, %287 : vector<1x1024xf32>
    %289 = vector.extract_strided_slice %288 {offsets = [0, 0], sizes = [1, 256], strides = [1, 1]} : vector<1x1024xf32> to vector<1x256xf32>
    %290 = arith.negf %289 : vector<1x256xf32>
    %291 = math.exp %290 : vector<1x256xf32>
    %cst_89 = arith.constant 1.000000e+00 : f32
    %292 = vector.broadcast %cst_89 : f32 to vector<1x256xf32>
    %293 = arith.addf %292, %291 : vector<1x256xf32>
    %294 = arith.divf %292, %293 : vector<1x256xf32>
    %295 = vector.extract_strided_slice %288 {offsets = [0, 256], sizes = [1, 256], strides = [1, 1]} : vector<1x1024xf32> to vector<1x256xf32>
    %296 = arith.negf %295 : vector<1x256xf32>
    %297 = math.exp %296 : vector<1x256xf32>
    %cst_90 = arith.constant 1.000000e+00 : f32
    %298 = vector.broadcast %cst_90 : f32 to vector<1x256xf32>
    %299 = arith.addf %298, %297 : vector<1x256xf32>
    %300 = arith.divf %298, %299 : vector<1x256xf32>
    %301 = vector.extract_strided_slice %288 {offsets = [0, 512], sizes = [1, 256], strides = [1, 1]} : vector<1x1024xf32> to vector<1x256xf32>
    %302 = math.tanh %301 : vector<1x256xf32>
    %303 = vector.extract_strided_slice %288 {offsets = [0, 768], sizes = [1, 256], strides = [1, 1]} : vector<1x1024xf32> to vector<1x256xf32>
    %304 = arith.negf %303 : vector<1x256xf32>
    %305 = math.exp %304 : vector<1x256xf32>
    %cst_91 = arith.constant 1.000000e+00 : f32
    %306 = vector.broadcast %cst_91 : f32 to vector<1x256xf32>
    %307 = arith.addf %306, %305 : vector<1x256xf32>
    %308 = arith.divf %306, %307 : vector<1x256xf32>
    %309 = arith.mulf %300, %282 : vector<1x256xf32>
    %310 = arith.mulf %294, %302 : vector<1x256xf32>
    %311 = arith.addf %309, %310 : vector<1x256xf32>
    %312 = math.tanh %311 : vector<1x256xf32>
    %313 = arith.mulf %308, %312 : vector<1x256xf32>
    %314 = arith.index_cast %c0_i32_84 : i32 to index
    %c0_92 = arith.constant 0 : index
    %315 = vector.load %arg12[%314, %c0_92] : memref<8x256xf32, #tpu.memory_space<vmem>>, vector<1x256xf32>
    tpu.vector_store %arg12[%314, %c0_92], %313 {strides = array<i32>} : memref<8x256xf32, #tpu.memory_space<vmem>>, vector<1x256xf32>,
    %c1_i32_93 = arith.constant 1 : i32
    %316 = arith.index_cast %c1_i32_93 : i32 to index
    %c0_94 = arith.constant 0 : index
    %317 = vector.load %arg11[%316, %c0_94] : memref<8x1024xf32, #tpu.memory_space<vmem>>, vector<1x1024xf32>
    %318 = arith.truncf %313 : vector<1x256xf32> to vector<1x256xbf16>
    %c0_95 = arith.constant 0 : index
    %c0_96 = arith.constant 0 : index
    %319 = vector.load %arg6[%c0_95, %c0_96] : memref<256x1024xbf16, #tpu.memory_space<vmem>>, vector<256x1024xbf16>
    %cst_97 = arith.constant dense<0.000000e+00> : vector<1x1024xf32>
    %320 = tpu.matmul %318, %319, %cst_97 {dimension_numbers = #tpu.dot_dimension_numbers<[1], [0], [0], [1], [0, 0, 1, 1], [], []>} : vector<1x256xbf16>, vector<256x1024xbf16>, vector<1x1024xf32> -> vector<1x1024xf32>
    %321 = arith.addf %317, %320 : vector<1x1024xf32>
    %322 = vector.extract_strided_slice %321 {offsets = [0, 0], sizes = [1, 256], strides = [1, 1]} : vector<1x1024xf32> to vector<1x256xf32>
    %323 = arith.negf %322 : vector<1x256xf32>
    %324 = math.exp %323 : vector<1x256xf32>
    %cst_98 = arith.constant 1.000000e+00 : f32
    %325 = vector.broadcast %cst_98 : f32 to vector<1x256xf32>
    %326 = arith.addf %325, %324 : vector<1x256xf32>
    %327 = arith.divf %325, %326 : vector<1x256xf32>
    %328 = vector.extract_strided_slice %321 {offsets = [0, 256], sizes = [1, 256], strides = [1, 1]} : vector<1x1024xf32> to vector<1x256xf32>
    %329 = arith.negf %328 : vector<1x256xf32>
    %330 = math.exp %329 : vector<1x256xf32>
    %cst_99 = arith.constant 1.000000e+00 : f32
    %331 = vector.broadcast %cst_99 : f32 to vector<1x256xf32>
    %332 = arith.addf %331, %330 : vector<1x256xf32>
    %333 = arith.divf %331, %332 : vector<1x256xf32>
    %334 = vector.extract_strided_slice %321 {offsets = [0, 512], sizes = [1, 256], strides = [1, 1]} : vector<1x1024xf32> to vector<1x256xf32>
    %335 = math.tanh %334 : vector<1x256xf32>
    %336 = vector.extract_strided_slice %321 {offsets = [0, 768], sizes = [1, 256], strides = [1, 1]} : vector<1x1024xf32> to vector<1x256xf32>
    %337 = arith.negf %336 : vector<1x256xf32>
    %338 = math.exp %337 : vector<1x256xf32>
    %cst_100 = arith.constant 1.000000e+00 : f32
    %339 = vector.broadcast %cst_100 : f32 to vector<1x256xf32>
    %340 = arith.addf %339, %338 : vector<1x256xf32>
    %341 = arith.divf %339, %340 : vector<1x256xf32>
    %342 = arith.mulf %333, %311 : vector<1x256xf32>
    %343 = arith.mulf %327, %335 : vector<1x256xf32>
    %344 = arith.addf %342, %343 : vector<1x256xf32>
    %345 = math.tanh %344 : vector<1x256xf32>
    %346 = arith.mulf %341, %345 : vector<1x256xf32>
    %347 = arith.index_cast %c1_i32_93 : i32 to index
    %c0_101 = arith.constant 0 : index
    %348 = vector.load %arg12[%347, %c0_101] : memref<8x256xf32, #tpu.memory_space<vmem>>, vector<1x256xf32>
    tpu.vector_store %arg12[%347, %c0_101], %346 {strides = array<i32>} : memref<8x256xf32, #tpu.memory_space<vmem>>, vector<1x256xf32>,
    %c2_i32_102 = arith.constant 2 : i32
    %349 = arith.index_cast %c2_i32_102 : i32 to index
    %c0_103 = arith.constant 0 : index
    %350 = vector.load %arg11[%349, %c0_103] : memref<8x1024xf32, #tpu.memory_space<vmem>>, vector<1x1024xf32>
    %351 = arith.truncf %346 : vector<1x256xf32> to vector<1x256xbf16>
    %c0_104 = arith.constant 0 : index
    %c0_105 = arith.constant 0 : index
    %352 = vector.load %arg6[%c0_104, %c0_105] : memref<256x1024xbf16, #tpu.memory_space<vmem>>, vector<256x1024xbf16>
    %cst_106 = arith.constant dense<0.000000e+00> : vector<1x1024xf32>
    %353 = tpu.matmul %351, %352, %cst_106 {dimension_numbers = #tpu.dot_dimension_numbers<[1], [0], [0], [1], [0, 0, 1, 1], [], []>} : vector<1x256xbf16>, vector<256x1024xbf16>, vector<1x1024xf32> -> vector<1x1024xf32>
    %354 = arith.addf %350, %353 : vector<1x1024xf32>
    %355 = vector.extract_strided_slice %354 {offsets = [0, 0], sizes = [1, 256], strides = [1, 1]} : vector<1x1024xf32> to vector<1x256xf32>
    %356 = arith.negf %355 : vector<1x256xf32>
    %357 = math.exp %356 : vector<1x256xf32>
    %cst_107 = arith.constant 1.000000e+00 : f32
    %358 = vector.broadcast %cst_107 : f32 to vector<1x256xf32>
    %359 = arith.addf %358, %357 : vector<1x256xf32>
    %360 = arith.divf %358, %359 : vector<1x256xf32>
    %361 = vector.extract_strided_slice %354 {offsets = [0, 256], sizes = [1, 256], strides = [1, 1]} : vector<1x1024xf32> to vector<1x256xf32>
    %362 = arith.negf %361 : vector<1x256xf32>
    %363 = math.exp %362 : vector<1x256xf32>
    %cst_108 = arith.constant 1.000000e+00 : f32
    %364 = vector.broadcast %cst_108 : f32 to vector<1x256xf32>
    %365 = arith.addf %364, %363 : vector<1x256xf32>
    %366 = arith.divf %364, %365 : vector<1x256xf32>
    %367 = vector.extract_strided_slice %354 {offsets = [0, 512], sizes = [1, 256], strides = [1, 1]} : vector<1x1024xf32> to vector<1x256xf32>
    %368 = math.tanh %367 : vector<1x256xf32>
    %369 = vector.extract_strided_slice %354 {offsets = [0, 768], sizes = [1, 256], strides = [1, 1]} : vector<1x1024xf32> to vector<1x256xf32>
    %370 = arith.negf %369 : vector<1x256xf32>
    %371 = math.exp %370 : vector<1x256xf32>
    %cst_109 = arith.constant 1.000000e+00 : f32
    %372 = vector.broadcast %cst_109 : f32 to vector<1x256xf32>
    %373 = arith.addf %372, %371 : vector<1x256xf32>
    %374 = arith.divf %372, %373 : vector<1x256xf32>
    %375 = arith.mulf %366, %344 : vector<1x256xf32>
    %376 = arith.mulf %360, %368 : vector<1x256xf32>
    %377 = arith.addf %375, %376 : vector<1x256xf32>
    %378 = math.tanh %377 : vector<1x256xf32>
    %379 = arith.mulf %374, %378 : vector<1x256xf32>
    %380 = arith.index_cast %c2_i32_102 : i32 to index
    %c0_110 = arith.constant 0 : index
    %381 = vector.load %arg12[%380, %c0_110] : memref<8x256xf32, #tpu.memory_space<vmem>>, vector<1x256xf32>
    tpu.vector_store %arg12[%380, %c0_110], %379 {strides = array<i32>} : memref<8x256xf32, #tpu.memory_space<vmem>>, vector<1x256xf32>,
    %c3_i32_111 = arith.constant 3 : i32
    %382 = arith.index_cast %c3_i32_111 : i32 to index
    %c0_112 = arith.constant 0 : index
    %383 = vector.load %arg11[%382, %c0_112] : memref<8x1024xf32, #tpu.memory_space<vmem>>, vector<1x1024xf32>
    %384 = arith.truncf %379 : vector<1x256xf32> to vector<1x256xbf16>
    %c0_113 = arith.constant 0 : index
    %c0_114 = arith.constant 0 : index
    %385 = vector.load %arg6[%c0_113, %c0_114] : memref<256x1024xbf16, #tpu.memory_space<vmem>>, vector<256x1024xbf16>
    %cst_115 = arith.constant dense<0.000000e+00> : vector<1x1024xf32>
    %386 = tpu.matmul %384, %385, %cst_115 {dimension_numbers = #tpu.dot_dimension_numbers<[1], [0], [0], [1], [0, 0, 1, 1], [], []>} : vector<1x256xbf16>, vector<256x1024xbf16>, vector<1x1024xf32> -> vector<1x1024xf32>
    %387 = arith.addf %383, %386 : vector<1x1024xf32>
    %388 = vector.extract_strided_slice %387 {offsets = [0, 0], sizes = [1, 256], strides = [1, 1]} : vector<1x1024xf32> to vector<1x256xf32>
    %389 = arith.negf %388 : vector<1x256xf32>
    %390 = math.exp %389 : vector<1x256xf32>
    %cst_116 = arith.constant 1.000000e+00 : f32
    %391 = vector.broadcast %cst_116 : f32 to vector<1x256xf32>
    %392 = arith.addf %391, %390 : vector<1x256xf32>
    %393 = arith.divf %391, %392 : vector<1x256xf32>
    %394 = vector.extract_strided_slice %387 {offsets = [0, 256], sizes = [1, 256], strides = [1, 1]} : vector<1x1024xf32> to vector<1x256xf32>
    %395 = arith.negf %394 : vector<1x256xf32>
    %396 = math.exp %395 : vector<1x256xf32>
    %cst_117 = arith.constant 1.000000e+00 : f32
    %397 = vector.broadcast %cst_117 : f32 to vector<1x256xf32>
    %398 = arith.addf %397, %396 : vector<1x256xf32>
    %399 = arith.divf %397, %398 : vector<1x256xf32>
    %400 = vector.extract_strided_slice %387 {offsets = [0, 512], sizes = [1, 256], strides = [1, 1]} : vector<1x1024xf32> to vector<1x256xf32>
    %401 = math.tanh %400 : vector<1x256xf32>
    %402 = vector.extract_strided_slice %387 {offsets = [0, 768], sizes = [1, 256], strides = [1, 1]} : vector<1x1024xf32> to vector<1x256xf32>
    %403 = arith.negf %402 : vector<1x256xf32>
    %404 = math.exp %403 : vector<1x256xf32>
    %cst_118 = arith.constant 1.000000e+00 : f32
    %405 = vector.broadcast %cst_118 : f32 to vector<1x256xf32>
    %406 = arith.addf %405, %404 : vector<1x256xf32>
    %407 = arith.divf %405, %406 : vector<1x256xf32>
    %408 = arith.mulf %399, %377 : vector<1x256xf32>
    %409 = arith.mulf %393, %401 : vector<1x256xf32>
    %410 = arith.addf %408, %409 : vector<1x256xf32>
    %411 = math.tanh %410 : vector<1x256xf32>
    %412 = arith.mulf %407, %411 : vector<1x256xf32>
    %413 = arith.index_cast %c3_i32_111 : i32 to index
    %c0_119 = arith.constant 0 : index
    %414 = vector.load %arg12[%413, %c0_119] : memref<8x256xf32, #tpu.memory_space<vmem>>, vector<1x256xf32>
    tpu.vector_store %arg12[%413, %c0_119], %412 {strides = array<i32>} : memref<8x256xf32, #tpu.memory_space<vmem>>, vector<1x256xf32>,
    %c4_i32_120 = arith.constant 4 : i32
    %415 = arith.index_cast %c4_i32_120 : i32 to index
    %c0_121 = arith.constant 0 : index
    %416 = vector.load %arg11[%415, %c0_121] : memref<8x1024xf32, #tpu.memory_space<vmem>>, vector<1x1024xf32>
    %417 = arith.truncf %412 : vector<1x256xf32> to vector<1x256xbf16>
    %c0_122 = arith.constant 0 : index
    %c0_123 = arith.constant 0 : index
    %418 = vector.load %arg6[%c0_122, %c0_123] : memref<256x1024xbf16, #tpu.memory_space<vmem>>, vector<256x1024xbf16>
    %cst_124 = arith.constant dense<0.000000e+00> : vector<1x1024xf32>
    %419 = tpu.matmul %417, %418, %cst_124 {dimension_numbers = #tpu.dot_dimension_numbers<[1], [0], [0], [1], [0, 0, 1, 1], [], []>} : vector<1x256xbf16>, vector<256x1024xbf16>, vector<1x1024xf32> -> vector<1x1024xf32>
    %420 = arith.addf %416, %419 : vector<1x1024xf32>
    %421 = vector.extract_strided_slice %420 {offsets = [0, 0], sizes = [1, 256], strides = [1, 1]} : vector<1x1024xf32> to vector<1x256xf32>
    %422 = arith.negf %421 : vector<1x256xf32>
    %423 = math.exp %422 : vector<1x256xf32>
    %cst_125 = arith.constant 1.000000e+00 : f32
    %424 = vector.broadcast %cst_125 : f32 to vector<1x256xf32>
    %425 = arith.addf %424, %423 : vector<1x256xf32>
    %426 = arith.divf %424, %425 : vector<1x256xf32>
    %427 = vector.extract_strided_slice %420 {offsets = [0, 256], sizes = [1, 256], strides = [1, 1]} : vector<1x1024xf32> to vector<1x256xf32>
    %428 = arith.negf %427 : vector<1x256xf32>
    %429 = math.exp %428 : vector<1x256xf32>
    %cst_126 = arith.constant 1.000000e+00 : f32
    %430 = vector.broadcast %cst_126 : f32 to vector<1x256xf32>
    %431 = arith.addf %430, %429 : vector<1x256xf32>
    %432 = arith.divf %430, %431 : vector<1x256xf32>
    %433 = vector.extract_strided_slice %420 {offsets = [0, 512], sizes = [1, 256], strides = [1, 1]} : vector<1x1024xf32> to vector<1x256xf32>
    %434 = math.tanh %433 : vector<1x256xf32>
    %435 = vector.extract_strided_slice %420 {offsets = [0, 768], sizes = [1, 256], strides = [1, 1]} : vector<1x1024xf32> to vector<1x256xf32>
    %436 = arith.negf %435 : vector<1x256xf32>
    %437 = math.exp %436 : vector<1x256xf32>
    %cst_127 = arith.constant 1.000000e+00 : f32
    %438 = vector.broadcast %cst_127 : f32 to vector<1x256xf32>
    %439 = arith.addf %438, %437 : vector<1x256xf32>
    %440 = arith.divf %438, %439 : vector<1x256xf32>
    %441 = arith.mulf %432, %410 : vector<1x256xf32>
    %442 = arith.mulf %426, %434 : vector<1x256xf32>
    %443 = arith.addf %441, %442 : vector<1x256xf32>
    %444 = math.tanh %443 : vector<1x256xf32>
    %445 = arith.mulf %440, %444 : vector<1x256xf32>
    %446 = arith.index_cast %c4_i32_120 : i32 to index
    %c0_128 = arith.constant 0 : index
    %447 = vector.load %arg12[%446, %c0_128] : memref<8x256xf32, #tpu.memory_space<vmem>>, vector<1x256xf32>
    tpu.vector_store %arg12[%446, %c0_128], %445 {strides = array<i32>} : memref<8x256xf32, #tpu.memory_space<vmem>>, vector<1x256xf32>,
    %c5_i32_129 = arith.constant 5 : i32
    %448 = arith.index_cast %c5_i32_129 : i32 to index
    %c0_130 = arith.constant 0 : index
    %449 = vector.load %arg11[%448, %c0_130] : memref<8x1024xf32, #tpu.memory_space<vmem>>, vector<1x1024xf32>
    %450 = arith.truncf %445 : vector<1x256xf32> to vector<1x256xbf16>
    %c0_131 = arith.constant 0 : index
    %c0_132 = arith.constant 0 : index
    %451 = vector.load %arg6[%c0_131, %c0_132] : memref<256x1024xbf16, #tpu.memory_space<vmem>>, vector<256x1024xbf16>
    %cst_133 = arith.constant dense<0.000000e+00> : vector<1x1024xf32>
    %452 = tpu.matmul %450, %451, %cst_133 {dimension_numbers = #tpu.dot_dimension_numbers<[1], [0], [0], [1], [0, 0, 1, 1], [], []>} : vector<1x256xbf16>, vector<256x1024xbf16>, vector<1x1024xf32> -> vector<1x1024xf32>
    %453 = arith.addf %449, %452 : vector<1x1024xf32>
    %454 = vector.extract_strided_slice %453 {offsets = [0, 0], sizes = [1, 256], strides = [1, 1]} : vector<1x1024xf32> to vector<1x256xf32>
    %455 = arith.negf %454 : vector<1x256xf32>
    %456 = math.exp %455 : vector<1x256xf32>
    %cst_134 = arith.constant 1.000000e+00 : f32
    %457 = vector.broadcast %cst_134 : f32 to vector<1x256xf32>
    %458 = arith.addf %457, %456 : vector<1x256xf32>
    %459 = arith.divf %457, %458 : vector<1x256xf32>
    %460 = vector.extract_strided_slice %453 {offsets = [0, 256], sizes = [1, 256], strides = [1, 1]} : vector<1x1024xf32> to vector<1x256xf32>
    %461 = arith.negf %460 : vector<1x256xf32>
    %462 = math.exp %461 : vector<1x256xf32>
    %cst_135 = arith.constant 1.000000e+00 : f32
    %463 = vector.broadcast %cst_135 : f32 to vector<1x256xf32>
    %464 = arith.addf %463, %462 : vector<1x256xf32>
    %465 = arith.divf %463, %464 : vector<1x256xf32>
    %466 = vector.extract_strided_slice %453 {offsets = [0, 512], sizes = [1, 256], strides = [1, 1]} : vector<1x1024xf32> to vector<1x256xf32>
    %467 = math.tanh %466 : vector<1x256xf32>
    %468 = vector.extract_strided_slice %453 {offsets = [0, 768], sizes = [1, 256], strides = [1, 1]} : vector<1x1024xf32> to vector<1x256xf32>
    %469 = arith.negf %468 : vector<1x256xf32>
    %470 = math.exp %469 : vector<1x256xf32>
    %cst_136 = arith.constant 1.000000e+00 : f32
    %471 = vector.broadcast %cst_136 : f32 to vector<1x256xf32>
    %472 = arith.addf %471, %470 : vector<1x256xf32>
    %473 = arith.divf %471, %472 : vector<1x256xf32>
    %474 = arith.mulf %465, %443 : vector<1x256xf32>
    %475 = arith.mulf %459, %467 : vector<1x256xf32>
    %476 = arith.addf %474, %475 : vector<1x256xf32>
    %477 = math.tanh %476 : vector<1x256xf32>
    %478 = arith.mulf %473, %477 : vector<1x256xf32>
    %479 = arith.index_cast %c5_i32_129 : i32 to index
    %c0_137 = arith.constant 0 : index
    %480 = vector.load %arg12[%479, %c0_137] : memref<8x256xf32, #tpu.memory_space<vmem>>, vector<1x256xf32>
    tpu.vector_store %arg12[%479, %c0_137], %478 {strides = array<i32>} : memref<8x256xf32, #tpu.memory_space<vmem>>, vector<1x256xf32>,
    %c6_i32_138 = arith.constant 6 : i32
    %481 = arith.index_cast %c6_i32_138 : i32 to index
    %c0_139 = arith.constant 0 : index
    %482 = vector.load %arg11[%481, %c0_139] : memref<8x1024xf32, #tpu.memory_space<vmem>>, vector<1x1024xf32>
    %483 = arith.truncf %478 : vector<1x256xf32> to vector<1x256xbf16>
    %c0_140 = arith.constant 0 : index
    %c0_141 = arith.constant 0 : index
    %484 = vector.load %arg6[%c0_140, %c0_141] : memref<256x1024xbf16, #tpu.memory_space<vmem>>, vector<256x1024xbf16>
    %cst_142 = arith.constant dense<0.000000e+00> : vector<1x1024xf32>
    %485 = tpu.matmul %483, %484, %cst_142 {dimension_numbers = #tpu.dot_dimension_numbers<[1], [0], [0], [1], [0, 0, 1, 1], [], []>} : vector<1x256xbf16>, vector<256x1024xbf16>, vector<1x1024xf32> -> vector<1x1024xf32>
    %486 = arith.addf %482, %485 : vector<1x1024xf32>
    %487 = vector.extract_strided_slice %486 {offsets = [0, 0], sizes = [1, 256], strides = [1, 1]} : vector<1x1024xf32> to vector<1x256xf32>
    %488 = arith.negf %487 : vector<1x256xf32>
    %489 = math.exp %488 : vector<1x256xf32>
    %cst_143 = arith.constant 1.000000e+00 : f32
    %490 = vector.broadcast %cst_143 : f32 to vector<1x256xf32>
    %491 = arith.addf %490, %489 : vector<1x256xf32>
    %492 = arith.divf %490, %491 : vector<1x256xf32>
    %493 = vector.extract_strided_slice %486 {offsets = [0, 256], sizes = [1, 256], strides = [1, 1]} : vector<1x1024xf32> to vector<1x256xf32>
    %494 = arith.negf %493 : vector<1x256xf32>
    %495 = math.exp %494 : vector<1x256xf32>
    %cst_144 = arith.constant 1.000000e+00 : f32
    %496 = vector.broadcast %cst_144 : f32 to vector<1x256xf32>
    %497 = arith.addf %496, %495 : vector<1x256xf32>
    %498 = arith.divf %496, %497 : vector<1x256xf32>
    %499 = vector.extract_strided_slice %486 {offsets = [0, 512], sizes = [1, 256], strides = [1, 1]} : vector<1x1024xf32> to vector<1x256xf32>
    %500 = math.tanh %499 : vector<1x256xf32>
    %501 = vector.extract_strided_slice %486 {offsets = [0, 768], sizes = [1, 256], strides = [1, 1]} : vector<1x1024xf32> to vector<1x256xf32>
    %502 = arith.negf %501 : vector<1x256xf32>
    %503 = math.exp %502 : vector<1x256xf32>
    %cst_145 = arith.constant 1.000000e+00 : f32
    %504 = vector.broadcast %cst_145 : f32 to vector<1x256xf32>
    %505 = arith.addf %504, %503 : vector<1x256xf32>
    %506 = arith.divf %504, %505 : vector<1x256xf32>
    %507 = arith.mulf %498, %476 : vector<1x256xf32>
    %508 = arith.mulf %492, %500 : vector<1x256xf32>
    %509 = arith.addf %507, %508 : vector<1x256xf32>
    %510 = math.tanh %509 : vector<1x256xf32>
    %511 = arith.mulf %506, %510 : vector<1x256xf32>
    %512 = arith.index_cast %c6_i32_138 : i32 to index
    %c0_146 = arith.constant 0 : index
    %513 = vector.load %arg12[%512, %c0_146] : memref<8x256xf32, #tpu.memory_space<vmem>>, vector<1x256xf32>
    tpu.vector_store %arg12[%512, %c0_146], %511 {strides = array<i32>} : memref<8x256xf32, #tpu.memory_space<vmem>>, vector<1x256xf32>,
    %c7_i32_147 = arith.constant 7 : i32
    %514 = arith.index_cast %c7_i32_147 : i32 to index
    %c0_148 = arith.constant 0 : index
    %515 = vector.load %arg11[%514, %c0_148] : memref<8x1024xf32, #tpu.memory_space<vmem>>, vector<1x1024xf32>
    %516 = arith.truncf %511 : vector<1x256xf32> to vector<1x256xbf16>
    %c0_149 = arith.constant 0 : index
    %c0_150 = arith.constant 0 : index
    %517 = vector.load %arg6[%c0_149, %c0_150] : memref<256x1024xbf16, #tpu.memory_space<vmem>>, vector<256x1024xbf16>
    %cst_151 = arith.constant dense<0.000000e+00> : vector<1x1024xf32>
    %518 = tpu.matmul %516, %517, %cst_151 {dimension_numbers = #tpu.dot_dimension_numbers<[1], [0], [0], [1], [0, 0, 1, 1], [], []>} : vector<1x256xbf16>, vector<256x1024xbf16>, vector<1x1024xf32> -> vector<1x1024xf32>
    %519 = arith.addf %515, %518 : vector<1x1024xf32>
    %520 = vector.extract_strided_slice %519 {offsets = [0, 0], sizes = [1, 256], strides = [1, 1]} : vector<1x1024xf32> to vector<1x256xf32>
    %521 = arith.negf %520 : vector<1x256xf32>
    %522 = math.exp %521 : vector<1x256xf32>
    %cst_152 = arith.constant 1.000000e+00 : f32
    %523 = vector.broadcast %cst_152 : f32 to vector<1x256xf32>
    %524 = arith.addf %523, %522 : vector<1x256xf32>
    %525 = arith.divf %523, %524 : vector<1x256xf32>
    %526 = vector.extract_strided_slice %519 {offsets = [0, 256], sizes = [1, 256], strides = [1, 1]} : vector<1x1024xf32> to vector<1x256xf32>
    %527 = arith.negf %526 : vector<1x256xf32>
    %528 = math.exp %527 : vector<1x256xf32>
    %cst_153 = arith.constant 1.000000e+00 : f32
    %529 = vector.broadcast %cst_153 : f32 to vector<1x256xf32>
    %530 = arith.addf %529, %528 : vector<1x256xf32>
    %531 = arith.divf %529, %530 : vector<1x256xf32>
    %532 = vector.extract_strided_slice %519 {offsets = [0, 512], sizes = [1, 256], strides = [1, 1]} : vector<1x1024xf32> to vector<1x256xf32>
    %533 = math.tanh %532 : vector<1x256xf32>
    %534 = vector.extract_strided_slice %519 {offsets = [0, 768], sizes = [1, 256], strides = [1, 1]} : vector<1x1024xf32> to vector<1x256xf32>
    %535 = arith.negf %534 : vector<1x256xf32>
    %536 = math.exp %535 : vector<1x256xf32>
    %cst_154 = arith.constant 1.000000e+00 : f32
    %537 = vector.broadcast %cst_154 : f32 to vector<1x256xf32>
    %538 = arith.addf %537, %536 : vector<1x256xf32>
    %539 = arith.divf %537, %538 : vector<1x256xf32>
    %540 = arith.mulf %531, %509 : vector<1x256xf32>
    %541 = arith.mulf %525, %533 : vector<1x256xf32>
    %542 = arith.addf %540, %541 : vector<1x256xf32>
    %543 = math.tanh %542 : vector<1x256xf32>
    %544 = arith.mulf %539, %543 : vector<1x256xf32>
    %545 = arith.index_cast %c7_i32_147 : i32 to index
    %c0_155 = arith.constant 0 : index
    %546 = vector.load %arg12[%545, %c0_155] : memref<8x256xf32, #tpu.memory_space<vmem>>, vector<1x256xf32>
    tpu.vector_store %arg12[%545, %c0_155], %544 {strides = array<i32>} : memref<8x256xf32, #tpu.memory_space<vmem>>, vector<1x256xf32>,
    %c8_i32_156 = arith.constant 8 : i32
    %c0_157 = arith.constant 0 : index
    %c0_158 = arith.constant 0 : index
    %547 = vector.load %arg12[%c0_157, %c0_158] : memref<8x256xf32, #tpu.memory_space<vmem>>, vector<8x256xf32>
    %c0_159 = arith.constant 0 : index
    %c0_160 = arith.constant 0 : index
    %548 = vector.load %arg8[%c0_159, %c0_160] : memref<8x256xf32, #tpu.memory_space<vmem>>, vector<8x256xf32>
    tpu.vector_store %arg8[%c0_159, %c0_160], %547 {strides = array<i32>} : memref<8x256xf32, #tpu.memory_space<vmem>>, vector<8x256xf32>,
    return
  }
  func.func @transform_0(%arg0: i32) -> (i32, i32) {
    %c0_i32 = arith.constant 0 : i32
    %c0_i32_0 = arith.constant 0 : i32
    %c0_i32_1 = arith.constant 0 : i32
    return %c0_i32, %c0_i32_0 : i32, i32
  }
  func.func @transform_1(%arg0: i32) -> (i32, i32) {
    %c0_i32 = arith.constant 0 : i32
    %c0_i32_0 = arith.constant 0 : i32
    %c0_i32_1 = arith.constant 0 : i32
    return %c0_i32, %c0_i32_0 : i32, i32
  }
  func.func @transform_2(%arg0: i32) -> (i32, i32) {
    %c0_i32 = arith.constant 0 : i32
    %c0_i32_0 = arith.constant 0 : i32
    %c0_i32_1 = arith.constant 0 : i32
    return %c0_i32, %c0_i32_0 : i32, i32
  }
  func.func @transform_3(%arg0: i32) -> (i32, i32) {
    %c0_i32 = arith.constant 0 : i32
    %c0_i32_0 = arith.constant 0 : i32
    %c0_i32_1 = arith.constant 0 : i32
    return %c0_i32, %c0_i32_0 : i32, i32
  }
  func.func @transform_4(%arg0: i32) -> (i32, i32) {
    %c0_i32 = arith.constant 0 : i32
    %c0_i32_0 = arith.constant 0 : i32
    %c0_i32_1 = arith.constant 0 : i32
    return %c0_i32, %c0_i32_0 : i32, i32
  }
  func.func @transform_5(%arg0: i32) -> (i32, i32) {
    %c0_i32 = arith.constant 0 : i32
    %c0_i32_0 = arith.constant 0 : i32
    %c0_i32_1 = arith.constant 0 : i32
    return %c0_i32, %c0_i32_0 : i32, i32
  }
  func.func @transform_6(%arg0: i32) -> (i32, i32) {
    %c0_i32 = arith.constant 0 : i32
    %c0_i32_0 = arith.constant 0 : i32
    %c0_i32_1 = arith.constant 0 : i32
    return %c0_i32, %c0_i32_0 : i32, i32
  }
  func.func @transform_7(%arg0: i32) -> (i32, i32) {
    %c0_i32 = arith.constant 0 : i32
    %c0_i32_0 = arith.constant 0 : i32
    %c0_i32_1 = arith.constant 0 : i32
    return %c0_i32, %c0_i32_0 : i32, i32
  }
}

</mosaic_0001>

<llo_original>
// kernel: tpu_custom_call.1
$region0: #{tpu_custom_call.1}
  #allocation0 [shape = 'u32[]', space=smem, size = 0x4, offset = 0x4, fixed_abs, tag = 'smem constant byte address 0x4 - core index']
  #allocation1 [shape = 'u32[72,128]{1,0:T(1,128)}', space=vmem, size = 0x9000, scoped, tag = 'internal scratch']
  #allocation2 [shape = 'f32[8,512]{1,0:T(8,128)}', space=vmem, size = 0x4000, scoped, tag = 'scratch operand']
  #allocation3 [shape = 'f32[8,128]{1,0:T(8,128)}', space=vmem, size = 0x1000, scoped, tag = 'scratch operand']
  #allocation4 [shape = 'f32[8,1024]{1,0:T(8,128)}', space=vmem, size = 0x8000, scoped, tag = 'scratch operand']
  #allocation5 [shape = 'f32[8,256]{1,0:T(8,128)}', space=vmem, size = 0x2000, scoped, tag = 'scratch operand']
  %s0 = inlined_call_operand.hbm [shape: bf16[8,256], index: 0, kind: input, shape index: {}]
  %s1 = inlined_call_operand.hbm [shape: bf16[256,512], index: 1, kind: input, shape index: {}]
  %s2 = inlined_call_operand.hbm [shape: f32[1,512], index: 2, kind: input, shape index: {}]
  %s3 = inlined_call_operand.hbm [shape: bf16[128,512], index: 3, kind: input, shape index: {}]
  %s4 = inlined_call_operand.hbm [shape: bf16[128,1024], index: 4, kind: input, shape index: {}]
  %s5 = inlined_call_operand.hbm [shape: bf16[256,1024], index: 5, kind: input, shape index: {}]
  %s6 = inlined_call_operand.hbm [shape: f32[1,1024], index: 6, kind: input, shape index: {}]
  %s7 = inlined_call_operand.hbm [shape: f32[8,256], index: 7, kind: output, shape index: {}]
  %s8 = sld [smem:[#allocation0]]
  $region66: #{tpu_custom_call.1} parent=0
    _
  %s10 = ssub.s32 1, %s8
  %s11 = scalar_select 0, %s10, %s8
  $region1: #{tpu_custom_call.1} parent=0
    #allocation6 [shape = 'u8[4096]{0}', space=vmem, size = 0x1000, scoped, tag = 'input window, operand 0, single buffered']
    #allocation7 [shape = 's32[1]{0}', space=sflag, size = 0x4, scoped, tag = 'scoped memory for tpu_custom_call.1']
    #allocation8 [shape = 's32[1]{0}', space=sflag, size = 0x4, scoped, tag = 'scoped memory for tpu_custom_call.1']
    #allocation9 [shape = 'u8[262144]{0}', space=vmem, size = 0x40000, scoped, tag = 'input window, operand 1, single buffered']
    #allocation10 [shape = 's32[1]{0}', space=sflag, size = 0x4, scoped, tag = 'scoped memory for tpu_custom_call.1']
    #allocation11 [shape = 'u8[2048]{0}', space=vmem, size = 0x800, scoped, tag = 'input window, operand 2, single buffered']
    #allocation12 [shape = 'u8[131072]{0}', space=vmem, size = 0x20000, scoped, tag = 'input window, operand 3, single buffered']
    #allocation13 [shape = 's32[1]{0}', space=sflag, size = 0x4, scoped, tag = 'scoped memory for tpu_custom_call.1']
    #allocation14 [shape = 'u8[262144]{0}', space=vmem, size = 0x40000, scoped, tag = 'input window, operand 4, single buffered']
    #allocation15 [shape = 'u8[524288]{0}', space=vmem, size = 0x80000, scoped, tag = 'input window, operand 5, single buffered']
    #allocation16 [shape = 's32[1]{0}', space=sflag, size = 0x4, scoped, tag = 'scoped memory for tpu_custom_call.1']
    #allocation17 [shape = 'u8[4096]{0}', space=vmem, size = 0x1000, scoped, tag = 'input window, operand 6, single buffered']
    #allocation18 [shape = 'u8[8192]{0}', space=vmem, size = 0x2000, scoped, tag = 'output window, operand 0, single buffered']
    %12 = vsyncpa [#allocation7], 0
    %13 = vsyncpa [#allocation10], 0
    %14 = vsyncpa [#allocation13], 0
    %15 = vsyncpa [#allocation16], 0
    %16 = vsyncpa [#allocation8], 0
    // Predicated region
    $region2: #{tpu_custom_call.1} parent=1 // pred_check
      _
    $region3: #{tpu_custom_call.1} parent=1 // pred_check_branch
      %18 = sbr.rel (0) target = $region5
    $region4: #{tpu_custom_call.1} parent=1 // pred_region
      %20 = vsyncadd [#allocation7], 0
      %s22 = sshll.u32 %s0, 4
      %s23 = int_to_ptr.hbm [resolvable:$true] %s22
      %s24 = sshll.u32 [#allocation6], 4
      %s25 = int_to_ptr.vmem [resolvable:$true] %s24
      %27 = dma.hbm_to_vmem [thread:$0]  %s23, 128, %s25, [#allocation7]
    $region5: #{tpu_custom_call.1} parent=1 // pred_fallthru
      _
    // Predicated region
    $region6: #{tpu_custom_call.1} parent=1 // pred_check
      _
    $region7: #{tpu_custom_call.1} parent=1 // pred_check_branch
      %29 = sbr.rel (0) target = $region9
    $region8: #{tpu_custom_call.1} parent=1 // pred_region
      %31 = vsyncadd [#allocation10], 0
      %s32 = sshll.u32 %s1, 4
      %s33 = int_to_ptr.hbm [resolvable:$true] %s32
      %s34 = sshll.u32 [#allocation9], 4
      %s35 = int_to_ptr.vmem [resolvable:$true] %s34
      %40 = dma.hbm_to_vmem [thread:$0]  %s33, 8192, %s35, [#allocation10], 256, 256, 16
    $region9: #{tpu_custom_call.1} parent=1 // pred_fallthru
      _
    // Predicated region
    $region10: #{tpu_custom_call.1} parent=1 // pred_check
      _
    $region11: #{tpu_custom_call.1} parent=1 // pred_check_branch
      %42 = sbr.rel (0) target = $region13
    $region12: #{tpu_custom_call.1} parent=1 // pred_region
      %44 = vsyncadd [#allocation10], 0
      %s46 = sshll.u32 %s2, 4
      %s47 = int_to_ptr.hbm [resolvable:$true] %s46
      %s48 = sshll.u32 [#allocation11], 4
      %s49 = int_to_ptr.vmem [resolvable:$true] %s48
      %51 = dma.hbm_to_vmem [thread:$0]  %s47, 64, %s49, [#allocation10]
    $region13: #{tpu_custom_call.1} parent=1 // pred_fallthru
      _
    // Predicated region
    $region14: #{tpu_custom_call.1} parent=1 // pred_check
      _
    $region15: #{tpu_custom_call.1} parent=1 // pred_check_branch
      %53 = sbr.rel (0) target = $region17
    $region16: #{tpu_custom_call.1} parent=1 // pred_region
      %55 = vsyncadd [#allocation13], 0
      %s56 = sshll.u32 %s3, 4
      %s57 = int_to_ptr.hbm [resolvable:$true] %s56
      %s58 = sshll.u32 [#allocation12], 4
      %s59 = int_to_ptr.vmem [resolvable:$true] %s58
      %64 = dma.hbm_to_vmem [thread:$0]  %s57, 4096, %s59, [#allocation13], 256, 256, 16
    $region17: #{tpu_custom_call.1} parent=1 // pred_fallthru
      _
    // Predicated region
    $region18: #{tpu_custom_call.1} parent=1 // pred_check
      _
    $region19: #{tpu_custom_call.1} parent=1 // pred_check_branch
      %66 = sbr.rel (0) target = $region21
    $region20: #{tpu_custom_call.1} parent=1 // pred_region
      %68 = vsyncadd [#allocation13], 0
      %s69 = sshll.u32 %s4, 4
      %s70 = int_to_ptr.hbm [resolvable:$true] %s69
      %s71 = sshll.u32 [#allocation14], 4
      %s72 = int_to_ptr.vmem [resolvable:$true] %s71
      %77 = dma.hbm_to_vmem [thread:$0]  %s70, 8192, %s72, [#allocation13], 512, 512, 32
    $region21: #{tpu_custom_call.1} parent=1 // pred_fallthru
      _
    // Predicated region
    $region22: #{tpu_custom_call.1} parent=1 // pred_check
      _
    $region23: #{tpu_custom_call.1} parent=1 // pred_check_branch
      %79 = sbr.rel (0) target = $region25
    $region24: #{tpu_custom_call.1} parent=1 // pred_region
      %81 = vsyncadd [#allocation16], 0
      %s82 = sshll.u32 %s5, 4
      %s83 = int_to_ptr.hbm [resolvable:$true] %s82
      %s84 = sshll.u32 [#allocation15], 4
      %s85 = int_to_ptr.vmem [resolvable:$true] %s84
      %90 = dma.hbm_to_vmem [thread:$0]  %s83, 16384, %s85, [#allocation16], 512, 512, 32
    $region25: #{tpu_custom_call.1} parent=1 // pred_fallthru
      _
    // Predicated region
    $region26: #{tpu_custom_call.1} parent=1 // pred_check
      _
    $region27: #{tpu_custom_call.1} parent=1 // pred_check_branch
      %92 = sbr.rel (0) target = $region29
    $region28: #{tpu_custom_call.1} parent=1 // pred_region
      %94 = vsyncadd [#allocation16], 0
      %s96 = sshll.u32 %s6, 4
      %s97 = int_to_ptr.hbm [resolvable:$true] %s96
      %s98 = sshll.u32 [#allocation17], 4
      %s99 = int_to_ptr.vmem [resolvable:$true] %s98
      %101 = dma.hbm_to_vmem [thread:$0]  %s97, 128, %s99, [#allocation16]
    $region29: #{tpu_custom_call.1} parent=1 // pred_fallthru
      _
    // Predicated region
    $region30: #{tpu_custom_call.1} parent=1 // pred_check
      _
    $region31: #{tpu_custom_call.1} parent=1 // pred_check_branch
      %103 = sbr.rel (0) target = $region33
    $region32: #{tpu_custom_call.1} parent=1 // pred_region
      %105 = dma.done [#allocation7], 128
    $region33: #{tpu_custom_call.1} parent=1 // pred_fallthru
      _
    // Predicated region
    $region34: #{tpu_custom_call.1} parent=1 // pred_check
      _
    $region35: #{tpu_custom_call.1} parent=1 // pred_check_branch
      %107 = sbr.rel (0) target = $region37
    $region36: #{tpu_custom_call.1} parent=1 // pred_region
      %109 = dma.done [#allocation10], 8192
    $region37: #{tpu_custom_call.1} parent=1 // pred_fallthru
      _
    // Predicated region
    $region38: #{tpu_custom_call.1} parent=1 // pred_check
      _
    $region39: #{tpu_custom_call.1} parent=1 // pred_check_branch
      %111 = sbr.rel (0) target = $region41
    $region40: #{tpu_custom_call.1} parent=1 // pred_region
      %113 = dma.done [#allocation10], 64
    $region41: #{tpu_custom_call.1} parent=1 // pred_fallthru
      _
    // Predicated region
    $region42: #{tpu_custom_call.1} parent=1 // pred_check
      _
    $region43: #{tpu_custom_call.1} parent=1 // pred_check_branch
      %115 = sbr.rel (0) target = $region45
    $region44: #{tpu_custom_call.1} parent=1 // pred_region
      %117 = dma.done [#allocation13], 4096
    $region45: #{tpu_custom_call.1} parent=1 // pred_fallthru
      _
    // Predicated region
    $region46: #{tpu_custom_call.1} parent=1 // pred_check
      _
    $region47: #{tpu_custom_call.1} parent=1 // pred_check_branch
      %119 = sbr.rel (0) target = $region49
    $region48: #{tpu_custom_call.1} parent=1 // pred_region
      %121 = dma.done [#allocation13], 8192
    $region49: #{tpu_custom_call.1} parent=1 // pred_fallthru
      _
    // Predicated region
    $region50: #{tpu_custom_call.1} parent=1 // pred_check
      _
    $region51: #{tpu_custom_call.1} parent=1 // pred_check_branch
      %123 = sbr.rel (0) target = $region53
    $region52: #{tpu_custom_call.1} parent=1 // pred_region
      %125 = dma.done [#allocation16], 16384
    $region53: #{tpu_custom_call.1} parent=1 // pred_fallthru
      _
    // Predicated region
    $region54: #{tpu_custom_call.1} parent=1 // pred_check
      _
    $region55: #{tpu_custom_call.1} parent=1 // pred_check_branch
      %127 = sbr.rel (0) target = $region57
    $region56: #{tpu_custom_call.1} parent=1 // pred_region
      %129 = dma.done [#allocation16], 128
    $region57: #{tpu_custom_call.1} parent=1 // pred_fallthru
      _
    %v131 = vld [vmem:[#allocation6] sm:$0xff]
    %v132 = vld [vmem:[#allocation9] sm:$0xff]
    %v133 = vld [vmem:[#allocation9 + $0x8] sm:$0xff]
    %v134 = vld [vmem:[#allocation9 + $0x10] sm:$0xff]
    %v135 = vld [vmem:[#allocation9 + $0x18] sm:$0xff]
    %v136 = vld [vmem:[#allocation9 + $0x20] sm:$0xff]
    %v137 = vld [vmem:[#allocation9 + $0x28] sm:$0xff]
    %v138 = vld [vmem:[#allocation9 + $0x30] sm:$0xff]
    %v139 = vld [vmem:[#allocation9 + $0x38] sm:$0xff]
    %v140 = vld [vmem:[#allocation9 + $0x40] sm:$0xff]
    %v141 = vld [vmem:[#allocation9 + $0x48] sm:$0xff]
    %v142 = vld [vmem:[#allocation9 + $0x50] sm:$0xff]
    %v143 = vld [vmem:[#allocation9 + $0x58] sm:$0xff]
    %v144 = vld [vmem:[#allocation9 + $0x60] sm:$0xff]
    %v145 = vld [vmem:[#allocation9 + $0x68] sm:$0xff]
    %v146 = vld [vmem:[#allocation9 + $0x70] sm:$0xff]
    %v147 = vld [vmem:[#allocation9 + $0x78] sm:$0xff]
    %v148 = vld [vmem:[#allocation9 + $0x80] sm:$0xff]
    %v149 = vld [vmem:[#allocation9 + $0x88] sm:$0xff]
    %v150 = vld [vmem:[#allocation9 + $0x90] sm:$0xff]
    %v151 = vld [vmem:[#allocation9 + $0x98] sm:$0xff]
    %v152 = vld [vmem:[#allocation9 + $0xa0] sm:$0xff]
    %v153 = vld [vmem:[#allocation9 + $0xa8] sm:$0xff]
    %v154 = vld [vmem:[#allocation9 + $0xb0] sm:$0xff]
    %v155 = vld [vmem:[#allocation9 + $0xb8] sm:$0xff]
    %v156 = vld [vmem:[#allocation9 + $0xc0] sm:$0xff]
    %v157 = vld [vmem:[#allocation9 + $0xc8] sm:$0xff]
    %v158 = vld [vmem:[#allocation9 + $0xd0] sm:$0xff]
    %v159 = vld [vmem:[#allocation9 + $0xd8] sm:$0xff]
    %v160 = vld [vmem:[#allocation9 + $0xe0] sm:$0xff]
    %v161 = vld [vmem:[#allocation9 + $0xe8] sm:$0xff]
    %v162 = vld [vmem:[#allocation9 + $0xf0] sm:$0xff]
    %v163 = vld [vmem:[#allocation9 + $0xf8] sm:$0xff]
    %v164 = vld [vmem:[#allocation9 + $0x100] sm:$0xff]
    %v165 = vld [vmem:[#allocation9 + $0x108] sm:$0xff]
    %v166 = vld [vmem:[#allocation9 + $0x110] sm:$0xff]
    %v167 = vld [vmem:[#allocation9 + $0x118] sm:$0xff]
    %v168 = vld [vmem:[#allocation9 + $0x120] sm:$0xff]
    %v169 = vld [vmem:[#allocation9 + $0x128] sm:$0xff]
    %v170 = vld [vmem:[#allocation9 + $0x130] sm:$0xff]
    %v171 = vld [vmem:[#allocation9 + $0x138] sm:$0xff]
    %v172 = vld [vmem:[#allocation9 + $0x140] sm:$0xff]
    %v173 = vld [vmem:[#allocation9 + $0x148] sm:$0xff]
    %v174 = vld [vmem:[#allocation9 + $0x150] sm:$0xff]
    %v175 = vld [vmem:[#allocation9 + $0x158] sm:$0xff]
    %v176 = vld [vmem:[#allocation9 + $0x160] sm:$0xff]
    %v177 = vld [vmem:[#allocation9 + $0x168] sm:$0xff]
    %v178 = vld [vmem:[#allocation9 + $0x170] sm:$0xff]
    %v179 = vld [vmem:[#allocation9 + $0x178] sm:$0xff]
    %v180 = vld [vmem:[#allocation9 + $0x180] sm:$0xff]
    %v181 = vld [vmem:[#allocation9 + $0x188] sm:$0xff]
    %v182 = vld [vmem:[#allocation9 + $0x190] sm:$0xff]
    %v183 = vld [vmem:[#allocation9 + $0x198] sm:$0xff]
    %v184 = vld [vmem:[#allocation9 + $0x1a0] sm:$0xff]
    %v185 = vld [vmem:[#allocation9 + $0x1a8] sm:$0xff]
    %v186 = vld [vmem:[#allocation9 + $0x1b0] sm:$0xff]
    %v187 = vld [vmem:[#allocation9 + $0x1b8] sm:$0xff]
    %v188 = vld [vmem:[#allocation9 + $0x1c0] sm:$0xff]
    %v189 = vld [vmem:[#allocation9 + $0x1c8] sm:$0xff]
    %v190 = vld [vmem:[#allocation9 + $0x1d0] sm:$0xff]
    %v191 = vld [vmem:[#allocation9 + $0x1d8] sm:$0xff]
    %v192 = vld [vmem:[#allocation9 + $0x1e0] sm:$0xff]
    %v193 = vld [vmem:[#allocation9 + $0x1e8] sm:$0xff]
    %v194 = vld [vmem:[#allocation9 + $0x1f0] sm:$0xff]
    %v195 = vld [vmem:[#allocation9 + $0x1f8] sm:$0xff]
    %v196 = vld [vmem:[#allocation11] sm:$0xf]
    %v198 = vperm.slane %v196, 0
    %v199 = vperm.slane %v196, 1
    %v200 = vperm.slane %v196, 2
    %v201 = vperm.slane %v196, 3
    %v207 = vunpack.c.l.b16 %v131
    %v208 = vunpack.c.h.b16 %v131
    %v209 = vpack.c.b16 %v207, %v207
    %v210 = vpack.c.b16 %v208, %v208
    %v277 = vunpack.c.l.b16 %v132
    %v278 = vunpack.c.h.b16 %v132
    %v279 = vunpack.c.l.b16 %v133
    %v280 = vunpack.c.h.b16 %v133
    %v281 = vunpack.c.l.b16 %v134
    %v282 = vunpack.c.h.b16 %v134
    %v283 = vunpack.c.l.b16 %v135
    %v284 = vunpack.c.h.b16 %v135
    %v285 = vunpack.c.l.b16 %v136
    %v286 = vunpack.c.h.b16 %v136
    %v287 = vunpack.c.l.b16 %v137
    %v288 = vunpack.c.h.b16 %v137
    %v289 = vunpack.c.l.b16 %v138
    %v290 = vunpack.c.h.b16 %v138
    %v291 = vunpack.c.l.b16 %v139
    %v292 = vunpack.c.h.b16 %v139
    %v293 = vunpack.c.l.b16 %v140
    %v294 = vunpack.c.h.b16 %v140
    %v295 = vunpack.c.l.b16 %v141
    %v296 = vunpack.c.h.b16 %v141
    %v297 = vunpack.c.l.b16 %v142
    %v298 = vunpack.c.h.b16 %v142
    %v299 = vunpack.c.l.b16 %v143
    %v300 = vunpack.c.h.b16 %v143
    %v301 = vunpack.c.l.b16 %v144
    %v302 = vunpack.c.h.b16 %v144
    %v303 = vunpack.c.l.b16 %v145
    %v304 = vunpack.c.h.b16 %v145
    %v305 = vunpack.c.l.b16 %v146
    %v306 = vunpack.c.h.b16 %v146
    %v307 = vunpack.c.l.b16 %v147
    %v308 = vunpack.c.h.b16 %v147
    %v309 = vunpack.c.l.b16 %v148
    %v310 = vunpack.c.h.b16 %v148
    %v311 = vunpack.c.l.b16 %v149
    %v312 = vunpack.c.h.b16 %v149
    %v313 = vunpack.c.l.b16 %v150
    %v314 = vunpack.c.h.b16 %v150
    %v315 = vunpack.c.l.b16 %v151
    %v316 = vunpack.c.h.b16 %v151
    %v317 = vunpack.c.l.b16 %v152
    %v318 = vunpack.c.h.b16 %v152
    %v319 = vunpack.c.l.b16 %v153
    %v320 = vunpack.c.h.b16 %v153
    %v321 = vunpack.c.l.b16 %v154
    %v322 = vunpack.c.h.b16 %v154
    %v323 = vunpack.c.l.b16 %v155
    %v324 = vunpack.c.h.b16 %v155
    %v325 = vunpack.c.l.b16 %v156
    %v326 = vunpack.c.h.b16 %v156
    %v327 = vunpack.c.l.b16 %v157
    %v328 = vunpack.c.h.b16 %v157
    %v329 = vunpack.c.l.b16 %v158
    %v330 = vunpack.c.h.b16 %v158
    %v331 = vunpack.c.l.b16 %v159
    %v332 = vunpack.c.h.b16 %v159
    %v333 = vunpack.c.l.b16 %v160
    %v334 = vunpack.c.h.b16 %v160
    %v335 = vunpack.c.l.b16 %v161
    %v336 = vunpack.c.h.b16 %v161
    %v337 = vunpack.c.l.b16 %v162
    %v338 = vunpack.c.h.b16 %v162
    %v339 = vunpack.c.l.b16 %v163
    %v340 = vunpack.c.h.b16 %v163
    %v341 = vunpack.c.l.b16 %v164
    %v342 = vunpack.c.h.b16 %v164
    %v343 = vunpack.c.l.b16 %v165
    %v344 = vunpack.c.h.b16 %v165
    %v345 = vunpack.c.l.b16 %v166
    %v346 = vunpack.c.h.b16 %v166
    %v347 = vunpack.c.l.b16 %v167
    %v348 = vunpack.c.h.b16 %v167
    %v349 = vunpack.c.l.b16 %v168
    %v350 = vunpack.c.h.b16 %v168
    %v351 = vunpack.c.l.b16 %v169
    %v352 = vunpack.c.h.b16 %v169
    %v353 = vunpack.c.l.b16 %v170
    %v354 = vunpack.c.h.b16 %v170
    %v355 = vunpack.c.l.b16 %v171
    %v356 = vunpack.c.h.b16 %v171
    %v357 = vunpack.c.l.b16 %v172
    %v358 = vunpack.c.h.b16 %v172
    %v359 = vunpack.c.l.b16 %v173
    %v360 = vunpack.c.h.b16 %v173
    %v361 = vunpack.c.l.b16 %v174
    %v362 = vunpack.c.h.b16 %v174
    %v363 = vunpack.c.l.b16 %v175
    %v364 = vunpack.c.h.b16 %v175
    %v365 = vunpack.c.l.b16 %v176
    %v366 = vunpack.c.h.b16 %v176
    %v367 = vunpack.c.l.b16 %v177
    %v368 = vunpack.c.h.b16 %v177
    %v369 = vunpack.c.l.b16 %v178
    %v370 = vunpack.c.h.b16 %v178
    %v371 = vunpack.c.l.b16 %v179
    %v372 = vunpack.c.h.b16 %v179
    %v373 = vunpack.c.l.b16 %v180
    %v374 = vunpack.c.h.b16 %v180
    %v375 = vunpack.c.l.b16 %v181
    %v376 = vunpack.c.h.b16 %v181
    %v377 = vunpack.c.l.b16 %v182
    %v378 = vunpack.c.h.b16 %v182
    %v379 = vunpack.c.l.b16 %v183
    %v380 = vunpack.c.h.b16 %v183
    %v381 = vunpack.c.l.b16 %v184
    %v382 = vunpack.c.h.b16 %v184
    %v383 = vunpack.c.l.b16 %v185
    %v384 = vunpack.c.h.b16 %v185
    %v385 = vunpack.c.l.b16 %v186
    %v386 = vunpack.c.h.b16 %v186
    %v387 = vunpack.c.l.b16 %v187
    %v388 = vunpack.c.h.b16 %v187
    %v389 = vunpack.c.l.b16 %v188
    %v390 = vunpack.c.h.b16 %v188
    %v391 = vunpack.c.l.b16 %v189
    %v392 = vunpack.c.h.b16 %v189
    %v393 = vunpack.c.l.b16 %v190
    %v394 = vunpack.c.h.b16 %v190
    %v395 = vunpack.c.l.b16 %v191
    %v396 = vunpack.c.h.b16 %v191
    %v397 = vunpack.c.l.b16 %v192
    %v398 = vunpack.c.h.b16 %v192
    %v399 = vunpack.c.l.b16 %v193
    %v400 = vunpack.c.h.b16 %v193
    %v401 = vunpack.c.l.b16 %v194
    %v402 = vunpack.c.h.b16 %v194
    %v403 = vunpack.c.l.b16 %v195
    %v404 = vunpack.c.h.b16 %v195
    %v405 = vpack.c.b16 %v281, %v277
    %v406 = vpack.c.b16 %v282, %v278
    %v407 = vpack.c.b16 %v283, %v279
    %v408 = vpack.c.b16 %v284, %v280
    %v409 = vpack.c.b16 %v289, %v285
    %v410 = vpack.c.b16 %v290, %v286
    %v411 = vpack.c.b16 %v291, %v287
    %v412 = vpack.c.b16 %v292, %v288
    %v413 = vpack.c.b16 %v297, %v293
    %v414 = vpack.c.b16 %v298, %v294
    %v415 = vpack.c.b16 %v299, %v295
    %v416 = vpack.c.b16 %v300, %v296
    %v417 = vpack.c.b16 %v305, %v301
    %v418 = vpack.c.b16 %v306, %v302
    %v419 = vpack.c.b16 %v307, %v303
    %v420 = vpack.c.b16 %v308, %v304
    %v421 = vpack.c.b16 %v313, %v309
    %v422 = vpack.c.b16 %v314, %v310
    %v423 = vpack.c.b16 %v315, %v311
    %v424 = vpack.c.b16 %v316, %v312
    %v425 = vpack.c.b16 %v321, %v317
    %v426 = vpack.c.b16 %v322, %v318
    %v427 = vpack.c.b16 %v323, %v319
    %v428 = vpack.c.b16 %v324, %v320
    %v429 = vpack.c.b16 %v329, %v325
    %v430 = vpack.c.b16 %v330, %v326
    %v431 = vpack.c.b16 %v331, %v327
    %v432 = vpack.c.b16 %v332, %v328
    %v433 = vpack.c.b16 %v337, %v333
    %v434 = vpack.c.b16 %v338, %v334
    %v435 = vpack.c.b16 %v339, %v335
    %v436 = vpack.c.b16 %v340, %v336
    %v437 = vpack.c.b16 %v345, %v341
    %v438 = vpack.c.b16 %v346, %v342
    %v439 = vpack.c.b16 %v347, %v343
    %v440 = vpack.c.b16 %v348, %v344
    %v441 = vpack.c.b16 %v353, %v349
    %v442 = vpack.c.b16 %v354, %v350
    %v443 = vpack.c.b16 %v355, %v351
    %v444 = vpack.c.b16 %v356, %v352
    %v445 = vpack.c.b16 %v361, %v357
    %v446 = vpack.c.b16 %v362, %v358
    %v447 = vpack.c.b16 %v363, %v359
    %v448 = vpack.c.b16 %v364, %v360
    %v449 = vpack.c.b16 %v369, %v365
    %v450 = vpack.c.b16 %v370, %v366
    %v451 = vpack.c.b16 %v371, %v367
    %v452 = vpack.c.b16 %v372, %v368
    %v453 = vpack.c.b16 %v377, %v373
    %v454 = vpack.c.b16 %v378, %v374
    %v455 = vpack.c.b16 %v379, %v375
    %v456 = vpack.c.b16 %v380, %v376
    %v457 = vpack.c.b16 %v385, %v381
    %v458 = vpack.c.b16 %v386, %v382
    %v459 = vpack.c.b16 %v387, %v383
    %v460 = vpack.c.b16 %v388, %v384
    %v461 = vpack.c.b16 %v393, %v389
    %v462 = vpack.c.b16 %v394, %v390
    %v463 = vpack.c.b16 %v395, %v391
    %v464 = vpack.c.b16 %v396, %v392
    %v465 = vpack.c.b16 %v401, %v397
    %v466 = vpack.c.b16 %v402, %v398
    %v467 = vpack.c.b16 %v403, %v399
    %v468 = vpack.c.b16 %v404, %v400
    %533 = vmatpush.bf16.msra.mxu0 %v433
    %534 = vmatpush.bf16.msra.mxu0 %v429
    %535 = vmatpush.bf16.msra.mxu0 %v425
    %536 = vmatpush.bf16.msra.mxu0 %v421
    %537 = vmatpush.bf16.msra.mxu0 %v417
    %538 = vmatpush.bf16.msra.mxu0 %v413
    %539 = vmatpush.bf16.msra.mxu0 %v409
    %540 = vmatpush.bf16.msra.mxu0 %v405
    %541 = vmatmul.bf16.gmra.mxu0 %v209
    %v542 = vpop.f32.mrf.mxu0
    %v543 = vadd.f32 %v198, %v542
    %v544 = vpop.f32.mrf.mxu0
    %545 = vdwg.mxu0
    %546 = vmatpush.bf16.msra.mxu0 %v465
    %547 = vmatpush.bf16.msra.mxu0 %v461
    %548 = vmatpush.bf16.msra.mxu0 %v457
    %549 = vmatpush.bf16.msra.mxu0 %v453
    %550 = vmatpush.bf16.msra.mxu0 %v449
    %551 = vmatpush.bf16.msra.mxu0 %v445
    %552 = vmatpush.bf16.msra.mxu0 %v441
    %553 = vmatpush.bf16.msra.mxu0 %v437
    %554 = vmatmul.bf16.gmra.mxu0 %v210
    %v555 = vpop.f32.mrf.mxu0
    %v556 = vadd.f32 %v543, %v555
    %v557 = vpop.f32.mrf.mxu0
    %558 = vdwg.mxu0
    %559 = vmatpush.bf16.msra.mxu0 %v434
    %560 = vmatpush.bf16.msra.mxu0 %v430
    %561 = vmatpush.bf16.msra.mxu0 %v426
    %562 = vmatpush.bf16.msra.mxu0 %v422
    %563 = vmatpush.bf16.msra.mxu0 %v418
    %564 = vmatpush.bf16.msra.mxu0 %v414
    %565 = vmatpush.bf16.msra.mxu0 %v410
    %566 = vmatpush.bf16.msra.mxu0 %v406
    %567 = vmatmul.bf16.gmra.mxu0 %v209
    %v568 = vpop.f32.mrf.mxu0
    %v569 = vadd.f32 %v199, %v568
    %v570 = vpop.f32.mrf.mxu0
    %571 = vdwg.mxu0
    %572 = vmatpush.bf16.msra.mxu0 %v466
    %573 = vmatpush.bf16.msra.mxu0 %v462
    %574 = vmatpush.bf16.msra.mxu0 %v458
    %575 = vmatpush.bf16.msra.mxu0 %v454
    %576 = vmatpush.bf16.msra.mxu0 %v450
    %577 = vmatpush.bf16.msra.mxu0 %v446
    %578 = vmatpush.bf16.msra.mxu0 %v442
    %579 = vmatpush.bf16.msra.mxu0 %v438
    %580 = vmatmul.bf16.gmra.mxu0 %v210
    %v581 = vpop.f32.mrf.mxu0
    %v582 = vadd.f32 %v569, %v581
    %v583 = vpop.f32.mrf.mxu0
    %584 = vdwg.mxu0
    %585 = vmatpush.bf16.msra.mxu0 %v435
    %586 = vmatpush.bf16.msra.mxu0 %v431
    %587 = vmatpush.bf16.msra.mxu0 %v427
    %588 = vmatpush.bf16.msra.mxu0 %v423
    %589 = vmatpush.bf16.msra.mxu0 %v419
    %590 = vmatpush.bf16.msra.mxu0 %v415
    %591 = vmatpush.bf16.msra.mxu0 %v411
    %592 = vmatpush.bf16.msra.mxu0 %v407
    %593 = vmatmul.bf16.gmra.mxu0 %v209
    %v594 = vpop.f32.mrf.mxu0
    %v595 = vadd.f32 %v200, %v594
    %v596 = vpop.f32.mrf.mxu0
    %597 = vdwg.mxu0
    %598 = vmatpush.bf16.msra.mxu0 %v467
    %599 = vmatpush.bf16.msra.mxu0 %v463
    %600 = vmatpush.bf16.msra.mxu0 %v459
    %601 = vmatpush.bf16.msra.mxu0 %v455
    %602 = vmatpush.bf16.msra.mxu0 %v451
    %603 = vmatpush.bf16.msra.mxu0 %v447
    %604 = vmatpush.bf16.msra.mxu0 %v443
    %605 = vmatpush.bf16.msra.mxu0 %v439
    %606 = vmatmul.bf16.gmra.mxu0 %v210
    %v607 = vpop.f32.mrf.mxu0
    %v608 = vadd.f32 %v595, %v607
    %v609 = vpop.f32.mrf.mxu0
    %610 = vdwg.mxu0
    %611 = vmatpush.bf16.msra.mxu0 %v436
    %612 = vmatpush.bf16.msra.mxu0 %v432
    %613 = vmatpush.bf16.msra.mxu0 %v428
    %614 = vmatpush.bf16.msra.mxu0 %v424
    %615 = vmatpush.bf16.msra.mxu0 %v420
    %616 = vmatpush.bf16.msra.mxu0 %v416
    %617 = vmatpush.bf16.msra.mxu0 %v412
    %618 = vmatpush.bf16.msra.mxu0 %v408
    %619 = vmatmul.bf16.gmra.mxu0 %v209
    %v620 = vpop.f32.mrf.mxu0
    %v621 = vadd.f32 %v201, %v620
    %v622 = vpop.f32.mrf.mxu0
    %623 = vdwg.mxu0
    %624 = vmatpush.bf16.msra.mxu0 %v468
    %625 = vmatpush.bf16.msra.mxu0 %v464
    %626 = vmatpush.bf16.msra.mxu0 %v460
    %627 = vmatpush.bf16.msra.mxu0 %v456
    %628 = vmatpush.bf16.msra.mxu0 %v452
    %629 = vmatpush.bf16.msra.mxu0 %v448
    %630 = vmatpush.bf16.msra.mxu0 %v444
    %631 = vmatpush.bf16.msra.mxu0 %v440
    %632 = vmatmul.bf16.gmra.mxu0 %v210
    %v633 = vpop.f32.mrf.mxu0
    %v634 = vadd.f32 %v621, %v633
    %v635 = vpop.f32.mrf.mxu0
    %636 = vdwg.mxu0
    %637 = vst [vmem:[#allocation2] sm:$0xff] %v556
    %638 = vst [vmem:[#allocation2 + $0x8] sm:$0xff] %v582
    %639 = vst [vmem:[#allocation2 + $0x10] sm:$0xff] %v608
    %640 = vst [vmem:[#allocation2 + $0x18] sm:$0xff] %v634
    %v641 = vld [vmem:[#allocation2] ss:$8 sm:$0xf]
    %v642 = vld [vmem:[#allocation12] sm:$0xff]
    %v643 = vld [vmem:[#allocation12 + $0x8] sm:$0xff]
    %v644 = vld [vmem:[#allocation12 + $0x10] sm:$0xff]
    %v645 = vld [vmem:[#allocation12 + $0x18] sm:$0xff]
    %v646 = vld [vmem:[#allocation12 + $0x20] sm:$0xff]
    %v647 = vld [vmem:[#allocation12 + $0x28] sm:$0xff]
    %v648 = vld [vmem:[#allocation12 + $0x30] sm:$0xff]
    %v649 = vld [vmem:[#allocation12 + $0x38] sm:$0xff]
    %v650 = vld [vmem:[#allocation12 + $0x40] sm:$0xff]
    %v651 = vld [vmem:[#allocation12 + $0x48] sm:$0xff]
    %v652 = vld [vmem:[#allocation12 + $0x50] sm:$0xff]
    %v653 = vld [vmem:[#allocation12 + $0x58] sm:$0xff]
    %v654 = vld [vmem:[#allocation12 + $0x60] sm:$0xff]
    %v655 = vld [vmem:[#allocation12 + $0x68] sm:$0xff]
    %v656 = vld [vmem:[#allocation12 + $0x70] sm:$0xff]
    %v657 = vld [vmem:[#allocation12 + $0x78] sm:$0xff]
    %v658 = vld [vmem:[#allocation12 + $0x80] sm:$0xff]
    %v659 = vld [vmem:[#allocation12 + $0x88] sm:$0xff]
    %v660 = vld [vmem:[#allocation12 + $0x90] sm:$0xff]
    %v661 = vld [vmem:[#allocation12 + $0x98] sm:$0xff]
    %v662 = vld [vmem:[#allocation12 + $0xa0] sm:$0xff]
    %v663 = vld [vmem:[#allocation12 + $0xa8] sm:$0xff]
    %v664 = vld [vmem:[#allocation12 + $0xb0] sm:$0xff]
    %v665 = vld [vmem:[#allocation12 + $0xb8] sm:$0xff]
    %v666 = vld [vmem:[#allocation12 + $0xc0] sm:$0xff]
    %v667 = vld [vmem:[#allocation12 + $0xc8] sm:$0xff]
    %v668 = vld [vmem:[#allocation12 + $0xd0] sm:$0xff]
    %v669 = vld [vmem:[#allocation12 + $0xd8] sm:$0xff]
    %v670 = vld [vmem:[#allocation12 + $0xe0] sm:$0xff]
    %v671 = vld [vmem:[#allocation12 + $0xe8] sm:$0xff]
    %v672 = vld [vmem:[#allocation12 + $0xf0] sm:$0xff]
    %v673 = vld [vmem:[#allocation12 + $0xf8] sm:$0xff]
    %v706 = vunpack.c.l.b16 %v642
    %v707 = vunpack.c.h.b16 %v642
    %v708 = vunpack.c.l.b16 %v643
    %v709 = vunpack.c.h.b16 %v643
    %v710 = vunpack.c.l.b16 %v644
    %v711 = vunpack.c.h.b16 %v644
    %v712 = vunpack.c.l.b16 %v645
    %v713 = vunpack.c.h.b16 %v645
    %v714 = vunpack.c.l.b16 %v646
    %v715 = vunpack.c.h.b16 %v646
    %v716 = vunpack.c.l.b16 %v647
    %v717 = vunpack.c.h.b16 %v647
    %v718 = vunpack.c.l.b16 %v648
    %v719 = vunpack.c.h.b16 %v648
    %v720 = vunpack.c.l.b16 %v649
    %v721 = vunpack.c.h.b16 %v649
    %v722 = vunpack.c.l.b16 %v650
    %v723 = vunpack.c.h.b16 %v650
    %v724 = vunpack.c.l.b16 %v651
    %v725 = vunpack.c.h.b16 %v651
    %v726 = vunpack.c.l.b16 %v652
    %v727 = vunpack.c.h.b16 %v652
    %v728 = vunpack.c.l.b16 %v653
    %v729 = vunpack.c.h.b16 %v653
    %v730 = vunpack.c.l.b16 %v654
    %v731 = vunpack.c.h.b16 %v654
    %v732 = vunpack.c.l.b16 %v655
    %v733 = vunpack.c.h.b16 %v655
    %v734 = vunpack.c.l.b16 %v656
    %v735 = vunpack.c.h.b16 %v656
    %v736 = vunpack.c.l.b16 %v657
    %v737 = vunpack.c.h.b16 %v657
    %v738 = vunpack.c.l.b16 %v658
    %v739 = vunpack.c.h.b16 %v658
    %v740 = vunpack.c.l.b16 %v659
    %v741 = vunpack.c.h.b16 %v659
    %v742 = vunpack.c.l.b16 %v660
    %v743 = vunpack.c.h.b16 %v660
    %v744 = vunpack.c.l.b16 %v661
    %v745 = vunpack.c.h.b16 %v661
    %v746 = vunpack.c.l.b16 %v662
    %v747 = vunpack.c.h.b16 %v662
    %v748 = vunpack.c.l.b16 %v663
    %v749 = vunpack.c.h.b16 %v663
    %v750 = vunpack.c.l.b16 %v664
    %v751 = vunpack.c.h.b16 %v664
    %v752 = vunpack.c.l.b16 %v665
    %v753 = vunpack.c.h.b16 %v665
    %v754 = vunpack.c.l.b16 %v666
    %v755 = vunpack.c.h.b16 %v666
    %v756 = vunpack.c.l.b16 %v667
    %v757 = vunpack.c.h.b16 %v667
    %v758 = vunpack.c.l.b16 %v668
    %v759 = vunpack.c.h.b16 %v668
    %v760 = vunpack.c.l.b16 %v669
    %v761 = vunpack.c.h.b16 %v669
    %v762 = vunpack.c.l.b16 %v670
    %v763 = vunpack.c.h.b16 %v670
    %v764 = vunpack.c.l.b16 %v671
    %v765 = vunpack.c.h.b16 %v671
    %v766 = vunpack.c.l.b16 %v672
    %v767 = vunpack.c.h.b16 %v672
    %v768 = vunpack.c.l.b16 %v673
    %v769 = vunpack.c.h.b16 %v673
    %v770 = vpack.c.b16 %v710, %v706
    %v771 = vpack.c.b16 %v711, %v707
    %v772 = vpack.c.b16 %v712, %v708
    %v773 = vpack.c.b16 %v713, %v709
    %v774 = vpack.c.b16 %v718, %v714
    %v775 = vpack.c.b16 %v719, %v715
    %v776 = vpack.c.b16 %v720, %v716
    %v777 = vpack.c.b16 %v721, %v717
    %v778 = vpack.c.b16 %v726, %v722
    %v779 = vpack.c.b16 %v727, %v723
    %v780 = vpack.c.b16 %v728, %v724
    %v781 = vpack.c.b16 %v729, %v725
    %v782 = vpack.c.b16 %v734, %v730
    %v783 = vpack.c.b16 %v735, %v731
    %v784 = vpack.c.b16 %v736, %v732
    %v785 = vpack.c.b16 %v737, %v733
    %v786 = vpack.c.b16 %v742, %v738
    %v787 = vpack.c.b16 %v743, %v739
    %v788 = vpack.c.b16 %v744, %v740
    %v789 = vpack.c.b16 %v745, %v741
    %v790 = vpack.c.b16 %v750, %v746
    %v791 = vpack.c.b16 %v751, %v747
    %v792 = vpack.c.b16 %v752, %v748
    %v793 = vpack.c.b16 %v753, %v749
    %v794 = vpack.c.b16 %v758, %v754
    %v795 = vpack.c.b16 %v759, %v755
    %v796 = vpack.c.b16 %v760, %v756
    %v797 = vpack.c.b16 %v761, %v757
    %v798 = vpack.c.b16 %v766, %v762
    %v799 = vpack.c.b16 %v767, %v763
    %v800 = vpack.c.b16 %v768, %v764
    %v801 = vpack.c.b16 %v769, %v765
    %834 = vmatpush.bf16.msra.mxu0 %v798
    %835 = vmatpush.bf16.msra.mxu0 %v794
    %836 = vmatpush.bf16.msra.mxu0 %v790
    %837 = vmatpush.bf16.msra.mxu0 %v786
    %838 = vmatpush.bf16.msra.mxu0 %v782
    %839 = vmatpush.bf16.msra.mxu0 %v778
    %840 = vmatpush.bf16.msra.mxu0 %v774
    %841 = vmatpush.bf16.msra.mxu0 %v770
    %842 = vmatmul.bf16.gmra.mxu0 0
    %v843 = vpop.f32.mrf.mxu0
    %v844 = vadd.f32 0.0, %v843
    %v845 = vpop.f32.mrf.mxu0
    %846 = vdwg.mxu0
    %847 = vmatpush.bf16.msra.mxu0 %v799
    %848 = vmatpush.bf16.msra.mxu0 %v795
    %849 = vmatpush.bf16.msra.mxu0 %v791
    %850 = vmatpush.bf16.msra.mxu0 %v787
    %851 = vmatpush.bf16.msra.mxu0 %v783
    %852 = vmatpush.bf16.msra.mxu0 %v779
    %853 = vmatpush.bf16.msra.mxu0 %v775
    %854 = vmatpush.bf16.msra.mxu0 %v771
    %855 = vmatmul.bf16.gmra.mxu0 0
    %v856 = vpop.f32.mrf.mxu0
    %v857 = vadd.f32 0.0, %v856
    %v858 = vpop.f32.mrf.mxu0
    %859 = vdwg.mxu0
    %860 = vmatpush.bf16.msra.mxu0 %v800
    %861 = vmatpush.bf16.msra.mxu0 %v796
    %862 = vmatpush.bf16.msra.mxu0 %v792
    %863 = vmatpush.bf16.msra.mxu0 %v788
    %864 = vmatpush.bf16.msra.mxu0 %v784
    %865 = vmatpush.bf16.msra.mxu0 %v780
    %866 = vmatpush.bf16.msra.mxu0 %v776
    %867 = vmatpush.bf16.msra.mxu0 %v772
    %868 = vmatmul.bf16.gmra.mxu0 0
    %v869 = vpop.f32.mrf.mxu0
    %v870 = vadd.f32 0.0, %v869
    %v871 = vpop.f32.mrf.mxu0
    %872 = vdwg.mxu0
    %873 = vmatpush.bf16.msra.mxu0 %v801
    %874 = vmatpush.bf16.msra.mxu0 %v797
    %875 = vmatpush.bf16.msra.mxu0 %v793
    %876 = vmatpush.bf16.msra.mxu0 %v789
    %877 = vmatpush.bf16.msra.mxu0 %v785
    %878 = vmatpush.bf16.msra.mxu0 %v781
    %879 = vmatpush.bf16.msra.mxu0 %v777
    %880 = vmatpush.bf16.msra.mxu0 %v773
    %881 = vmatmul.bf16.gmra.mxu0 0
    %v882 = vpop.f32.mrf.mxu0
    %v883 = vadd.f32 0.0, %v882
    %v884 = vpop.f32.mrf.mxu0
    %885 = vdwg.mxu0
    %v890 = vrot.slane %v857, 7
    %v891 = vrot.slane %v870, 6
    %v892 = vrot.slane %v883, 5
    %vm893 = vcmask 1040384
    %v894 = vsel %vm893, %v844, %v890
    %vm895 = vcmask 1042434
    %v896 = vsel %vm895, %v891, %v892
    %vm897 = vcmask 1041408
    %v898 = vsel %vm897, %v894, %v896
    %v900 = vadd.f32 %v641, %v898
    %v901 = vxor.u32 %v900, 2147483648
    %v902 = vmul.f32 %v901, 1.442695
    %v903 = vpow.pop %v902
    %v904 = vadd.f32 %v903, 1.0
    %v905 = vrcp.pop %v904
    %v906 = vmul.f32 %v904, %v905
    %v907 = vsub.f32 1.0, %v906
    %v908 = vmul.f32 %v905, %v907
    %v909 = vadd.f32 %v905, %v908
    %vm910 = vweird.f32 %v904
    %vm911 = vweird.f32 %v905
    %vm912 = vmor %vm910, %vm911
    %v913 = vsel %vm912, %v905, %v909
    %v914 = vand.u32 2147483647, %v904
    %vm915 = vcmp.eq.f32.partialorder %v914, 8.507059e+37
    %v916 = vand.u32 %v904, 2147483648
    %v917 = vor.u32 1.1754944e-38, %v916
    %v918 = vsel %vm915, %v917, %v913
    %v919 = vmul.f32 1.0, %v918
    %v921 = vrot.slane %v900, 1
    %v923 = vxor.u32 %v921, 2147483648
    %v924 = vmul.f32 %v923, 1.442695
    %v925 = vpow.pop %v924
    %v926 = vadd.f32 %v925, 1.0
    %v927 = vrcp.pop %v926
    %v928 = vmul.f32 %v926, %v927
    %v929 = vsub.f32 1.0, %v928
    %v930 = vmul.f32 %v927, %v929
    %v931 = vadd.f32 %v927, %v930
    %vm932 = vweird.f32 %v926
    %vm933 = vweird.f32 %v927
    %vm934 = vmor %vm932, %vm933
    %v935 = vsel %vm934, %v927, %v931
    %v936 = vand.u32 2147483647, %v926
    %vm937 = vcmp.eq.f32.partialorder %v936, 8.507059e+37
    %v938 = vand.u32 %v926, 2147483648
    %v939 = vor.u32 1.1754944e-38, %v938
    %v940 = vsel %vm937, %v939, %v935
    %v941 = vmul.f32 1.0, %v940
    %v942 = vrot.slane %v900, 2
    %v944 = vtanh.pop %v942
    %v945 = vrot.slane %v900, 3
    %v947 = vxor.u32 %v945, 2147483648
    %v948 = vmul.f32 %v947, 1.442695
    %v949 = vpow.pop %v948
    %v950 = vadd.f32 %v949, 1.0
    %v951 = vrcp.pop %v950
    %v952 = vmul.f32 %v950, %v951
    %v953 = vsub.f32 1.0, %v952
    %v954 = vmul.f32 %v951, %v953
    %v955 = vadd.f32 %v951, %v954
    %vm956 = vweird.f32 %v950
    %vm957 = vweird.f32 %v951
    %vm958 = vmor %vm956, %vm957
    %v959 = vsel %vm958, %v951, %v955
    %v960 = vand.u32 2147483647, %v950
    %vm961 = vcmp.eq.f32.partialorder %v960, 8.507059e+37
    %v962 = vand.u32 %v950, 2147483648
    %v963 = vor.u32 1.1754944e-38, %v962
    %v964 = vsel %vm961, %v963, %v959
    %v965 = vmul.f32 1.0, %v964
    %v966 = vmul.f32 %v941, 0.0
    %v967 = vmul.f32 %v919, %v944
    %v968 = vadd.f32 %v966, %v967
    %v969 = vtanh.pop %v968
    %v970 = vmul.f32 %v965, %v969
    %971 = vst [vmem:[#allocation3] sm:$0x1] %v970
    %s972 = scalar_lea.vmem [#allocation2], 1
    %v973 = vld [vmem:[%s972] ss:$8 sm:$0xf]
    %v974 = vpack.c.bf16 %v970, %v970
    %v975 = vld [vmem:[#allocation12] sm:$0xff]
    %v976 = vld [vmem:[#allocation12 + $0x8] sm:$0xff]
    %v977 = vld [vmem:[#allocation12 + $0x10] sm:$0xff]
    %v978 = vld [vmem:[#allocation12 + $0x18] sm:$0xff]
    %v979 = vld [vmem:[#allocation12 + $0x20] sm:$0xff]
    %v980 = vld [vmem:[#allocation12 + $0x28] sm:$0xff]
    %v981 = vld [vmem:[#allocation12 + $0x30] sm:$0xff]
    %v982 = vld [vmem:[#allocation12 + $0x38] sm:$0xff]
    %v983 = vld [vmem:[#allocation12 + $0x40] sm:$0xff]
    %v984 = vld [vmem:[#allocation12 + $0x48] sm:$0xff]
    %v985 = vld [vmem:[#allocation12 + $0x50] sm:$0xff]
    %v986 = vld [vmem:[#allocation12 + $0x58] sm:$0xff]
    %v987 = vld [vmem:[#allocation12 + $0x60] sm:$0xff]
    %v988 = vld [vmem:[#allocation12 + $0x68] sm:$0xff]
    %v989 = vld [vmem:[#allocation12 + $0x70] sm:$0xff]
    %v990 = vld [vmem:[#allocation12 + $0x78] sm:$0xff]
    %v991 = vld [vmem:[#allocation12 + $0x80] sm:$0xff]
    %v992 = vld [vmem:[#allocation12 + $0x88] sm:$0xff]
    %v993 = vld [vmem:[#allocation12 + $0x90] sm:$0xff]
    %v994 = vld [vmem:[#allocation12 + $0x98] sm:$0xff]
    %v995 = vld [vmem:[#allocation12 + $0xa0] sm:$0xff]
    %v996 = vld [vmem:[#allocation12 + $0xa8] sm:$0xff]
    %v997 = vld [vmem:[#allocation12 + $0xb0] sm:$0xff]
    %v998 = vld [vmem:[#allocation12 + $0xb8] sm:$0xff]
    %v999 = vld [vmem:[#allocation12 + $0xc0] sm:$0xff]
    %v1000 = vld [vmem:[#allocation12 + $0xc8] sm:$0xff]
    %v1001 = vld [vmem:[#allocation12 + $0xd0] sm:$0xff]
    %v1002 = vld [vmem:[#allocation12 + $0xd8] sm:$0xff]
    %v1003 = vld [vmem:[#allocation12 + $0xe0] sm:$0xff]
    %v1004 = vld [vmem:[#allocation12 + $0xe8] sm:$0xff]
    %v1005 = vld [vmem:[#allocation12 + $0xf0] sm:$0xff]
    %v1006 = vld [vmem:[#allocation12 + $0xf8] sm:$0xff]
    %v1039 = vunpack.c.l.b16 %v975
    %v1040 = vunpack.c.h.b16 %v975
    %v1041 = vunpack.c.l.b16 %v976
    %v1042 = vunpack.c.h.b16 %v976
    %v1043 = vunpack.c.l.b16 %v977
    %v1044 = vunpack.c.h.b16 %v977
    %v1045 = vunpack.c.l.b16 %v978
    %v1046 = vunpack.c.h.b16 %v978
    %v1047 = vunpack.c.l.b16 %v979
    %v1048 = vunpack.c.h.b16 %v979
    %v1049 = vunpack.c.l.b16 %v980
    %v1050 = vunpack.c.h.b16 %v980
    %v1051 = vunpack.c.l.b16 %v981
    %v1052 = vunpack.c.h.b16 %v981
    %v1053 = vunpack.c.l.b16 %v982
    %v1054 = vunpack.c.h.b16 %v982
    %v1055 = vunpack.c.l.b16 %v983
    %v1056 = vunpack.c.h.b16 %v983
    %v1057 = vunpack.c.l.b16 %v984
    %v1058 = vunpack.c.h.b16 %v984
    %v1059 = vunpack.c.l.b16 %v985
    %v1060 = vunpack.c.h.b16 %v985
    %v1061 = vunpack.c.l.b16 %v986
    %v1062 = vunpack.c.h.b16 %v986
    %v1063 = vunpack.c.l.b16 %v987
    %v1064 = vunpack.c.h.b16 %v987
    %v1065 = vunpack.c.l.b16 %v988
    %v1066 = vunpack.c.h.b16 %v988
    %v1067 = vunpack.c.l.b16 %v989
    %v1068 = vunpack.c.h.b16 %v989
    %v1069 = vunpack.c.l.b16 %v990
    %v1070 = vunpack.c.h.b16 %v990
    %v1071 = vunpack.c.l.b16 %v991
    %v1072 = vunpack.c.h.b16 %v991
    %v1073 = vunpack.c.l.b16 %v992
    %v1074 = vunpack.c.h.b16 %v992
    %v1075 = vunpack.c.l.b16 %v993
    %v1076 = vunpack.c.h.b16 %v993
    %v1077 = vunpack.c.l.b16 %v994
    %v1078 = vunpack.c.h.b16 %v994
    %v1079 = vunpack.c.l.b16 %v995
    %v1080 = vunpack.c.h.b16 %v995
    %v1081 = vunpack.c.l.b16 %v996
    %v1082 = vunpack.c.h.b16 %v996
    %v1083 = vunpack.c.l.b16 %v997
    %v1084 = vunpack.c.h.b16 %v997
    %v1085 = vunpack.c.l.b16 %v998
    %v1086 = vunpack.c.h.b16 %v998
    %v1087 = vunpack.c.l.b16 %v999
    %v1088 = vunpack.c.h.b16 %v999
    %v1089 = vunpack.c.l.b16 %v1000
    %v1090 = vunpack.c.h.b16 %v1000
    %v1091 = vunpack.c.l.b16 %v1001
    %v1092 = vunpack.c.h.b16 %v1001
    %v1093 = vunpack.c.l.b16 %v1002
    %v1094 = vunpack.c.h.b16 %v1002
    %v1095 = vunpack.c.l.b16 %v1003
    %v1096 = vunpack.c.h.b16 %v1003
    %v1097 = vunpack.c.l.b16 %v1004
    %v1098 = vunpack.c.h.b16 %v1004
    %v1099 = vunpack.c.l.b16 %v1005
    %v1100 = vunpack.c.h.b16 %v1005
    %v1101 = vunpack.c.l.b16 %v1006
    %v1102 = vunpack.c.h.b16 %v1006
    %v1103 = vpack.c.b16 %v1043, %v1039
    %v1104 = vpack.c.b16 %v1044, %v1040
    %v1105 = vpack.c.b16 %v1045, %v1041
    %v1106 = vpack.c.b16 %v1046, %v1042
    %v1107 = vpack.c.b16 %v1051, %v1047
    %v1108 = vpack.c.b16 %v1052, %v1048
    %v1109 = vpack.c.b16 %v1053, %v1049
    %v1110 = vpack.c.b16 %v1054, %v1050
    %v1111 = vpack.c.b16 %v1059, %v1055
    %v1112 = vpack.c.b16 %v1060, %v1056
    %v1113 = vpack.c.b16 %v1061, %v1057
    %v1114 = vpack.c.b16 %v1062, %v1058
    %v1115 = vpack.c.b16 %v1067, %v1063
    %v1116 = vpack.c.b16 %v1068, %v1064
    %v1117 = vpack.c.b16 %v1069, %v1065
    %v1118 = vpack.c.b16 %v1070, %v1066
    %v1119 = vpack.c.b16 %v1075, %v1071
    %v1120 = vpack.c.b16 %v1076, %v1072
    %v1121 = vpack.c.b16 %v1077, %v1073
    %v1122 = vpack.c.b16 %v1078, %v1074
    %v1123 = vpack.c.b16 %v1083, %v1079
    %v1124 = vpack.c.b16 %v1084, %v1080
    %v1125 = vpack.c.b16 %v1085, %v1081
    %v1126 = vpack.c.b16 %v1086, %v1082
    %v1127 = vpack.c.b16 %v1091, %v1087
    %v1128 = vpack.c.b16 %v1092, %v1088
    %v1129 = vpack.c.b16 %v1093, %v1089
    %v1130 = vpack.c.b16 %v1094, %v1090
    %v1131 = vpack.c.b16 %v1099, %v1095
    %v1132 = vpack.c.b16 %v1100, %v1096
    %v1133 = vpack.c.b16 %v1101, %v1097
    %v1134 = vpack.c.b16 %v1102, %v1098
    %1167 = vmatpush.bf16.msra.mxu0 %v1131
    %1168 = vmatpush.bf16.msra.mxu0 %v1127
    %1169 = vmatpush.bf16.msra.mxu0 %v1123
    %1170 = vmatpush.bf16.msra.mxu0 %v1119
    %1171 = vmatpush.bf16.msra.mxu0 %v1115
    %1172 = vmatpush.bf16.msra.mxu0 %v1111
    %1173 = vmatpush.bf16.msra.mxu0 %v1107
    %1174 = vmatpush.bf16.msra.mxu0 %v1103
    %1175 = vmatmul.bf16.gmra.mxu0 %v974
    %v1176 = vpop.f32.mrf.mxu0
    %v1177 = vadd.f32 0.0, %v1176
    %v1178 = vpop.f32.mrf.mxu0
    %1179 = vdwg.mxu0
    %1180 = vmatpush.bf16.msra.mxu0 %v1132
    %1181 = vmatpush.bf16.msra.mxu0 %v1128
    %1182 = vmatpush.bf16.msra.mxu0 %v1124
    %1183 = vmatpush.bf16.msra.mxu0 %v1120
    %1184 = vmatpush.bf16.msra.mxu0 %v1116
    %1185 = vmatpush.bf16.msra.mxu0 %v1112
    %1186 = vmatpush.bf16.msra.mxu0 %v1108
    %1187 = vmatpush.bf16.msra.mxu0 %v1104
    %1188 = vmatmul.bf16.gmra.mxu0 %v974
    %v1189 = vpop.f32.mrf.mxu0
    %v1190 = vadd.f32 0.0, %v1189
    %v1191 = vpop.f32.mrf.mxu0
    %1192 = vdwg.mxu0
    %1193 = vmatpush.bf16.msra.mxu0 %v1133
    %1194 = vmatpush.bf16.msra.mxu0 %v1129
    %1195 = vmatpush.bf16.msra.mxu0 %v1125
    %1196 = vmatpush.bf16.msra.mxu0 %v1121
    %1197 = vmatpush.bf16.msra.mxu0 %v1117
    %1198 = vmatpush.bf16.msra.mxu0 %v1113
    %1199 = vmatpush.bf16.msra.mxu0 %v1109
    %1200 = vmatpush.bf16.msra.mxu0 %v1105
    %1201 = vmatmul.bf16.gmra.mxu0 %v974
    %v1202 = vpop.f32.mrf.mxu0
    %v1203 = vadd.f32 0.0, %v1202
    %v1204 = vpop.f32.mrf.mxu0
    %1205 = vdwg.mxu0
    %1206 = vmatpush.bf16.msra.mxu0 %v1134
    %1207 = vmatpush.bf16.msra.mxu0 %v1130
    %1208 = vmatpush.bf16.msra.mxu0 %v1126
    %1209 = vmatpush.bf16.msra.mxu0 %v1122
    %1210 = vmatpush.bf16.msra.mxu0 %v1118
    %1211 = vmatpush.bf16.msra.mxu0 %v1114
    %1212 = vmatpush.bf16.msra.mxu0 %v1110
    %1213 = vmatpush.bf16.msra.mxu0 %v1106
    %1214 = vmatmul.bf16.gmra.mxu0 %v974
    %v1215 = vpop.f32.mrf.mxu0
    %v1216 = vadd.f32 0.0, %v1215
    %v1217 = vpop.f32.mrf.mxu0
    %1218 = vdwg.mxu0
    %v1223 = vrot.slane %v1190, 7
    %v1224 = vrot.slane %v1203, 6
    %v1225 = vrot.slane %v1216, 5
    %v1226 = vsel %vm893, %v1177, %v1223
    %v1227 = vsel %vm895, %v1224, %v1225
    %v1228 = vsel %vm897, %v1226, %v1227
    %v1230 = vadd.f32 %v973, %v1228
    %v1231 = vxor.u32 %v1230, 2147483648
    %v1232 = vmul.f32 %v1231, 1.442695
    %v1233 = vpow.pop %v1232
    %v1234 = vadd.f32 %v1233, 1.0
    %v1235 = vrcp.pop %v1234
    %v1236 = vmul.f32 %v1234, %v1235
    %v1237 = vsub.f32 1.0, %v1236
    %v1238 = vmul.f32 %v1235, %v1237
    %v1239 = vadd.f32 %v1235, %v1238
    %vm1240 = vweird.f32 %v1234
    %vm1241 = vweird.f32 %v1235
    %vm1242 = vmor %vm1240, %vm1241
    %v1243 = vsel %vm1242, %v1235, %v1239
    %v1244 = vand.u32 2147483647, %v1234
    %vm1245 = vcmp.eq.f32.partialorder %v1244, 8.507059e+37
    %v1246 = vand.u32 %v1234, 2147483648
    %v1247 = vor.u32 1.1754944e-38, %v1246
    %v1248 = vsel %vm1245, %v1247, %v1243
    %v1249 = vmul.f32 1.0, %v1248
    %v1251 = vrot.slane %v1230, 1
    %v1253 = vxor.u32 %v1251, 2147483648
    %v1254 = vmul.f32 %v1253, 1.442695
    %v1255 = vpow.pop %v1254
    %v1256 = vadd.f32 %v1255, 1.0
    %v1257 = vrcp.pop %v1256
    %v1258 = vmul.f32 %v1256, %v1257
    %v1259 = vsub.f32 1.0, %v1258
    %v1260 = vmul.f32 %v1257, %v1259
    %v1261 = vadd.f32 %v1257, %v1260
    %vm1262 = vweird.f32 %v1256
    %vm1263 = vweird.f32 %v1257
    %vm1264 = vmor %vm1262, %vm1263
    %v1265 = vsel %vm1264, %v1257, %v1261
    %v1266 = vand.u32 2147483647, %v1256
    %vm1267 = vcmp.eq.f32.partialorder %v1266, 8.507059e+37
    %v1268 = vand.u32 %v1256, 2147483648
    %v1269 = vor.u32 1.1754944e-38, %v1268
    %v1270 = vsel %vm1267, %v1269, %v1265
    %v1271 = vmul.f32 1.0, %v1270
    %v1272 = vrot.slane %v1230, 2
    %v1274 = vtanh.pop %v1272
    %v1275 = vrot.slane %v1230, 3
    %v1277 = vxor.u32 %v1275, 2147483648
    %v1278 = vmul.f32 %v1277, 1.442695
    %v1279 = vpow.pop %v1278
    %v1280 = vadd.f32 %v1279, 1.0
    %v1281 = vrcp.pop %v1280
    %v1282 = vmul.f32 %v1280, %v1281
    %v1283 = vsub.f32 1.0, %v1282
    %v1284 = vmul.f32 %v1281, %v1283
    %v1285 = vadd.f32 %v1281, %v1284
    %vm1286 = vweird.f32 %v1280
    %vm1287 = vweird.f32 %v1281
    %vm1288 = vmor %vm1286, %vm1287
    %v1289 = vsel %vm1288, %v1281, %v1285
    %v1290 = vand.u32 2147483647, %v1280
    %vm1291 = vcmp.eq.f32.partialorder %v1290, 8.507059e+37
    %v1292 = vand.u32 %v1280, 2147483648
    %v1293 = vor.u32 1.1754944e-38, %v1292
    %v1294 = vsel %vm1291, %v1293, %v1289
    %v1295 = vmul.f32 1.0, %v1294
    %v1296 = vmul.f32 %v1271, %v968
    %v1297 = vmul.f32 %v1249, %v1274
    %v1298 = vadd.f32 %v1296, %v1297
    %v1299 = vtanh.pop %v1298
    %v1300 = vmul.f32 %v1295, %v1299
    %1301 = vst [vmem:[#allocation3 + $0x1] sm:$0x1] %v1300
    %s1302 = scalar_lea.vmem [#allocation2], 2
    %v1303 = vld [vmem:[%s1302] ss:$8 sm:$0xf]
    %v1304 = vpack.c.bf16 %v1300, %v1300
    %v1305 = vld [vmem:[#allocation12] sm:$0xff]
    %v1306 = vld [vmem:[#allocation12 + $0x8] sm:$0xff]
    %v1307 = vld [vmem:[#allocation12 + $0x10] sm:$0xff]
    %v1308 = vld [vmem:[#allocation12 + $0x18] sm:$0xff]
    %v1309 = vld [vmem:[#allocation12 + $0x20] sm:$0xff]
    %v1310 = vld [vmem:[#allocation12 + $0x28] sm:$0xff]
    %v1311 = vld [vmem:[#allocation12 + $0x30] sm:$0xff]
    %v1312 = vld [vmem:[#allocation12 + $0x38] sm:$0xff]
    %v1313 = vld [vmem:[#allocation12 + $0x40] sm:$0xff]
    %v1314 = vld [vmem:[#allocation12 + $0x48] sm:$0xff]
    %v1315 = vld [vmem:[#allocation12 + $0x50] sm:$0xff]
    %v1316 = vld [vmem:[#allocation12 + $0x58] sm:$0xff]
    %v1317 = vld [vmem:[#allocation12 + $0x60] sm:$0xff]
    %v1318 = vld [vmem:[#allocation12 + $0x68] sm:$0xff]
    %v1319 = vld [vmem:[#allocation12 + $0x70] sm:$0xff]
    %v1320 = vld [vmem:[#allocation12 + $0x78] sm:$0xff]
    %v1321 = vld [vmem:[#allocation12 + $0x80] sm:$0xff]
    %v1322 = vld [vmem:[#allocation12 + $0x88] sm:$0xff]
    %v1323 = vld [vmem:[#allocation12 + $0x90] sm:$0xff]
    %v1324 = vld [vmem:[#allocation12 + $0x98] sm:$0xff]
    %v1325 = vld [vmem:[#allocation12 + $0xa0] sm:$0xff]
    %v1326 = vld [vmem:[#allocation12 + $0xa8] sm:$0xff]
    %v1327 = vld [vmem:[#allocation12 + $0xb0] sm:$0xff]
    %v1328 = vld [vmem:[#allocation12 + $0xb8] sm:$0xff]
    %v1329 = vld [vmem:[#allocation12 + $0xc0] sm:$0xff]
    %v1330 = vld [vmem:[#allocation12 + $0xc8] sm:$0xff]
    %v1331 = vld [vmem:[#allocation12 + $0xd0] sm:$0xff]
    %v1332 = vld [vmem:[#allocation12 + $0xd8] sm:$0xff]
    %v1333 = vld [vmem:[#allocation12 + $0xe0] sm:$0xff]
    %v1334 = vld [vmem:[#allocation12 + $0xe8] sm:$0xff]
    %v1335 = vld [vmem:[#allocation12 + $0xf0] sm:$0xff]
    %v1336 = vld [vmem:[#allocation12 + $0xf8] sm:$0xff]
    %v1369 = vunpack.c.l.b16 %v1305
    %v1370 = vunpack.c.h.b16 %v1305
    %v1371 = vunpack.c.l.b16 %v1306
    %v1372 = vunpack.c.h.b16 %v1306
    %v1373 = vunpack.c.l.b16 %v1307
    %v1374 = vunpack.c.h.b16 %v1307
    %v1375 = vunpack.c.l.b16 %v1308
    %v1376 = vunpack.c.h.b16 %v1308
    %v1377 = vunpack.c.l.b16 %v1309
    %v1378 = vunpack.c.h.b16 %v1309
    %v1379 = vunpack.c.l.b16 %v1310
    %v1380 = vunpack.c.h.b16 %v1310
    %v1381 = vunpack.c.l.b16 %v1311
    %v1382 = vunpack.c.h.b16 %v1311
    %v1383 = vunpack.c.l.b16 %v1312
    %v1384 = vunpack.c.h.b16 %v1312
    %v1385 = vunpack.c.l.b16 %v1313
    %v1386 = vunpack.c.h.b16 %v1313
    %v1387 = vunpack.c.l.b16 %v1314
    %v1388 = vunpack.c.h.b16 %v1314
    %v1389 = vunpack.c.l.b16 %v1315
    %v1390 = vunpack.c.h.b16 %v1315
    %v1391 = vunpack.c.l.b16 %v1316
    %v1392 = vunpack.c.h.b16 %v1316
    %v1393 = vunpack.c.l.b16 %v1317
    %v1394 = vunpack.c.h.b16 %v1317
    %v1395 = vunpack.c.l.b16 %v1318
    %v1396 = vunpack.c.h.b16 %v1318
    %v1397 = vunpack.c.l.b16 %v1319
    %v1398 = vunpack.c.h.b16 %v1319
    %v1399 = vunpack.c.l.b16 %v1320
    %v1400 = vunpack.c.h.b16 %v1320
    %v1401 = vunpack.c.l.b16 %v1321
    %v1402 = vunpack.c.h.b16 %v1321
    %v1403 = vunpack.c.l.b16 %v1322
    %v1404 = vunpack.c.h.b16 %v1322
    %v1405 = vunpack.c.l.b16 %v1323
    %v1406 = vunpack.c.h.b16 %v1323
    %v1407 = vunpack.c.l.b16 %v1324
    %v1408 = vunpack.c.h.b16 %v1324
    %v1409 = vunpack.c.l.b16 %v1325
    %v1410 = vunpack.c.h.b16 %v1325
    %v1411 = vunpack.c.l.b16 %v1326
    %v1412 = vunpack.c.h.b16 %v1326
    %v1413 = vunpack.c.l.b16 %v1327
    %v1414 = vunpack.c.h.b16 %v1327
    %v1415 = vunpack.c.l.b16 %v1328
    %v1416 = vunpack.c.h.b16 %v1328
    %v1417 = vunpack.c.l.b16 %v1329
    %v1418 = vunpack.c.h.b16 %v1329
    %v1419 = vunpack.c.l.b16 %v1330
    %v1420 = vunpack.c.h.b16 %v1330
    %v1421 = vunpack.c.l.b16 %v1331
    %v1422 = vunpack.c.h.b16 %v1331
    %v1423 = vunpack.c.l.b16 %v1332
    %v1424 = vunpack.c.h.b16 %v1332
    %v1425 = vunpack.c.l.b16 %v1333
    %v1426 = vunpack.c.h.b16 %v1333
    %v1427 = vunpack.c.l.b16 %v1334
    %v1428 = vunpack.c.h.b16 %v1334
    %v1429 = vunpack.c.l.b16 %v1335
    %v1430 = vunpack.c.h.b16 %v1335
    %v1431 = vunpack.c.l.b16 %v1336
    %v1432 = vunpack.c.h.b16 %v1336
    %v1433 = vpack.c.b16 %v1373, %v1369
    %v1434 = vpack.c.b16 %v1374, %v1370
    %v1435 = vpack.c.b16 %v1375, %v1371
    %v1436 = vpack.c.b16 %v1376, %v1372
    %v1437 = vpack.c.b16 %v1381, %v1377
    %v1438 = vpack.c.b16 %v1382, %v1378
    %v1439 = vpack.c.b16 %v1383, %v1379
    %v1440 = vpack.c.b16 %v1384, %v1380
    %v1441 = vpack.c.b16 %v1389, %v1385
    %v1442 = vpack.c.b16 %v1390, %v1386
    %v1443 = vpack.c.b16 %v1391, %v1387
    %v1444 = vpack.c.b16 %v1392, %v1388
    %v1445 = vpack.c.b16 %v1397, %v1393
    %v1446 = vpack.c.b16 %v1398, %v1394
    %v1447 = vpack.c.b16 %v1399, %v1395
    %v1448 = vpack.c.b16 %v1400, %v1396
    %v1449 = vpack.c.b16 %v1405, %v1401
    %v1450 = vpack.c.b16 %v1406, %v1402
    %v1451 = vpack.c.b16 %v1407, %v1403
    %v1452 = vpack.c.b16 %v1408, %v1404
    %v1453 = vpack.c.b16 %v1413, %v1409
    %v1454 = vpack.c.b16 %v1414, %v1410
    %v1455 = vpack.c.b16 %v1415, %v1411
    %v1456 = vpack.c.b16 %v1416, %v1412
    %v1457 = vpack.c.b16 %v1421, %v1417
    %v1458 = vpack.c.b16 %v1422, %v1418
    %v1459 = vpack.c.b16 %v1423, %v1419
    %v1460 = vpack.c.b16 %v1424, %v1420
    %v1461 = vpack.c.b16 %v1429, %v1425
    %v1462 = vpack.c.b16 %v1430, %v1426
    %v1463 = vpack.c.b16 %v1431, %v1427
    %v1464 = vpack.c.b16 %v1432, %v1428
    %1497 = vmatpush.bf16.msra.mxu0 %v1461
    %1498 = vmatpush.bf16.msra.mxu0 %v1457
    %1499 = vmatpush.bf16.msra.mxu0 %v1453
    %1500 = vmatpush.bf16.msra.mxu0 %v1449
    %1501 = vmatpush.bf16.msra.mxu0 %v1445
    %1502 = vmatpush.bf16.msra.mxu0 %v1441
    %1503 = vmatpush.bf16.msra.mxu0 %v1437
    %1504 = vmatpush.bf16.msra.mxu0 %v1433
    %1505 = vmatmul.bf16.gmra.mxu0 %v1304
    %v1506 = vpop.f32.mrf.mxu0
    %v1507 = vadd.f32 0.0, %v1506
    %v1508 = vpop.f32.mrf.mxu0
    %1509 = vdwg.mxu0
    %1510 = vmatpush.bf16.msra.mxu0 %v1462
    %1511 = vmatpush.bf16.msra.mxu0 %v1458
    %1512 = vmatpush.bf16.msra.mxu0 %v1454
    %1513 = vmatpush.bf16.msra.mxu0 %v1450
    %1514 = vmatpush.bf16.msra.mxu0 %v1446
    %1515 = vmatpush.bf16.msra.mxu0 %v1442
    %1516 = vmatpush.bf16.msra.mxu0 %v1438
    %1517 = vmatpush.bf16.msra.mxu0 %v1434
    %1518 = vmatmul.bf16.gmra.mxu0 %v1304
    %v1519 = vpop.f32.mrf.mxu0
    %v1520 = vadd.f32 0.0, %v1519
    %v1521 = vpop.f32.mrf.mxu0
    %1522 = vdwg.mxu0
    %1523 = vmatpush.bf16.msra.mxu0 %v1463
    %1524 = vmatpush.bf16.msra.mxu0 %v1459
    %1525 = vmatpush.bf16.msra.mxu0 %v1455
    %1526 = vmatpush.bf16.msra.mxu0 %v1451
    %1527 = vmatpush.bf16.msra.mxu0 %v1447
    %1528 = vmatpush.bf16.msra.mxu0 %v1443
    %1529 = vmatpush.bf16.msra.mxu0 %v1439
    %1530 = vmatpush.bf16.msra.mxu0 %v1435
    %1531 = vmatmul.bf16.gmra.mxu0 %v1304
    %v1532 = vpop.f32.mrf.mxu0
    %v1533 = vadd.f32 0.0, %v1532
    %v1534 = vpop.f32.mrf.mxu0
    %1535 = vdwg.mxu0
    %1536 = vmatpush.bf16.msra.mxu0 %v1464
    %1537 = vmatpush.bf16.msra.mxu0 %v1460
    %1538 = vmatpush.bf16.msra.mxu0 %v1456
    %1539 = vmatpush.bf16.msra.mxu0 %v1452
    %1540 = vmatpush.bf16.msra.mxu0 %v1448
    %1541 = vmatpush.bf16.msra.mxu0 %v1444
    %1542 = vmatpush.bf16.msra.mxu0 %v1440
    %1543 = vmatpush.bf16.msra.mxu0 %v1436
    %1544 = vmatmul.bf16.gmra.mxu0 %v1304
    %v1545 = vpop.f32.mrf.mxu0
    %v1546 = vadd.f32 0.0, %v1545
    %v1547 = vpop.f32.mrf.mxu0
    %1548 = vdwg.mxu0
    %v1553 = vrot.slane %v1520, 7
    %v1554 = vrot.slane %v1533, 6
    %v1555 = vrot.slane %v1546, 5
    %v1556 = vsel %vm893, %v1507, %v1553
    %v1557 = vsel %vm895, %v1554, %v1555
    %v1558 = vsel %vm897, %v1556, %v1557
    %v1560 = vadd.f32 %v1303, %v1558
    %v1561 = vxor.u32 %v1560, 2147483648
    %v1562 = vmul.f32 %v1561, 1.442695
    %v1563 = vpow.pop %v1562
    %v1564 = vadd.f32 %v1563, 1.0
    %v1565 = vrcp.pop %v1564
    %v1566 = vmul.f32 %v1564, %v1565
    %v1567 = vsub.f32 1.0, %v1566
    %v1568 = vmul.f32 %v1565, %v1567
    %v1569 = vadd.f32 %v1565, %v1568
    %vm1570 = vweird.f32 %v1564
    %vm1571 = vweird.f32 %v1565
    %vm1572 = vmor %vm1570, %vm1571
    %v1573 = vsel %vm1572, %v1565, %v1569
    %v1574 = vand.u32 2147483647, %v1564
    %vm1575 = vcmp.eq.f32.partialorder %v1574, 8.507059e+37
    %v1576 = vand.u32 %v1564, 2147483648
    %v1577 = vor.u32 1.1754944e-38, %v1576
    %v1578 = vsel %vm1575, %v1577, %v1573
    %v1579 = vmul.f32 1.0, %v1578
    %v1581 = vrot.slane %v1560, 1
    %v1583 = vxor.u32 %v1581, 2147483648
    %v1584 = vmul.f32 %v1583, 1.442695
    %v1585 = vpow.pop %v1584
    %v1586 = vadd.f32 %v1585, 1.0
    %v1587 = vrcp.pop %v1586
    %v1588 = vmul.f32 %v1586, %v1587
    %v1589 = vsub.f32 1.0, %v1588
    %v1590 = vmul.f32 %v1587, %v1589
    %v1591 = vadd.f32 %v1587, %v1590
    %vm1592 = vweird.f32 %v1586
    %vm1593 = vweird.f32 %v1587
    %vm1594 = vmor %vm1592, %vm1593
    %v1595 = vsel %vm1594, %v1587, %v1591
    %v1596 = vand.u32 2147483647, %v1586
    %vm1597 = vcmp.eq.f32.partialorder %v1596, 8.507059e+37
    %v1598 = vand.u32 %v1586, 2147483648
    %v1599 = vor.u32 1.1754944e-38, %v1598
    %v1600 = vsel %vm1597, %v1599, %v1595
    %v1601 = vmul.f32 1.0, %v1600
    %v1602 = vrot.slane %v1560, 2
    %v1604 = vtanh.pop %v1602
    %v1605 = vrot.slane %v1560, 3
    %v1607 = vxor.u32 %v1605, 2147483648
    %v1608 = vmul.f32 %v1607, 1.442695
    %v1609 = vpow.pop %v1608
    %v1610 = vadd.f32 %v1609, 1.0
    %v1611 = vrcp.pop %v1610
    %v1612 = vmul.f32 %v1610, %v1611
    %v1613 = vsub.f32 1.0, %v1612
    %v1614 = vmul.f32 %v1611, %v1613
    %v1615 = vadd.f32 %v1611, %v1614
    %vm1616 = vweird.f32 %v1610
    %vm1617 = vweird.f32 %v1611
    %vm1618 = vmor %vm1616, %vm1617
    %v1619 = vsel %vm1618, %v1611, %v1615
    %v1620 = vand.u32 2147483647, %v1610
    %vm1621 = vcmp.eq.f32.partialorder %v1620, 8.507059e+37
    %v1622 = vand.u32 %v1610, 2147483648
    %v1623 = vor.u32 1.1754944e-38, %v1622
    %v1624 = vsel %vm1621, %v1623, %v1619
    %v1625 = vmul.f32 1.0, %v1624
    %v1626 = vmul.f32 %v1601, %v1298
    %v1627 = vmul.f32 %v1579, %v1604
    %v1628 = vadd.f32 %v1626, %v1627
    %v1629 = vtanh.pop %v1628
    %v1630 = vmul.f32 %v1625, %v1629
    %1631 = vst [vmem:[#allocation3 + $0x2] sm:$0x1] %v1630
    %s1632 = scalar_lea.vmem [#allocation2], 3
    %v1633 = vld [vmem:[%s1632] ss:$8 sm:$0xf]
    %v1634 = vpack.c.bf16 %v1630, %v1630
    %v1635 = vld [vmem:[#allocation12] sm:$0xff]
    %v1636 = vld [vmem:[#allocation12 + $0x8] sm:$0xff]
    %v1637 = vld [vmem:[#allocation12 + $0x10] sm:$0xff]
    %v1638 = vld [vmem:[#allocation12 + $0x18] sm:$0xff]
    %v1639 = vld [vmem:[#allocation12 + $0x20] sm:$0xff]
    %v1640 = vld [vmem:[#allocation12 + $0x28] sm:$0xff]
    %v1641 = vld [vmem:[#allocation12 + $0x30] sm:$0xff]
    %v1642 = vld [vmem:[#allocation12 + $0x38] sm:$0xff]
    %v1643 = vld [vmem:[#allocation12 + $0x40] sm:$0xff]
    %v1644 = vld [vmem:[#allocation12 + $0x48] sm:$0xff]
    %v1645 = vld [vmem:[#allocation12 + $0x50] sm:$0xff]
    %v1646 = vld [vmem:[#allocation12 + $0x58] sm:$0xff]
    %v1647 = vld [vmem:[#allocation12 + $0x60] sm:$0xff]
    %v1648 = vld [vmem:[#allocation12 + $0x68] sm:$0xff]
    %v1649 = vld [vmem:[#allocation12 + $0x70] sm:$0xff]
    %v1650 = vld [vmem:[#allocation12 + $0x78] sm:$0xff]
    %v1651 = vld [vmem:[#allocation12 + $0x80] sm:$0xff]
    %v1652 = vld [vmem:[#allocation12 + $0x88] sm:$0xff]
    %v1653 = vld [vmem:[#allocation12 + $0x90] sm:$0xff]
    %v1654 = vld [vmem:[#allocation12 + $0x98] sm:$0xff]
    %v1655 = vld [vmem:[#allocation12 + $0xa0] sm:$0xff]
    %v1656 = vld [vmem:[#allocation12 + $0xa8] sm:$0xff]
    %v1657 = vld [vmem:[#allocation12 + $0xb0] sm:$0xff]
    %v1658 = vld [vmem:[#allocation12 + $0xb8] sm:$0xff]
    %v1659 = vld [vmem:[#allocation12 + $0xc0] sm:$0xff]
    %v1660 = vld [vmem:[#allocation12 + $0xc8] sm:$0xff]
    %v1661 = vld [vmem:[#allocation12 + $0xd0] sm:$0xff]
    %v1662 = vld [vmem:[#allocation12 + $0xd8] sm:$0xff]
    %v1663 = vld [vmem:[#allocation12 + $0xe0] sm:$0xff]
    %v1664 = vld [vmem:[#allocation12 + $0xe8] sm:$0xff]
    %v1665 = vld [vmem:[#allocation12 + $0xf0] sm:$0xff]
    %v1666 = vld [vmem:[#allocation12 + $0xf8] sm:$0xff]
    %v1699 = vunpack.c.l.b16 %v1635
    %v1700 = vunpack.c.h.b16 %v1635
    %v1701 = vunpack.c.l.b16 %v1636
    %v1702 = vunpack.c.h.b16 %v1636
    %v1703 = vunpack.c.l.b16 %v1637
    %v1704 = vunpack.c.h.b16 %v1637
    %v1705 = vunpack.c.l.b16 %v1638
    %v1706 = vunpack.c.h.b16 %v1638
    %v1707 = vunpack.c.l.b16 %v1639
    %v1708 = vunpack.c.h.b16 %v1639
    %v1709 = vunpack.c.l.b16 %v1640
    %v1710 = vunpack.c.h.b16 %v1640
    %v1711 = vunpack.c.l.b16 %v1641
    %v1712 = vunpack.c.h.b16 %v1641
    %v1713 = vunpack.c.l.b16 %v1642
    %v1714 = vunpack.c.h.b16 %v1642
    %v1715 = vunpack.c.l.b16 %v1643
    %v1716 = vunpack.c.h.b16 %v1643
    %v1717 = vunpack.c.l.b16 %v1644
    %v1718 = vunpack.c.h.b16 %v1644
    %v1719 = vunpack.c.l.b16 %v1645
    %v1720 = vunpack.c.h.b16 %v1645
    %v1721 = vunpack.c.l.b16 %v1646
    %v1722 = vunpack.c.h.b16 %v1646
    %v1723 = vunpack.c.l.b16 %v1647
    %v1724 = vunpack.c.h.b16 %v1647
    %v1725 = vunpack.c.l.b16 %v1648
    %v1726 = vunpack.c.h.b16 %v1648
    %v1727 = vunpack.c.l.b16 %v1649
    %v1728 = vunpack.c.h.b16 %v1649
    %v1729 = vunpack.c.l.b16 %v1650
    %v1730 = vunpack.c.h.b16 %v1650
    %v1731 = vunpack.c.l.b16 %v1651
    %v1732 = vunpack.c.h.b16 %v1651
    %v1733 = vunpack.c.l.b16 %v1652
    %v1734 = vunpack.c.h.b16 %v1652
    %v1735 = vunpack.c.l.b16 %v1653
    %v1736 = vunpack.c.h.b16 %v1653
    %v1737 = vunpack.c.l.b16 %v1654
    %v1738 = vunpack.c.h.b16 %v1654
    %v1739 = vunpack.c.l.b16 %v1655
    %v1740 = vunpack.c.h.b16 %v1655
    %v1741 = vunpack.c.l.b16 %v1656
    %v1742 = vunpack.c.h.b16 %v1656
    %v1743 = vunpack.c.l.b16 %v1657
    %v1744 = vunpack.c.h.b16 %v1657
    %v1745 = vunpack.c.l.b16 %v1658
    %v1746 = vunpack.c.h.b16 %v1658
    %v1747 = vunpack.c.l.b16 %v1659
    %v1748 = vunpack.c.h.b16 %v1659
    %v1749 = vunpack.c.l.b16 %v1660
    %v1750 = vunpack.c.h.b16 %v1660
    %v1751 = vunpack.c.l.b16 %v1661
    %v1752 = vunpack.c.h.b16 %v1661
    %v1753 = vunpack.c.l.b16 %v1662
    %v1754 = vunpack.c.h.b16 %v1662
    %v1755 = vunpack.c.l.b16 %v1663
    %v1756 = vunpack.c.h.b16 %v1663
    %v1757 = vunpack.c.l.b16 %v1664
    %v1758 = vunpack.c.h.b16 %v1664
    %v1759 = vunpack.c.l.b16 %v1665
    %v1760 = vunpack.c.h.b16 %v1665
    %v1761 = vunpack.c.l.b16 %v1666
    %v1762 = vunpack.c.h.b16 %v1666
    %v1763 = vpack.c.b16 %v1703, %v1699
    %v1764 = vpack.c.b16 %v1704, %v1700
    %v1765 = vpack.c.b16 %v1705, %v1701
    %v1766 = vpack.c.b16 %v1706, %v1702
    %v1767 = vpack.c.b16 %v1711, %v1707
    %v1768 = vpack.c.b16 %v1712, %v1708
    %v1769 = vpack.c.b16 %v1713, %v1709
    %v1770 = vpack.c.b16 %v1714, %v1710
    %v1771 = vpack.c.b16 %v1719, %v1715
    %v1772 = vpack.c.b16 %v1720, %v1716
    %v1773 = vpack.c.b16 %v1721, %v1717
    %v1774 = vpack.c.b16 %v1722, %v1718
    %v1775 = vpack.c.b16 %v1727, %v1723
    %v1776 = vpack.c.b16 %v1728, %v1724
    %v1777 = vpack.c.b16 %v1729, %v1725
    %v1778 = vpack.c.b16 %v1730, %v1726
    %v1779 = vpack.c.b16 %v1735, %v1731
    %v1780 = vpack.c.b16 %v1736, %v1732
    %v1781 = vpack.c.b16 %v1737, %v1733
    %v1782 = vpack.c.b16 %v1738, %v1734
    %v1783 = vpack.c.b16 %v1743, %v1739
    %v1784 = vpack.c.b16 %v1744, %v1740
    %v1785 = vpack.c.b16 %v1745, %v1741
    %v1786 = vpack.c.b16 %v1746, %v1742
    %v1787 = vpack.c.b16 %v1751, %v1747
    %v1788 = vpack.c.b16 %v1752, %v1748
    %v1789 = vpack.c.b16 %v1753, %v1749
    %v1790 = vpack.c.b16 %v1754, %v1750
    %v1791 = vpack.c.b16 %v1759, %v1755
    %v1792 = vpack.c.b16 %v1760, %v1756
    %v1793 = vpack.c.b16 %v1761, %v1757
    %v1794 = vpack.c.b16 %v1762, %v1758
    %1827 = vmatpush.bf16.msra.mxu0 %v1791
    %1828 = vmatpush.bf16.msra.mxu0 %v1787
    %1829 = vmatpush.bf16.msra.mxu0 %v1783
    %1830 = vmatpush.bf16.msra.mxu0 %v1779
    %1831 = vmatpush.bf16.msra.mxu0 %v1775
    %1832 = vmatpush.bf16.msra.mxu0 %v1771
    %1833 = vmatpush.bf16.msra.mxu0 %v1767
    %1834 = vmatpush.bf16.msra.mxu0 %v1763
    %1835 = vmatmul.bf16.gmra.mxu0 %v1634
    %v1836 = vpop.f32.mrf.mxu0
    %v1837 = vadd.f32 0.0, %v1836
    %v1838 = vpop.f32.mrf.mxu0
    %1839 = vdwg.mxu0
    %1840 = vmatpush.bf16.msra.mxu0 %v1792
    %1841 = vmatpush.bf16.msra.mxu0 %v1788
    %1842 = vmatpush.bf16.msra.mxu0 %v1784
    %1843 = vmatpush.bf16.msra.mxu0 %v1780
    %1844 = vmatpush.bf16.msra.mxu0 %v1776
    %1845 = vmatpush.bf16.msra.mxu0 %v1772
    %1846 = vmatpush.bf16.msra.mxu0 %v1768
    %1847 = vmatpush.bf16.msra.mxu0 %v1764
    %1848 = vmatmul.bf16.gmra.mxu0 %v1634
    %v1849 = vpop.f32.mrf.mxu0
    %v1850 = vadd.f32 0.0, %v1849
    %v1851 = vpop.f32.mrf.mxu0
    %1852 = vdwg.mxu0
    %1853 = vmatpush.bf16.msra.mxu0 %v1793
    %1854 = vmatpush.bf16.msra.mxu0 %v1789
    %1855 = vmatpush.bf16.msra.mxu0 %v1785
    %1856 = vmatpush.bf16.msra.mxu0 %v1781
    %1857 = vmatpush.bf16.msra.mxu0 %v1777
    %1858 = vmatpush.bf16.msra.mxu0 %v1773
    %1859 = vmatpush.bf16.msra.mxu0 %v1769
    %1860 = vmatpush.bf16.msra.mxu0 %v1765
    %1861 = vmatmul.bf16.gmra.mxu0 %v1634
    %v1862 = vpop.f32.mrf.mxu0
    %v1863 = vadd.f32 0.0, %v1862
    %v1864 = vpop.f32.mrf.mxu0
    %1865 = vdwg.mxu0
    %1866 = vmatpush.bf16.msra.mxu0 %v1794
    %1867 = vmatpush.bf16.msra.mxu0 %v1790
    %1868 = vmatpush.bf16.msra.mxu0 %v1786
    %1869 = vmatpush.bf16.msra.mxu0 %v1782
    %1870 = vmatpush.bf16.msra.mxu0 %v1778
    %1871 = vmatpush.bf16.msra.mxu0 %v1774
    %1872 = vmatpush.bf16.msra.mxu0 %v1770
    %1873 = vmatpush.bf16.msra.mxu0 %v1766
    %1874 = vmatmul.bf16.gmra.mxu0 %v1634
    %v1875 = vpop.f32.mrf.mxu0
    %v1876 = vadd.f32 0.0, %v1875
    %v1877 = vpop.f32.mrf.mxu0
    %1878 = vdwg.mxu0
    %v1883 = vrot.slane %v1850, 7
    %v1884 = vrot.slane %v1863, 6
    %v1885 = vrot.slane %v1876, 5
    %v1886 = vsel %vm893, %v1837, %v1883
    %v1887 = vsel %vm895, %v1884, %v1885
    %v1888 = vsel %vm897, %v1886, %v1887
    %v1890 = vadd.f32 %v1633, %v1888
    %v1891 = vxor.u32 %v1890, 2147483648
    %v1892 = vmul.f32 %v1891, 1.442695
    %v1893 = vpow.pop %v1892
    %v1894 = vadd.f32 %v1893, 1.0
    %v1895 = vrcp.pop %v1894
    %v1896 = vmul.f32 %v1894, %v1895
    %v1897 = vsub.f32 1.0, %v1896
    %v1898 = vmul.f32 %v1895, %v1897
    %v1899 = vadd.f32 %v1895, %v1898
    %vm1900 = vweird.f32 %v1894
    %vm1901 = vweird.f32 %v1895
    %vm1902 = vmor %vm1900, %vm1901
    %v1903 = vsel %vm1902, %v1895, %v1899
    %v1904 = vand.u32 2147483647, %v1894
    %vm1905 = vcmp.eq.f32.partialorder %v1904, 8.507059e+37
    %v1906 = vand.u32 %v1894, 2147483648
    %v1907 = vor.u32 1.1754944e-38, %v1906
    %v1908 = vsel %vm1905, %v1907, %v1903
    %v1909 = vmul.f32 1.0, %v1908
    %v1911 = vrot.slane %v1890, 1
    %v1913 = vxor.u32 %v1911, 2147483648
    %v1914 = vmul.f32 %v1913, 1.442695
    %v1915 = vpow.pop %v1914
    %v1916 = vadd.f32 %v1915, 1.0
    %v1917 = vrcp.pop %v1916
    %v1918 = vmul.f32 %v1916, %v1917
    %v1919 = vsub.f32 1.0, %v1918
    %v1920 = vmul.f32 %v1917, %v1919
    %v1921 = vadd.f32 %v1917, %v1920
    %vm1922 = vweird.f32 %v1916
    %vm1923 = vweird.f32 %v1917
    %vm1924 = vmor %vm1922, %vm1923
    %v1925 = vsel %vm1924, %v1917, %v1921
    %v1926 = vand.u32 2147483647, %v1916
    %vm1927 = vcmp.eq.f32.partialorder %v1926, 8.507059e+37
    %v1928 = vand.u32 %v1916, 2147483648
    %v1929 = vor.u32 1.1754944e-38, %v1928
    %v1930 = vsel %vm1927, %v1929, %v1925
    %v1931 = vmul.f32 1.0, %v1930
    %v1932 = vrot.slane %v1890, 2
    %v1934 = vtanh.pop %v1932
    %v1935 = vrot.slane %v1890, 3
    %v1937 = vxor.u32 %v1935, 2147483648
    %v1938 = vmul.f32 %v1937, 1.442695
    %v1939 = vpow.pop %v1938
    %v1940 = vadd.f32 %v1939, 1.0
    %v1941 = vrcp.pop %v1940
    %v1942 = vmul.f32 %v1940, %v1941
    %v1943 = vsub.f32 1.0, %v1942
    %v1944 = vmul.f32 %v1941, %v1943
    %v1945 = vadd.f32 %v1941, %v1944
    %vm1946 = vweird.f32 %v1940
    %vm1947 = vweird.f32 %v1941
    %vm1948 = vmor %vm1946, %vm1947
    %v1949 = vsel %vm1948, %v1941, %v1945
    %v1950 = vand.u32 2147483647, %v1940
    %vm1951 = vcmp.eq.f32.partialorder %v1950, 8.507059e+37
    %v1952 = vand.u32 %v1940, 2147483648
    %v1953 = vor.u32 1.1754944e-38, %v1952
    %v1954 = vsel %vm1951, %v1953, %v1949
    %v1955 = vmul.f32 1.0, %v1954
    %v1956 = vmul.f32 %v1931, %v1628
    %v1957 = vmul.f32 %v1909, %v1934
    %v1958 = vadd.f32 %v1956, %v1957
    %v1959 = vtanh.pop %v1958
    %v1960 = vmul.f32 %v1955, %v1959
    %1961 = vst [vmem:[#allocation3 + $0x3] sm:$0x1] %v1960
    %s1962 = scalar_lea.vmem [#allocation2], 4
    %v1963 = vld [vmem:[%s1962] ss:$8 sm:$0xf]
    %v1964 = vpack.c.bf16 %v1960, %v1960
    %v1965 = vld [vmem:[#allocation12] sm:$0xff]
    %v1966 = vld [vmem:[#allocation12 + $0x8] sm:$0xff]
    %v1967 = vld [vmem:[#allocation12 + $0x10] sm:$0xff]
    %v1968 = vld [vmem:[#allocation12 + $0x18] sm:$0xff]
    %v1969 = vld [vmem:[#allocation12 + $0x20] sm:$0xff]
    %v1970 = vld [vmem:[#allocation12 + $0x28] sm:$0xff]
    %v1971 = vld [vmem:[#allocation12 + $0x30] sm:$0xff]
    %v1972 = vld [vmem:[#allocation12 + $0x38] sm:$0xff]
    %v1973 = vld [vmem:[#allocation12 + $0x40] sm:$0xff]
    %v1974 = vld [vmem:[#allocation12 + $0x48] sm:$0xff]
    %v1975 = vld [vmem:[#allocation12 + $0x50] sm:$0xff]
    %v1976 = vld [vmem:[#allocation12 + $0x58] sm:$0xff]
    %v1977 = vld [vmem:[#allocation12 + $0x60] sm:$0xff]
    %v1978 = vld [vmem:[#allocation12 + $0x68] sm:$0xff]
    %v1979 = vld [vmem:[#allocation12 + $0x70] sm:$0xff]
    %v1980 = vld [vmem:[#allocation12 + $0x78] sm:$0xff]
    %v1981 = vld [vmem:[#allocation12 + $0x80] sm:$0xff]
    %v1982 = vld [vmem:[#allocation12 + $0x88] sm:$0xff]
    %v1983 = vld [vmem:[#allocation12 + $0x90] sm:$0xff]
    %v1984 = vld [vmem:[#allocation12 + $0x98] sm:$0xff]
    %v1985 = vld [vmem:[#allocation12 + $0xa0] sm:$0xff]
    %v1986 = vld [vmem:[#allocation12 + $0xa8] sm:$0xff]
    %v1987 = vld [vmem:[#allocation12 + $0xb0] sm:$0xff]
    %v1988 = vld [vmem:[#allocation12 + $0xb8] sm:$0xff]
    %v1989 = vld [vmem:[#allocation12 + $0xc0] sm:$0xff]
    %v1990 = vld [vmem:[#allocation12 + $0xc8] sm:$0xff]
    %v1991 = vld [vmem:[#allocation12 + $0xd0] sm:$0xff]
    %v1992 = vld [vmem:[#allocation12 + $0xd8] sm:$0xff]
    %v1993 = vld [vmem:[#allocation12 + $0xe0] sm:$0xff]
    %v1994 = vld [vmem:[#allocation12 + $0xe8] sm:$0xff]
    %v1995 = vld [vmem:[#allocation12 + $0xf0] sm:$0xff]
    %v1996 = vld [vmem:[#allocation12 + $0xf8] sm:$0xff]
    %v2029 = vunpack.c.l.b16 %v1965
    %v2030 = vunpack.c.h.b16 %v1965
    %v2031 = vunpack.c.l.b16 %v1966
    %v2032 = vunpack.c.h.b16 %v1966
    %v2033 = vunpack.c.l.b16 %v1967
    %v2034 = vunpack.c.h.b16 %v1967
    %v2035 = vunpack.c.l.b16 %v1968
    %v2036 = vunpack.c.h.b16 %v1968
    %v2037 = vunpack.c.l.b16 %v1969
    %v2038 = vunpack.c.h.b16 %v1969
    %v2039 = vunpack.c.l.b16 %v1970
    %v2040 = vunpack.c.h.b16 %v1970
    %v2041 = vunpack.c.l.b16 %v1971
    %v2042 = vunpack.c.h.b16 %v1971
    %v2043 = vunpack.c.l.b16 %v1972
    %v2044 = vunpack.c.h.b16 %v1972
    %v2045 = vunpack.c.l.b16 %v1973
    %v2046 = vunpack.c.h.b16 %v1973
    %v2047 = vunpack.c.l.b16 %v1974
    %v2048 = vunpack.c.h.b16 %v1974
    %v2049 = vunpack.c.l.b16 %v1975
    %v2050 = vunpack.c.h.b16 %v1975
    %v2051 = vunpack.c.l.b16 %v1976
    %v2052 = vunpack.c.h.b16 %v1976
    %v2053 = vunpack.c.l.b16 %v1977
    %v2054 = vunpack.c.h.b16 %v1977
    %v2055 = vunpack.c.l.b16 %v1978
    %v2056 = vunpack.c.h.b16 %v1978
    %v2057 = vunpack.c.l.b16 %v1979
    %v2058 = vunpack.c.h.b16 %v1979
    %v2059 = vunpack.c.l.b16 %v1980
    %v2060 = vunpack.c.h.b16 %v1980
    %v2061 = vunpack.c.l.b16 %v1981
    %v2062 = vunpack.c.h.b16 %v1981
    %v2063 = vunpack.c.l.b16 %v1982
    %v2064 = vunpack.c.h.b16 %v1982
    %v2065 = vunpack.c.l.b16 %v1983
    %v2066 = vunpack.c.h.b16 %v1983
    %v2067 = vunpack.c.l.b16 %v1984
    %v2068 = vunpack.c.h.b16 %v1984
    %v2069 = vunpack.c.l.b16 %v1985
    %v2070 = vunpack.c.h.b16 %v1985
    %v2071 = vunpack.c.l.b16 %v1986
    %v2072 = vunpack.c.h.b16 %v1986
    %v2073 = vunpack.c.l.b16 %v1987
    %v2074 = vunpack.c.h.b16 %v1987
    %v2075 = vunpack.c.l.b16 %v1988
    %v2076 = vunpack.c.h.b16 %v1988
    %v2077 = vunpack.c.l.b16 %v1989
    %v2078 = vunpack.c.h.b16 %v1989
    %v2079 = vunpack.c.l.b16 %v1990
    %v2080 = vunpack.c.h.b16 %v1990
    %v2081 = vunpack.c.l.b16 %v1991
    %v2082 = vunpack.c.h.b16 %v1991
    %v2083 = vunpack.c.l.b16 %v1992
    %v2084 = vunpack.c.h.b16 %v1992
    %v2085 = vunpack.c.l.b16 %v1993
    %v2086 = vunpack.c.h.b16 %v1993
    %v2087 = vunpack.c.l.b16 %v1994
    %v2088 = vunpack.c.h.b16 %v1994
    %v2089 = vunpack.c.l.b16 %v1995
    %v2090 = vunpack.c.h.b16 %v1995
    %v2091 = vunpack.c.l.b16 %v1996
    %v2092 = vunpack.c.h.b16 %v1996
    %v2093 = vpack.c.b16 %v2033, %v2029
    %v2094 = vpack.c.b16 %v2034, %v2030
    %v2095 = vpack.c.b16 %v2035, %v2031
    %v2096 = vpack.c.b16 %v2036, %v2032
    %v2097 = vpack.c.b16 %v2041, %v2037
    %v2098 = vpack.c.b16 %v2042, %v2038
    %v2099 = vpack.c.b16 %v2043, %v2039
    %v2100 = vpack.c.b16 %v2044, %v2040
    %v2101 = vpack.c.b16 %v2049, %v2045
    %v2102 = vpack.c.b16 %v2050, %v2046
    %v2103 = vpack.c.b16 %v2051, %v2047
    %v2104 = vpack.c.b16 %v2052, %v2048
    %v2105 = vpack.c.b16 %v2057, %v2053
    %v2106 = vpack.c.b16 %v2058, %v2054
    %v2107 = vpack.c.b16 %v2059, %v2055
    %v2108 = vpack.c.b16 %v2060, %v2056
    %v2109 = vpack.c.b16 %v2065, %v2061
    %v2110 = vpack.c.b16 %v2066, %v2062
    %v2111 = vpack.c.b16 %v2067, %v2063
    %v2112 = vpack.c.b16 %v2068, %v2064
    %v2113 = vpack.c.b16 %v2073, %v2069
    %v2114 = vpack.c.b16 %v2074, %v2070
    %v2115 = vpack.c.b16 %v2075, %v2071
    %v2116 = vpack.c.b16 %v2076, %v2072
    %v2117 = vpack.c.b16 %v2081, %v2077
    %v2118 = vpack.c.b16 %v2082, %v2078
    %v2119 = vpack.c.b16 %v2083, %v2079
    %v2120 = vpack.c.b16 %v2084, %v2080
    %v2121 = vpack.c.b16 %v2089, %v2085
    %v2122 = vpack.c.b16 %v2090, %v2086
    %v2123 = vpack.c.b16 %v2091, %v2087
    %v2124 = vpack.c.b16 %v2092, %v2088
    %2157 = vmatpush.bf16.msra.mxu0 %v2121
    %2158 = vmatpush.bf16.msra.mxu0 %v2117
    %2159 = vmatpush.bf16.msra.mxu0 %v2113
    %2160 = vmatpush.bf16.msra.mxu0 %v2109
    %2161 = vmatpush.bf16.msra.mxu0 %v2105
    %2162 = vmatpush.bf16.msra.mxu0 %v2101
    %2163 = vmatpush.bf16.msra.mxu0 %v2097
    %2164 = vmatpush.bf16.msra.mxu0 %v2093
    %2165 = vmatmul.bf16.gmra.mxu0 %v1964
    %v2166 = vpop.f32.mrf.mxu0
    %v2167 = vadd.f32 0.0, %v2166
    %v2168 = vpop.f32.mrf.mxu0
    %2169 = vdwg.mxu0
    %2170 = vmatpush.bf16.msra.mxu0 %v2122
    %2171 = vmatpush.bf16.msra.mxu0 %v2118
    %2172 = vmatpush.bf16.msra.mxu0 %v2114
    %2173 = vmatpush.bf16.msra.mxu0 %v2110
    %2174 = vmatpush.bf16.msra.mxu0 %v2106
    %2175 = vmatpush.bf16.msra.mxu0 %v2102
    %2176 = vmatpush.bf16.msra.mxu0 %v2098
    %2177 = vmatpush.bf16.msra.mxu0 %v2094
    %2178 = vmatmul.bf16.gmra.mxu0 %v1964
    %v2179 = vpop.f32.mrf.mxu0
    %v2180 = vadd.f32 0.0, %v2179
    %v2181 = vpop.f32.mrf.mxu0
    %2182 = vdwg.mxu0
    %2183 = vmatpush.bf16.msra.mxu0 %v2123
    %2184 = vmatpush.bf16.msra.mxu0 %v2119
    %2185 = vmatpush.bf16.msra.mxu0 %v2115
    %2186 = vmatpush.bf16.msra.mxu0 %v2111
    %2187 = vmatpush.bf16.msra.mxu0 %v2107
    %2188 = vmatpush.bf16.msra.mxu0 %v2103
    %2189 = vmatpush.bf16.msra.mxu0 %v2099
    %2190 = vmatpush.bf16.msra.mxu0 %v2095
    %2191 = vmatmul.bf16.gmra.mxu0 %v1964
    %v2192 = vpop.f32.mrf.mxu0
    %v2193 = vadd.f32 0.0, %v2192
    %v2194 = vpop.f32.mrf.mxu0
    %2195 = vdwg.mxu0
    %2196 = vmatpush.bf16.msra.mxu0 %v2124
    %2197 = vmatpush.bf16.msra.mxu0 %v2120
    %2198 = vmatpush.bf16.msra.mxu0 %v2116
    %2199 = vmatpush.bf16.msra.mxu0 %v2112
    %2200 = vmatpush.bf16.msra.mxu0 %v2108
    %2201 = vmatpush.bf16.msra.mxu0 %v2104
    %2202 = vmatpush.bf16.msra.mxu0 %v2100
    %2203 = vmatpush.bf16.msra.mxu0 %v2096
    %2204 = vmatmul.bf16.gmra.mxu0 %v1964
    %v2205 = vpop.f32.mrf.mxu0
    %v2206 = vadd.f32 0.0, %v2205
    %v2207 = vpop.f32.mrf.mxu0
    %2208 = vdwg.mxu0
    %v2213 = vrot.slane %v2180, 7
    %v2214 = vrot.slane %v2193, 6
    %v2215 = vrot.slane %v2206, 5
    %v2216 = vsel %vm893, %v2167, %v2213
    %v2217 = vsel %vm895, %v2214, %v2215
    %v2218 = vsel %vm897, %v2216, %v2217
    %v2220 = vadd.f32 %v1963, %v2218
    %v2221 = vxor.u32 %v2220, 2147483648
    %v2222 = vmul.f32 %v2221, 1.442695
    %v2223 = vpow.pop %v2222
    %v2224 = vadd.f32 %v2223, 1.0
    %v2225 = vrcp.pop %v2224
    %v2226 = vmul.f32 %v2224, %v2225
    %v2227 = vsub.f32 1.0, %v2226
    %v2228 = vmul.f32 %v2225, %v2227
    %v2229 = vadd.f32 %v2225, %v2228
    %vm2230 = vweird.f32 %v2224
    %vm2231 = vweird.f32 %v2225
    %vm2232 = vmor %vm2230, %vm2231
    %v2233 = vsel %vm2232, %v2225, %v2229
    %v2234 = vand.u32 2147483647, %v2224
    %vm2235 = vcmp.eq.f32.partialorder %v2234, 8.507059e+37
    %v2236 = vand.u32 %v2224, 2147483648
    %v2237 = vor.u32 1.1754944e-38, %v2236
    %v2238 = vsel %vm2235, %v2237, %v2233
    %v2239 = vmul.f32 1.0, %v2238
    %v2241 = vrot.slane %v2220, 1
    %v2243 = vxor.u32 %v2241, 2147483648
    %v2244 = vmul.f32 %v2243, 1.442695
    %v2245 = vpow.pop %v2244
    %v2246 = vadd.f32 %v2245, 1.0
    %v2247 = vrcp.pop %v2246
    %v2248 = vmul.f32 %v2246, %v2247
    %v2249 = vsub.f32 1.0, %v2248
    %v2250 = vmul.f32 %v2247, %v2249
    %v2251 = vadd.f32 %v2247, %v2250
    %vm2252 = vweird.f32 %v2246
    %vm2253 = vweird.f32 %v2247
    %vm2254 = vmor %vm2252, %vm2253
    %v2255 = vsel %vm2254, %v2247, %v2251
    %v2256 = vand.u32 2147483647, %v2246
    %vm2257 = vcmp.eq.f32.partialorder %v2256, 8.507059e+37
    %v2258 = vand.u32 %v2246, 2147483648
    %v2259 = vor.u32 1.1754944e-38, %v2258
    %v2260 = vsel %vm2257, %v2259, %v2255
    %v2261 = vmul.f32 1.0, %v2260
    %v2262 = vrot.slane %v2220, 2
    %v2264 = vtanh.pop %v2262
    %v2265 = vrot.slane %v2220, 3
    %v2267 = vxor.u32 %v2265, 2147483648
    %v2268 = vmul.f32 %v2267, 1.442695
    %v2269 = vpow.pop %v2268
    %v2270 = vadd.f32 %v2269, 1.0
    %v2271 = vrcp.pop %v2270
    %v2272 = vmul.f32 %v2270, %v2271
    %v2273 = vsub.f32 1.0, %v2272
    %v2274 = vmul.f32 %v2271, %v2273
    %v2275 = vadd.f32 %v2271, %v2274
    %vm2276 = vweird.f32 %v2270
    %vm2277 = vweird.f32 %v2271
    %vm2278 = vmor %vm2276, %vm2277
    %v2279 = vsel %vm2278, %v2271, %v2275
    %v2280 = vand.u32 2147483647, %v2270
    %vm2281 = vcmp.eq.f32.partialorder %v2280, 8.507059e+37
    %v2282 = vand.u32 %v2270, 2147483648
    %v2283 = vor.u32 1.1754944e-38, %v2282
    %v2284 = vsel %vm2281, %v2283, %v2279
    %v2285 = vmul.f32 1.0, %v2284
    %v2286 = vmul.f32 %v2261, %v1958
    %v2287 = vmul.f32 %v2239, %v2264
    %v2288 = vadd.f32 %v2286, %v2287
    %v2289 = vtanh.pop %v2288
    %v2290 = vmul.f32 %v2285, %v2289
    %2291 = vst [vmem:[#allocation3 + $0x4] sm:$0x1] %v2290
    %s2292 = scalar_lea.vmem [#allocation2], 5
    %v2293 = vld [vmem:[%s2292] ss:$8 sm:$0xf]
    %v2294 = vpack.c.bf16 %v2290, %v2290
    %v2295 = vld [vmem:[#allocation12] sm:$0xff]
    %v2296 = vld [vmem:[#allocation12 + $0x8] sm:$0xff]
    %v2297 = vld [vmem:[#allocation12 + $0x10] sm:$0xff]
    %v2298 = vld [vmem:[#allocation12 + $0x18] sm:$0xff]
    %v2299 = vld [vmem:[#allocation12 + $0x20] sm:$0xff]
    %v2300 = vld [vmem:[#allocation12 + $0x28] sm:$0xff]
    %v2301 = vld [vmem:[#allocation12 + $0x30] sm:$0xff]
    %v2302 = vld [vmem:[#allocation12 + $0x38] sm:$0xff]
    %v2303 = vld [vmem:[#allocation12 + $0x40] sm:$0xff]
    %v2304 = vld [vmem:[#allocation12 + $0x48] sm:$0xff]
    %v2305 = vld [vmem:[#allocation12 + $0x50] sm:$0xff]
    %v2306 = vld [vmem:[#allocation12 + $0x58] sm:$0xff]
    %v2307 = vld [vmem:[#allocation12 + $0x60] sm:$0xff]
    %v2308 = vld [vmem:[#allocation12 + $0x68] sm:$0xff]
    %v2309 = vld [vmem:[#allocation12 + $0x70] sm:$0xff]
    %v2310 = vld [vmem:[#allocation12 + $0x78] sm:$0xff]
    %v2311 = vld [vmem:[#allocation12 + $0x80] sm:$0xff]
    %v2312 = vld [vmem:[#allocation12 + $0x88] sm:$0xff]
    %v2313 = vld [vmem:[#allocation12 + $0x90] sm:$0xff]
    %v2314 = vld [vmem:[#allocation12 + $0x98] sm:$0xff]
    %v2315 = vld [vmem:[#allocation12 + $0xa0] sm:$0xff]
    %v2316 = vld [vmem:[#allocation12 + $0xa8] sm:$0xff]
    %v2317 = vld [vmem:[#allocation12 + $0xb0] sm:$0xff]
    %v2318 = vld [vmem:[#allocation12 + $0xb8] sm:$0xff]
    %v2319 = vld [vmem:[#allocation12 + $0xc0] sm:$0xff]
    %v2320 = vld [vmem:[#allocation12 + $0xc8] sm:$0xff]
    %v2321 = vld [vmem:[#allocation12 + $0xd0] sm:$0xff]
    %v2322 = vld [vmem:[#allocation12 + $0xd8] sm:$0xff]
    %v2323 = vld [vmem:[#allocation12 + $0xe0] sm:$0xff]
    %v2324 = vld [vmem:[#allocation12 + $0xe8] sm:$0xff]
    %v2325 = vld [vmem:[#allocation12 + $0xf0] sm:$0xff]
    %v2326 = vld [vmem:[#allocation12 + $0xf8] sm:$0xff]
    %v2359 = vunpack.c.l.b16 %v2295
    %v2360 = vunpack.c.h.b16 %v2295
    %v2361 = vunpack.c.l.b16 %v2296
    %v2362 = vunpack.c.h.b16 %v2296
    %v2363 = vunpack.c.l.b16 %v2297
    %v2364 = vunpack.c.h.b16 %v2297
    %v2365 = vunpack.c.l.b16 %v2298
    %v2366 = vunpack.c.h.b16 %v2298
    %v2367 = vunpack.c.l.b16 %v2299
    %v2368 = vunpack.c.h.b16 %v2299
    %v2369 = vunpack.c.l.b16 %v2300
    %v2370 = vunpack.c.h.b16 %v2300
    %v2371 = vunpack.c.l.b16 %v2301
    %v2372 = vunpack.c.h.b16 %v2301
    %v2373 = vunpack.c.l.b16 %v2302
    %v2374 = vunpack.c.h.b16 %v2302
    %v2375 = vunpack.c.l.b16 %v2303
    %v2376 = vunpack.c.h.b16 %v2303
    %v2377 = vunpack.c.l.b16 %v2304
    %v2378 = vunpack.c.h.b16 %v2304
    %v2379 = vunpack.c.l.b16 %v2305
    %v2380 = vunpack.c.h.b16 %v2305
    %v2381 = vunpack.c.l.b16 %v2306
    %v2382 = vunpack.c.h.b16 %v2306
    %v2383 = vunpack.c.l.b16 %v2307
    %v2384 = vunpack.c.h.b16 %v2307
    %v2385 = vunpack.c.l.b16 %v2308
    %v2386 = vunpack.c.h.b16 %v2308
    %v2387 = vunpack.c.l.b16 %v2309
    %v2388 = vunpack.c.h.b16 %v2309
    %v2389 = vunpack.c.l.b16 %v2310
    %v2390 = vunpack.c.h.b16 %v2310
    %v2391 = vunpack.c.l.b16 %v2311
    %v2392 = vunpack.c.h.b16 %v2311
    %v2393 = vunpack.c.l.b16 %v2312
    %v2394 = vunpack.c.h.b16 %v2312
    %v2395 = vunpack.c.l.b16 %v2313
    %v2396 = vunpack.c.h.b16 %v2313
    %v2397 = vunpack.c.l.b16 %v2314
    %v2398 = vunpack.c.h.b16 %v2314
    %v2399 = vunpack.c.l.b16 %v2315
    %v2400 = vunpack.c.h.b16 %v2315
    %v2401 = vunpack.c.l.b16 %v2316
    %v2402 = vunpack.c.h.b16 %v2316
    %v2403 = vunpack.c.l.b16 %v2317
    %v2404 = vunpack.c.h.b16 %v2317
    %v2405 = vunpack.c.l.b16 %v2318
    %v2406 = vunpack.c.h.b16 %v2318
    %v2407 = vunpack.c.l.b16 %v2319
    %v2408 = vunpack.c.h.b16 %v2319
    %v2409 = vunpack.c.l.b16 %v2320
    %v2410 = vunpack.c.h.b16 %v2320
    %v2411 = vunpack.c.l.b16 %v2321
    %v2412 = vunpack.c.h.b16 %v2321
    %v2413 = vunpack.c.l.b16 %v2322
    %v2414 = vunpack.c.h.b16 %v2322
    %v2415 = vunpack.c.l.b16 %v2323
    %v2416 = vunpack.c.h.b16 %v2323
    %v2417 = vunpack.c.l.b16 %v2324
    %v2418 = vunpack.c.h.b16 %v2324
    %v2419 = vunpack.c.l.b16 %v2325
    %v2420 = vunpack.c.h.b16 %v2325
    %v2421 = vunpack.c.l.b16 %v2326
    %v2422 = vunpack.c.h.b16 %v2326
    %v2423 = vpack.c.b16 %v2363, %v2359
    %v2424 = vpack.c.b16 %v2364, %v2360
    %v2425 = vpack.c.b16 %v2365, %v2361
    %v2426 = vpack.c.b16 %v2366, %v2362
    %v2427 = vpack.c.b16 %v2371, %v2367
    %v2428 = vpack.c.b16 %v2372, %v2368
    %v2429 = vpack.c.b16 %v2373, %v2369
    %v2430 = vpack.c.b16 %v2374, %v2370
    %v2431 = vpack.c.b16 %v2379, %v2375
    %v2432 = vpack.c.b16 %v2380, %v2376
    %v2433 = vpack.c.b16 %v2381, %v2377
    %v2434 = vpack.c.b16 %v2382, %v2378
    %v2435 = vpack.c.b16 %v2387, %v2383
    %v2436 = vpack.c.b16 %v2388, %v2384
    %v2437 = vpack.c.b16 %v2389, %v2385
    %v2438 = vpack.c.b16 %v2390, %v2386
    %v2439 = vpack.c.b16 %v2395, %v2391
    %v2440 = vpack.c.b16 %v2396, %v2392
    %v2441 = vpack.c.b16 %v2397, %v2393
    %v2442 = vpack.c.b16 %v2398, %v2394
    %v2443 = vpack.c.b16 %v2403, %v2399
    %v2444 = vpack.c.b16 %v2404, %v2400
    %v2445 = vpack.c.b16 %v2405, %v2401
    %v2446 = vpack.c.b16 %v2406, %v2402
    %v2447 = vpack.c.b16 %v2411, %v2407
    %v2448 = vpack.c.b16 %v2412, %v2408
    %v2449 = vpack.c.b16 %v2413, %v2409
    %v2450 = vpack.c.b16 %v2414, %v2410
    %v2451 = vpack.c.b16 %v2419, %v2415
    %v2452 = vpack.c.b16 %v2420, %v2416
    %v2453 = vpack.c.b16 %v2421, %v2417
    %v2454 = vpack.c.b16 %v2422, %v2418
    %2487 = vmatpush.bf16.msra.mxu0 %v2451
    %2488 = vmatpush.bf16.msra.mxu0 %v2447
    %2489 = vmatpush.bf16.msra.mxu0 %v2443
    %2490 = vmatpush.bf16.msra.mxu0 %v2439
    %2491 = vmatpush.bf16.msra.mxu0 %v2435
    %2492 = vmatpush.bf16.msra.mxu0 %v2431
    %2493 = vmatpush.bf16.msra.mxu0 %v2427
    %2494 = vmatpush.bf16.msra.mxu0 %v2423
    %2495 = vmatmul.bf16.gmra.mxu0 %v2294
    %v2496 = vpop.f32.mrf.mxu0
    %v2497 = vadd.f32 0.0, %v2496
    %v2498 = vpop.f32.mrf.mxu0
    %2499 = vdwg.mxu0
    %2500 = vmatpush.bf16.msra.mxu0 %v2452
    %2501 = vmatpush.bf16.msra.mxu0 %v2448
    %2502 = vmatpush.bf16.msra.mxu0 %v2444
    %2503 = vmatpush.bf16.msra.mxu0 %v2440
    %2504 = vmatpush.bf16.msra.mxu0 %v2436
    %2505 = vmatpush.bf16.msra.mxu0 %v2432
    %2506 = vmatpush.bf16.msra.mxu0 %v2428
    %2507 = vmatpush.bf16.msra.mxu0 %v2424
    %2508 = vmatmul.bf16.gmra.mxu0 %v2294
    %v2509 = vpop.f32.mrf.mxu0
    %v2510 = vadd.f32 0.0, %v2509
    %v2511 = vpop.f32.mrf.mxu0
    %2512 = vdwg.mxu0
    %2513 = vmatpush.bf16.msra.mxu0 %v2453
    %2514 = vmatpush.bf16.msra.mxu0 %v2449
    %2515 = vmatpush.bf16.msra.mxu0 %v2445
    %2516 = vmatpush.bf16.msra.mxu0 %v2441
    %2517 = vmatpush.bf16.msra.mxu0 %v2437
    %2518 = vmatpush.bf16.msra.mxu0 %v2433
    %2519 = vmatpush.bf16.msra.mxu0 %v2429
    %2520 = vmatpush.bf16.msra.mxu0 %v2425
    %2521 = vmatmul.bf16.gmra.mxu0 %v2294
    %v2522 = vpop.f32.mrf.mxu0
    %v2523 = vadd.f32 0.0, %v2522
    %v2524 = vpop.f32.mrf.mxu0
    %2525 = vdwg.mxu0
    %2526 = vmatpush.bf16.msra.mxu0 %v2454
    %2527 = vmatpush.bf16.msra.mxu0 %v2450
    %2528 = vmatpush.bf16.msra.mxu0 %v2446
    %2529 = vmatpush.bf16.msra.mxu0 %v2442
    %2530 = vmatpush.bf16.msra.mxu0 %v2438
    %2531 = vmatpush.bf16.msra.mxu0 %v2434
    %2532 = vmatpush.bf16.msra.mxu0 %v2430
    %2533 = vmatpush.bf16.msra.mxu0 %v2426
    %2534 = vmatmul.bf16.gmra.mxu0 %v2294
    %v2535 = vpop.f32.mrf.mxu0
    %v2536 = vadd.f32 0.0, %v2535
    %v2537 = vpop.f32.mrf.mxu0
    %2538 = vdwg.mxu0
    %v2543 = vrot.slane %v2510, 7
    %v2544 = vrot.slane %v2523, 6
    %v2545 = vrot.slane %v2536, 5
    %v2546 = vsel %vm893, %v2497, %v2543
    %v2547 = vsel %vm895, %v2544, %v2545
    %v2548 = vsel %vm897, %v2546, %v2547
    %v2550 = vadd.f32 %v2293, %v2548
    %v2551 = vxor.u32 %v2550, 2147483648
    %v2552 = vmul.f32 %v2551, 1.442695
    %v2553 = vpow.pop %v2552
    %v2554 = vadd.f32 %v2553, 1.0
    %v2555 = vrcp.pop %v2554
    %v2556 = vmul.f32 %v2554, %v2555
    %v2557 = vsub.f32 1.0, %v2556
    %v2558 = vmul.f32 %v2555, %v2557
    %v2559 = vadd.f32 %v2555, %v2558
    %vm2560 = vweird.f32 %v2554
    %vm2561 = vweird.f32 %v2555
    %vm2562 = vmor %vm2560, %vm2561
    %v2563 = vsel %vm2562, %v2555, %v2559
    %v2564 = vand.u32 2147483647, %v2554
    %vm2565 = vcmp.eq.f32.partialorder %v2564, 8.507059e+37
    %v2566 = vand.u32 %v2554, 2147483648
    %v2567 = vor.u32 1.1754944e-38, %v2566
    %v2568 = vsel %vm2565, %v2567, %v2563
    %v2569 = vmul.f32 1.0, %v2568
    %v2571 = vrot.slane %v2550, 1
    %v2573 = vxor.u32 %v2571, 2147483648
    %v2574 = vmul.f32 %v2573, 1.442695
    %v2575 = vpow.pop %v2574
    %v2576 = vadd.f32 %v2575, 1.0
    %v2577 = vrcp.pop %v2576
    %v2578 = vmul.f32 %v2576, %v2577
    %v2579 = vsub.f32 1.0, %v2578
    %v2580 = vmul.f32 %v2577, %v2579
    %v2581 = vadd.f32 %v2577, %v2580
    %vm2582 = vweird.f32 %v2576
    %vm2583 = vweird.f32 %v2577
    %vm2584 = vmor %vm2582, %vm2583
    %v2585 = vsel %vm2584, %v2577, %v2581
    %v2586 = vand.u32 2147483647, %v2576
    %vm2587 = vcmp.eq.f32.partialorder %v2586, 8.507059e+37
    %v2588 = vand.u32 %v2576, 2147483648
    %v2589 = vor.u32 1.1754944e-38, %v2588
    %v2590 = vsel %vm2587, %v2589, %v2585
    %v2591 = vmul.f32 1.0, %v2590
    %v2592 = vrot.slane %v2550, 2
    %v2594 = vtanh.pop %v2592
    %v2595 = vrot.slane %v2550, 3
    %v2597 = vxor.u32 %v2595, 2147483648
    %v2598 = vmul.f32 %v2597, 1.442695
    %v2599 = vpow.pop %v2598
    %v2600 = vadd.f32 %v2599, 1.0
    %v2601 = vrcp.pop %v2600
    %v2602 = vmul.f32 %v2600, %v2601
    %v2603 = vsub.f32 1.0, %v2602
    %v2604 = vmul.f32 %v2601, %v2603
    %v2605 = vadd.f32 %v2601, %v2604
    %vm2606 = vweird.f32 %v2600
    %vm2607 = vweird.f32 %v2601
    %vm2608 = vmor %vm2606, %vm2607
    %v2609 = vsel %vm2608, %v2601, %v2605
    %v2610 = vand.u32 2147483647, %v2600
    %vm2611 = vcmp.eq.f32.partialorder %v2610, 8.507059e+37
    %v2612 = vand.u32 %v2600, 2147483648
    %v2613 = vor.u32 1.1754944e-38, %v2612
    %v2614 = vsel %vm2611, %v2613, %v2609
    %v2615 = vmul.f32 1.0, %v2614
    %v2616 = vmul.f32 %v2591, %v2288
    %v2617 = vmul.f32 %v2569, %v2594
    %v2618 = vadd.f32 %v2616, %v2617
    %v2619 = vtanh.pop %v2618
    %v2620 = vmul.f32 %v2615, %v2619
    %2621 = vst [vmem:[#allocation3 + $0x5] sm:$0x1] %v2620
    %s2622 = scalar_lea.vmem [#allocation2], 6
    %v2623 = vld [vmem:[%s2622] ss:$8 sm:$0xf]
    %v2624 = vpack.c.bf16 %v2620, %v2620
    %v2625 = vld [vmem:[#allocation12] sm:$0xff]
    %v2626 = vld [vmem:[#allocation12 + $0x8] sm:$0xff]
    %v2627 = vld [vmem:[#allocation12 + $0x10] sm:$0xff]
    %v2628 = vld [vmem:[#allocation12 + $0x18] sm:$0xff]
    %v2629 = vld [vmem:[#allocation12 + $0x20] sm:$0xff]
    %v2630 = vld [vmem:[#allocation12 + $0x28] sm:$0xff]
    %v2631 = vld [vmem:[#allocation12 + $0x30] sm:$0xff]
    %v2632 = vld [vmem:[#allocation12 + $0x38] sm:$0xff]
    %v2633 = vld [vmem:[#allocation12 + $0x40] sm:$0xff]
    %v2634 = vld [vmem:[#allocation12 + $0x48] sm:$0xff]
    %v2635 = vld [vmem:[#allocation12 + $0x50] sm:$0xff]
    %v2636 = vld [vmem:[#allocation12 + $0x58] sm:$0xff]
    %v2637 = vld [vmem:[#allocation12 + $0x60] sm:$0xff]
    %v2638 = vld [vmem:[#allocation12 + $0x68] sm:$0xff]
    %v2639 = vld [vmem:[#allocation12 + $0x70] sm:$0xff]
    %v2640 = vld [vmem:[#allocation12 + $0x78] sm:$0xff]
    %v2641 = vld [vmem:[#allocation12 + $0x80] sm:$0xff]
    %v2642 = vld [vmem:[#allocation12 + $0x88] sm:$0xff]
    %v2643 = vld [vmem:[#allocation12 + $0x90] sm:$0xff]
    %v2644 = vld [vmem:[#allocation12 + $0x98] sm:$0xff]
    %v2645 = vld [vmem:[#allocation12 + $0xa0] sm:$0xff]
    %v2646 = vld [vmem:[#allocation12 + $0xa8] sm:$0xff]
    %v2647 = vld [vmem:[#allocation12 + $0xb0] sm:$0xff]
    %v2648 = vld [vmem:[#allocation12 + $0xb8] sm:$0xff]
    %v2649 = vld [vmem:[#allocation12 + $0xc0] sm:$0xff]
    %v2650 = vld [vmem:[#allocation12 + $0xc8] sm:$0xff]
    %v2651 = vld [vmem:[#allocation12 + $0xd0] sm:$0xff]
    %v2652 = vld [vmem:[#allocation12 + $0xd8] sm:$0xff]
    %v2653 = vld [vmem:[#allocation12 + $0xe0] sm:$0xff]
    %v2654 = vld [vmem:[#allocation12 + $0xe8] sm:$0xff]
    %v2655 = vld [vmem:[#allocation12 + $0xf0] sm:$0xff]
    %v2656 = vld [vmem:[#allocation12 + $0xf8] sm:$0xff]
    %v2689 = vunpack.c.l.b16 %v2625
    %v2690 = vunpack.c.h.b16 %v2625
    %v2691 = vunpack.c.l.b16 %v2626
    %v2692 = vunpack.c.h.b16 %v2626
    %v2693 = vunpack.c.l.b16 %v2627
    %v2694 = vunpack.c.h.b16 %v2627
    %v2695 = vunpack.c.l.b16 %v2628
    %v2696 = vunpack.c.h.b16 %v2628
    %v2697 = vunpack.c.l.b16 %v2629
    %v2698 = vunpack.c.h.b16 %v2629
    %v2699 = vunpack.c.l.b16 %v2630
    %v2700 = vunpack.c.h.b16 %v2630
    %v2701 = vunpack.c.l.b16 %v2631
    %v2702 = vunpack.c.h.b16 %v2631
    %v2703 = vunpack.c.l.b16 %v2632
    %v2704 = vunpack.c.h.b16 %v2632
    %v2705 = vunpack.c.l.b16 %v2633
    %v2706 = vunpack.c.h.b16 %v2633
    %v2707 = vunpack.c.l.b16 %v2634
    %v2708 = vunpack.c.h.b16 %v2634
    %v2709 = vunpack.c.l.b16 %v2635
    %v2710 = vunpack.c.h.b16 %v2635
    %v2711 = vunpack.c.l.b16 %v2636
    %v2712 = vunpack.c.h.b16 %v2636
    %v2713 = vunpack.c.l.b16 %v2637
    %v2714 = vunpack.c.h.b16 %v2637
    %v2715 = vunpack.c.l.b16 %v2638
    %v2716 = vunpack.c.h.b16 %v2638
    %v2717 = vunpack.c.l.b16 %v2639
    %v2718 = vunpack.c.h.b16 %v2639
    %v2719 = vunpack.c.l.b16 %v2640
    %v2720 = vunpack.c.h.b16 %v2640
    %v2721 = vunpack.c.l.b16 %v2641
    %v2722 = vunpack.c.h.b16 %v2641
    %v2723 = vunpack.c.l.b16 %v2642
    %v2724 = vunpack.c.h.b16 %v2642
    %v2725 = vunpack.c.l.b16 %v2643
    %v2726 = vunpack.c.h.b16 %v2643
    %v2727 = vunpack.c.l.b16 %v2644
    %v2728 = vunpack.c.h.b16 %v2644
    %v2729 = vunpack.c.l.b16 %v2645
    %v2730 = vunpack.c.h.b16 %v2645
    %v2731 = vunpack.c.l.b16 %v2646
    %v2732 = vunpack.c.h.b16 %v2646
    %v2733 = vunpack.c.l.b16 %v2647
    %v2734 = vunpack.c.h.b16 %v2647
    %v2735 = vunpack.c.l.b16 %v2648
    %v2736 = vunpack.c.h.b16 %v2648
    %v2737 = vunpack.c.l.b16 %v2649
    %v2738 = vunpack.c.h.b16 %v2649
    %v2739 = vunpack.c.l.b16 %v2650
    %v2740 = vunpack.c.h.b16 %v2650
    %v2741 = vunpack.c.l.b16 %v2651
    %v2742 = vunpack.c.h.b16 %v2651
    %v2743 = vunpack.c.l.b16 %v2652
    %v2744 = vunpack.c.h.b16 %v2652
    %v2745 = vunpack.c.l.b16 %v2653
    %v2746 = vunpack.c.h.b16 %v2653
    %v2747 = vunpack.c.l.b16 %v2654
    %v2748 = vunpack.c.h.b16 %v2654
    %v2749 = vunpack.c.l.b16 %v2655
    %v2750 = vunpack.c.h.b16 %v2655
    %v2751 = vunpack.c.l.b16 %v2656
    %v2752 = vunpack.c.h.b16 %v2656
    %v2753 = vpack.c.b16 %v2693, %v2689
    %v2754 = vpack.c.b16 %v2694, %v2690
    %v2755 = vpack.c.b16 %v2695, %v2691
    %v2756 = vpack.c.b16 %v2696, %v2692
    %v2757 = vpack.c.b16 %v2701, %v2697
    %v2758 = vpack.c.b16 %v2702, %v2698
    %v2759 = vpack.c.b16 %v2703, %v2699
    %v2760 = vpack.c.b16 %v2704, %v2700
    %v2761 = vpack.c.b16 %v2709, %v2705
    %v2762 = vpack.c.b16 %v2710, %v2706
    %v2763 = vpack.c.b16 %v2711, %v2707
    %v2764 = vpack.c.b16 %v2712, %v2708
    %v2765 = vpack.c.b16 %v2717, %v2713
    %v2766 = vpack.c.b16 %v2718, %v2714
    %v2767 = vpack.c.b16 %v2719, %v2715
    %v2768 = vpack.c.b16 %v2720, %v2716
    %v2769 = vpack.c.b16 %v2725, %v2721
    %v2770 = vpack.c.b16 %v2726, %v2722
    %v2771 = vpack.c.b16 %v2727, %v2723
    %v2772 = vpack.c.b16 %v2728, %v2724
    %v2773 = vpack.c.b16 %v2733, %v2729
    %v2774 = vpack.c.b16 %v2734, %v2730
    %v2775 = vpack.c.b16 %v2735, %v2731
    %v2776 = vpack.c.b16 %v2736, %v2732
    %v2777 = vpack.c.b16 %v2741, %v2737
    %v2778 = vpack.c.b16 %v2742, %v2738
    %v2779 = vpack.c.b16 %v2743, %v2739
    %v2780 = vpack.c.b16 %v2744, %v2740
    %v2781 = vpack.c.b16 %v2749, %v2745
    %v2782 = vpack.c.b16 %v2750, %v2746
    %v2783 = vpack.c.b16 %v2751, %v2747
    %v2784 = vpack.c.b16 %v2752, %v2748
    %2817 = vmatpush.bf16.msra.mxu0 %v2781
    %2818 = vmatpush.bf16.msra.mxu0 %v2777
    %2819 = vmatpush.bf16.msra.mxu0 %v2773
    %2820 = vmatpush.bf16.msra.mxu0 %v2769
    %2821 = vmatpush.bf16.msra.mxu0 %v2765
    %2822 = vmatpush.bf16.msra.mxu0 %v2761
    %2823 = vmatpush.bf16.msra.mxu0 %v2757
    %2824 = vmatpush.bf16.msra.mxu0 %v2753
    %2825 = vmatmul.bf16.gmra.mxu0 %v2624
    %v2826 = vpop.f32.mrf.mxu0
    %v2827 = vadd.f32 0.0, %v2826
    %v2828 = vpop.f32.mrf.mxu0
    %2829 = vdwg.mxu0
    %2830 = vmatpush.bf16.msra.mxu0 %v2782
    %2831 = vmatpush.bf16.msra.mxu0 %v2778
    %2832 = vmatpush.bf16.msra.mxu0 %v2774
    %2833 = vmatpush.bf16.msra.mxu0 %v2770
    %2834 = vmatpush.bf16.msra.mxu0 %v2766
    %2835 = vmatpush.bf16.msra.mxu0 %v2762
    %2836 = vmatpush.bf16.msra.mxu0 %v2758
    %2837 = vmatpush.bf16.msra.mxu0 %v2754
    %2838 = vmatmul.bf16.gmra.mxu0 %v2624
    %v2839 = vpop.f32.mrf.mxu0
    %v2840 = vadd.f32 0.0, %v2839
    %v2841 = vpop.f32.mrf.mxu0
    %2842 = vdwg.mxu0
    %2843 = vmatpush.bf16.msra.mxu0 %v2783
    %2844 = vmatpush.bf16.msra.mxu0 %v2779
    %2845 = vmatpush.bf16.msra.mxu0 %v2775
    %2846 = vmatpush.bf16.msra.mxu0 %v2771
    %2847 = vmatpush.bf16.msra.mxu0 %v2767
    %2848 = vmatpush.bf16.msra.mxu0 %v2763
    %2849 = vmatpush.bf16.msra.mxu0 %v2759
    %2850 = vmatpush.bf16.msra.mxu0 %v2755
    %2851 = vmatmul.bf16.gmra.mxu0 %v2624
    %v2852 = vpop.f32.mrf.mxu0
    %v2853 = vadd.f32 0.0, %v2852
    %v2854 = vpop.f32.mrf.mxu0
    %2855 = vdwg.mxu0
    %2856 = vmatpush.bf16.msra.mxu0 %v2784
    %2857 = vmatpush.bf16.msra.mxu0 %v2780
    %2858 = vmatpush.bf16.msra.mxu0 %v2776
    %2859 = vmatpush.bf16.msra.mxu0 %v2772
    %2860 = vmatpush.bf16.msra.mxu0 %v2768
    %2861 = vmatpush.bf16.msra.mxu0 %v2764
    %2862 = vmatpush.bf16.msra.mxu0 %v2760
    %2863 = vmatpush.bf16.msra.mxu0 %v2756
    %2864 = vmatmul.bf16.gmra.mxu0 %v2624
    %v2865 = vpop.f32.mrf.mxu0
    %v2866 = vadd.f32 0.0, %v2865
    %v2867 = vpop.f32.mrf.mxu0
    %2868 = vdwg.mxu0
    %v2873 = vrot.slane %v2840, 7
    %v2874 = vrot.slane %v2853, 6
    %v2875 = vrot.slane %v2866, 5
    %v2876 = vsel %vm893, %v2827, %v2873
    %v2877 = vsel %vm895, %v2874, %v2875
    %v2878 = vsel %vm897, %v2876, %v2877
    %v2880 = vadd.f32 %v2623, %v2878
    %v2881 = vxor.u32 %v2880, 2147483648
    %v2882 = vmul.f32 %v2881, 1.442695
    %v2883 = vpow.pop %v2882
    %v2884 = vadd.f32 %v2883, 1.0
    %v2885 = vrcp.pop %v2884
    %v2886 = vmul.f32 %v2884, %v2885
    %v2887 = vsub.f32 1.0, %v2886
    %v2888 = vmul.f32 %v2885, %v2887
    %v2889 = vadd.f32 %v2885, %v2888
    %vm2890 = vweird.f32 %v2884
    %vm2891 = vweird.f32 %v2885
    %vm2892 = vmor %vm2890, %vm2891
    %v2893 = vsel %vm2892, %v2885, %v2889
    %v2894 = vand.u32 2147483647, %v2884
    %vm2895 = vcmp.eq.f32.partialorder %v2894, 8.507059e+37
    %v2896 = vand.u32 %v2884, 2147483648
    %v2897 = vor.u32 1.1754944e-38, %v2896
    %v2898 = vsel %vm2895, %v2897, %v2893
    %v2899 = vmul.f32 1.0, %v2898
    %v2901 = vrot.slane %v2880, 1
    %v2903 = vxor.u32 %v2901, 2147483648
    %v2904 = vmul.f32 %v2903, 1.442695
    %v2905 = vpow.pop %v2904
    %v2906 = vadd.f32 %v2905, 1.0
    %v2907 = vrcp.pop %v2906
    %v2908 = vmul.f32 %v2906, %v2907
    %v2909 = vsub.f32 1.0, %v2908
    %v2910 = vmul.f32 %v2907, %v2909
    %v2911 = vadd.f32 %v2907, %v2910
    %vm2912 = vweird.f32 %v2906
    %vm2913 = vweird.f32 %v2907
    %vm2914 = vmor %vm2912, %vm2913
    %v2915 = vsel %vm2914, %v2907, %v2911
    %v2916 = vand.u32 2147483647, %v2906
    %vm2917 = vcmp.eq.f32.partialorder %v2916, 8.507059e+37
    %v2918 = vand.u32 %v2906, 2147483648
    %v2919 = vor.u32 1.1754944e-38, %v2918
    %v2920 = vsel %vm2917, %v2919, %v2915
    %v2921 = vmul.f32 1.0, %v2920
    %v2922 = vrot.slane %v2880, 2
    %v2924 = vtanh.pop %v2922
    %v2925 = vrot.slane %v2880, 3
    %v2927 = vxor.u32 %v2925, 2147483648
    %v2928 = vmul.f32 %v2927, 1.442695
    %v2929 = vpow.pop %v2928
    %v2930 = vadd.f32 %v2929, 1.0
    %v2931 = vrcp.pop %v2930
    %v2932 = vmul.f32 %v2930, %v2931
    %v2933 = vsub.f32 1.0, %v2932
    %v2934 = vmul.f32 %v2931, %v2933
    %v2935 = vadd.f32 %v2931, %v2934
    %vm2936 = vweird.f32 %v2930
    %vm2937 = vweird.f32 %v2931
    %vm2938 = vmor %vm2936, %vm2937
    %v2939 = vsel %vm2938, %v2931, %v2935
    %v2940 = vand.u32 2147483647, %v2930
    %vm2941 = vcmp.eq.f32.partialorder %v2940, 8.507059e+37
    %v2942 = vand.u32 %v2930, 2147483648
    %v2943 = vor.u32 1.1754944e-38, %v2942
    %v2944 = vsel %vm2941, %v2943, %v2939
    %v2945 = vmul.f32 1.0, %v2944
    %v2946 = vmul.f32 %v2921, %v2618
    %v2947 = vmul.f32 %v2899, %v2924
    %v2948 = vadd.f32 %v2946, %v2947
    %v2949 = vtanh.pop %v2948
    %v2950 = vmul.f32 %v2945, %v2949
    %2951 = vst [vmem:[#allocation3 + $0x6] sm:$0x1] %v2950
    %s2952 = scalar_lea.vmem [#allocation2], 7
    %v2953 = vld [vmem:[%s2952] ss:$8 sm:$0xf]
    %v2954 = vpack.c.bf16 %v2950, %v2950
    %v2955 = vld [vmem:[#allocation12] sm:$0xff]
    %v2956 = vld [vmem:[#allocation12 + $0x8] sm:$0xff]
    %v2957 = vld [vmem:[#allocation12 + $0x10] sm:$0xff]
    %v2958 = vld [vmem:[#allocation12 + $0x18] sm:$0xff]
    %v2959 = vld [vmem:[#allocation12 + $0x20] sm:$0xff]
    %v2960 = vld [vmem:[#allocation12 + $0x28] sm:$0xff]
    %v2961 = vld [vmem:[#allocation12 + $0x30] sm:$0xff]
    %v2962 = vld [vmem:[#allocation12 + $0x38] sm:$0xff]
    %v2963 = vld [vmem:[#allocation12 + $0x40] sm:$0xff]
    %v2964 = vld [vmem:[#allocation12 + $0x48] sm:$0xff]
    %v2965 = vld [vmem:[#allocation12 + $0x50] sm:$0xff]
    %v2966 = vld [vmem:[#allocation12 + $0x58] sm:$0xff]
    %v2967 = vld [vmem:[#allocation12 + $0x60] sm:$0xff]
    %v2968 = vld [vmem:[#allocation12 + $0x68] sm:$0xff]
    %v2969 = vld [vmem:[#allocation12 + $0x70] sm:$0xff]
    %v2970 = vld [vmem:[#allocation12 + $0x78] sm:$0xff]
    %v2971 = vld [vmem:[#allocation12 + $0x80] sm:$0xff]
    %v2972 = vld [vmem:[#allocation12 + $0x88] sm:$0xff]
    %v2973 = vld [vmem:[#allocation12 + $0x90] sm:$0xff]
    %v2974 = vld [vmem:[#allocation12 + $0x98] sm:$0xff]
    %v2975 = vld [vmem:[#allocation12 + $0xa0] sm:$0xff]
    %v2976 = vld [vmem:[#allocation12 + $0xa8] sm:$0xff]
    %v2977 = vld [vmem:[#allocation12 + $0xb0] sm:$0xff]
    %v2978 = vld [vmem:[#allocation12 + $0xb8] sm:$0xff]
    %v2979 = vld [vmem:[#allocation12 + $0xc0] sm:$0xff]
    %v2980 = vld [vmem:[#allocation12 + $0xc8] sm:$0xff]
    %v2981 = vld [vmem:[#allocation12 + $0xd0] sm:$0xff]
    %v2982 = vld [vmem:[#allocation12 + $0xd8] sm:$0xff]
    %v2983 = vld [vmem:[#allocation12 + $0xe0] sm:$0xff]
    %v2984 = vld [vmem:[#allocation12 + $0xe8] sm:$0xff]
    %v2985 = vld [vmem:[#allocation12 + $0xf0] sm:$0xff]
    %v2986 = vld [vmem:[#allocation12 + $0xf8] sm:$0xff]
    %v3019 = vunpack.c.l.b16 %v2955
    %v3020 = vunpack.c.h.b16 %v2955
    %v3021 = vunpack.c.l.b16 %v2956
    %v3022 = vunpack.c.h.b16 %v2956
    %v3023 = vunpack.c.l.b16 %v2957
    %v3024 = vunpack.c.h.b16 %v2957
    %v3025 = vunpack.c.l.b16 %v2958
    %v3026 = vunpack.c.h.b16 %v2958
    %v3027 = vunpack.c.l.b16 %v2959
    %v3028 = vunpack.c.h.b16 %v2959
    %v3029 = vunpack.c.l.b16 %v2960
    %v3030 = vunpack.c.h.b16 %v2960
    %v3031 = vunpack.c.l.b16 %v2961
    %v3032 = vunpack.c.h.b16 %v2961
    %v3033 = vunpack.c.l.b16 %v2962
    %v3034 = vunpack.c.h.b16 %v2962
    %v3035 = vunpack.c.l.b16 %v2963
    %v3036 = vunpack.c.h.b16 %v2963
    %v3037 = vunpack.c.l.b16 %v2964
    %v3038 = vunpack.c.h.b16 %v2964
    %v3039 = vunpack.c.l.b16 %v2965
    %v3040 = vunpack.c.h.b16 %v2965
    %v3041 = vunpack.c.l.b16 %v2966
    %v3042 = vunpack.c.h.b16 %v2966
    %v3043 = vunpack.c.l.b16 %v2967
    %v3044 = vunpack.c.h.b16 %v2967
    %v3045 = vunpack.c.l.b16 %v2968
    %v3046 = vunpack.c.h.b16 %v2968
    %v3047 = vunpack.c.l.b16 %v2969
    %v3048 = vunpack.c.h.b16 %v2969
    %v3049 = vunpack.c.l.b16 %v2970
    %v3050 = vunpack.c.h.b16 %v2970
    %v3051 = vunpack.c.l.b16 %v2971
    %v3052 = vunpack.c.h.b16 %v2971
    %v3053 = vunpack.c.l.b16 %v2972
    %v3054 = vunpack.c.h.b16 %v2972
    %v3055 = vunpack.c.l.b16 %v2973
    %v3056 = vunpack.c.h.b16 %v2973
    %v3057 = vunpack.c.l.b16 %v2974
    %v3058 = vunpack.c.h.b16 %v2974
    %v3059 = vunpack.c.l.b16 %v2975
    %v3060 = vunpack.c.h.b16 %v2975
    %v3061 = vunpack.c.l.b16 %v2976
    %v3062 = vunpack.c.h.b16 %v2976
    %v3063 = vunpack.c.l.b16 %v2977
    %v3064 = vunpack.c.h.b16 %v2977
    %v3065 = vunpack.c.l.b16 %v2978
    %v3066 = vunpack.c.h.b16 %v2978
    %v3067 = vunpack.c.l.b16 %v2979
    %v3068 = vunpack.c.h.b16 %v2979
    %v3069 = vunpack.c.l.b16 %v2980
    %v3070 = vunpack.c.h.b16 %v2980
    %v3071 = vunpack.c.l.b16 %v2981
    %v3072 = vunpack.c.h.b16 %v2981
    %v3073 = vunpack.c.l.b16 %v2982
    %v3074 = vunpack.c.h.b16 %v2982
    %v3075 = vunpack.c.l.b16 %v2983
    %v3076 = vunpack.c.h.b16 %v2983
    %v3077 = vunpack.c.l.b16 %v2984
    %v3078 = vunpack.c.h.b16 %v2984
    %v3079 = vunpack.c.l.b16 %v2985
    %v3080 = vunpack.c.h.b16 %v2985
    %v3081 = vunpack.c.l.b16 %v2986
    %v3082 = vunpack.c.h.b16 %v2986
    %v3083 = vpack.c.b16 %v3023, %v3019
    %v3084 = vpack.c.b16 %v3024, %v3020
    %v3085 = vpack.c.b16 %v3025, %v3021
    %v3086 = vpack.c.b16 %v3026, %v3022
    %v3087 = vpack.c.b16 %v3031, %v3027
    %v3088 = vpack.c.b16 %v3032, %v3028
    %v3089 = vpack.c.b16 %v3033, %v3029
    %v3090 = vpack.c.b16 %v3034, %v3030
    %v3091 = vpack.c.b16 %v3039, %v3035
    %v3092 = vpack.c.b16 %v3040, %v3036
    %v3093 = vpack.c.b16 %v3041, %v3037
    %v3094 = vpack.c.b16 %v3042, %v3038
    %v3095 = vpack.c.b16 %v3047, %v3043
    %v3096 = vpack.c.b16 %v3048, %v3044
    %v3097 = vpack.c.b16 %v3049, %v3045
    %v3098 = vpack.c.b16 %v3050, %v3046
    %v3099 = vpack.c.b16 %v3055, %v3051
    %v3100 = vpack.c.b16 %v3056, %v3052
    %v3101 = vpack.c.b16 %v3057, %v3053
    %v3102 = vpack.c.b16 %v3058, %v3054
    %v3103 = vpack.c.b16 %v3063, %v3059
    %v3104 = vpack.c.b16 %v3064, %v3060
    %v3105 = vpack.c.b16 %v3065, %v3061
    %v3106 = vpack.c.b16 %v3066, %v3062
    %v3107 = vpack.c.b16 %v3071, %v3067
    %v3108 = vpack.c.b16 %v3072, %v3068
    %v3109 = vpack.c.b16 %v3073, %v3069
    %v3110 = vpack.c.b16 %v3074, %v3070
    %v3111 = vpack.c.b16 %v3079, %v3075
    %v3112 = vpack.c.b16 %v3080, %v3076
    %v3113 = vpack.c.b16 %v3081, %v3077
    %v3114 = vpack.c.b16 %v3082, %v3078
    %3147 = vmatpush.bf16.msra.mxu0 %v3111
    %3148 = vmatpush.bf16.msra.mxu0 %v3107
    %3149 = vmatpush.bf16.msra.mxu0 %v3103
    %3150 = vmatpush.bf16.msra.mxu0 %v3099
    %3151 = vmatpush.bf16.msra.mxu0 %v3095
    %3152 = vmatpush.bf16.msra.mxu0 %v3091
    %3153 = vmatpush.bf16.msra.mxu0 %v3087
    %3154 = vmatpush.bf16.msra.mxu0 %v3083
    %3155 = vmatmul.bf16.gmra.mxu0 %v2954
    %v3156 = vpop.f32.mrf.mxu0
    %v3157 = vadd.f32 0.0, %v3156
    %v3158 = vpop.f32.mrf.mxu0
    %3159 = vdwg.mxu0
    %3160 = vmatpush.bf16.msra.mxu0 %v3112
    %3161 = vmatpush.bf16.msra.mxu0 %v3108
    %3162 = vmatpush.bf16.msra.mxu0 %v3104
    %3163 = vmatpush.bf16.msra.mxu0 %v3100
    %3164 = vmatpush.bf16.msra.mxu0 %v3096
    %3165 = vmatpush.bf16.msra.mxu0 %v3092
    %3166 = vmatpush.bf16.msra.mxu0 %v3088
    %3167 = vmatpush.bf16.msra.mxu0 %v3084
    %3168 = vmatmul.bf16.gmra.mxu0 %v2954
    %v3169 = vpop.f32.mrf.mxu0
    %v3170 = vadd.f32 0.0, %v3169
    %v3171 = vpop.f32.mrf.mxu0
    %3172 = vdwg.mxu0
    %3173 = vmatpush.bf16.msra.mxu0 %v3113
    %3174 = vmatpush.bf16.msra.mxu0 %v3109
    %3175 = vmatpush.bf16.msra.mxu0 %v3105
    %3176 = vmatpush.bf16.msra.mxu0 %v3101
    %3177 = vmatpush.bf16.msra.mxu0 %v3097
    %3178 = vmatpush.bf16.msra.mxu0 %v3093
    %3179 = vmatpush.bf16.msra.mxu0 %v3089
    %3180 = vmatpush.bf16.msra.mxu0 %v3085
    %3181 = vmatmul.bf16.gmra.mxu0 %v2954
    %v3182 = vpop.f32.mrf.mxu0
    %v3183 = vadd.f32 0.0, %v3182
    %v3184 = vpop.f32.mrf.mxu0
    %3185 = vdwg.mxu0
    %3186 = vmatpush.bf16.msra.mxu0 %v3114
    %3187 = vmatpush.bf16.msra.mxu0 %v3110
    %3188 = vmatpush.bf16.msra.mxu0 %v3106
    %3189 = vmatpush.bf16.msra.mxu0 %v3102
    %3190 = vmatpush.bf16.msra.mxu0 %v3098
    %3191 = vmatpush.bf16.msra.mxu0 %v3094
    %3192 = vmatpush.bf16.msra.mxu0 %v3090
    %3193 = vmatpush.bf16.msra.mxu0 %v3086
    %3194 = vmatmul.bf16.gmra.mxu0 %v2954
    %v3195 = vpop.f32.mrf.mxu0
    %v3196 = vadd.f32 0.0, %v3195
    %v3197 = vpop.f32.mrf.mxu0
    %3198 = vdwg.mxu0
    %v3203 = vrot.slane %v3170, 7
    %v3204 = vrot.slane %v3183, 6
    %v3205 = vrot.slane %v3196, 5
    %v3206 = vsel %vm893, %v3157, %v3203
    %v3207 = vsel %vm895, %v3204, %v3205
    %v3208 = vsel %vm897, %v3206, %v3207
    %v3210 = vadd.f32 %v2953, %v3208
    %v3211 = vxor.u32 %v3210, 2147483648
    %v3212 = vmul.f32 %v3211, 1.442695
    %v3213 = vpow.pop %v3212
    %v3214 = vadd.f32 %v3213, 1.0
    %v3215 = vrcp.pop %v3214
    %v3216 = vmul.f32 %v3214, %v3215
    %v3217 = vsub.f32 1.0, %v3216
    %v3218 = vmul.f32 %v3215, %v3217
    %v3219 = vadd.f32 %v3215, %v3218
    %vm3220 = vweird.f32 %v3214
    %vm3221 = vweird.f32 %v3215
    %vm3222 = vmor %vm3220, %vm3221
    %v3223 = vsel %vm3222, %v3215, %v3219
    %v3224 = vand.u32 2147483647, %v3214
    %vm3225 = vcmp.eq.f32.partialorder %v3224, 8.507059e+37
    %v3226 = vand.u32 %v3214, 2147483648
    %v3227 = vor.u32 1.1754944e-38, %v3226
    %v3228 = vsel %vm3225, %v3227, %v3223
    %v3229 = vmul.f32 1.0, %v3228
    %v3231 = vrot.slane %v3210, 1
    %v3233 = vxor.u32 %v3231, 2147483648
    %v3234 = vmul.f32 %v3233, 1.442695
    %v3235 = vpow.pop %v3234
    %v3236 = vadd.f32 %v3235, 1.0
    %v3237 = vrcp.pop %v3236
    %v3238 = vmul.f32 %v3236, %v3237
    %v3239 = vsub.f32 1.0, %v3238
    %v3240 = vmul.f32 %v3237, %v3239
    %v3241 = vadd.f32 %v3237, %v3240
    %vm3242 = vweird.f32 %v3236
    %vm3243 = vweird.f32 %v3237
    %vm3244 = vmor %vm3242, %vm3243
    %v3245 = vsel %vm3244, %v3237, %v3241
    %v3246 = vand.u32 2147483647, %v3236
    %vm3247 = vcmp.eq.f32.partialorder %v3246, 8.507059e+37
    %v3248 = vand.u32 %v3236, 2147483648
    %v3249 = vor.u32 1.1754944e-38, %v3248
    %v3250 = vsel %vm3247, %v3249, %v3245
    %v3251 = vmul.f32 1.0, %v3250
    %v3252 = vrot.slane %v3210, 2
    %v3254 = vtanh.pop %v3252
    %v3255 = vrot.slane %v3210, 3
    %v3257 = vxor.u32 %v3255, 2147483648
    %v3258 = vmul.f32 %v3257, 1.442695
    %v3259 = vpow.pop %v3258
    %v3260 = vadd.f32 %v3259, 1.0
    %v3261 = vrcp.pop %v3260
    %v3262 = vmul.f32 %v3260, %v3261
    %v3263 = vsub.f32 1.0, %v3262
    %v3264 = vmul.f32 %v3261, %v3263
    %v3265 = vadd.f32 %v3261, %v3264
    %vm3266 = vweird.f32 %v3260
    %vm3267 = vweird.f32 %v3261
    %vm3268 = vmor %vm3266, %vm3267
    %v3269 = vsel %vm3268, %v3261, %v3265
    %v3270 = vand.u32 2147483647, %v3260
    %vm3271 = vcmp.eq.f32.partialorder %v3270, 8.507059e+37
    %v3272 = vand.u32 %v3260, 2147483648
    %v3273 = vor.u32 1.1754944e-38, %v3272
    %v3274 = vsel %vm3271, %v3273, %v3269
    %v3275 = vmul.f32 1.0, %v3274
    %v3276 = vmul.f32 %v3251, %v2948
    %v3277 = vmul.f32 %v3229, %v3254
    %v3278 = vadd.f32 %v3276, %v3277
    %v3279 = vtanh.pop %v3278
    %v3280 = vmul.f32 %v3275, %v3279
    %3281 = vst [vmem:[#allocation3 + $0x7] sm:$0x1] %v3280
    %v3282 = vld [vmem:[#allocation3] sm:$0xff]
    %v3283 = vpack.c.bf16 %v3282, %v3282
    %v3284 = vld [vmem:[#allocation14] sm:$0xff]
    %v3285 = vld [vmem:[#allocation14 + $0x8] sm:$0xff]
    %v3286 = vld [vmem:[#allocation14 + $0x10] sm:$0xff]
    %v3287 = vld [vmem:[#allocation14 + $0x18] sm:$0xff]
    %v3288 = vld [vmem:[#allocation14 + $0x20] sm:$0xff]
    %v3289 = vld [vmem:[#allocation14 + $0x28] sm:$0xff]
    %v3290 = vld [vmem:[#allocation14 + $0x30] sm:$0xff]
    %v3291 = vld [vmem:[#allocation14 + $0x38] sm:$0xff]
    %v3292 = vld [vmem:[#allocation14 + $0x40] sm:$0xff]
    %v3293 = vld [vmem:[#allocation14 + $0x48] sm:$0xff]
    %v3294 = vld [vmem:[#allocation14 + $0x50] sm:$0xff]
    %v3295 = vld [vmem:[#allocation14 + $0x58] sm:$0xff]
    %v3296 = vld [vmem:[#allocation14 + $0x60] sm:$0xff]
    %v3297 = vld [vmem:[#allocation14 + $0x68] sm:$0xff]
    %v3298 = vld [vmem:[#allocation14 + $0x70] sm:$0xff]
    %v3299 = vld [vmem:[#allocation14 + $0x78] sm:$0xff]
    %v3300 = vld [vmem:[#allocation14 + $0x80] sm:$0xff]
    %v3301 = vld [vmem:[#allocation14 + $0x88] sm:$0xff]
    %v3302 = vld [vmem:[#allocation14 + $0x90] sm:$0xff]
    %v3303 = vld [vmem:[#allocation14 + $0x98] sm:$0xff]
    %v3304 = vld [vmem:[#allocation14 + $0xa0] sm:$0xff]
    %v3305 = vld [vmem:[#allocation14 + $0xa8] sm:$0xff]
    %v3306 = vld [vmem:[#allocation14 + $0xb0] sm:$0xff]
    %v3307 = vld [vmem:[#allocation14 + $0xb8] sm:$0xff]
    %v3308 = vld [vmem:[#allocation14 + $0xc0] sm:$0xff]
    %v3309 = vld [vmem:[#allocation14 + $0xc8] sm:$0xff]
    %v3310 = vld [vmem:[#allocation14 + $0xd0] sm:$0xff]
    %v3311 = vld [vmem:[#allocation14 + $0xd8] sm:$0xff]
    %v3312 = vld [vmem:[#allocation14 + $0xe0] sm:$0xff]
    %v3313 = vld [vmem:[#allocation14 + $0xe8] sm:$0xff]
    %v3314 = vld [vmem:[#allocation14 + $0xf0] sm:$0xff]
    %v3315 = vld [vmem:[#allocation14 + $0xf8] sm:$0xff]
    %v3316 = vld [vmem:[#allocation14 + $0x100] sm:$0xff]
    %v3317 = vld [vmem:[#allocation14 + $0x108] sm:$0xff]
    %v3318 = vld [vmem:[#allocation14 + $0x110] sm:$0xff]
    %v3319 = vld [vmem:[#allocation14 + $0x118] sm:$0xff]
    %v3320 = vld [vmem:[#allocation14 + $0x120] sm:$0xff]
    %v3321 = vld [vmem:[#allocation14 + $0x128] sm:$0xff]
    %v3322 = vld [vmem:[#allocation14 + $0x130] sm:$0xff]
    %v3323 = vld [vmem:[#allocation14 + $0x138] sm:$0xff]
    %v3324 = vld [vmem:[#allocation14 + $0x140] sm:$0xff]
    %v3325 = vld [vmem:[#allocation14 + $0x148] sm:$0xff]
    %v3326 = vld [vmem:[#allocation14 + $0x150] sm:$0xff]
    %v3327 = vld [vmem:[#allocation14 + $0x158] sm:$0xff]
    %v3328 = vld [vmem:[#allocation14 + $0x160] sm:$0xff]
    %v3329 = vld [vmem:[#allocation14 + $0x168] sm:$0xff]
    %v3330 = vld [vmem:[#allocation14 + $0x170] sm:$0xff]
    %v3331 = vld [vmem:[#allocation14 + $0x178] sm:$0xff]
    %v3332 = vld [vmem:[#allocation14 + $0x180] sm:$0xff]
    %v3333 = vld [vmem:[#allocation14 + $0x188] sm:$0xff]
    %v3334 = vld [vmem:[#allocation14 + $0x190] sm:$0xff]
    %v3335 = vld [vmem:[#allocation14 + $0x198] sm:$0xff]
    %v3336 = vld [vmem:[#allocation14 + $0x1a0] sm:$0xff]
    %v3337 = vld [vmem:[#allocation14 + $0x1a8] sm:$0xff]
    %v3338 = vld [vmem:[#allocation14 + $0x1b0] sm:$0xff]
    %v3339 = vld [vmem:[#allocation14 + $0x1b8] sm:$0xff]
    %v3340 = vld [vmem:[#allocation14 + $0x1c0] sm:$0xff]
    %v3341 = vld [vmem:[#allocation14 + $0x1c8] sm:$0xff]
    %v3342 = vld [vmem:[#allocation14 + $0x1d0] sm:$0xff]
    %v3343 = vld [vmem:[#allocation14 + $0x1d8] sm:$0xff]
    %v3344 = vld [vmem:[#allocation14 + $0x1e0] sm:$0xff]
    %v3345 = vld [vmem:[#allocation14 + $0x1e8] sm:$0xff]
    %v3346 = vld [vmem:[#allocation14 + $0x1f0] sm:$0xff]
    %v3347 = vld [vmem:[#allocation14 + $0x1f8] sm:$0xff]
    %v3348 = vld [vmem:[#allocation17] sm:$0xff]
    %v3350 = vperm.slane %v3348, 0
    %v3351 = vperm.slane %v3348, 1
    %v3352 = vperm.slane %v3348, 2
    %v3353 = vperm.slane %v3348, 3
    %v3354 = vperm.slane %v3348, 4
    %v3355 = vperm.slane %v3348, 5
    %v3356 = vperm.slane %v3348, 6
    %v3357 = vperm.slane %v3348, 7
    %v3430 = vunpack.c.l.b16 %v3284
    %v3431 = vunpack.c.h.b16 %v3284
    %v3432 = vunpack.c.l.b16 %v3285
    %v3433 = vunpack.c.h.b16 %v3285
    %v3434 = vunpack.c.l.b16 %v3286
    %v3435 = vunpack.c.h.b16 %v3286
    %v3436 = vunpack.c.l.b16 %v3287
    %v3437 = vunpack.c.h.b16 %v3287
    %v3438 = vunpack.c.l.b16 %v3288
    %v3439 = vunpack.c.h.b16 %v3288
    %v3440 = vunpack.c.l.b16 %v3289
    %v3441 = vunpack.c.h.b16 %v3289
    %v3442 = vunpack.c.l.b16 %v3290
    %v3443 = vunpack.c.h.b16 %v3290
    %v3444 = vunpack.c.l.b16 %v3291
    %v3445 = vunpack.c.h.b16 %v3291
    %v3446 = vunpack.c.l.b16 %v3292
    %v3447 = vunpack.c.h.b16 %v3292
    %v3448 = vunpack.c.l.b16 %v3293
    %v3449 = vunpack.c.h.b16 %v3293
    %v3450 = vunpack.c.l.b16 %v3294
    %v3451 = vunpack.c.h.b16 %v3294
    %v3452 = vunpack.c.l.b16 %v3295
    %v3453 = vunpack.c.h.b16 %v3295
    %v3454 = vunpack.c.l.b16 %v3296
    %v3455 = vunpack.c.h.b16 %v3296
    %v3456 = vunpack.c.l.b16 %v3297
    %v3457 = vunpack.c.h.b16 %v3297
    %v3458 = vunpack.c.l.b16 %v3298
    %v3459 = vunpack.c.h.b16 %v3298
    %v3460 = vunpack.c.l.b16 %v3299
    %v3461 = vunpack.c.h.b16 %v3299
    %v3462 = vunpack.c.l.b16 %v3300
    %v3463 = vunpack.c.h.b16 %v3300
    %v3464 = vunpack.c.l.b16 %v3301
    %v3465 = vunpack.c.h.b16 %v3301
    %v3466 = vunpack.c.l.b16 %v3302
    %v3467 = vunpack.c.h.b16 %v3302
    %v3468 = vunpack.c.l.b16 %v3303
    %v3469 = vunpack.c.h.b16 %v3303
    %v3470 = vunpack.c.l.b16 %v3304
    %v3471 = vunpack.c.h.b16 %v3304
    %v3472 = vunpack.c.l.b16 %v3305
    %v3473 = vunpack.c.h.b16 %v3305
    %v3474 = vunpack.c.l.b16 %v3306
    %v3475 = vunpack.c.h.b16 %v3306
    %v3476 = vunpack.c.l.b16 %v3307
    %v3477 = vunpack.c.h.b16 %v3307
    %v3478 = vunpack.c.l.b16 %v3308
    %v3479 = vunpack.c.h.b16 %v3308
    %v3480 = vunpack.c.l.b16 %v3309
    %v3481 = vunpack.c.h.b16 %v3309
    %v3482 = vunpack.c.l.b16 %v3310
    %v3483 = vunpack.c.h.b16 %v3310
    %v3484 = vunpack.c.l.b16 %v3311
    %v3485 = vunpack.c.h.b16 %v3311
    %v3486 = vunpack.c.l.b16 %v3312
    %v3487 = vunpack.c.h.b16 %v3312
    %v3488 = vunpack.c.l.b16 %v3313
    %v3489 = vunpack.c.h.b16 %v3313
    %v3490 = vunpack.c.l.b16 %v3314
    %v3491 = vunpack.c.h.b16 %v3314
    %v3492 = vunpack.c.l.b16 %v3315
    %v3493 = vunpack.c.h.b16 %v3315
    %v3494 = vunpack.c.l.b16 %v3316
    %v3495 = vunpack.c.h.b16 %v3316
    %v3496 = vunpack.c.l.b16 %v3317
    %v3497 = vunpack.c.h.b16 %v3317
    %v3498 = vunpack.c.l.b16 %v3318
    %v3499 = vunpack.c.h.b16 %v3318
    %v3500 = vunpack.c.l.b16 %v3319
    %v3501 = vunpack.c.h.b16 %v3319
    %v3502 = vunpack.c.l.b16 %v3320
    %v3503 = vunpack.c.h.b16 %v3320
    %v3504 = vunpack.c.l.b16 %v3321
    %v3505 = vunpack.c.h.b16 %v3321
    %v3506 = vunpack.c.l.b16 %v3322
    %v3507 = vunpack.c.h.b16 %v3322
    %v3508 = vunpack.c.l.b16 %v3323
    %v3509 = vunpack.c.h.b16 %v3323
    %v3510 = vunpack.c.l.b16 %v3324
    %v3511 = vunpack.c.h.b16 %v3324
    %v3512 = vunpack.c.l.b16 %v3325
    %v3513 = vunpack.c.h.b16 %v3325
    %v3514 = vunpack.c.l.b16 %v3326
    %v3515 = vunpack.c.h.b16 %v3326
    %v3516 = vunpack.c.l.b16 %v3327
    %v3517 = vunpack.c.h.b16 %v3327
    %v3518 = vunpack.c.l.b16 %v3328
    %v3519 = vunpack.c.h.b16 %v3328
    %v3520 = vunpack.c.l.b16 %v3329
    %v3521 = vunpack.c.h.b16 %v3329
    %v3522 = vunpack.c.l.b16 %v3330
    %v3523 = vunpack.c.h.b16 %v3330
    %v3524 = vunpack.c.l.b16 %v3331
    %v3525 = vunpack.c.h.b16 %v3331
    %v3526 = vunpack.c.l.b16 %v3332
    %v3527 = vunpack.c.h.b16 %v3332
    %v3528 = vunpack.c.l.b16 %v3333
    %v3529 = vunpack.c.h.b16 %v3333
    %v3530 = vunpack.c.l.b16 %v3334
    %v3531 = vunpack.c.h.b16 %v3334
    %v3532 = vunpack.c.l.b16 %v3335
    %v3533 = vunpack.c.h.b16 %v3335
    %v3534 = vunpack.c.l.b16 %v3336
    %v3535 = vunpack.c.h.b16 %v3336
    %v3536 = vunpack.c.l.b16 %v3337
    %v3537 = vunpack.c.h.b16 %v3337
    %v3538 = vunpack.c.l.b16 %v3338
    %v3539 = vunpack.c.h.b16 %v3338
    %v3540 = vunpack.c.l.b16 %v3339
    %v3541 = vunpack.c.h.b16 %v3339
    %v3542 = vunpack.c.l.b16 %v3340
    %v3543 = vunpack.c.h.b16 %v3340
    %v3544 = vunpack.c.l.b16 %v3341
    %v3545 = vunpack.c.h.b16 %v3341
    %v3546 = vunpack.c.l.b16 %v3342
    %v3547 = vunpack.c.h.b16 %v3342
    %v3548 = vunpack.c.l.b16 %v3343
    %v3549 = vunpack.c.h.b16 %v3343
    %v3550 = vunpack.c.l.b16 %v3344
    %v3551 = vunpack.c.h.b16 %v3344
    %v3552 = vunpack.c.l.b16 %v3345
    %v3553 = vunpack.c.h.b16 %v3345
    %v3554 = vunpack.c.l.b16 %v3346
    %v3555 = vunpack.c.h.b16 %v3346
    %v3556 = vunpack.c.l.b16 %v3347
    %v3557 = vunpack.c.h.b16 %v3347
    %v3558 = vpack.c.b16 %v3438, %v3430
    %v3559 = vpack.c.b16 %v3439, %v3431
    %v3560 = vpack.c.b16 %v3440, %v3432
    %v3561 = vpack.c.b16 %v3441, %v3433
    %v3562 = vpack.c.b16 %v3442, %v3434
    %v3563 = vpack.c.b16 %v3443, %v3435
    %v3564 = vpack.c.b16 %v3444, %v3436
    %v3565 = vpack.c.b16 %v3445, %v3437
    %v3566 = vpack.c.b16 %v3454, %v3446
    %v3567 = vpack.c.b16 %v3455, %v3447
    %v3568 = vpack.c.b16 %v3456, %v3448
    %v3569 = vpack.c.b16 %v3457, %v3449
    %v3570 = vpack.c.b16 %v3458, %v3450
    %v3571 = vpack.c.b16 %v3459, %v3451
    %v3572 = vpack.c.b16 %v3460, %v3452
    %v3573 = vpack.c.b16 %v3461, %v3453
    %v3574 = vpack.c.b16 %v3470, %v3462
    %v3575 = vpack.c.b16 %v3471, %v3463
    %v3576 = vpack.c.b16 %v3472, %v3464
    %v3577 = vpack.c.b16 %v3473, %v3465
    %v3578 = vpack.c.b16 %v3474, %v3466
    %v3579 = vpack.c.b16 %v3475, %v3467
    %v3580 = vpack.c.b16 %v3476, %v3468
    %v3581 = vpack.c.b16 %v3477, %v3469
    %v3582 = vpack.c.b16 %v3486, %v3478
    %v3583 = vpack.c.b16 %v3487, %v3479
    %v3584 = vpack.c.b16 %v3488, %v3480
    %v3585 = vpack.c.b16 %v3489, %v3481
    %v3586 = vpack.c.b16 %v3490, %v3482
    %v3587 = vpack.c.b16 %v3491, %v3483
    %v3588 = vpack.c.b16 %v3492, %v3484
    %v3589 = vpack.c.b16 %v3493, %v3485
    %v3590 = vpack.c.b16 %v3502, %v3494
    %v3591 = vpack.c.b16 %v3503, %v3495
    %v3592 = vpack.c.b16 %v3504, %v3496
    %v3593 = vpack.c.b16 %v3505, %v3497
    %v3594 = vpack.c.b16 %v3506, %v3498
    %v3595 = vpack.c.b16 %v3507, %v3499
    %v3596 = vpack.c.b16 %v3508, %v3500
    %v3597 = vpack.c.b16 %v3509, %v3501
    %v3598 = vpack.c.b16 %v3518, %v3510
    %v3599 = vpack.c.b16 %v3519, %v3511
    %v3600 = vpack.c.b16 %v3520, %v3512
    %v3601 = vpack.c.b16 %v3521, %v3513
    %v3602 = vpack.c.b16 %v3522, %v3514
    %v3603 = vpack.c.b16 %v3523, %v3515
    %v3604 = vpack.c.b16 %v3524, %v3516
    %v3605 = vpack.c.b16 %v3525, %v3517
    %v3606 = vpack.c.b16 %v3534, %v3526
    %v3607 = vpack.c.b16 %v3535, %v3527
    %v3608 = vpack.c.b16 %v3536, %v3528
    %v3609 = vpack.c.b16 %v3537, %v3529
    %v3610 = vpack.c.b16 %v3538, %v3530
    %v3611 = vpack.c.b16 %v3539, %v3531
    %v3612 = vpack.c.b16 %v3540, %v3532
    %v3613 = vpack.c.b16 %v3541, %v3533
    %v3614 = vpack.c.b16 %v3550, %v3542
    %v3615 = vpack.c.b16 %v3551, %v3543
    %v3616 = vpack.c.b16 %v3552, %v3544
    %v3617 = vpack.c.b16 %v3553, %v3545
    %v3618 = vpack.c.b16 %v3554, %v3546
    %v3619 = vpack.c.b16 %v3555, %v3547
    %v3620 = vpack.c.b16 %v3556, %v3548
    %v3621 = vpack.c.b16 %v3557, %v3549
    %3686 = vmatpush.bf16.msra.mxu0 %v3614
    %3687 = vmatpush.bf16.msra.mxu0 %v3606
    %3688 = vmatpush.bf16.msra.mxu0 %v3598
    %3689 = vmatpush.bf16.msra.mxu0 %v3590
    %3690 = vmatpush.bf16.msra.mxu0 %v3582
    %3691 = vmatpush.bf16.msra.mxu0 %v3574
    %3692 = vmatpush.bf16.msra.mxu0 %v3566
    %3693 = vmatpush.bf16.msra.mxu0 %v3558
    %3694 = vmatmul.bf16.gmra.mxu0 %v3283
    %v3695 = vpop.f32.mrf.mxu0
    %v3696 = vadd.f32 %v3350, %v3695
    %v3697 = vpop.f32.mrf.mxu0
    %3698 = vdwg.mxu0
    %3699 = vmatpush.bf16.msra.mxu0 %v3615
    %3700 = vmatpush.bf16.msra.mxu0 %v3607
    %3701 = vmatpush.bf16.msra.mxu0 %v3599
    %3702 = vmatpush.bf16.msra.mxu0 %v3591
    %3703 = vmatpush.bf16.msra.mxu0 %v3583
    %3704 = vmatpush.bf16.msra.mxu0 %v3575
    %3705 = vmatpush.bf16.msra.mxu0 %v3567
    %3706 = vmatpush.bf16.msra.mxu0 %v3559
    %3707 = vmatmul.bf16.gmra.mxu0 %v3283
    %v3708 = vpop.f32.mrf.mxu0
    %v3709 = vadd.f32 %v3351, %v3708
    %v3710 = vpop.f32.mrf.mxu0
    %3711 = vdwg.mxu0
    %3712 = vmatpush.bf16.msra.mxu0 %v3616
    %3713 = vmatpush.bf16.msra.mxu0 %v3608
    %3714 = vmatpush.bf16.msra.mxu0 %v3600
    %3715 = vmatpush.bf16.msra.mxu0 %v3592
    %3716 = vmatpush.bf16.msra.mxu0 %v3584
    %3717 = vmatpush.bf16.msra.mxu0 %v3576
    %3718 = vmatpush.bf16.msra.mxu0 %v3568
    %3719 = vmatpush.bf16.msra.mxu0 %v3560
    %3720 = vmatmul.bf16.gmra.mxu0 %v3283
    %v3721 = vpop.f32.mrf.mxu0
    %v3722 = vadd.f32 %v3352, %v3721
    %v3723 = vpop.f32.mrf.mxu0
    %3724 = vdwg.mxu0
    %3725 = vmatpush.bf16.msra.mxu0 %v3617
    %3726 = vmatpush.bf16.msra.mxu0 %v3609
    %3727 = vmatpush.bf16.msra.mxu0 %v3601
    %3728 = vmatpush.bf16.msra.mxu0 %v3593
    %3729 = vmatpush.bf16.msra.mxu0 %v3585
    %3730 = vmatpush.bf16.msra.mxu0 %v3577
    %3731 = vmatpush.bf16.msra.mxu0 %v3569
    %3732 = vmatpush.bf16.msra.mxu0 %v3561
    %3733 = vmatmul.bf16.gmra.mxu0 %v3283
    %v3734 = vpop.f32.mrf.mxu0
    %v3735 = vadd.f32 %v3353, %v3734
    %v3736 = vpop.f32.mrf.mxu0
    %3737 = vdwg.mxu0
    %3738 = vmatpush.bf16.msra.mxu0 %v3618
    %3739 = vmatpush.bf16.msra.mxu0 %v3610
    %3740 = vmatpush.bf16.msra.mxu0 %v3602
    %3741 = vmatpush.bf16.msra.mxu0 %v3594
    %3742 = vmatpush.bf16.msra.mxu0 %v3586
    %3743 = vmatpush.bf16.msra.mxu0 %v3578
    %3744 = vmatpush.bf16.msra.mxu0 %v3570
    %3745 = vmatpush.bf16.msra.mxu0 %v3562
    %3746 = vmatmul.bf16.gmra.mxu0 %v3283
    %v3747 = vpop.f32.mrf.mxu0
    %v3748 = vadd.f32 %v3354, %v3747
    %v3749 = vpop.f32.mrf.mxu0
    %3750 = vdwg.mxu0
    %3751 = vmatpush.bf16.msra.mxu0 %v3619
    %3752 = vmatpush.bf16.msra.mxu0 %v3611
    %3753 = vmatpush.bf16.msra.mxu0 %v3603
    %3754 = vmatpush.bf16.msra.mxu0 %v3595
    %3755 = vmatpush.bf16.msra.mxu0 %v3587
    %3756 = vmatpush.bf16.msra.mxu0 %v3579
    %3757 = vmatpush.bf16.msra.mxu0 %v3571
    %3758 = vmatpush.bf16.msra.mxu0 %v3563
    %3759 = vmatmul.bf16.gmra.mxu0 %v3283
    %v3760 = vpop.f32.mrf.mxu0
    %v3761 = vadd.f32 %v3355, %v3760
    %v3762 = vpop.f32.mrf.mxu0
    %3763 = vdwg.mxu0
    %3764 = vmatpush.bf16.msra.mxu0 %v3620
    %3765 = vmatpush.bf16.msra.mxu0 %v3612
    %3766 = vmatpush.bf16.msra.mxu0 %v3604
    %3767 = vmatpush.bf16.msra.mxu0 %v3596
    %3768 = vmatpush.bf16.msra.mxu0 %v3588
    %3769 = vmatpush.bf16.msra.mxu0 %v3580
    %3770 = vmatpush.bf16.msra.mxu0 %v3572
    %3771 = vmatpush.bf16.msra.mxu0 %v3564
    %3772 = vmatmul.bf16.gmra.mxu0 %v3283
    %v3773 = vpop.f32.mrf.mxu0
    %v3774 = vadd.f32 %v3356, %v3773
    %v3775 = vpop.f32.mrf.mxu0
    %3776 = vdwg.mxu0
    %3777 = vmatpush.bf16.msra.mxu0 %v3621
    %3778 = vmatpush.bf16.msra.mxu0 %v3613
    %3779 = vmatpush.bf16.msra.mxu0 %v3605
    %3780 = vmatpush.bf16.msra.mxu0 %v3597
    %3781 = vmatpush.bf16.msra.mxu0 %v3589
    %3782 = vmatpush.bf16.msra.mxu0 %v3581
    %3783 = vmatpush.bf16.msra.mxu0 %v3573
    %3784 = vmatpush.bf16.msra.mxu0 %v3565
    %3785 = vmatmul.bf16.gmra.mxu0 %v3283
    %v3786 = vpop.f32.mrf.mxu0
    %v3787 = vadd.f32 %v3357, %v3786
    %v3788 = vpop.f32.mrf.mxu0
    %3789 = vdwg.mxu0
    %3790 = vst [vmem:[#allocation4] sm:$0xff] %v3696
    %3791 = vst [vmem:[#allocation4 + $0x8] sm:$0xff] %v3709
    %3792 = vst [vmem:[#allocation4 + $0x10] sm:$0xff] %v3722
    %3793 = vst [vmem:[#allocation4 + $0x18] sm:$0xff] %v3735
    %3794 = vst [vmem:[#allocation4 + $0x20] sm:$0xff] %v3748
    %3795 = vst [vmem:[#allocation4 + $0x28] sm:$0xff] %v3761
    %3796 = vst [vmem:[#allocation4 + $0x30] sm:$0xff] %v3774
    %3797 = vst [vmem:[#allocation4 + $0x38] sm:$0xff] %v3787
    %v3798 = vld [vmem:[#allocation4] ss:$8 sm:$0xf]
    %v3799 = vld [vmem:[#allocation4] ss:$8 sm:$0xf0]
    %v3800 = vor.u32 %v3798, %v3799
    %v3801 = vld [vmem:[#allocation15] sm:$0xff]
    %v3802 = vld [vmem:[#allocation15 + $0x8] sm:$0xff]
    %v3803 = vld [vmem:[#allocation15 + $0x10] sm:$0xff]
    %v3804 = vld [vmem:[#allocation15 + $0x18] sm:$0xff]
    %v3805 = vld [vmem:[#allocation15 + $0x20] sm:$0xff]
    %v3806 = vld [vmem:[#allocation15 + $0x28] sm:$0xff]
    %v3807 = vld [vmem:[#allocation15 + $0x30] sm:$0xff]
    %v3808 = vld [vmem:[#allocation15 + $0x38] sm:$0xff]
    %v3809 = vld [vmem:[#allocation15 + $0x40] sm:$0xff]
    %v3810 = vld [vmem:[#allocation15 + $0x48] sm:$0xff]
    %v3811 = vld [vmem:[#allocation15 + $0x50] sm:$0xff]
    %v3812 = vld [vmem:[#allocation15 + $0x58] sm:$0xff]
    %v3813 = vld [vmem:[#allocation15 + $0x60] sm:$0xff]
    %v3814 = vld [vmem:[#allocation15 + $0x68] sm:$0xff]
    %v3815 = vld [vmem:[#allocation15 + $0x70] sm:$0xff]
    %v3816 = vld [vmem:[#allocation15 + $0x78] sm:$0xff]
    %v3817 = vld [vmem:[#allocation15 + $0x80] sm:$0xff]
    %v3818 = vld [vmem:[#allocation15 + $0x88] sm:$0xff]
    %v3819 = vld [vmem:[#allocation15 + $0x90] sm:$0xff]
    %v3820 = vld [vmem:[#allocation15 + $0x98] sm:$0xff]
    %v3821 = vld [vmem:[#allocation15 + $0xa0] sm:$0xff]
    %v3822 = vld [vmem:[#allocation15 + $0xa8] sm:$0xff]
    %v3823 = vld [vmem:[#allocation15 + $0xb0] sm:$0xff]
    %v3824 = vld [vmem:[#allocation15 + $0xb8] sm:$0xff]
    %v3825 = vld [vmem:[#allocation15 + $0xc0] sm:$0xff]
    %v3826 = vld [vmem:[#allocation15 + $0xc8] sm:$0xff]
    %v3827 = vld [vmem:[#allocation15 + $0xd0] sm:$0xff]
    %v3828 = vld [vmem:[#allocation15 + $0xd8] sm:$0xff]
    %v3829 = vld [vmem:[#allocation15 + $0xe0] sm:$0xff]
    %v3830 = vld [vmem:[#allocation15 + $0xe8] sm:$0xff]
    %v3831 = vld [vmem:[#allocation15 + $0xf0] sm:$0xff]
    %v3832 = vld [vmem:[#allocation15 + $0xf8] sm:$0xff]
    %v3833 = vld [vmem:[#allocation15 + $0x100] sm:$0xff]
    %v3834 = vld [vmem:[#allocation15 + $0x108] sm:$0xff]
    %v3835 = vld [vmem:[#allocation15 + $0x110] sm:$0xff]
    %v3836 = vld [vmem:[#allocation15 + $0x118] sm:$0xff]
    %v3837 = vld [vmem:[#allocation15 + $0x120] sm:$0xff]
    %v3838 = vld [vmem:[#allocation15 + $0x128] sm:$0xff]
    %v3839 = vld [vmem:[#allocation15 + $0x130] sm:$0xff]
    %v3840 = vld [vmem:[#allocation15 + $0x138] sm:$0xff]
    %v3841 = vld [vmem:[#allocation15 + $0x140] sm:$0xff]
    %v3842 = vld [vmem:[#allocation15 + $0x148] sm:$0xff]
    %v3843 = vld [vmem:[#allocation15 + $0x150] sm:$0xff]
    %v3844 = vld [vmem:[#allocation15 + $0x158] sm:$0xff]
    %v3845 = vld [vmem:[#allocation15 + $0x160] sm:$0xff]
    %v3846 = vld [vmem:[#allocation15 + $0x168] sm:$0xff]
    %v3847 = vld [vmem:[#allocation15 + $0x170] sm:$0xff]
    %v3848 = vld [vmem:[#allocation15 + $0x178] sm:$0xff]
    %v3849 = vld [vmem:[#allocation15 + $0x180] sm:$0xff]
    %v3850 = vld [vmem:[#allocation15 + $0x188] sm:$0xff]
    %v3851 = vld [vmem:[#allocation15 + $0x190] sm:$0xff]
    %v3852 = vld [vmem:[#allocation15 + $0x198] sm:$0xff]
    %v3853 = vld [vmem:[#allocation15 + $0x1a0] sm:$0xff]
    %v3854 = vld [vmem:[#allocation15 + $0x1a8] sm:$0xff]
    %v3855 = vld [vmem:[#allocation15 + $0x1b0] sm:$0xff]
    %v3856 = vld [vmem:[#allocation15 + $0x1b8] sm:$0xff]
    %v3857 = vld [vmem:[#allocation15 + $0x1c0] sm:$0xff]
    %v3858 = vld [vmem:[#allocation15 + $0x1c8] sm:$0xff]
    %v3859 = vld [vmem:[#allocation15 + $0x1d0] sm:$0xff]
    %v3860 = vld [vmem:[#allocation15 + $0x1d8] sm:$0xff]
    %v3861 = vld [vmem:[#allocation15 + $0x1e0] sm:$0xff]
    %v3862 = vld [vmem:[#allocation15 + $0x1e8] sm:$0xff]
    %v3863 = vld [vmem:[#allocation15 + $0x1f0] sm:$0xff]
    %v3864 = vld [vmem:[#allocation15 + $0x1f8] sm:$0xff]
    %v3865 = vld [vmem:[#allocation15 + $0x200] sm:$0xff]
    %v3866 = vld [vmem:[#allocation15 + $0x208] sm:$0xff]
    %v3867 = vld [vmem:[#allocation15 + $0x210] sm:$0xff]
    %v3868 = vld [vmem:[#allocation15 + $0x218] sm:$0xff]
    %v3869 = vld [vmem:[#allocation15 + $0x220] sm:$0xff]
    %v3870 = vld [vmem:[#allocation15 + $0x228] sm:$0xff]
    %v3871 = vld [vmem:[#allocation15 + $0x230] sm:$0xff]
    %v3872 = vld [vmem:[#allocation15 + $0x238] sm:$0xff]
    %v3873 = vld [vmem:[#allocation15 + $0x240] sm:$0xff]
    %v3874 = vld [vmem:[#allocation15 + $0x248] sm:$0xff]
    %v3875 = vld [vmem:[#allocation15 + $0x250] sm:$0xff]
    %v3876 = vld [vmem:[#allocation15 + $0x258] sm:$0xff]
    %v3877 = vld [vmem:[#allocation15 + $0x260] sm:$0xff]
    %v3878 = vld [vmem:[#allocation15 + $0x268] sm:$0xff]
    %v3879 = vld [vmem:[#allocation15 + $0x270] sm:$0xff]
    %v3880 = vld [vmem:[#allocation15 + $0x278] sm:$0xff]
    %v3881 = vld [vmem:[#allocation15 + $0x280] sm:$0xff]
    %v3882 = vld [vmem:[#allocation15 + $0x288] sm:$0xff]
    %v3883 = vld [vmem:[#allocation15 + $0x290] sm:$0xff]
    %v3884 = vld [vmem:[#allocation15 + $0x298] sm:$0xff]
    %v3885 = vld [vmem:[#allocation15 + $0x2a0] sm:$0xff]
    %v3886 = vld [vmem:[#allocation15 + $0x2a8] sm:$0xff]
    %v3887 = vld [vmem:[#allocation15 + $0x2b0] sm:$0xff]
    %v3888 = vld [vmem:[#allocation15 + $0x2b8] sm:$0xff]
    %v3889 = vld [vmem:[#allocation15 + $0x2c0] sm:$0xff]
    %v3890 = vld [vmem:[#allocation15 + $0x2c8] sm:$0xff]
    %v3891 = vld [vmem:[#allocation15 + $0x2d0] sm:$0xff]
    %v3892 = vld [vmem:[#allocation15 + $0x2d8] sm:$0xff]
    %v3893 = vld [vmem:[#allocation15 + $0x2e0] sm:$0xff]
    %v3894 = vld [vmem:[#allocation15 + $0x2e8] sm:$0xff]
    %v3895 = vld [vmem:[#allocation15 + $0x2f0] sm:$0xff]
    %v3896 = vld [vmem:[#allocation15 + $0x2f8] sm:$0xff]
    %v3897 = vld [vmem:[#allocation15 + $0x300] sm:$0xff]
    %v3898 = vld [vmem:[#allocation15 + $0x308] sm:$0xff]
    %v3899 = vld [vmem:[#allocation15 + $0x310] sm:$0xff]
    %v3900 = vld [vmem:[#allocation15 + $0x318] sm:$0xff]
    %v3901 = vld [vmem:[#allocation15 + $0x320] sm:$0xff]
    %v3902 = vld [vmem:[#allocation15 + $0x328] sm:$0xff]
    %v3903 = vld [vmem:[#allocation15 + $0x330] sm:$0xff]
    %v3904 = vld [vmem:[#allocation15 + $0x338] sm:$0xff]
    %v3905 = vld [vmem:[#allocation15 + $0x340] sm:$0xff]
    %v3906 = vld [vmem:[#allocation15 + $0x348] sm:$0xff]
    %v3907 = vld [vmem:[#allocation15 + $0x350] sm:$0xff]
    %v3908 = vld [vmem:[#allocation15 + $0x358] sm:$0xff]
    %v3909 = vld [vmem:[#allocation15 + $0x360] sm:$0xff]
    %v3910 = vld [vmem:[#allocation15 + $0x368] sm:$0xff]
    %v3911 = vld [vmem:[#allocation15 + $0x370] sm:$0xff]
    %v3912 = vld [vmem:[#allocation15 + $0x378] sm:$0xff]
    %v3913 = vld [vmem:[#allocation15 + $0x380] sm:$0xff]
    %v3914 = vld [vmem:[#allocation15 + $0x388] sm:$0xff]
    %v3915 = vld [vmem:[#allocation15 + $0x390] sm:$0xff]
    %v3916 = vld [vmem:[#allocation15 + $0x398] sm:$0xff]
    %v3917 = vld [vmem:[#allocation15 + $0x3a0] sm:$0xff]
    %v3918 = vld [vmem:[#allocation15 + $0x3a8] sm:$0xff]
    %v3919 = vld [vmem:[#allocation15 + $0x3b0] sm:$0xff]
    %v3920 = vld [vmem:[#allocation15 + $0x3b8] sm:$0xff]
    %v3921 = vld [vmem:[#allocation15 + $0x3c0] sm:$0xff]
    %v3922 = vld [vmem:[#allocation15 + $0x3c8] sm:$0xff]
    %v3923 = vld [vmem:[#allocation15 + $0x3d0] sm:$0xff]
    %v3924 = vld [vmem:[#allocation15 + $0x3d8] sm:$0xff]
    %v3925 = vld [vmem:[#allocation15 + $0x3e0] sm:$0xff]
    %v3926 = vld [vmem:[#allocation15 + $0x3e8] sm:$0xff]
    %v3927 = vld [vmem:[#allocation15 + $0x3f0] sm:$0xff]
    %v3928 = vld [vmem:[#allocation15 + $0x3f8] sm:$0xff]
    %v4057 = vunpack.c.l.b16 %v3801
    %v4058 = vunpack.c.h.b16 %v3801
    %v4059 = vunpack.c.l.b16 %v3802
    %v4060 = vunpack.c.h.b16 %v3802
    %v4061 = vunpack.c.l.b16 %v3803
    %v4062 = vunpack.c.h.b16 %v3803
    %v4063 = vunpack.c.l.b16 %v3804
    %v4064 = vunpack.c.h.b16 %v3804
    %v4065 = vunpack.c.l.b16 %v3805
    %v4066 = vunpack.c.h.b16 %v3805
    %v4067 = vunpack.c.l.b16 %v3806
    %v4068 = vunpack.c.h.b16 %v3806
    %v4069 = vunpack.c.l.b16 %v3807
    %v4070 = vunpack.c.h.b16 %v3807
    %v4071 = vunpack.c.l.b16 %v3808
    %v4072 = vunpack.c.h.b16 %v3808
    %v4073 = vunpack.c.l.b16 %v3809
    %v4074 = vunpack.c.h.b16 %v3809
    %v4075 = vunpack.c.l.b16 %v3810
    %v4076 = vunpack.c.h.b16 %v3810
    %v4077 = vunpack.c.l.b16 %v3811
    %v4078 = vunpack.c.h.b16 %v3811
    %v4079 = vunpack.c.l.b16 %v3812
    %v4080 = vunpack.c.h.b16 %v3812
    %v4081 = vunpack.c.l.b16 %v3813
    %v4082 = vunpack.c.h.b16 %v3813
    %v4083 = vunpack.c.l.b16 %v3814
    %v4084 = vunpack.c.h.b16 %v3814
    %v4085 = vunpack.c.l.b16 %v3815
    %v4086 = vunpack.c.h.b16 %v3815
    %v4087 = vunpack.c.l.b16 %v3816
    %v4088 = vunpack.c.h.b16 %v3816
    %v4089 = vunpack.c.l.b16 %v3817
    %v4090 = vunpack.c.h.b16 %v3817
    %v4091 = vunpack.c.l.b16 %v3818
    %v4092 = vunpack.c.h.b16 %v3818
    %v4093 = vunpack.c.l.b16 %v3819
    %v4094 = vunpack.c.h.b16 %v3819
    %v4095 = vunpack.c.l.b16 %v3820
    %v4096 = vunpack.c.h.b16 %v3820
    %v4097 = vunpack.c.l.b16 %v3821
    %v4098 = vunpack.c.h.b16 %v3821
    %v4099 = vunpack.c.l.b16 %v3822
    %v4100 = vunpack.c.h.b16 %v3822
    %v4101 = vunpack.c.l.b16 %v3823
    %v4102 = vunpack.c.h.b16 %v3823
    %v4103 = vunpack.c.l.b16 %v3824
    %v4104 = vunpack.c.h.b16 %v3824
    %v4105 = vunpack.c.l.b16 %v3825
    %v4106 = vunpack.c.h.b16 %v3825
    %v4107 = vunpack.c.l.b16 %v3826
    %v4108 = vunpack.c.h.b16 %v3826
    %v4109 = vunpack.c.l.b16 %v3827
    %v4110 = vunpack.c.h.b16 %v3827
    %v4111 = vunpack.c.l.b16 %v3828
    %v4112 = vunpack.c.h.b16 %v3828
    %v4113 = vunpack.c.l.b16 %v3829
    %v4114 = vunpack.c.h.b16 %v3829
    %v4115 = vunpack.c.l.b16 %v3830
    %v4116 = vunpack.c.h.b16 %v3830
    %v4117 = vunpack.c.l.b16 %v3831
    %v4118 = vunpack.c.h.b16 %v3831
    %v4119 = vunpack.c.l.b16 %v3832
    %v4120 = vunpack.c.h.b16 %v3832
    %v4121 = vunpack.c.l.b16 %v3833
    %v4122 = vunpack.c.h.b16 %v3833
    %v4123 = vunpack.c.l.b16 %v3834
    %v4124 = vunpack.c.h.b16 %v3834
    %v4125 = vunpack.c.l.b16 %v3835
    %v4126 = vunpack.c.h.b16 %v3835
    %v4127 = vunpack.c.l.b16 %v3836
    %v4128 = vunpack.c.h.b16 %v3836
    %v4129 = vunpack.c.l.b16 %v3837
    %v4130 = vunpack.c.h.b16 %v3837
    %v4131 = vunpack.c.l.b16 %v3838
    %v4132 = vunpack.c.h.b16 %v3838
    %v4133 = vunpack.c.l.b16 %v3839
    %v4134 = vunpack.c.h.b16 %v3839
    %v4135 = vunpack.c.l.b16 %v3840
    %v4136 = vunpack.c.h.b16 %v3840
    %v4137 = vunpack.c.l.b16 %v3841
    %v4138 = vunpack.c.h.b16 %v3841
    %v4139 = vunpack.c.l.b16 %v3842
    %v4140 = vunpack.c.h.b16 %v3842
    %v4141 = vunpack.c.l.b16 %v3843
    %v4142 = vunpack.c.h.b16 %v3843
    %v4143 = vunpack.c.l.b16 %v3844
    %v4144 = vunpack.c.h.b16 %v3844
    %v4145 = vunpack.c.l.b16 %v3845
    %v4146 = vunpack.c.h.b16 %v3845
    %v4147 = vunpack.c.l.b16 %v3846
    %v4148 = vunpack.c.h.b16 %v3846
    %v4149 = vunpack.c.l.b16 %v3847
    %v4150 = vunpack.c.h.b16 %v3847
    %v4151 = vunpack.c.l.b16 %v3848
    %v4152 = vunpack.c.h.b16 %v3848
    %v4153 = vunpack.c.l.b16 %v3849
    %v4154 = vunpack.c.h.b16 %v3849
    %v4155 = vunpack.c.l.b16 %v3850
    %v4156 = vunpack.c.h.b16 %v3850
    %v4157 = vunpack.c.l.b16 %v3851
    %v4158 = vunpack.c.h.b16 %v3851
    %v4159 = vunpack.c.l.b16 %v3852
    %v4160 = vunpack.c.h.b16 %v3852
    %v4161 = vunpack.c.l.b16 %v3853
    %v4162 = vunpack.c.h.b16 %v3853
    %v4163 = vunpack.c.l.b16 %v3854
    %v4164 = vunpack.c.h.b16 %v3854
    %v4165 = vunpack.c.l.b16 %v3855
    %v4166 = vunpack.c.h.b16 %v3855
    %v4167 = vunpack.c.l.b16 %v3856
    %v4168 = vunpack.c.h.b16 %v3856
    %v4169 = vunpack.c.l.b16 %v3857
    %v4170 = vunpack.c.h.b16 %v3857
    %v4171 = vunpack.c.l.b16 %v3858
    %v4172 = vunpack.c.h.b16 %v3858
    %v4173 = vunpack.c.l.b16 %v3859
    %v4174 = vunpack.c.h.b16 %v3859
    %v4175 = vunpack.c.l.b16 %v3860
    %v4176 = vunpack.c.h.b16 %v3860
    %v4177 = vunpack.c.l.b16 %v3861
    %v4178 = vunpack.c.h.b16 %v3861
    %v4179 = vunpack.c.l.b16 %v3862
    %v4180 = vunpack.c.h.b16 %v3862
    %v4181 = vunpack.c.l.b16 %v3863
    %v4182 = vunpack.c.h.b16 %v3863
    %v4183 = vunpack.c.l.b16 %v3864
    %v4184 = vunpack.c.h.b16 %v3864
    %v4185 = vunpack.c.l.b16 %v3865
    %v4186 = vunpack.c.h.b16 %v3865
    %v4187 = vunpack.c.l.b16 %v3866
    %v4188 = vunpack.c.h.b16 %v3866
    %v4189 = vunpack.c.l.b16 %v3867
    %v4190 = vunpack.c.h.b16 %v3867
    %v4191 = vunpack.c.l.b16 %v3868
    %v4192 = vunpack.c.h.b16 %v3868
    %v4193 = vunpack.c.l.b16 %v3869
    %v4194 = vunpack.c.h.b16 %v3869
    %v4195 = vunpack.c.l.b16 %v3870
    %v4196 = vunpack.c.h.b16 %v3870
    %v4197 = vunpack.c.l.b16 %v3871
    %v4198 = vunpack.c.h.b16 %v3871
    %v4199 = vunpack.c.l.b16 %v3872
    %v4200 = vunpack.c.h.b16 %v3872
    %v4201 = vunpack.c.l.b16 %v3873
    %v4202 = vunpack.c.h.b16 %v3873
    %v4203 = vunpack.c.l.b16 %v3874
    %v4204 = vunpack.c.h.b16 %v3874
    %v4205 = vunpack.c.l.b16 %v3875
    %v4206 = vunpack.c.h.b16 %v3875
    %v4207 = vunpack.c.l.b16 %v3876
    %v4208 = vunpack.c.h.b16 %v3876
    %v4209 = vunpack.c.l.b16 %v3877
    %v4210 = vunpack.c.h.b16 %v3877
    %v4211 = vunpack.c.l.b16 %v3878
    %v4212 = vunpack.c.h.b16 %v3878
    %v4213 = vunpack.c.l.b16 %v3879
    %v4214 = vunpack.c.h.b16 %v3879
    %v4215 = vunpack.c.l.b16 %v3880
    %v4216 = vunpack.c.h.b16 %v3880
    %v4217 = vunpack.c.l.b16 %v3881
    %v4218 = vunpack.c.h.b16 %v3881
    %v4219 = vunpack.c.l.b16 %v3882
    %v4220 = vunpack.c.h.b16 %v3882
    %v4221 = vunpack.c.l.b16 %v3883
    %v4222 = vunpack.c.h.b16 %v3883
    %v4223 = vunpack.c.l.b16 %v3884
    %v4224 = vunpack.c.h.b16 %v3884
    %v4225 = vunpack.c.l.b16 %v3885
    %v4226 = vunpack.c.h.b16 %v3885
    %v4227 = vunpack.c.l.b16 %v3886
    %v4228 = vunpack.c.h.b16 %v3886
    %v4229 = vunpack.c.l.b16 %v3887
    %v4230 = vunpack.c.h.b16 %v3887
    %v4231 = vunpack.c.l.b16 %v3888
    %v4232 = vunpack.c.h.b16 %v3888
    %v4233 = vunpack.c.l.b16 %v3889
    %v4234 = vunpack.c.h.b16 %v3889
    %v4235 = vunpack.c.l.b16 %v3890
    %v4236 = vunpack.c.h.b16 %v3890
    %v4237 = vunpack.c.l.b16 %v3891
    %v4238 = vunpack.c.h.b16 %v3891
    %v4239 = vunpack.c.l.b16 %v3892
    %v4240 = vunpack.c.h.b16 %v3892
    %v4241 = vunpack.c.l.b16 %v3893
    %v4242 = vunpack.c.h.b16 %v3893
    %v4243 = vunpack.c.l.b16 %v3894
    %v4244 = vunpack.c.h.b16 %v3894
    %v4245 = vunpack.c.l.b16 %v3895
    %v4246 = vunpack.c.h.b16 %v3895
    %v4247 = vunpack.c.l.b16 %v3896
    %v4248 = vunpack.c.h.b16 %v3896
    %v4249 = vunpack.c.l.b16 %v3897
    %v4250 = vunpack.c.h.b16 %v3897
    %v4251 = vunpack.c.l.b16 %v3898
    %v4252 = vunpack.c.h.b16 %v3898
    %v4253 = vunpack.c.l.b16 %v3899
    %v4254 = vunpack.c.h.b16 %v3899
    %v4255 = vunpack.c.l.b16 %v3900
    %v4256 = vunpack.c.h.b16 %v3900
    %v4257 = vunpack.c.l.b16 %v3901
    %v4258 = vunpack.c.h.b16 %v3901
    %v4259 = vunpack.c.l.b16 %v3902
    %v4260 = vunpack.c.h.b16 %v3902
    %v4261 = vunpack.c.l.b16 %v3903
    %v4262 = vunpack.c.h.b16 %v3903
    %v4263 = vunpack.c.l.b16 %v3904
    %v4264 = vunpack.c.h.b16 %v3904
    %v4265 = vunpack.c.l.b16 %v3905
    %v4266 = vunpack.c.h.b16 %v3905
    %v4267 = vunpack.c.l.b16 %v3906
    %v4268 = vunpack.c.h.b16 %v3906
    %v4269 = vunpack.c.l.b16 %v3907
    %v4270 = vunpack.c.h.b16 %v3907
    %v4271 = vunpack.c.l.b16 %v3908
    %v4272 = vunpack.c.h.b16 %v3908
    %v4273 = vunpack.c.l.b16 %v3909
    %v4274 = vunpack.c.h.b16 %v3909
    %v4275 = vunpack.c.l.b16 %v3910
    %v4276 = vunpack.c.h.b16 %v3910
    %v4277 = vunpack.c.l.b16 %v3911
    %v4278 = vunpack.c.h.b16 %v3911
    %v4279 = vunpack.c.l.b16 %v3912
    %v4280 = vunpack.c.h.b16 %v3912
    %v4281 = vunpack.c.l.b16 %v3913
    %v4282 = vunpack.c.h.b16 %v3913
    %v4283 = vunpack.c.l.b16 %v3914
    %v4284 = vunpack.c.h.b16 %v3914
    %v4285 = vunpack.c.l.b16 %v3915
    %v4286 = vunpack.c.h.b16 %v3915
    %v4287 = vunpack.c.l.b16 %v3916
    %v4288 = vunpack.c.h.b16 %v3916
    %v4289 = vunpack.c.l.b16 %v3917
    %v4290 = vunpack.c.h.b16 %v3917
    %v4291 = vunpack.c.l.b16 %v3918
    %v4292 = vunpack.c.h.b16 %v3918
    %v4293 = vunpack.c.l.b16 %v3919
    %v4294 = vunpack.c.h.b16 %v3919
    %v4295 = vunpack.c.l.b16 %v3920
    %v4296 = vunpack.c.h.b16 %v3920
    %v4297 = vunpack.c.l.b16 %v3921
    %v4298 = vunpack.c.h.b16 %v3921
    %v4299 = vunpack.c.l.b16 %v3922
    %v4300 = vunpack.c.h.b16 %v3922
    %v4301 = vunpack.c.l.b16 %v3923
    %v4302 = vunpack.c.h.b16 %v3923
    %v4303 = vunpack.c.l.b16 %v3924
    %v4304 = vunpack.c.h.b16 %v3924
    %v4305 = vunpack.c.l.b16 %v3925
    %v4306 = vunpack.c.h.b16 %v3925
    %v4307 = vunpack.c.l.b16 %v3926
    %v4308 = vunpack.c.h.b16 %v3926
    %v4309 = vunpack.c.l.b16 %v3927
    %v4310 = vunpack.c.h.b16 %v3927
    %v4311 = vunpack.c.l.b16 %v3928
    %v4312 = vunpack.c.h.b16 %v3928
    %v4313 = vpack.c.b16 %v4065, %v4057
    %v4314 = vpack.c.b16 %v4066, %v4058
    %v4315 = vpack.c.b16 %v4067, %v4059
    %v4316 = vpack.c.b16 %v4068, %v4060
    %v4317 = vpack.c.b16 %v4069, %v4061
    %v4318 = vpack.c.b16 %v4070, %v4062
    %v4319 = vpack.c.b16 %v4071, %v4063
    %v4320 = vpack.c.b16 %v4072, %v4064
    %v4321 = vpack.c.b16 %v4081, %v4073
    %v4322 = vpack.c.b16 %v4082, %v4074
    %v4323 = vpack.c.b16 %v4083, %v4075
    %v4324 = vpack.c.b16 %v4084, %v4076
    %v4325 = vpack.c.b16 %v4085, %v4077
    %v4326 = vpack.c.b16 %v4086, %v4078
    %v4327 = vpack.c.b16 %v4087, %v4079
    %v4328 = vpack.c.b16 %v4088, %v4080
    %v4329 = vpack.c.b16 %v4097, %v4089
    %v4330 = vpack.c.b16 %v4098, %v4090
    %v4331 = vpack.c.b16 %v4099, %v4091
    %v4332 = vpack.c.b16 %v4100, %v4092
    %v4333 = vpack.c.b16 %v4101, %v4093
    %v4334 = vpack.c.b16 %v4102, %v4094
    %v4335 = vpack.c.b16 %v4103, %v4095
    %v4336 = vpack.c.b16 %v4104, %v4096
    %v4337 = vpack.c.b16 %v4113, %v4105
    %v4338 = vpack.c.b16 %v4114, %v4106
    %v4339 = vpack.c.b16 %v4115, %v4107
    %v4340 = vpack.c.b16 %v4116, %v4108
    %v4341 = vpack.c.b16 %v4117, %v4109
    %v4342 = vpack.c.b16 %v4118, %v4110
    %v4343 = vpack.c.b16 %v4119, %v4111
    %v4344 = vpack.c.b16 %v4120, %v4112
    %v4345 = vpack.c.b16 %v4129, %v4121
    %v4346 = vpack.c.b16 %v4130, %v4122
    %v4347 = vpack.c.b16 %v4131, %v4123
    %v4348 = vpack.c.b16 %v4132, %v4124
    %v4349 = vpack.c.b16 %v4133, %v4125
    %v4350 = vpack.c.b16 %v4134, %v4126
    %v4351 = vpack.c.b16 %v4135, %v4127
    %v4352 = vpack.c.b16 %v4136, %v4128
    %v4353 = vpack.c.b16 %v4145, %v4137
    %v4354 = vpack.c.b16 %v4146, %v4138
    %v4355 = vpack.c.b16 %v4147, %v4139
    %v4356 = vpack.c.b16 %v4148, %v4140
    %v4357 = vpack.c.b16 %v4149, %v4141
    %v4358 = vpack.c.b16 %v4150, %v4142
    %v4359 = vpack.c.b16 %v4151, %v4143
    %v4360 = vpack.c.b16 %v4152, %v4144
    %v4361 = vpack.c.b16 %v4161, %v4153
    %v4362 = vpack.c.b16 %v4162, %v4154
    %v4363 = vpack.c.b16 %v4163, %v4155
    %v4364 = vpack.c.b16 %v4164, %v4156
    %v4365 = vpack.c.b16 %v4165, %v4157
    %v4366 = vpack.c.b16 %v4166, %v4158
    %v4367 = vpack.c.b16 %v4167, %v4159
    %v4368 = vpack.c.b16 %v4168, %v4160
    %v4369 = vpack.c.b16 %v4177, %v4169
    %v4370 = vpack.c.b16 %v4178, %v4170
    %v4371 = vpack.c.b16 %v4179, %v4171
    %v4372 = vpack.c.b16 %v4180, %v4172
    %v4373 = vpack.c.b16 %v4181, %v4173
    %v4374 = vpack.c.b16 %v4182, %v4174
    %v4375 = vpack.c.b16 %v4183, %v4175
    %v4376 = vpack.c.b16 %v4184, %v4176
    %v4377 = vpack.c.b16 %v4193, %v4185
    %v4378 = vpack.c.b16 %v4194, %v4186
    %v4379 = vpack.c.b16 %v4195, %v4187
    %v4380 = vpack.c.b16 %v4196, %v4188
    %v4381 = vpack.c.b16 %v4197, %v4189
    %v4382 = vpack.c.b16 %v4198, %v4190
    %v4383 = vpack.c.b16 %v4199, %v4191
    %v4384 = vpack.c.b16 %v4200, %v4192
    %v4385 = vpack.c.b16 %v4209, %v4201
    %v4386 = vpack.c.b16 %v4210, %v4202
    %v4387 = vpack.c.b16 %v4211, %v4203
    %v4388 = vpack.c.b16 %v4212, %v4204
    %v4389 = vpack.c.b16 %v4213, %v4205
    %v4390 = vpack.c.b16 %v4214, %v4206
    %v4391 = vpack.c.b16 %v4215, %v4207
    %v4392 = vpack.c.b16 %v4216, %v4208
    %v4393 = vpack.c.b16 %v4225, %v4217
    %v4394 = vpack.c.b16 %v4226, %v4218
    %v4395 = vpack.c.b16 %v4227, %v4219
    %v4396 = vpack.c.b16 %v4228, %v4220
    %v4397 = vpack.c.b16 %v4229, %v4221
    %v4398 = vpack.c.b16 %v4230, %v4222
    %v4399 = vpack.c.b16 %v4231, %v4223
    %v4400 = vpack.c.b16 %v4232, %v4224
    %v4401 = vpack.c.b16 %v4241, %v4233
    %v4402 = vpack.c.b16 %v4242, %v4234
    %v4403 = vpack.c.b16 %v4243, %v4235
    %v4404 = vpack.c.b16 %v4244, %v4236
    %v4405 = vpack.c.b16 %v4245, %v4237
    %v4406 = vpack.c.b16 %v4246, %v4238
    %v4407 = vpack.c.b16 %v4247, %v4239
    %v4408 = vpack.c.b16 %v4248, %v4240
    %v4409 = vpack.c.b16 %v4257, %v4249
    %v4410 = vpack.c.b16 %v4258, %v4250
    %v4411 = vpack.c.b16 %v4259, %v4251
    %v4412 = vpack.c.b16 %v4260, %v4252
    %v4413 = vpack.c.b16 %v4261, %v4253
    %v4414 = vpack.c.b16 %v4262, %v4254
    %v4415 = vpack.c.b16 %v4263, %v4255
    %v4416 = vpack.c.b16 %v4264, %v4256
    %v4417 = vpack.c.b16 %v4273, %v4265
    %v4418 = vpack.c.b16 %v4274, %v4266
    %v4419 = vpack.c.b16 %v4275, %v4267
    %v4420 = vpack.c.b16 %v4276, %v4268
    %v4421 = vpack.c.b16 %v4277, %v4269
    %v4422 = vpack.c.b16 %v4278, %v4270
    %v4423 = vpack.c.b16 %v4279, %v4271
    %v4424 = vpack.c.b16 %v4280, %v4272
    %v4425 = vpack.c.b16 %v4289, %v4281
    %v4426 = vpack.c.b16 %v4290, %v4282
    %v4427 = vpack.c.b16 %v4291, %v4283
    %v4428 = vpack.c.b16 %v4292, %v4284
    %v4429 = vpack.c.b16 %v4293, %v4285
    %v4430 = vpack.c.b16 %v4294, %v4286
    %v4431 = vpack.c.b16 %v4295, %v4287
    %v4432 = vpack.c.b16 %v4296, %v4288
    %v4433 = vpack.c.b16 %v4305, %v4297
    %v4434 = vpack.c.b16 %v4306, %v4298
    %v4435 = vpack.c.b16 %v4307, %v4299
    %v4436 = vpack.c.b16 %v4308, %v4300
    %v4437 = vpack.c.b16 %v4309, %v4301
    %v4438 = vpack.c.b16 %v4310, %v4302
    %v4439 = vpack.c.b16 %v4311, %v4303
    %v4440 = vpack.c.b16 %v4312, %v4304
    %4569 = vmatpush.bf16.msra.mxu0 %v4369
    %4570 = vmatpush.bf16.msra.mxu0 %v4361
    %4571 = vmatpush.bf16.msra.mxu0 %v4353
    %4572 = vmatpush.bf16.msra.mxu0 %v4345
    %4573 = vmatpush.bf16.msra.mxu0 %v4337
    %4574 = vmatpush.bf16.msra.mxu0 %v4329
    %4575 = vmatpush.bf16.msra.mxu0 %v4321
    %4576 = vmatpush.bf16.msra.mxu0 %v4313
    %4577 = vmatmul.bf16.gmra.mxu0 0
    %v4578 = vpop.f32.mrf.mxu0
    %v4579 = vadd.f32 0.0, %v4578
    %v4580 = vpop.f32.mrf.mxu0
    %4581 = vdwg.mxu0
    %4582 = vmatpush.bf16.msra.mxu0 %v4433
    %4583 = vmatpush.bf16.msra.mxu0 %v4425
    %4584 = vmatpush.bf16.msra.mxu0 %v4417
    %4585 = vmatpush.bf16.msra.mxu0 %v4409
    %4586 = vmatpush.bf16.msra.mxu0 %v4401
    %4587 = vmatpush.bf16.msra.mxu0 %v4393
    %4588 = vmatpush.bf16.msra.mxu0 %v4385
    %4589 = vmatpush.bf16.msra.mxu0 %v4377
    %4590 = vmatmul.bf16.gmra.mxu0 0
    %v4591 = vpop.f32.mrf.mxu0
    %v4592 = vadd.f32 %v4579, %v4591
    %v4593 = vpop.f32.mrf.mxu0
    %4594 = vdwg.mxu0
    %4595 = vmatpush.bf16.msra.mxu0 %v4370
    %4596 = vmatpush.bf16.msra.mxu0 %v4362
    %4597 = vmatpush.bf16.msra.mxu0 %v4354
    %4598 = vmatpush.bf16.msra.mxu0 %v4346
    %4599 = vmatpush.bf16.msra.mxu0 %v4338
    %4600 = vmatpush.bf16.msra.mxu0 %v4330
    %4601 = vmatpush.bf16.msra.mxu0 %v4322
    %4602 = vmatpush.bf16.msra.mxu0 %v4314
    %4603 = vmatmul.bf16.gmra.mxu0 0
    %v4604 = vpop.f32.mrf.mxu0
    %v4605 = vadd.f32 0.0, %v4604
    %v4606 = vpop.f32.mrf.mxu0
    %4607 = vdwg.mxu0
    %4608 = vmatpush.bf16.msra.mxu0 %v4434
    %4609 = vmatpush.bf16.msra.mxu0 %v4426
    %4610 = vmatpush.bf16.msra.mxu0 %v4418
    %4611 = vmatpush.bf16.msra.mxu0 %v4410
    %4612 = vmatpush.bf16.msra.mxu0 %v4402
    %4613 = vmatpush.bf16.msra.mxu0 %v4394
    %4614 = vmatpush.bf16.msra.mxu0 %v4386
    %4615 = vmatpush.bf16.msra.mxu0 %v4378
    %4616 = vmatmul.bf16.gmra.mxu0 0
    %v4617 = vpop.f32.mrf.mxu0
    %v4618 = vadd.f32 %v4605, %v4617
    %v4619 = vpop.f32.mrf.mxu0
    %4620 = vdwg.mxu0
    %4621 = vmatpush.bf16.msra.mxu0 %v4371
    %4622 = vmatpush.bf16.msra.mxu0 %v4363
    %4623 = vmatpush.bf16.msra.mxu0 %v4355
    %4624 = vmatpush.bf16.msra.mxu0 %v4347
    %4625 = vmatpush.bf16.msra.mxu0 %v4339
    %4626 = vmatpush.bf16.msra.mxu0 %v4331
    %4627 = vmatpush.bf16.msra.mxu0 %v4323
    %4628 = vmatpush.bf16.msra.mxu0 %v4315
    %4629 = vmatmul.bf16.gmra.mxu0 0
    %v4630 = vpop.f32.mrf.mxu0
    %v4631 = vadd.f32 0.0, %v4630
    %v4632 = vpop.f32.mrf.mxu0
    %4633 = vdwg.mxu0
    %4634 = vmatpush.bf16.msra.mxu0 %v4435
    %4635 = vmatpush.bf16.msra.mxu0 %v4427
    %4636 = vmatpush.bf16.msra.mxu0 %v4419
    %4637 = vmatpush.bf16.msra.mxu0 %v4411
    %4638 = vmatpush.bf16.msra.mxu0 %v4403
    %4639 = vmatpush.bf16.msra.mxu0 %v4395
    %4640 = vmatpush.bf16.msra.mxu0 %v4387
    %4641 = vmatpush.bf16.msra.mxu0 %v4379
    %4642 = vmatmul.bf16.gmra.mxu0 0
    %v4643 = vpop.f32.mrf.mxu0
    %v4644 = vadd.f32 %v4631, %v4643
    %v4645 = vpop.f32.mrf.mxu0
    %4646 = vdwg.mxu0
    %4647 = vmatpush.bf16.msra.mxu0 %v4372
    %4648 = vmatpush.bf16.msra.mxu0 %v4364
    %4649 = vmatpush.bf16.msra.mxu0 %v4356
    %4650 = vmatpush.bf16.msra.mxu0 %v4348
    %4651 = vmatpush.bf16.msra.mxu0 %v4340
    %4652 = vmatpush.bf16.msra.mxu0 %v4332
    %4653 = vmatpush.bf16.msra.mxu0 %v4324
    %4654 = vmatpush.bf16.msra.mxu0 %v4316
    %4655 = vmatmul.bf16.gmra.mxu0 0
    %v4656 = vpop.f32.mrf.mxu0
    %v4657 = vadd.f32 0.0, %v4656
    %v4658 = vpop.f32.mrf.mxu0
    %4659 = vdwg.mxu0
    %4660 = vmatpush.bf16.msra.mxu0 %v4436
    %4661 = vmatpush.bf16.msra.mxu0 %v4428
    %4662 = vmatpush.bf16.msra.mxu0 %v4420
    %4663 = vmatpush.bf16.msra.mxu0 %v4412
    %4664 = vmatpush.bf16.msra.mxu0 %v4404
    %4665 = vmatpush.bf16.msra.mxu0 %v4396
    %4666 = vmatpush.bf16.msra.mxu0 %v4388
    %4667 = vmatpush.bf16.msra.mxu0 %v4380
    %4668 = vmatmul.bf16.gmra.mxu0 0
    %v4669 = vpop.f32.mrf.mxu0
    %v4670 = vadd.f32 %v4657, %v4669
    %v4671 = vpop.f32.mrf.mxu0
    %4672 = vdwg.mxu0
    %4673 = vmatpush.bf16.msra.mxu0 %v4373
    %4674 = vmatpush.bf16.msra.mxu0 %v4365
    %4675 = vmatpush.bf16.msra.mxu0 %v4357
    %4676 = vmatpush.bf16.msra.mxu0 %v4349
    %4677 = vmatpush.bf16.msra.mxu0 %v4341
    %4678 = vmatpush.bf16.msra.mxu0 %v4333
    %4679 = vmatpush.bf16.msra.mxu0 %v4325
    %4680 = vmatpush.bf16.msra.mxu0 %v4317
    %4681 = vmatmul.bf16.gmra.mxu0 0
    %v4682 = vpop.f32.mrf.mxu0
    %v4683 = vadd.f32 0.0, %v4682
    %v4684 = vpop.f32.mrf.mxu0
    %4685 = vdwg.mxu0
    %4686 = vmatpush.bf16.msra.mxu0 %v4437
    %4687 = vmatpush.bf16.msra.mxu0 %v4429
    %4688 = vmatpush.bf16.msra.mxu0 %v4421
    %4689 = vmatpush.bf16.msra.mxu0 %v4413
    %4690 = vmatpush.bf16.msra.mxu0 %v4405
    %4691 = vmatpush.bf16.msra.mxu0 %v4397
    %4692 = vmatpush.bf16.msra.mxu0 %v4389
    %4693 = vmatpush.bf16.msra.mxu0 %v4381
    %4694 = vmatmul.bf16.gmra.mxu0 0
    %v4695 = vpop.f32.mrf.mxu0
    %v4696 = vadd.f32 %v4683, %v4695
    %v4697 = vpop.f32.mrf.mxu0
    %4698 = vdwg.mxu0
    %4699 = vmatpush.bf16.msra.mxu0 %v4374
    %4700 = vmatpush.bf16.msra.mxu0 %v4366
    %4701 = vmatpush.bf16.msra.mxu0 %v4358
    %4702 = vmatpush.bf16.msra.mxu0 %v4350
    %4703 = vmatpush.bf16.msra.mxu0 %v4342
    %4704 = vmatpush.bf16.msra.mxu0 %v4334
    %4705 = vmatpush.bf16.msra.mxu0 %v4326
    %4706 = vmatpush.bf16.msra.mxu0 %v4318
    %4707 = vmatmul.bf16.gmra.mxu0 0
    %v4708 = vpop.f32.mrf.mxu0
    %v4709 = vadd.f32 0.0, %v4708
    %v4710 = vpop.f32.mrf.mxu0
    %4711 = vdwg.mxu0
    %4712 = vmatpush.bf16.msra.mxu0 %v4438
    %4713 = vmatpush.bf16.msra.mxu0 %v4430
    %4714 = vmatpush.bf16.msra.mxu0 %v4422
    %4715 = vmatpush.bf16.msra.mxu0 %v4414
    %4716 = vmatpush.bf16.msra.mxu0 %v4406
    %4717 = vmatpush.bf16.msra.mxu0 %v4398
    %4718 = vmatpush.bf16.msra.mxu0 %v4390
    %4719 = vmatpush.bf16.msra.mxu0 %v4382
    %4720 = vmatmul.bf16.gmra.mxu0 0
    %v4721 = vpop.f32.mrf.mxu0
    %v4722 = vadd.f32 %v4709, %v4721
    %v4723 = vpop.f32.mrf.mxu0
    %4724 = vdwg.mxu0
    %4725 = vmatpush.bf16.msra.mxu0 %v4375
    %4726 = vmatpush.bf16.msra.mxu0 %v4367
    %4727 = vmatpush.bf16.msra.mxu0 %v4359
    %4728 = vmatpush.bf16.msra.mxu0 %v4351
    %4729 = vmatpush.bf16.msra.mxu0 %v4343
    %4730 = vmatpush.bf16.msra.mxu0 %v4335
    %4731 = vmatpush.bf16.msra.mxu0 %v4327
    %4732 = vmatpush.bf16.msra.mxu0 %v4319
    %4733 = vmatmul.bf16.gmra.mxu0 0
    %v4734 = vpop.f32.mrf.mxu0
    %v4735 = vadd.f32 0.0, %v4734
    %v4736 = vpop.f32.mrf.mxu0
    %4737 = vdwg.mxu0
    %4738 = vmatpush.bf16.msra.mxu0 %v4439
    %4739 = vmatpush.bf16.msra.mxu0 %v4431
    %4740 = vmatpush.bf16.msra.mxu0 %v4423
    %4741 = vmatpush.bf16.msra.mxu0 %v4415
    %4742 = vmatpush.bf16.msra.mxu0 %v4407
    %4743 = vmatpush.bf16.msra.mxu0 %v4399
    %4744 = vmatpush.bf16.msra.mxu0 %v4391
    %4745 = vmatpush.bf16.msra.mxu0 %v4383
    %4746 = vmatmul.bf16.gmra.mxu0 0
    %v4747 = vpop.f32.mrf.mxu0
    %v4748 = vadd.f32 %v4735, %v4747
    %v4749 = vpop.f32.mrf.mxu0
    %4750 = vdwg.mxu0
    %4751 = vmatpush.bf16.msra.mxu0 %v4376
    %4752 = vmatpush.bf16.msra.mxu0 %v4368
    %4753 = vmatpush.bf16.msra.mxu0 %v4360
    %4754 = vmatpush.bf16.msra.mxu0 %v4352
    %4755 = vmatpush.bf16.msra.mxu0 %v4344
    %4756 = vmatpush.bf16.msra.mxu0 %v4336
    %4757 = vmatpush.bf16.msra.mxu0 %v4328
    %4758 = vmatpush.bf16.msra.mxu0 %v4320
    %4759 = vmatmul.bf16.gmra.mxu0 0
    %v4760 = vpop.f32.mrf.mxu0
    %v4761 = vadd.f32 0.0, %v4760
    %v4762 = vpop.f32.mrf.mxu0
    %4763 = vdwg.mxu0
    %4764 = vmatpush.bf16.msra.mxu0 %v4440
    %4765 = vmatpush.bf16.msra.mxu0 %v4432
    %4766 = vmatpush.bf16.msra.mxu0 %v4424
    %4767 = vmatpush.bf16.msra.mxu0 %v4416
    %4768 = vmatpush.bf16.msra.mxu0 %v4408
    %4769 = vmatpush.bf16.msra.mxu0 %v4400
    %4770 = vmatpush.bf16.msra.mxu0 %v4392
    %4771 = vmatpush.bf16.msra.mxu0 %v4384
    %4772 = vmatmul.bf16.gmra.mxu0 0
    %v4773 = vpop.f32.mrf.mxu0
    %v4774 = vadd.f32 %v4761, %v4773
    %v4775 = vpop.f32.mrf.mxu0
    %4776 = vdwg.mxu0
    %v4785 = vrot.slane %v4618, 7
    %v4786 = vrot.slane %v4644, 6
    %v4787 = vrot.slane %v4670, 5
    %v4788 = vrot.slane %v4696, 4
    %v4789 = vrot.slane %v4722, 3
    %v4790 = vrot.slane %v4748, 2
    %v4791 = vrot.slane %v4774, 1
    %v4792 = vsel %vm893, %v4592, %v4785
    %v4793 = vsel %vm895, %v4786, %v4787
    %v4794 = vsel %vm897, %v4792, %v4793
    %vm4795 = vcmask 1044484
    %v4796 = vsel %vm4795, %v4788, %v4789
    %vm4797 = vcmask 1046534
    %v4798 = vsel %vm4797, %v4790, %v4791
    %vm4799 = vcmask 1045508
    %v4800 = vsel %vm4799, %v4796, %v4798
    %vm4801 = vcmask 1043456
    %v4802 = vsel %vm4801, %v4794, %v4800
    %v4804 = vadd.f32 %v3800, %v4802
    %v4805 = vxor.u32 %v4804, 2147483648
    %v4806 = vmul.f32 %v4805, 1.442695
    %v4807 = vpow.pop %v4806
    %v4808 = vadd.f32 %v4807, 1.0
    %v4809 = vrcp.pop %v4808
    %v4810 = vmul.f32 %v4808, %v4809
    %v4811 = vsub.f32 1.0, %v4810
    %v4812 = vmul.f32 %v4809, %v4811
    %v4813 = vadd.f32 %v4809, %v4812
    %vm4814 = vweird.f32 %v4808
    %vm4815 = vweird.f32 %v4809
    %vm4816 = vmor %vm4814, %vm4815
    %v4817 = vsel %vm4816, %v4809, %v4813
    %v4818 = vand.u32 2147483647, %v4808
    %vm4819 = vcmp.eq.f32.partialorder %v4818, 8.507059e+37
    %v4820 = vand.u32 %v4808, 2147483648
    %v4821 = vor.u32 1.1754944e-38, %v4820
    %v4822 = vsel %vm4819, %v4821, %v4817
    %v4823 = vmul.f32 1.0, %v4822
    %v4825 = vrot.slane %v4804, 2
    %v4827 = vxor.u32 %v4825, 2147483648
    %v4828 = vmul.f32 %v4827, 1.442695
    %v4829 = vpow.pop %v4828
    %v4830 = vadd.f32 %v4829, 1.0
    %v4831 = vrcp.pop %v4830
    %v4832 = vmul.f32 %v4830, %v4831
    %v4833 = vsub.f32 1.0, %v4832
    %v4834 = vmul.f32 %v4831, %v4833
    %v4835 = vadd.f32 %v4831, %v4834
    %vm4836 = vweird.f32 %v4830
    %vm4837 = vweird.f32 %v4831
    %vm4838 = vmor %vm4836, %vm4837
    %v4839 = vsel %vm4838, %v4831, %v4835
    %v4840 = vand.u32 2147483647, %v4830
    %vm4841 = vcmp.eq.f32.partialorder %v4840, 8.507059e+37
    %v4842 = vand.u32 %v4830, 2147483648
    %v4843 = vor.u32 1.1754944e-38, %v4842
    %v4844 = vsel %vm4841, %v4843, %v4839
    %v4845 = vmul.f32 1.0, %v4844
    %v4846 = vrot.slane %v4804, 4
    %v4848 = vtanh.pop %v4846
    %v4849 = vrot.slane %v4804, 6
    %v4851 = vxor.u32 %v4849, 2147483648
    %v4852 = vmul.f32 %v4851, 1.442695
    %v4853 = vpow.pop %v4852
    %v4854 = vadd.f32 %v4853, 1.0
    %v4855 = vrcp.pop %v4854
    %v4856 = vmul.f32 %v4854, %v4855
    %v4857 = vsub.f32 1.0, %v4856
    %v4858 = vmul.f32 %v4855, %v4857
    %v4859 = vadd.f32 %v4855, %v4858
    %vm4860 = vweird.f32 %v4854
    %vm4861 = vweird.f32 %v4855
    %vm4862 = vmor %vm4860, %vm4861
    %v4863 = vsel %vm4862, %v4855, %v4859
    %v4864 = vand.u32 2147483647, %v4854
    %vm4865 = vcmp.eq.f32.partialorder %v4864, 8.507059e+37
    %v4866 = vand.u32 %v4854, 2147483648
    %v4867 = vor.u32 1.1754944e-38, %v4866
    %v4868 = vsel %vm4865, %v4867, %v4863
    %v4869 = vmul.f32 1.0, %v4868
    %v4870 = vmul.f32 %v4845, 0.0
    %v4871 = vmul.f32 %v4823, %v4848
    %v4872 = vadd.f32 %v4870, %v4871
    %v4873 = vtanh.pop %v4872
    %v4874 = vmul.f32 %v4869, %v4873
    %v4875 = vlaneseq
    %vm4876 = vcmp.ge.s32.totalorder %v4875, 0
    %vm4877 = vcmp.lt.s32.totalorder %v4875, 256
    %vm4878 = vmand %vm4876, %vm4877
    %4879 = vst.msk [vmem:[#allocation5] ss:$8 sm:$0x3] %vm4878, %v4874
    %4880 = vst.msk [vmem:[#allocation5] ss:$8 sm:$0x0] %vm4878, %v4874
    %s4881 = scalar_lea.vmem [#allocation4], 1
    %v4882 = vld [vmem:[%s4881] ss:$8 sm:$0xf]
    %v4883 = vld [vmem:[%s4881] ss:$8 sm:$0xf0]
    %v4884 = vor.u32 %v4882, %v4883
    %v4886 = vperm.slane %v4874, 0
    %v4887 = vperm.slane %v4874, 1
    %v4890 = vpack.c.bf16 %v4886, %v4886
    %v4891 = vpack.c.bf16 %v4887, %v4887
    %v4892 = vld [vmem:[#allocation15] sm:$0xff]
    %v4893 = vld [vmem:[#allocation15 + $0x8] sm:$0xff]
    %v4894 = vld [vmem:[#allocation15 + $0x10] sm:$0xff]
    %v4895 = vld [vmem:[#allocation15 + $0x18] sm:$0xff]
    %v4896 = vld [vmem:[#allocation15 + $0x20] sm:$0xff]
    %v4897 = vld [vmem:[#allocation15 + $0x28] sm:$0xff]
    %v4898 = vld [vmem:[#allocation15 + $0x30] sm:$0xff]
    %v4899 = vld [vmem:[#allocation15 + $0x38] sm:$0xff]
    %v4900 = vld [vmem:[#allocation15 + $0x40] sm:$0xff]
    %v4901 = vld [vmem:[#allocation15 + $0x48] sm:$0xff]
    %v4902 = vld [vmem:[#allocation15 + $0x50] sm:$0xff]
    %v4903 = vld [vmem:[#allocation15 + $0x58] sm:$0xff]
    %v4904 = vld [vmem:[#allocation15 + $0x60] sm:$0xff]
    %v4905 = vld [vmem:[#allocation15 + $0x68] sm:$0xff]
    %v4906 = vld [vmem:[#allocation15 + $0x70] sm:$0xff]
    %v4907 = vld [vmem:[#allocation15 + $0x78] sm:$0xff]
    %v4908 = vld [vmem:[#allocation15 + $0x80] sm:$0xff]
    %v4909 = vld [vmem:[#allocation15 + $0x88] sm:$0xff]
    %v4910 = vld [vmem:[#allocation15 + $0x90] sm:$0xff]
    %v4911 = vld [vmem:[#allocation15 + $0x98] sm:$0xff]
    %v4912 = vld [vmem:[#allocation15 + $0xa0] sm:$0xff]
    %v4913 = vld [vmem:[#allocation15 + $0xa8] sm:$0xff]
    %v4914 = vld [vmem:[#allocation15 + $0xb0] sm:$0xff]
    %v4915 = vld [vmem:[#allocation15 + $0xb8] sm:$0xff]
    %v4916 = vld [vmem:[#allocation15 + $0xc0] sm:$0xff]
    %v4917 = vld [vmem:[#allocation15 + $0xc8] sm:$0xff]
    %v4918 = vld [vmem:[#allocation15 + $0xd0] sm:$0xff]
    %v4919 = vld [vmem:[#allocation15 + $0xd8] sm:$0xff]
    %v4920 = vld [vmem:[#allocation15 + $0xe0] sm:$0xff]
    %v4921 = vld [vmem:[#allocation15 + $0xe8] sm:$0xff]
    %v4922 = vld [vmem:[#allocation15 + $0xf0] sm:$0xff]
    %v4923 = vld [vmem:[#allocation15 + $0xf8] sm:$0xff]
    %v4924 = vld [vmem:[#allocation15 + $0x100] sm:$0xff]
    %v4925 = vld [vmem:[#allocation15 + $0x108] sm:$0xff]
    %v4926 = vld [vmem:[#allocation15 + $0x110] sm:$0xff]
    %v4927 = vld [vmem:[#allocation15 + $0x118] sm:$0xff]
    %v4928 = vld [vmem:[#allocation15 + $0x120] sm:$0xff]
    %v4929 = vld [vmem:[#allocation15 + $0x128] sm:$0xff]
    %v4930 = vld [vmem:[#allocation15 + $0x130] sm:$0xff]
    %v4931 = vld [vmem:[#allocation15 + $0x138] sm:$0xff]
    %v4932 = vld [vmem:[#allocation15 + $0x140] sm:$0xff]
    %v4933 = vld [vmem:[#allocation15 + $0x148] sm:$0xff]
    %v4934 = vld [vmem:[#allocation15 + $0x150] sm:$0xff]
    %v4935 = vld [vmem:[#allocation15 + $0x158] sm:$0xff]
    %v4936 = vld [vmem:[#allocation15 + $0x160] sm:$0xff]
    %v4937 = vld [vmem:[#allocation15 + $0x168] sm:$0xff]
    %v4938 = vld [vmem:[#allocation15 + $0x170] sm:$0xff]
    %v4939 = vld [vmem:[#allocation15 + $0x178] sm:$0xff]
    %v4940 = vld [vmem:[#allocation15 + $0x180] sm:$0xff]
    %v4941 = vld [vmem:[#allocation15 + $0x188] sm:$0xff]
    %v4942 = vld [vmem:[#allocation15 + $0x190] sm:$0xff]
    %v4943 = vld [vmem:[#allocation15 + $0x198] sm:$0xff]
    %v4944 = vld [vmem:[#allocation15 + $0x1a0] sm:$0xff]
    %v4945 = vld [vmem:[#allocation15 + $0x1a8] sm:$0xff]
    %v4946 = vld [vmem:[#allocation15 + $0x1b0] sm:$0xff]
    %v4947 = vld [vmem:[#allocation15 + $0x1b8] sm:$0xff]
    %v4948 = vld [vmem:[#allocation15 + $0x1c0] sm:$0xff]
    %v4949 = vld [vmem:[#allocation15 + $0x1c8] sm:$0xff]
    %v4950 = vld [vmem:[#allocation15 + $0x1d0] sm:$0xff]
    %v4951 = vld [vmem:[#allocation15 + $0x1d8] sm:$0xff]
    %v4952 = vld [vmem:[#allocation15 + $0x1e0] sm:$0xff]
    %v4953 = vld [vmem:[#allocation15 + $0x1e8] sm:$0xff]
    %v4954 = vld [vmem:[#allocation15 + $0x1f0] sm:$0xff]
    %v4955 = vld [vmem:[#allocation15 + $0x1f8] sm:$0xff]
    %v4956 = vld [vmem:[#allocation15 + $0x200] sm:$0xff]
    %v4957 = vld [vmem:[#allocation15 + $0x208] sm:$0xff]
    %v4958 = vld [vmem:[#allocation15 + $0x210] sm:$0xff]
    %v4959 = vld [vmem:[#allocation15 + $0x218] sm:$0xff]
    %v4960 = vld [vmem:[#allocation15 + $0x220] sm:$0xff]
    %v4961 = vld [vmem:[#allocation15 + $0x228] sm:$0xff]
    %v4962 = vld [vmem:[#allocation15 + $0x230] sm:$0xff]
    %v4963 = vld [vmem:[#allocation15 + $0x238] sm:$0xff]
    %v4964 = vld [vmem:[#allocation15 + $0x240] sm:$0xff]
    %v4965 = vld [vmem:[#allocation15 + $0x248] sm:$0xff]
    %v4966 = vld [vmem:[#allocation15 + $0x250] sm:$0xff]
    %v4967 = vld [vmem:[#allocation15 + $0x258] sm:$0xff]
    %v4968 = vld [vmem:[#allocation15 + $0x260] sm:$0xff]
    %v4969 = vld [vmem:[#allocation15 + $0x268] sm:$0xff]
    %v4970 = vld [vmem:[#allocation15 + $0x270] sm:$0xff]
    %v4971 = vld [vmem:[#allocation15 + $0x278] sm:$0xff]
    %v4972 = vld [vmem:[#allocation15 + $0x280] sm:$0xff]
    %v4973 = vld [vmem:[#allocation15 + $0x288] sm:$0xff]
    %v4974 = vld [vmem:[#allocation15 + $0x290] sm:$0xff]
    %v4975 = vld [vmem:[#allocation15 + $0x298] sm:$0xff]
    %v4976 = vld [vmem:[#allocation15 + $0x2a0] sm:$0xff]
    %v4977 = vld [vmem:[#allocation15 + $0x2a8] sm:$0xff]
    %v4978 = vld [vmem:[#allocation15 + $0x2b0] sm:$0xff]
    %v4979 = vld [vmem:[#allocation15 + $0x2b8] sm:$0xff]
    %v4980 = vld [vmem:[#allocation15 + $0x2c0] sm:$0xff]
    %v4981 = vld [vmem:[#allocation15 + $0x2c8] sm:$0xff]
    %v4982 = vld [vmem:[#allocation15 + $0x2d0] sm:$0xff]
    %v4983 = vld [vmem:[#allocation15 + $0x2d8] sm:$0xff]
    %v4984 = vld [vmem:[#allocation15 + $0x2e0] sm:$0xff]
    %v4985 = vld [vmem:[#allocation15 + $0x2e8] sm:$0xff]
    %v4986 = vld [vmem:[#allocation15 + $0x2f0] sm:$0xff]
    %v4987 = vld [vmem:[#allocation15 + $0x2f8] sm:$0xff]
    %v4988 = vld [vmem:[#allocation15 + $0x300] sm:$0xff]
    %v4989 = vld [vmem:[#allocation15 + $0x308] sm:$0xff]
    %v4990 = vld [vmem:[#allocation15 + $0x310] sm:$0xff]
    %v4991 = vld [vmem:[#allocation15 + $0x318] sm:$0xff]
    %v4992 = vld [vmem:[#allocation15 + $0x320] sm:$0xff]
    %v4993 = vld [vmem:[#allocation15 + $0x328] sm:$0xff]
    %v4994 = vld [vmem:[#allocation15 + $0x330] sm:$0xff]
    %v4995 = vld [vmem:[#allocation15 + $0x338] sm:$0xff]
    %v4996 = vld [vmem:[#allocation15 + $0x340] sm:$0xff]
    %v4997 = vld [vmem:[#allocation15 + $0x348] sm:$0xff]
    %v4998 = vld [vmem:[#allocation15 + $0x350] sm:$0xff]
    %v4999 = vld [vmem:[#allocation15 + $0x358] sm:$0xff]
    %v5000 = vld [vmem:[#allocation15 + $0x360] sm:$0xff]
    %v5001 = vld [vmem:[#allocation15 + $0x368] sm:$0xff]
    %v5002 = vld [vmem:[#allocation15 + $0x370] sm:$0xff]
    %v5003 = vld [vmem:[#allocation15 + $0x378] sm:$0xff]
    %v5004 = vld [vmem:[#allocation15 + $0x380] sm:$0xff]
    %v5005 = vld [vmem:[#allocation15 + $0x388] sm:$0xff]
    %v5006 = vld [vmem:[#allocation15 + $0x390] sm:$0xff]
    %v5007 = vld [vmem:[#allocation15 + $0x398] sm:$0xff]
    %v5008 = vld [vmem:[#allocation15 + $0x3a0] sm:$0xff]
    %v5009 = vld [vmem:[#allocation15 + $0x3a8] sm:$0xff]
    %v5010 = vld [vmem:[#allocation15 + $0x3b0] sm:$0xff]
    %v5011 = vld [vmem:[#allocation15 + $0x3b8] sm:$0xff]
    %v5012 = vld [vmem:[#allocation15 + $0x3c0] sm:$0xff]
    %v5013 = vld [vmem:[#allocation15 + $0x3c8] sm:$0xff]
    %v5014 = vld [vmem:[#allocation15 + $0x3d0] sm:$0xff]
    %v5015 = vld [vmem:[#allocation15 + $0x3d8] sm:$0xff]
    %v5016 = vld [vmem:[#allocation15 + $0x3e0] sm:$0xff]
    %v5017 = vld [vmem:[#allocation15 + $0x3e8] sm:$0xff]
    %v5018 = vld [vmem:[#allocation15 + $0x3f0] sm:$0xff]
    %v5019 = vld [vmem:[#allocation15 + $0x3f8] sm:$0xff]
    %v5148 = vunpack.c.l.b16 %v4892
    %v5149 = vunpack.c.h.b16 %v4892
    %v5150 = vunpack.c.l.b16 %v4893
    %v5151 = vunpack.c.h.b16 %v4893
    %v5152 = vunpack.c.l.b16 %v4894
    %v5153 = vunpack.c.h.b16 %v4894
    %v5154 = vunpack.c.l.b16 %v4895
    %v5155 = vunpack.c.h.b16 %v4895
    %v5156 = vunpack.c.l.b16 %v4896
    %v5157 = vunpack.c.h.b16 %v4896
    %v5158 = vunpack.c.l.b16 %v4897
    %v5159 = vunpack.c.h.b16 %v4897
    %v5160 = vunpack.c.l.b16 %v4898
    %v5161 = vunpack.c.h.b16 %v4898
    %v5162 = vunpack.c.l.b16 %v4899
    %v5163 = vunpack.c.h.b16 %v4899
    %v5164 = vunpack.c.l.b16 %v4900
    %v5165 = vunpack.c.h.b16 %v4900
    %v5166 = vunpack.c.l.b16 %v4901
    %v5167 = vunpack.c.h.b16 %v4901
    %v5168 = vunpack.c.l.b16 %v4902
    %v5169 = vunpack.c.h.b16 %v4902
    %v5170 = vunpack.c.l.b16 %v4903
    %v5171 = vunpack.c.h.b16 %v4903
    %v5172 = vunpack.c.l.b16 %v4904
    %v5173 = vunpack.c.h.b16 %v4904
    %v5174 = vunpack.c.l.b16 %v4905
    %v5175 = vunpack.c.h.b16 %v4905
    %v5176 = vunpack.c.l.b16 %v4906
    %v5177 = vunpack.c.h.b16 %v4906
    %v5178 = vunpack.c.l.b16 %v4907
    %v5179 = vunpack.c.h.b16 %v4907
    %v5180 = vunpack.c.l.b16 %v4908
    %v5181 = vunpack.c.h.b16 %v4908
    %v5182 = vunpack.c.l.b16 %v4909
    %v5183 = vunpack.c.h.b16 %v4909
    %v5184 = vunpack.c.l.b16 %v4910
    %v5185 = vunpack.c.h.b16 %v4910
    %v5186 = vunpack.c.l.b16 %v4911
    %v5187 = vunpack.c.h.b16 %v4911
    %v5188 = vunpack.c.l.b16 %v4912
    %v5189 = vunpack.c.h.b16 %v4912
    %v5190 = vunpack.c.l.b16 %v4913
    %v5191 = vunpack.c.h.b16 %v4913
    %v5192 = vunpack.c.l.b16 %v4914
    %v5193 = vunpack.c.h.b16 %v4914
    %v5194 = vunpack.c.l.b16 %v4915
    %v5195 = vunpack.c.h.b16 %v4915
    %v5196 = vunpack.c.l.b16 %v4916
    %v5197 = vunpack.c.h.b16 %v4916
    %v5198 = vunpack.c.l.b16 %v4917
    %v5199 = vunpack.c.h.b16 %v4917
    %v5200 = vunpack.c.l.b16 %v4918
    %v5201 = vunpack.c.h.b16 %v4918
    %v5202 = vunpack.c.l.b16 %v4919
    %v5203 = vunpack.c.h.b16 %v4919
    %v5204 = vunpack.c.l.b16 %v4920
    %v5205 = vunpack.c.h.b16 %v4920
    %v5206 = vunpack.c.l.b16 %v4921
    %v5207 = vunpack.c.h.b16 %v4921
    %v5208 = vunpack.c.l.b16 %v4922
    %v5209 = vunpack.c.h.b16 %v4922
    %v5210 = vunpack.c.l.b16 %v4923
    %v5211 = vunpack.c.h.b16 %v4923
    %v5212 = vunpack.c.l.b16 %v4924
    %v5213 = vunpack.c.h.b16 %v4924
    %v5214 = vunpack.c.l.b16 %v4925
    %v5215 = vunpack.c.h.b16 %v4925
    %v5216 = vunpack.c.l.b16 %v4926
    %v5217 = vunpack.c.h.b16 %v4926
    %v5218 = vunpack.c.l.b16 %v4927
    %v5219 = vunpack.c.h.b16 %v4927
    %v5220 = vunpack.c.l.b16 %v4928
    %v5221 = vunpack.c.h.b16 %v4928
    %v5222 = vunpack.c.l.b16 %v4929
    %v5223 = vunpack.c.h.b16 %v4929
    %v5224 = vunpack.c.l.b16 %v4930
    %v5225 = vunpack.c.h.b16 %v4930
    %v5226 = vunpack.c.l.b16 %v4931
    %v5227 = vunpack.c.h.b16 %v4931
    %v5228 = vunpack.c.l.b16 %v4932
    %v5229 = vunpack.c.h.b16 %v4932
    %v5230 = vunpack.c.l.b16 %v4933
    %v5231 = vunpack.c.h.b16 %v4933
    %v5232 = vunpack.c.l.b16 %v4934
    %v5233 = vunpack.c.h.b16 %v4934
    %v5234 = vunpack.c.l.b16 %v4935
    %v5235 = vunpack.c.h.b16 %v4935
    %v5236 = vunpack.c.l.b16 %v4936
    %v5237 = vunpack.c.h.b16 %v4936
    %v5238 = vunpack.c.l.b16 %v4937
    %v5239 = vunpack.c.h.b16 %v4937
    %v5240 = vunpack.c.l.b16 %v4938
    %v5241 = vunpack.c.h.b16 %v4938
    %v5242 = vunpack.c.l.b16 %v4939
    %v5243 = vunpack.c.h.b16 %v4939
    %v5244 = vunpack.c.l.b16 %v4940
    %v5245 = vunpack.c.h.b16 %v4940
    %v5246 = vunpack.c.l.b16 %v4941
    %v5247 = vunpack.c.h.b16 %v4941
    %v5248 = vunpack.c.l.b16 %v4942
    %v5249 = vunpack.c.h.b16 %v4942
    %v5250 = vunpack.c.l.b16 %v4943
    %v5251 = vunpack.c.h.b16 %v4943
    %v5252 = vunpack.c.l.b16 %v4944
    %v5253 = vunpack.c.h.b16 %v4944
    %v5254 = vunpack.c.l.b16 %v4945
    %v5255 = vunpack.c.h.b16 %v4945
    %v5256 = vunpack.c.l.b16 %v4946
    %v5257 = vunpack.c.h.b16 %v4946
    %v5258 = vunpack.c.l.b16 %v4947
    %v5259 = vunpack.c.h.b16 %v4947
    %v5260 = vunpack.c.l.b16 %v4948
    %v5261 = vunpack.c.h.b16 %v4948
    %v5262 = vunpack.c.l.b16 %v4949
    %v5263 = vunpack.c.h.b16 %v4949
    %v5264 = vunpack.c.l.b16 %v4950
    %v5265 = vunpack.c.h.b16 %v4950
    %v5266 = vunpack.c.l.b16 %v4951
    %v5267 = vunpack.c.h.b16 %v4951
    %v5268 = vunpack.c.l.b16 %v4952
    %v5269 = vunpack.c.h.b16 %v4952
    %v5270 = vunpack.c.l.b16 %v4953
    %v5271 = vunpack.c.h.b16 %v4953
    %v5272 = vunpack.c.l.b16 %v4954
    %v5273 = vunpack.c.h.b16 %v4954
    %v5274 = vunpack.c.l.b16 %v4955
    %v5275 = vunpack.c.h.b16 %v4955
    %v5276 = vunpack.c.l.b16 %v4956
    %v5277 = vunpack.c.h.b16 %v4956
    %v5278 = vunpack.c.l.b16 %v4957
    %v5279 = vunpack.c.h.b16 %v4957
    %v5280 = vunpack.c.l.b16 %v4958
    %v5281 = vunpack.c.h.b16 %v4958
    %v5282 = vunpack.c.l.b16 %v4959
    %v5283 = vunpack.c.h.b16 %v4959
    %v5284 = vunpack.c.l.b16 %v4960
    %v5285 = vunpack.c.h.b16 %v4960
    %v5286 = vunpack.c.l.b16 %v4961
    %v5287 = vunpack.c.h.b16 %v4961
    %v5288 = vunpack.c.l.b16 %v4962
    %v5289 = vunpack.c.h.b16 %v4962
    %v5290 = vunpack.c.l.b16 %v4963
    %v5291 = vunpack.c.h.b16 %v4963
    %v5292 = vunpack.c.l.b16 %v4964
    %v5293 = vunpack.c.h.b16 %v4964
    %v5294 = vunpack.c.l.b16 %v4965
    %v5295 = vunpack.c.h.b16 %v4965
    %v5296 = vunpack.c.l.b16 %v4966
    %v5297 = vunpack.c.h.b16 %v4966
    %v5298 = vunpack.c.l.b16 %v4967
    %v5299 = vunpack.c.h.b16 %v4967
    %v5300 = vunpack.c.l.b16 %v4968
    %v5301 = vunpack.c.h.b16 %v4968
    %v5302 = vunpack.c.l.b16 %v4969
    %v5303 = vunpack.c.h.b16 %v4969
    %v5304 = vunpack.c.l.b16 %v4970
    %v5305 = vunpack.c.h.b16 %v4970
    %v5306 = vunpack.c.l.b16 %v4971
    %v5307 = vunpack.c.h.b16 %v4971
    %v5308 = vunpack.c.l.b16 %v4972
    %v5309 = vunpack.c.h.b16 %v4972
    %v5310 = vunpack.c.l.b16 %v4973
    %v5311 = vunpack.c.h.b16 %v4973
    %v5312 = vunpack.c.l.b16 %v4974
    %v5313 = vunpack.c.h.b16 %v4974
    %v5314 = vunpack.c.l.b16 %v4975
    %v5315 = vunpack.c.h.b16 %v4975
    %v5316 = vunpack.c.l.b16 %v4976
    %v5317 = vunpack.c.h.b16 %v4976
    %v5318 = vunpack.c.l.b16 %v4977
    %v5319 = vunpack.c.h.b16 %v4977
    %v5320 = vunpack.c.l.b16 %v4978
    %v5321 = vunpack.c.h.b16 %v4978
    %v5322 = vunpack.c.l.b16 %v4979
    %v5323 = vunpack.c.h.b16 %v4979
    %v5324 = vunpack.c.l.b16 %v4980
    %v5325 = vunpack.c.h.b16 %v4980
    %v5326 = vunpack.c.l.b16 %v4981
    %v5327 = vunpack.c.h.b16 %v4981
    %v5328 = vunpack.c.l.b16 %v4982
    %v5329 = vunpack.c.h.b16 %v4982
    %v5330 = vunpack.c.l.b16 %v4983
    %v5331 = vunpack.c.h.b16 %v4983
    %v5332 = vunpack.c.l.b16 %v4984
    %v5333 = vunpack.c.h.b16 %v4984
    %v5334 = vunpack.c.l.b16 %v4985
    %v5335 = vunpack.c.h.b16 %v4985
    %v5336 = vunpack.c.l.b16 %v4986
    %v5337 = vunpack.c.h.b16 %v4986
    %v5338 = vunpack.c.l.b16 %v4987
    %v5339 = vunpack.c.h.b16 %v4987
    %v5340 = vunpack.c.l.b16 %v4988
    %v5341 = vunpack.c.h.b16 %v4988
    %v5342 = vunpack.c.l.b16 %v4989
    %v5343 = vunpack.c.h.b16 %v4989
    %v5344 = vunpack.c.l.b16 %v4990
    %v5345 = vunpack.c.h.b16 %v4990
    %v5346 = vunpack.c.l.b16 %v4991
    %v5347 = vunpack.c.h.b16 %v4991
    %v5348 = vunpack.c.l.b16 %v4992
    %v5349 = vunpack.c.h.b16 %v4992
    %v5350 = vunpack.c.l.b16 %v4993
    %v5351 = vunpack.c.h.b16 %v4993
    %v5352 = vunpack.c.l.b16 %v4994
    %v5353 = vunpack.c.h.b16 %v4994
    %v5354 = vunpack.c.l.b16 %v4995
    %v5355 = vunpack.c.h.b16 %v4995
    %v5356 = vunpack.c.l.b16 %v4996
    %v5357 = vunpack.c.h.b16 %v4996
    %v5358 = vunpack.c.l.b16 %v4997
    %v5359 = vunpack.c.h.b16 %v4997
    %v5360 = vunpack.c.l.b16 %v4998
    %v5361 = vunpack.c.h.b16 %v4998
    %v5362 = vunpack.c.l.b16 %v4999
    %v5363 = vunpack.c.h.b16 %v4999
    %v5364 = vunpack.c.l.b16 %v5000
    %v5365 = vunpack.c.h.b16 %v5000
    %v5366 = vunpack.c.l.b16 %v5001
    %v5367 = vunpack.c.h.b16 %v5001
    %v5368 = vunpack.c.l.b16 %v5002
    %v5369 = vunpack.c.h.b16 %v5002
    %v5370 = vunpack.c.l.b16 %v5003
    %v5371 = vunpack.c.h.b16 %v5003
    %v5372 = vunpack.c.l.b16 %v5004
    %v5373 = vunpack.c.h.b16 %v5004
    %v5374 = vunpack.c.l.b16 %v5005
    %v5375 = vunpack.c.h.b16 %v5005
    %v5376 = vunpack.c.l.b16 %v5006
    %v5377 = vunpack.c.h.b16 %v5006
    %v5378 = vunpack.c.l.b16 %v5007
    %v5379 = vunpack.c.h.b16 %v5007
    %v5380 = vunpack.c.l.b16 %v5008
    %v5381 = vunpack.c.h.b16 %v5008
    %v5382 = vunpack.c.l.b16 %v5009
    %v5383 = vunpack.c.h.b16 %v5009
    %v5384 = vunpack.c.l.b16 %v5010
    %v5385 = vunpack.c.h.b16 %v5010
    %v5386 = vunpack.c.l.b16 %v5011
    %v5387 = vunpack.c.h.b16 %v5011
    %v5388 = vunpack.c.l.b16 %v5012
    %v5389 = vunpack.c.h.b16 %v5012
    %v5390 = vunpack.c.l.b16 %v5013
    %v5391 = vunpack.c.h.b16 %v5013
    %v5392 = vunpack.c.l.b16 %v5014
    %v5393 = vunpack.c.h.b16 %v5014
    %v5394 = vunpack.c.l.b16 %v5015
    %v5395 = vunpack.c.h.b16 %v5015
    %v5396 = vunpack.c.l.b16 %v5016
    %v5397 = vunpack.c.h.b16 %v5016
    %v5398 = vunpack.c.l.b16 %v5017
    %v5399 = vunpack.c.h.b16 %v5017
    %v5400 = vunpack.c.l.b16 %v5018
    %v5401 = vunpack.c.h.b16 %v5018
    %v5402 = vunpack.c.l.b16 %v5019
    %v5403 = vunpack.c.h.b16 %v5019
    %v5404 = vpack.c.b16 %v5156, %v5148
    %v5405 = vpack.c.b16 %v5157, %v5149
    %v5406 = vpack.c.b16 %v5158, %v5150
    %v5407 = vpack.c.b16 %v5159, %v5151
    %v5408 = vpack.c.b16 %v5160, %v5152
    %v5409 = vpack.c.b16 %v5161, %v5153
    %v5410 = vpack.c.b16 %v5162, %v5154
    %v5411 = vpack.c.b16 %v5163, %v5155
    %v5412 = vpack.c.b16 %v5172, %v5164
    %v5413 = vpack.c.b16 %v5173, %v5165
    %v5414 = vpack.c.b16 %v5174, %v5166
    %v5415 = vpack.c.b16 %v5175, %v5167
    %v5416 = vpack.c.b16 %v5176, %v5168
    %v5417 = vpack.c.b16 %v5177, %v5169
    %v5418 = vpack.c.b16 %v5178, %v5170
    %v5419 = vpack.c.b16 %v5179, %v5171
    %v5420 = vpack.c.b16 %v5188, %v5180
    %v5421 = vpack.c.b16 %v5189, %v5181
    %v5422 = vpack.c.b16 %v5190, %v5182
    %v5423 = vpack.c.b16 %v5191, %v5183
    %v5424 = vpack.c.b16 %v5192, %v5184
    %v5425 = vpack.c.b16 %v5193, %v5185
    %v5426 = vpack.c.b16 %v5194, %v5186
    %v5427 = vpack.c.b16 %v5195, %v5187
    %v5428 = vpack.c.b16 %v5204, %v5196
    %v5429 = vpack.c.b16 %v5205, %v5197
    %v5430 = vpack.c.b16 %v5206, %v5198
    %v5431 = vpack.c.b16 %v5207, %v5199
    %v5432 = vpack.c.b16 %v5208, %v5200
    %v5433 = vpack.c.b16 %v5209, %v5201
    %v5434 = vpack.c.b16 %v5210, %v5202
    %v5435 = vpack.c.b16 %v5211, %v5203
    %v5436 = vpack.c.b16 %v5220, %v5212
    %v5437 = vpack.c.b16 %v5221, %v5213
    %v5438 = vpack.c.b16 %v5222, %v5214
    %v5439 = vpack.c.b16 %v5223, %v5215
    %v5440 = vpack.c.b16 %v5224, %v5216
    %v5441 = vpack.c.b16 %v5225, %v5217
    %v5442 = vpack.c.b16 %v5226, %v5218
    %v5443 = vpack.c.b16 %v5227, %v5219
    %v5444 = vpack.c.b16 %v5236, %v5228
    %v5445 = vpack.c.b16 %v5237, %v5229
    %v5446 = vpack.c.b16 %v5238, %v5230
    %v5447 = vpack.c.b16 %v5239, %v5231
    %v5448 = vpack.c.b16 %v5240, %v5232
    %v5449 = vpack.c.b16 %v5241, %v5233
    %v5450 = vpack.c.b16 %v5242, %v5234
    %v5451 = vpack.c.b16 %v5243, %v5235
    %v5452 = vpack.c.b16 %v5252, %v5244
    %v5453 = vpack.c.b16 %v5253, %v5245
    %v5454 = vpack.c.b16 %v5254, %v5246
    %v5455 = vpack.c.b16 %v5255, %v5247
    %v5456 = vpack.c.b16 %v5256, %v5248
    %v5457 = vpack.c.b16 %v5257, %v5249
    %v5458 = vpack.c.b16 %v5258, %v5250
    %v5459 = vpack.c.b16 %v5259, %v5251
    %v5460 = vpack.c.b16 %v5268, %v5260
    %v5461 = vpack.c.b16 %v5269, %v5261
    %v5462 = vpack.c.b16 %v5270, %v5262
    %v5463 = vpack.c.b16 %v5271, %v5263
    %v5464 = vpack.c.b16 %v5272, %v5264
    %v5465 = vpack.c.b16 %v5273, %v5265
    %v5466 = vpack.c.b16 %v5274, %v5266
    %v5467 = vpack.c.b16 %v5275, %v5267
    %v5468 = vpack.c.b16 %v5284, %v5276
    %v5469 = vpack.c.b16 %v5285, %v5277
    %v5470 = vpack.c.b16 %v5286, %v5278
    %v5471 = vpack.c.b16 %v5287, %v5279
    %v5472 = vpack.c.b16 %v5288, %v5280
    %v5473 = vpack.c.b16 %v5289, %v5281
    %v5474 = vpack.c.b16 %v5290, %v5282
    %v5475 = vpack.c.b16 %v5291, %v5283
    %v5476 = vpack.c.b16 %v5300, %v5292
    %v5477 = vpack.c.b16 %v5301, %v5293
    %v5478 = vpack.c.b16 %v5302, %v5294
    %v5479 = vpack.c.b16 %v5303, %v5295
    %v5480 = vpack.c.b16 %v5304, %v5296
    %v5481 = vpack.c.b16 %v5305, %v5297
    %v5482 = vpack.c.b16 %v5306, %v5298
    %v5483 = vpack.c.b16 %v5307, %v5299
    %v5484 = vpack.c.b16 %v5316, %v5308
    %v5485 = vpack.c.b16 %v5317, %v5309
    %v5486 = vpack.c.b16 %v5318, %v5310
    %v5487 = vpack.c.b16 %v5319, %v5311
    %v5488 = vpack.c.b16 %v5320, %v5312
    %v5489 = vpack.c.b16 %v5321, %v5313
    %v5490 = vpack.c.b16 %v5322, %v5314
    %v5491 = vpack.c.b16 %v5323, %v5315
    %v5492 = vpack.c.b16 %v5332, %v5324
    %v5493 = vpack.c.b16 %v5333, %v5325
    %v5494 = vpack.c.b16 %v5334, %v5326
    %v5495 = vpack.c.b16 %v5335, %v5327
    %v5496 = vpack.c.b16 %v5336, %v5328
    %v5497 = vpack.c.b16 %v5337, %v5329
    %v5498 = vpack.c.b16 %v5338, %v5330
    %v5499 = vpack.c.b16 %v5339, %v5331
    %v5500 = vpack.c.b16 %v5348, %v5340
    %v5501 = vpack.c.b16 %v5349, %v5341
    %v5502 = vpack.c.b16 %v5350, %v5342
    %v5503 = vpack.c.b16 %v5351, %v5343
    %v5504 = vpack.c.b16 %v5352, %v5344
    %v5505 = vpack.c.b16 %v5353, %v5345
    %v5506 = vpack.c.b16 %v5354, %v5346
    %v5507 = vpack.c.b16 %v5355, %v5347
    %v5508 = vpack.c.b16 %v5364, %v5356
    %v5509 = vpack.c.b16 %v5365, %v5357
    %v5510 = vpack.c.b16 %v5366, %v5358
    %v5511 = vpack.c.b16 %v5367, %v5359
    %v5512 = vpack.c.b16 %v5368, %v5360
    %v5513 = vpack.c.b16 %v5369, %v5361
    %v5514 = vpack.c.b16 %v5370, %v5362
    %v5515 = vpack.c.b16 %v5371, %v5363
    %v5516 = vpack.c.b16 %v5380, %v5372
    %v5517 = vpack.c.b16 %v5381, %v5373
    %v5518 = vpack.c.b16 %v5382, %v5374
    %v5519 = vpack.c.b16 %v5383, %v5375
    %v5520 = vpack.c.b16 %v5384, %v5376
    %v5521 = vpack.c.b16 %v5385, %v5377
    %v5522 = vpack.c.b16 %v5386, %v5378
    %v5523 = vpack.c.b16 %v5387, %v5379
    %v5524 = vpack.c.b16 %v5396, %v5388
    %v5525 = vpack.c.b16 %v5397, %v5389
    %v5526 = vpack.c.b16 %v5398, %v5390
    %v5527 = vpack.c.b16 %v5399, %v5391
    %v5528 = vpack.c.b16 %v5400, %v5392
    %v5529 = vpack.c.b16 %v5401, %v5393
    %v5530 = vpack.c.b16 %v5402, %v5394
    %v5531 = vpack.c.b16 %v5403, %v5395
    %5660 = vmatpush.bf16.msra.mxu0 %v5460
    %5661 = vmatpush.bf16.msra.mxu0 %v5452
    %5662 = vmatpush.bf16.msra.mxu0 %v5444
    %5663 = vmatpush.bf16.msra.mxu0 %v5436
    %5664 = vmatpush.bf16.msra.mxu0 %v5428
    %5665 = vmatpush.bf16.msra.mxu0 %v5420
    %5666 = vmatpush.bf16.msra.mxu0 %v5412
    %5667 = vmatpush.bf16.msra.mxu0 %v5404
    %5668 = vmatmul.bf16.gmra.mxu0 %v4890
    %v5669 = vpop.f32.mrf.mxu0
    %v5670 = vadd.f32 0.0, %v5669
    %v5671 = vpop.f32.mrf.mxu0
    %5672 = vdwg.mxu0
    %5673 = vmatpush.bf16.msra.mxu0 %v5524
    %5674 = vmatpush.bf16.msra.mxu0 %v5516
    %5675 = vmatpush.bf16.msra.mxu0 %v5508
    %5676 = vmatpush.bf16.msra.mxu0 %v5500
    %5677 = vmatpush.bf16.msra.mxu0 %v5492
    %5678 = vmatpush.bf16.msra.mxu0 %v5484
    %5679 = vmatpush.bf16.msra.mxu0 %v5476
    %5680 = vmatpush.bf16.msra.mxu0 %v5468
    %5681 = vmatmul.bf16.gmra.mxu0 %v4891
    %v5682 = vpop.f32.mrf.mxu0
    %v5683 = vadd.f32 %v5670, %v5682
    %v5684 = vpop.f32.mrf.mxu0
    %5685 = vdwg.mxu0
    %5686 = vmatpush.bf16.msra.mxu0 %v5461
    %5687 = vmatpush.bf16.msra.mxu0 %v5453
    %5688 = vmatpush.bf16.msra.mxu0 %v5445
    %5689 = vmatpush.bf16.msra.mxu0 %v5437
    %5690 = vmatpush.bf16.msra.mxu0 %v5429
    %5691 = vmatpush.bf16.msra.mxu0 %v5421
    %5692 = vmatpush.bf16.msra.mxu0 %v5413
    %5693 = vmatpush.bf16.msra.mxu0 %v5405
    %5694 = vmatmul.bf16.gmra.mxu0 %v4890
    %v5695 = vpop.f32.mrf.mxu0
    %v5696 = vadd.f32 0.0, %v5695
    %v5697 = vpop.f32.mrf.mxu0
    %5698 = vdwg.mxu0
    %5699 = vmatpush.bf16.msra.mxu0 %v5525
    %5700 = vmatpush.bf16.msra.mxu0 %v5517
    %5701 = vmatpush.bf16.msra.mxu0 %v5509
    %5702 = vmatpush.bf16.msra.mxu0 %v5501
    %5703 = vmatpush.bf16.msra.mxu0 %v5493
    %5704 = vmatpush.bf16.msra.mxu0 %v5485
    %5705 = vmatpush.bf16.msra.mxu0 %v5477
    %5706 = vmatpush.bf16.msra.mxu0 %v5469
    %5707 = vmatmul.bf16.gmra.mxu0 %v4891
    %v5708 = vpop.f32.mrf.mxu0
    %v5709 = vadd.f32 %v5696, %v5708
    %v5710 = vpop.f32.mrf.mxu0
    %5711 = vdwg.mxu0
    %5712 = vmatpush.bf16.msra.mxu0 %v5462
    %5713 = vmatpush.bf16.msra.mxu0 %v5454
    %5714 = vmatpush.bf16.msra.mxu0 %v5446
    %5715 = vmatpush.bf16.msra.mxu0 %v5438
    %5716 = vmatpush.bf16.msra.mxu0 %v5430
    %5717 = vmatpush.bf16.msra.mxu0 %v5422
    %5718 = vmatpush.bf16.msra.mxu0 %v5414
    %5719 = vmatpush.bf16.msra.mxu0 %v5406
    %5720 = vmatmul.bf16.gmra.mxu0 %v4890
    %v5721 = vpop.f32.mrf.mxu0
    %v5722 = vadd.f32 0.0, %v5721
    %v5723 = vpop.f32.mrf.mxu0
    %5724 = vdwg.mxu0
    %5725 = vmatpush.bf16.msra.mxu0 %v5526
    %5726 = vmatpush.bf16.msra.mxu0 %v5518
    %5727 = vmatpush.bf16.msra.mxu0 %v5510
    %5728 = vmatpush.bf16.msra.mxu0 %v5502
    %5729 = vmatpush.bf16.msra.mxu0 %v5494
    %5730 = vmatpush.bf16.msra.mxu0 %v5486
    %5731 = vmatpush.bf16.msra.mxu0 %v5478
    %5732 = vmatpush.bf16.msra.mxu0 %v5470
    %5733 = vmatmul.bf16.gmra.mxu0 %v4891
    %v5734 = vpop.f32.mrf.mxu0
    %v5735 = vadd.f32 %v5722, %v5734
    %v5736 = vpop.f32.mrf.mxu0
    %5737 = vdwg.mxu0
    %5738 = vmatpush.bf16.msra.mxu0 %v5463
    %5739 = vmatpush.bf16.msra.mxu0 %v5455
    %5740 = vmatpush.bf16.msra.mxu0 %v5447
    %5741 = vmatpush.bf16.msra.mxu0 %v5439
    %5742 = vmatpush.bf16.msra.mxu0 %v5431
    %5743 = vmatpush.bf16.msra.mxu0 %v5423
    %5744 = vmatpush.bf16.msra.mxu0 %v5415
    %5745 = vmatpush.bf16.msra.mxu0 %v5407
    %5746 = vmatmul.bf16.gmra.mxu0 %v4890
    %v5747 = vpop.f32.mrf.mxu0
    %v5748 = vadd.f32 0.0, %v5747
    %v5749 = vpop.f32.mrf.mxu0
    %5750 = vdwg.mxu0
    %5751 = vmatpush.bf16.msra.mxu0 %v5527
    %5752 = vmatpush.bf16.msra.mxu0 %v5519
    %5753 = vmatpush.bf16.msra.mxu0 %v5511
    %5754 = vmatpush.bf16.msra.mxu0 %v5503
    %5755 = vmatpush.bf16.msra.mxu0 %v5495
    %5756 = vmatpush.bf16.msra.mxu0 %v5487
    %5757 = vmatpush.bf16.msra.mxu0 %v5479
    %5758 = vmatpush.bf16.msra.mxu0 %v5471
    %5759 = vmatmul.bf16.gmra.mxu0 %v4891
    %v5760 = vpop.f32.mrf.mxu0
    %v5761 = vadd.f32 %v5748, %v5760
    %v5762 = vpop.f32.mrf.mxu0
    %5763 = vdwg.mxu0
    %5764 = vmatpush.bf16.msra.mxu0 %v5464
    %5765 = vmatpush.bf16.msra.mxu0 %v5456
    %5766 = vmatpush.bf16.msra.mxu0 %v5448
    %5767 = vmatpush.bf16.msra.mxu0 %v5440
    %5768 = vmatpush.bf16.msra.mxu0 %v5432
    %5769 = vmatpush.bf16.msra.mxu0 %v5424
    %5770 = vmatpush.bf16.msra.mxu0 %v5416
    %5771 = vmatpush.bf16.msra.mxu0 %v5408
    %5772 = vmatmul.bf16.gmra.mxu0 %v4890
    %v5773 = vpop.f32.mrf.mxu0
    %v5774 = vadd.f32 0.0, %v5773
    %v5775 = vpop.f32.mrf.mxu0
    %5776 = vdwg.mxu0
    %5777 = vmatpush.bf16.msra.mxu0 %v5528
    %5778 = vmatpush.bf16.msra.mxu0 %v5520
    %5779 = vmatpush.bf16.msra.mxu0 %v5512
    %5780 = vmatpush.bf16.msra.mxu0 %v5504
    %5781 = vmatpush.bf16.msra.mxu0 %v5496
    %5782 = vmatpush.bf16.msra.mxu0 %v5488
    %5783 = vmatpush.bf16.msra.mxu0 %v5480
    %5784 = vmatpush.bf16.msra.mxu0 %v5472
    %5785 = vmatmul.bf16.gmra.mxu0 %v4891
    %v5786 = vpop.f32.mrf.mxu0
    %v5787 = vadd.f32 %v5774, %v5786
    %v5788 = vpop.f32.mrf.mxu0
    %5789 = vdwg.mxu0
    %5790 = vmatpush.bf16.msra.mxu0 %v5465
    %5791 = vmatpush.bf16.msra.mxu0 %v5457
    %5792 = vmatpush.bf16.msra.mxu0 %v5449
    %5793 = vmatpush.bf16.msra.mxu0 %v5441
    %5794 = vmatpush.bf16.msra.mxu0 %v5433
    %5795 = vmatpush.bf16.msra.mxu0 %v5425
    %5796 = vmatpush.bf16.msra.mxu0 %v5417
    %5797 = vmatpush.bf16.msra.mxu0 %v5409
    %5798 = vmatmul.bf16.gmra.mxu0 %v4890
    %v5799 = vpop.f32.mrf.mxu0
    %v5800 = vadd.f32 0.0, %v5799
    %v5801 = vpop.f32.mrf.mxu0
    %5802 = vdwg.mxu0
    %5803 = vmatpush.bf16.msra.mxu0 %v5529
    %5804 = vmatpush.bf16.msra.mxu0 %v5521
    %5805 = vmatpush.bf16.msra.mxu0 %v5513
    %5806 = vmatpush.bf16.msra.mxu0 %v5505
    %5807 = vmatpush.bf16.msra.mxu0 %v5497
    %5808 = vmatpush.bf16.msra.mxu0 %v5489
    %5809 = vmatpush.bf16.msra.mxu0 %v5481
    %5810 = vmatpush.bf16.msra.mxu0 %v5473
    %5811 = vmatmul.bf16.gmra.mxu0 %v4891
    %v5812 = vpop.f32.mrf.mxu0
    %v5813 = vadd.f32 %v5800, %v5812
    %v5814 = vpop.f32.mrf.mxu0
    %5815 = vdwg.mxu0
    %5816 = vmatpush.bf16.msra.mxu0 %v5466
    %5817 = vmatpush.bf16.msra.mxu0 %v5458
    %5818 = vmatpush.bf16.msra.mxu0 %v5450
    %5819 = vmatpush.bf16.msra.mxu0 %v5442
    %5820 = vmatpush.bf16.msra.mxu0 %v5434
    %5821 = vmatpush.bf16.msra.mxu0 %v5426
    %5822 = vmatpush.bf16.msra.mxu0 %v5418
    %5823 = vmatpush.bf16.msra.mxu0 %v5410
    %5824 = vmatmul.bf16.gmra.mxu0 %v4890
    %v5825 = vpop.f32.mrf.mxu0
    %v5826 = vadd.f32 0.0, %v5825
    %v5827 = vpop.f32.mrf.mxu0
    %5828 = vdwg.mxu0
    %5829 = vmatpush.bf16.msra.mxu0 %v5530
    %5830 = vmatpush.bf16.msra.mxu0 %v5522
    %5831 = vmatpush.bf16.msra.mxu0 %v5514
    %5832 = vmatpush.bf16.msra.mxu0 %v5506
    %5833 = vmatpush.bf16.msra.mxu0 %v5498
    %5834 = vmatpush.bf16.msra.mxu0 %v5490
    %5835 = vmatpush.bf16.msra.mxu0 %v5482
    %5836 = vmatpush.bf16.msra.mxu0 %v5474
    %5837 = vmatmul.bf16.gmra.mxu0 %v4891
    %v5838 = vpop.f32.mrf.mxu0
    %v5839 = vadd.f32 %v5826, %v5838
    %v5840 = vpop.f32.mrf.mxu0
    %5841 = vdwg.mxu0
    %5842 = vmatpush.bf16.msra.mxu0 %v5467
    %5843 = vmatpush.bf16.msra.mxu0 %v5459
    %5844 = vmatpush.bf16.msra.mxu0 %v5451
    %5845 = vmatpush.bf16.msra.mxu0 %v5443
    %5846 = vmatpush.bf16.msra.mxu0 %v5435
    %5847 = vmatpush.bf16.msra.mxu0 %v5427
    %5848 = vmatpush.bf16.msra.mxu0 %v5419
    %5849 = vmatpush.bf16.msra.mxu0 %v5411
    %5850 = vmatmul.bf16.gmra.mxu0 %v4890
    %v5851 = vpop.f32.mrf.mxu0
    %v5852 = vadd.f32 0.0, %v5851
    %v5853 = vpop.f32.mrf.mxu0
    %5854 = vdwg.mxu0
    %5855 = vmatpush.bf16.msra.mxu0 %v5531
    %5856 = vmatpush.bf16.msra.mxu0 %v5523
    %5857 = vmatpush.bf16.msra.mxu0 %v5515
    %5858 = vmatpush.bf16.msra.mxu0 %v5507
    %5859 = vmatpush.bf16.msra.mxu0 %v5499
    %5860 = vmatpush.bf16.msra.mxu0 %v5491
    %5861 = vmatpush.bf16.msra.mxu0 %v5483
    %5862 = vmatpush.bf16.msra.mxu0 %v5475
    %5863 = vmatmul.bf16.gmra.mxu0 %v4891
    %v5864 = vpop.f32.mrf.mxu0
    %v5865 = vadd.f32 %v5852, %v5864
    %v5866 = vpop.f32.mrf.mxu0
    %5867 = vdwg.mxu0
    %v5876 = vrot.slane %v5709, 7
    %v5877 = vrot.slane %v5735, 6
    %v5878 = vrot.slane %v5761, 5
    %v5879 = vrot.slane %v5787, 4
    %v5880 = vrot.slane %v5813, 3
    %v5881 = vrot.slane %v5839, 2
    %v5882 = vrot.slane %v5865, 1
    %v5883 = vsel %vm893, %v5683, %v5876
    %v5884 = vsel %vm895, %v5877, %v5878
    %v5885 = vsel %vm897, %v5883, %v5884
    %v5886 = vsel %vm4795, %v5879, %v5880
    %v5887 = vsel %vm4797, %v5881, %v5882
    %v5888 = vsel %vm4799, %v5886, %v5887
    %v5889 = vsel %vm4801, %v5885, %v5888
    %v5891 = vadd.f32 %v4884, %v5889
    %v5892 = vxor.u32 %v5891, 2147483648
    %v5893 = vmul.f32 %v5892, 1.442695
    %v5894 = vpow.pop %v5893
    %v5895 = vadd.f32 %v5894, 1.0
    %v5896 = vrcp.pop %v5895
    %v5897 = vmul.f32 %v5895, %v5896
    %v5898 = vsub.f32 1.0, %v5897
    %v5899 = vmul.f32 %v5896, %v5898
    %v5900 = vadd.f32 %v5896, %v5899
    %vm5901 = vweird.f32 %v5895
    %vm5902 = vweird.f32 %v5896
    %vm5903 = vmor %vm5901, %vm5902
    %v5904 = vsel %vm5903, %v5896, %v5900
    %v5905 = vand.u32 2147483647, %v5895
    %vm5906 = vcmp.eq.f32.partialorder %v5905, 8.507059e+37
    %v5907 = vand.u32 %v5895, 2147483648
    %v5908 = vor.u32 1.1754944e-38, %v5907
    %v5909 = vsel %vm5906, %v5908, %v5904
    %v5910 = vmul.f32 1.0, %v5909
    %v5912 = vrot.slane %v5891, 2
    %v5914 = vxor.u32 %v5912, 2147483648
    %v5915 = vmul.f32 %v5914, 1.442695
    %v5916 = vpow.pop %v5915
    %v5917 = vadd.f32 %v5916, 1.0
    %v5918 = vrcp.pop %v5917
    %v5919 = vmul.f32 %v5917, %v5918
    %v5920 = vsub.f32 1.0, %v5919
    %v5921 = vmul.f32 %v5918, %v5920
    %v5922 = vadd.f32 %v5918, %v5921
    %vm5923 = vweird.f32 %v5917
    %vm5924 = vweird.f32 %v5918
    %vm5925 = vmor %vm5923, %vm5924
    %v5926 = vsel %vm5925, %v5918, %v5922
    %v5927 = vand.u32 2147483647, %v5917
    %vm5928 = vcmp.eq.f32.partialorder %v5927, 8.507059e+37
    %v5929 = vand.u32 %v5917, 2147483648
    %v5930 = vor.u32 1.1754944e-38, %v5929
    %v5931 = vsel %vm5928, %v5930, %v5926
    %v5932 = vmul.f32 1.0, %v5931
    %v5933 = vrot.slane %v5891, 4
    %v5935 = vtanh.pop %v5933
    %v5936 = vrot.slane %v5891, 6
    %v5938 = vxor.u32 %v5936, 2147483648
    %v5939 = vmul.f32 %v5938, 1.442695
    %v5940 = vpow.pop %v5939
    %v5941 = vadd.f32 %v5940, 1.0
    %v5942 = vrcp.pop %v5941
    %v5943 = vmul.f32 %v5941, %v5942
    %v5944 = vsub.f32 1.0, %v5943
    %v5945 = vmul.f32 %v5942, %v5944
    %v5946 = vadd.f32 %v5942, %v5945
    %vm5947 = vweird.f32 %v5941
    %vm5948 = vweird.f32 %v5942
    %vm5949 = vmor %vm5947, %vm5948
    %v5950 = vsel %vm5949, %v5942, %v5946
    %v5951 = vand.u32 2147483647, %v5941
    %vm5952 = vcmp.eq.f32.partialorder %v5951, 8.507059e+37
    %v5953 = vand.u32 %v5941, 2147483648
    %v5954 = vor.u32 1.1754944e-38, %v5953
    %v5955 = vsel %vm5952, %v5954, %v5950
    %v5956 = vmul.f32 1.0, %v5955
    %v5957 = vmul.f32 %v5932, %v4872
    %v5958 = vmul.f32 %v5910, %v5935
    %v5959 = vadd.f32 %v5957, %v5958
    %v5960 = vtanh.pop %v5959
    %v5961 = vmul.f32 %v5956, %v5960
    %s5962 = scalar_lea.vmem [#allocation5], 1
    %5963 = vst.msk [vmem:[%s5962] ss:$8 sm:$0x3] %vm4878, %v5961
    %5964 = vst.msk [vmem:[%s5962] ss:$8 sm:$0x0] %vm4878, %v5961
    %s5965 = scalar_lea.vmem [#allocation4], 2
    %v5966 = vld [vmem:[%s5965] ss:$8 sm:$0xf]
    %v5967 = vld [vmem:[%s5965] ss:$8 sm:$0xf0]
    %v5968 = vor.u32 %v5966, %v5967
    %v5970 = vperm.slane %v5961, 0
    %v5971 = vperm.slane %v5961, 1
    %v5974 = vpack.c.bf16 %v5970, %v5970
    %v5975 = vpack.c.bf16 %v5971, %v5971
    %v5976 = vld [vmem:[#allocation15] sm:$0xff]
    %v5977 = vld [vmem:[#allocation15 + $0x8] sm:$0xff]
    %v5978 = vld [vmem:[#allocation15 + $0x10] sm:$0xff]
    %v5979 = vld [vmem:[#allocation15 + $0x18] sm:$0xff]
    %v5980 = vld [vmem:[#allocation15 + $0x20] sm:$0xff]
    %v5981 = vld [vmem:[#allocation15 + $0x28] sm:$0xff]
    %v5982 = vld [vmem:[#allocation15 + $0x30] sm:$0xff]
    %v5983 = vld [vmem:[#allocation15 + $0x38] sm:$0xff]
    %v5984 = vld [vmem:[#allocation15 + $0x40] sm:$0xff]
    %v5985 = vld [vmem:[#allocation15 + $0x48] sm:$0xff]
    %v5986 = vld [vmem:[#allocation15 + $0x50] sm:$0xff]
    %v5987 = vld [vmem:[#allocation15 + $0x58] sm:$0xff]
    %v5988 = vld [vmem:[#allocation15 + $0x60] sm:$0xff]
    %v5989 = vld [vmem:[#allocation15 + $0x68] sm:$0xff]
    %v5990 = vld [vmem:[#allocation15 + $0x70] sm:$0xff]
    %v5991 = vld [vmem:[#allocation15 + $0x78] sm:$0xff]
    %v5992 = vld [vmem:[#allocation15 + $0x80] sm:$0xff]
    %v5993 = vld [vmem:[#allocation15 + $0x88] sm:$0xff]
    %v5994 = vld [vmem:[#allocation15 + $0x90] sm:$0xff]
    %v5995 = vld [vmem:[#allocation15 + $0x98] sm:$0xff]
    %v5996 = vld [vmem:[#allocation15 + $0xa0] sm:$0xff]
    %v5997 = vld [vmem:[#allocation15 + $0xa8] sm:$0xff]
    %v5998 = vld [vmem:[#allocation15 + $0xb0] sm:$0xff]
    %v5999 = vld [vmem:[#allocation15 + $0xb8] sm:$0xff]
    %v6000 = vld [vmem:[#allocation15 + $0xc0] sm:$0xff]
    %v6001 = vld [vmem:[#allocation15 + $0xc8] sm:$0xff]
    %v6002 = vld [vmem:[#allocation15 + $0xd0] sm:$0xff]
    %v6003 = vld [vmem:[#allocation15 + $0xd8] sm:$0xff]
    %v6004 = vld [vmem:[#allocation15 + $0xe0] sm:$0xff]
    %v6005 = vld [vmem:[#allocation15 + $0xe8] sm:$0xff]
    %v6006 = vld [vmem:[#allocation15 + $0xf0] sm:$0xff]
    %v6007 = vld [vmem:[#allocation15 + $0xf8] sm:$0xff]
    %v6008 = vld [vmem:[#allocation15 + $0x100] sm:$0xff]
    %v6009 = vld [vmem:[#allocation15 + $0x108] sm:$0xff]
    %v6010 = vld [vmem:[#allocation15 + $0x110] sm:$0xff]
    %v6011 = vld [vmem:[#allocation15 + $0x118] sm:$0xff]
    %v6012 = vld [vmem:[#allocation15 + $0x120] sm:$0xff]
    %v6013 = vld [vmem:[#allocation15 + $0x128] sm:$0xff]
    %v6014 = vld [vmem:[#allocation15 + $0x130] sm:$0xff]
    %v6015 = vld [vmem:[#allocation15 + $0x138] sm:$0xff]
    %v6016 = vld [vmem:[#allocation15 + $0x140] sm:$0xff]
    %v6017 = vld [vmem:[#allocation15 + $0x148] sm:$0xff]
    %v6018 = vld [vmem:[#allocation15 + $0x150] sm:$0xff]
    %v6019 = vld [vmem:[#allocation15 + $0x158] sm:$0xff]
    %v6020 = vld [vmem:[#allocation15 + $0x160] sm:$0xff]
    %v6021 = vld [vmem:[#allocation15 + $0x168] sm:$0xff]
    %v6022 = vld [vmem:[#allocation15 + $0x170] sm:$0xff]
    %v6023 = vld [vmem:[#allocation15 + $0x178] sm:$0xff]
    %v6024 = vld [vmem:[#allocation15 + $0x180] sm:$0xff]
    %v6025 = vld [vmem:[#allocation15 + $0x188] sm:$0xff]
    %v6026 = vld [vmem:[#allocation15 + $0x190] sm:$0xff]
    %v6027 = vld [vmem:[#allocation15 + $0x198] sm:$0xff]
    %v6028 = vld [vmem:[#allocation15 + $0x1a0] sm:$0xff]
    %v6029 = vld [vmem:[#allocation15 + $0x1a8] sm:$0xff]
    %v6030 = vld [vmem:[#allocation15 + $0x1b0] sm:$0xff]
    %v6031 = vld [vmem:[#allocation15 + $0x1b8] sm:$0xff]
    %v6032 = vld [vmem:[#allocation15 + $0x1c0] sm:$0xff]
    %v6033 = vld [vmem:[#allocation15 + $0x1c8] sm:$0xff]
    %v6034 = vld [vmem:[#allocation15 + $0x1d0] sm:$0xff]
    %v6035 = vld [vmem:[#allocation15 + $0x1d8] sm:$0xff]
    %v6036 = vld [vmem:[#allocation15 + $0x1e0] sm:$0xff]
    %v6037 = vld [vmem:[#allocation15 + $0x1e8] sm:$0xff]
    %v6038 = vld [vmem:[#allocation15 + $0x1f0] sm:$0xff]
    %v6039 = vld [vmem:[#allocation15 + $0x1f8] sm:$0xff]
    %v6040 = vld [vmem:[#allocation15 + $0x200] sm:$0xff]
    %v6041 = vld [vmem:[#allocation15 + $0x208] sm:$0xff]
    %v6042 = vld [vmem:[#allocation15 + $0x210] sm:$0xff]
    %v6043 = vld [vmem:[#allocation15 + $0x218] sm:$0xff]
    %v6044 = vld [vmem:[#allocation15 + $0x220] sm:$0xff]
    %v6045 = vld [vmem:[#allocation15 + $0x228] sm:$0xff]
    %v6046 = vld [vmem:[#allocation15 + $0x230] sm:$0xff]
    %v6047 = vld [vmem:[#allocation15 + $0x238] sm:$0xff]
    %v6048 = vld [vmem:[#allocation15 + $0x240] sm:$0xff]
    %v6049 = vld [vmem:[#allocation15 + $0x248] sm:$0xff]
    %v6050 = vld [vmem:[#allocation15 + $0x250] sm:$0xff]
    %v6051 = vld [vmem:[#allocation15 + $0x258] sm:$0xff]
    %v6052 = vld [vmem:[#allocation15 + $0x260] sm:$0xff]
    %v6053 = vld [vmem:[#allocation15 + $0x268] sm:$0xff]
    %v6054 = vld [vmem:[#allocation15 + $0x270] sm:$0xff]
    %v6055 = vld [vmem:[#allocation15 + $0x278] sm:$0xff]
    %v6056 = vld [vmem:[#allocation15 + $0x280] sm:$0xff]
    %v6057 = vld [vmem:[#allocation15 + $0x288] sm:$0xff]
    %v6058 = vld [vmem:[#allocation15 + $0x290] sm:$0xff]
    %v6059 = vld [vmem:[#allocation15 + $0x298] sm:$0xff]
    %v6060 = vld [vmem:[#allocation15 + $0x2a0] sm:$0xff]
    %v6061 = vld [vmem:[#allocation15 + $0x2a8] sm:$0xff]
    %v6062 = vld [vmem:[#allocation15 + $0x2b0] sm:$0xff]
    %v6063 = vld [vmem:[#allocation15 + $0x2b8] sm:$0xff]
    %v6064 = vld [vmem:[#allocation15 + $0x2c0] sm:$0xff]
    %v6065 = vld [vmem:[#allocation15 + $0x2c8] sm:$0xff]
    %v6066 = vld [vmem:[#allocation15 + $0x2d0] sm:$0xff]
    %v6067 = vld [vmem:[#allocation15 + $0x2d8] sm:$0xff]
    %v6068 = vld [vmem:[#allocation15 + $0x2e0] sm:$0xff]
    %v6069 = vld [vmem:[#allocation15 + $0x2e8] sm:$0xff]
    %v6070 = vld [vmem:[#allocation15 + $0x2f0] sm:$0xff]
    %v6071 = vld [vmem:[#allocation15 + $0x2f8] sm:$0xff]
    %v6072 = vld [vmem:[#allocation15 + $0x300] sm:$0xff]
    %v6073 = vld [vmem:[#allocation15 + $0x308] sm:$0xff]
    %v6074 = vld [vmem:[#allocation15 + $0x310] sm:$0xff]
    %v6075 = vld [vmem:[#allocation15 + $0x318] sm:$0xff]
    %v6076 = vld [vmem:[#allocation15 + $0x320] sm:$0xff]
    %v6077 = vld [vmem:[#allocation15 + $0x328] sm:$0xff]
    %v6078 = vld [vmem:[#allocation15 + $0x330] sm:$0xff]
    %v6079 = vld [vmem:[#allocation15 + $0x338] sm:$0xff]
    %v6080 = vld [vmem:[#allocation15 + $0x340] sm:$0xff]
    %v6081 = vld [vmem:[#allocation15 + $0x348] sm:$0xff]
    %v6082 = vld [vmem:[#allocation15 + $0x350] sm:$0xff]
    %v6083 = vld [vmem:[#allocation15 + $0x358] sm:$0xff]
    %v6084 = vld [vmem:[#allocation15 + $0x360] sm:$0xff]
    %v6085 = vld [vmem:[#allocation15 + $0x368] sm:$0xff]
    %v6086 = vld [vmem:[#allocation15 + $0x370] sm:$0xff]
    %v6087 = vld [vmem:[#allocation15 + $0x378] sm:$0xff]
    %v6088 = vld [vmem:[#allocation15 + $0x380] sm:$0xff]
    %v6089 = vld [vmem:[#allocation15 + $0x388] sm:$0xff]
    %v6090 = vld [vmem:[#allocation15 + $0x390] sm:$0xff]
    %v6091 = vld [vmem:[#allocation15 + $0x398] sm:$0xff]
    %v6092 = vld [vmem:[#allocation15 + $0x3a0] sm:$0xff]
    %v6093 = vld [vmem:[#allocation15 + $0x3a8] sm:$0xff]
    %v6094 = vld [vmem:[#allocation15 + $0x3b0] sm:$0xff]
    %v6095 = vld [vmem:[#allocation15 + $0x3b8] sm:$0xff]
    %v6096 = vld [vmem:[#allocation15 + $0x3c0] sm:$0xff]
    %v6097 = vld [vmem:[#allocation15 + $0x3c8] sm:$0xff]
    %v6098 = vld [vmem:[#allocation15 + $0x3d0] sm:$0xff]
    %v6099 = vld [vmem:[#allocation15 + $0x3d8] sm:$0xff]
    %v6100 = vld [vmem:[#allocation15 + $0x3e0] sm:$0xff]
    %v6101 = vld [vmem:[#allocation15 + $0x3e8] sm:$0xff]
    %v6102 = vld [vmem:[#allocation15 + $0x3f0] sm:$0xff]
    %v6103 = vld [vmem:[#allocation15 + $0x3f8] sm:$0xff]
    %v6232 = vunpack.c.l.b16 %v5976
    %v6233 = vunpack.c.h.b16 %v5976
    %v6234 = vunpack.c.l.b16 %v5977
    %v6235 = vunpack.c.h.b16 %v5977
    %v6236 = vunpack.c.l.b16 %v5978
    %v6237 = vunpack.c.h.b16 %v5978
    %v6238 = vunpack.c.l.b16 %v5979
    %v6239 = vunpack.c.h.b16 %v5979
    %v6240 = vunpack.c.l.b16 %v5980
    %v6241 = vunpack.c.h.b16 %v5980
    %v6242 = vunpack.c.l.b16 %v5981
    %v6243 = vunpack.c.h.b16 %v5981
    %v6244 = vunpack.c.l.b16 %v5982
    %v6245 = vunpack.c.h.b16 %v5982
    %v6246 = vunpack.c.l.b16 %v5983
    %v6247 = vunpack.c.h.b16 %v5983
    %v6248 = vunpack.c.l.b16 %v5984
    %v6249 = vunpack.c.h.b16 %v5984
    %v6250 = vunpack.c.l.b16 %v5985
    %v6251 = vunpack.c.h.b16 %v5985
    %v6252 = vunpack.c.l.b16 %v5986
    %v6253 = vunpack.c.h.b16 %v5986
    %v6254 = vunpack.c.l.b16 %v5987
    %v6255 = vunpack.c.h.b16 %v5987
    %v6256 = vunpack.c.l.b16 %v5988
    %v6257 = vunpack.c.h.b16 %v5988
    %v6258 = vunpack.c.l.b16 %v5989
    %v6259 = vunpack.c.h.b16 %v5989
    %v6260 = vunpack.c.l.b16 %v5990
    %v6261 = vunpack.c.h.b16 %v5990
    %v6262 = vunpack.c.l.b16 %v5991
    %v6263 = vunpack.c.h.b16 %v5991
    %v6264 = vunpack.c.l.b16 %v5992
    %v6265 = vunpack.c.h.b16 %v5992
    %v6266 = vunpack.c.l.b16 %v5993
    %v6267 = vunpack.c.h.b16 %v5993
    %v6268 = vunpack.c.l.b16 %v5994
    %v6269 = vunpack.c.h.b16 %v5994
    %v6270 = vunpack.c.l.b16 %v5995
    %v6271 = vunpack.c.h.b16 %v5995
    %v6272 = vunpack.c.l.b16 %v5996
    %v6273 = vunpack.c.h.b16 %v5996
    %v6274 = vunpack.c.l.b16 %v5997
    %v6275 = vunpack.c.h.b16 %v5997
    %v6276 = vunpack.c.l.b16 %v5998
    %v6277 = vunpack.c.h.b16 %v5998
    %v6278 = vunpack.c.l.b16 %v5999
    %v6279 = vunpack.c.h.b16 %v5999
    %v6280 = vunpack.c.l.b16 %v6000
    %v6281 = vunpack.c.h.b16 %v6000
    %v6282 = vunpack.c.l.b16 %v6001
    %v6283 = vunpack.c.h.b16 %v6001
    %v6284 = vunpack.c.l.b16 %v6002
    %v6285 = vunpack.c.h.b16 %v6002
    %v6286 = vunpack.c.l.b16 %v6003
    %v6287 = vunpack.c.h.b16 %v6003
    %v6288 = vunpack.c.l.b16 %v6004
    %v6289 = vunpack.c.h.b16 %v6004
    %v6290 = vunpack.c.l.b16 %v6005
    %v6291 = vunpack.c.h.b16 %v6005
    %v6292 = vunpack.c.l.b16 %v6006
    %v6293 = vunpack.c.h.b16 %v6006
    %v6294 = vunpack.c.l.b16 %v6007
    %v6295 = vunpack.c.h.b16 %v6007
    %v6296 = vunpack.c.l.b16 %v6008
    %v6297 = vunpack.c.h.b16 %v6008
    %v6298 = vunpack.c.l.b16 %v6009
    %v6299 = vunpack.c.h.b16 %v6009
    %v6300 = vunpack.c.l.b16 %v6010
    %v6301 = vunpack.c.h.b16 %v6010
    %v6302 = vunpack.c.l.b16 %v6011
    %v6303 = vunpack.c.h.b16 %v6011
    %v6304 = vunpack.c.l.b16 %v6012
    %v6305 = vunpack.c.h.b16 %v6012
    %v6306 = vunpack.c.l.b16 %v6013
    %v6307 = vunpack.c.h.b16 %v6013
    %v6308 = vunpack.c.l.b16 %v6014
    %v6309 = vunpack.c.h.b16 %v6014
    %v6310 = vunpack.c.l.b16 %v6015
    %v6311 = vunpack.c.h.b16 %v6015
    %v6312 = vunpack.c.l.b16 %v6016
    %v6313 = vunpack.c.h.b16 %v6016
    %v6314 = vunpack.c.l.b16 %v6017
    %v6315 = vunpack.c.h.b16 %v6017
    %v6316 = vunpack.c.l.b16 %v6018
    %v6317 = vunpack.c.h.b16 %v6018
    %v6318 = vunpack.c.l.b16 %v6019
    %v6319 = vunpack.c.h.b16 %v6019
    %v6320 = vunpack.c.l.b16 %v6020
    %v6321 = vunpack.c.h.b16 %v6020
    %v6322 = vunpack.c.l.b16 %v6021
    %v6323 = vunpack.c.h.b16 %v6021
    %v6324 = vunpack.c.l.b16 %v6022
    %v6325 = vunpack.c.h.b16 %v6022
    %v6326 = vunpack.c.l.b16 %v6023
    %v6327 = vunpack.c.h.b16 %v6023
    %v6328 = vunpack.c.l.b16 %v6024
    %v6329 = vunpack.c.h.b16 %v6024
    %v6330 = vunpack.c.l.b16 %v6025
    %v6331 = vunpack.c.h.b16 %v6025
    %v6332 = vunpack.c.l.b16 %v6026
    %v6333 = vunpack.c.h.b16 %v6026
    %v6334 = vunpack.c.l.b16 %v6027
    %v6335 = vunpack.c.h.b16 %v6027
    %v6336 = vunpack.c.l.b16 %v6028
    %v6337 = vunpack.c.h.b16 %v6028
    %v6338 = vunpack.c.l.b16 %v6029
    %v6339 = vunpack.c.h.b16 %v6029
    %v6340 = vunpack.c.l.b16 %v6030
    %v6341 = vunpack.c.h.b16 %v6030
    %v6342 = vunpack.c.l.b16 %v6031
    %v6343 = vunpack.c.h.b16 %v6031
    %v6344 = vunpack.c.l.b16 %v6032
    %v6345 = vunpack.c.h.b16 %v6032
    %v6346 = vunpack.c.l.b16 %v6033
    %v6347 = vunpack.c.h.b16 %v6033
    %v6348 = vunpack.c.l.b16 %v6034
    %v6349 = vunpack.c.h.b16 %v6034
    %v6350 = vunpack.c.l.b16 %v6035
    %v6351 = vunpack.c.h.b16 %v6035
    %v6352 = vunpack.c.l.b16 %v6036
    %v6353 = vunpack.c.h.b16 %v6036
    %v6354 = vunpack.c.l.b16 %v6037
    %v6355 = vunpack.c.h.b16 %v6037
    %v6356 = vunpack.c.l.b16 %v6038
    %v6357 = vunpack.c.h.b16 %v6038
    %v6358 = vunpack.c.l.b16 %v6039
    %v6359 = vunpack.c.h.b16 %v6039
    %v6360 = vunpack.c.l.b16 %v6040
    %v6361 = vunpack.c.h.b16 %v6040
    %v6362 = vunpack.c.l.b16 %v6041
    %v6363 = vunpack.c.h.b16 %v6041
    %v6364 = vunpack.c.l.b16 %v6042
    %v6365 = vunpack.c.h.b16 %v6042
    %v6366 = vunpack.c.l.b16 %v6043
    %v6367 = vunpack.c.h.b16 %v6043
    %v6368 = vunpack.c.l.b16 %v6044
    %v6369 = vunpack.c.h.b16 %v6044
    %v6370 = vunpack.c.l.b16 %v6045
    %v6371 = vunpack.c.h.b16 %v6045
    %v6372 = vunpack.c.l.b16 %v6046
    %v6373 = vunpack.c.h.b16 %v6046
    %v6374 = vunpack.c.l.b16 %v6047
    %v6375 = vunpack.c.h.b16 %v6047
    %v6376 = vunpack.c.l.b16 %v6048
    %v6377 = vunpack.c.h.b16 %v6048
    %v6378 = vunpack.c.l.b16 %v6049
    %v6379 = vunpack.c.h.b16 %v6049
    %v6380 = vunpack.c.l.b16 %v6050
    %v6381 = vunpack.c.h.b16 %v6050
    %v6382 = vunpack.c.l.b16 %v6051
    %v6383 = vunpack.c.h.b16 %v6051
    %v6384 = vunpack.c.l.b16 %v6052
    %v6385 = vunpack.c.h.b16 %v6052
    %v6386 = vunpack.c.l.b16 %v6053
    %v6387 = vunpack.c.h.b16 %v6053
    %v6388 = vunpack.c.l.b16 %v6054
    %v6389 = vunpack.c.h.b16 %v6054
    %v6390 = vunpack.c.l.b16 %v6055
    %v6391 = vunpack.c.h.b16 %v6055
    %v6392 = vunpack.c.l.b16 %v6056
    %v6393 = vunpack.c.h.b16 %v6056
    %v6394 = vunpack.c.l.b16 %v6057
    %v6395 = vunpack.c.h.b16 %v6057
    %v6396 = vunpack.c.l.b16 %v6058
    %v6397 = vunpack.c.h.b16 %v6058
    %v6398 = vunpack.c.l.b16 %v6059
    %v6399 = vunpack.c.h.b16 %v6059
    %v6400 = vunpack.c.l.b16 %v6060
    %v6401 = vunpack.c.h.b16 %v6060
    %v6402 = vunpack.c.l.b16 %v6061
    %v6403 = vunpack.c.h.b16 %v6061
    %v6404 = vunpack.c.l.b16 %v6062
    %v6405 = vunpack.c.h.b16 %v6062
    %v6406 = vunpack.c.l.b16 %v6063
    %v6407 = vunpack.c.h.b16 %v6063
    %v6408 = vunpack.c.l.b16 %v6064
    %v6409 = vunpack.c.h.b16 %v6064
    %v6410 = vunpack.c.l.b16 %v6065
    %v6411 = vunpack.c.h.b16 %v6065
    %v6412 = vunpack.c.l.b16 %v6066
    %v6413 = vunpack.c.h.b16 %v6066
    %v6414 = vunpack.c.l.b16 %v6067
    %v6415 = vunpack.c.h.b16 %v6067
    %v6416 = vunpack.c.l.b16 %v6068
    %v6417 = vunpack.c.h.b16 %v6068
    %v6418 = vunpack.c.l.b16 %v6069
    %v6419 = vunpack.c.h.b16 %v6069
    %v6420 = vunpack.c.l.b16 %v6070
    %v6421 = vunpack.c.h.b16 %v6070
    %v6422 = vunpack.c.l.b16 %v6071
    %v6423 = vunpack.c.h.b16 %v6071
    %v6424 = vunpack.c.l.b16 %v6072
    %v6425 = vunpack.c.h.b16 %v6072
    %v6426 = vunpack.c.l.b16 %v6073
    %v6427 = vunpack.c.h.b16 %v6073
    %v6428 = vunpack.c.l.b16 %v6074
    %v6429 = vunpack.c.h.b16 %v6074
    %v6430 = vunpack.c.l.b16 %v6075
    %v6431 = vunpack.c.h.b16 %v6075
    %v6432 = vunpack.c.l.b16 %v6076
    %v6433 = vunpack.c.h.b16 %v6076
    %v6434 = vunpack.c.l.b16 %v6077
    %v6435 = vunpack.c.h.b16 %v6077
    %v6436 = vunpack.c.l.b16 %v6078
    %v6437 = vunpack.c.h.b16 %v6078
    %v6438 = vunpack.c.l.b16 %v6079
    %v6439 = vunpack.c.h.b16 %v6079
    %v6440 = vunpack.c.l.b16 %v6080
    %v6441 = vunpack.c.h.b16 %v6080
    %v6442 = vunpack.c.l.b16 %v6081
    %v6443 = vunpack.c.h.b16 %v6081
    %v6444 = vunpack.c.l.b16 %v6082
    %v6445 = vunpack.c.h.b16 %v6082
    %v6446 = vunpack.c.l.b16 %v6083
    %v6447 = vunpack.c.h.b16 %v6083
    %v6448 = vunpack.c.l.b16 %v6084
    %v6449 = vunpack.c.h.b16 %v6084
    %v6450 = vunpack.c.l.b16 %v6085
    %v6451 = vunpack.c.h.b16 %v6085
    %v6452 = vunpack.c.l.b16 %v6086
    %v6453 = vunpack.c.h.b16 %v6086
    %v6454 = vunpack.c.l.b16 %v6087
    %v6455 = vunpack.c.h.b16 %v6087
    %v6456 = vunpack.c.l.b16 %v6088
    %v6457 = vunpack.c.h.b16 %v6088
    %v6458 = vunpack.c.l.b16 %v6089
    %v6459 = vunpack.c.h.b16 %v6089
    %v6460 = vunpack.c.l.b16 %v6090
    %v6461 = vunpack.c.h.b16 %v6090
    %v6462 = vunpack.c.l.b16 %v6091
    %v6463 = vunpack.c.h.b16 %v6091
    %v6464 = vunpack.c.l.b16 %v6092
    %v6465 = vunpack.c.h.b16 %v6092
    %v6466 = vunpack.c.l.b16 %v6093
    %v6467 = vunpack.c.h.b16 %v6093
    %v6468 = vunpack.c.l.b16 %v6094
    %v6469 = vunpack.c.h.b16 %v6094
    %v6470 = vunpack.c.l.b16 %v6095
    %v6471 = vunpack.c.h.b16 %v6095
    %v6472 = vunpack.c.l.b16 %v6096
    %v6473 = vunpack.c.h.b16 %v6096
    %v6474 = vunpack.c.l.b16 %v6097
    %v6475 = vunpack.c.h.b16 %v6097
    %v6476 = vunpack.c.l.b16 %v6098
    %v6477 = vunpack.c.h.b16 %v6098
    %v6478 = vunpack.c.l.b16 %v6099
    %v6479 = vunpack.c.h.b16 %v6099
    %v6480 = vunpack.c.l.b16 %v6100
    %v6481 = vunpack.c.h.b16 %v6100
    %v6482 = vunpack.c.l.b16 %v6101
    %v6483 = vunpack.c.h.b16 %v6101
    %v6484 = vunpack.c.l.b16 %v6102
    %v6485 = vunpack.c.h.b16 %v6102
    %v6486 = vunpack.c.l.b16 %v6103
    %v6487 = vunpack.c.h.b16 %v6103
    %v6488 = vpack.c.b16 %v6240, %v6232
    %v6489 = vpack.c.b16 %v6241, %v6233
    %v6490 = vpack.c.b16 %v6242, %v6234
    %v6491 = vpack.c.b16 %v6243, %v6235
    %v6492 = vpack.c.b16 %v6244, %v6236
    %v6493 = vpack.c.b16 %v6245, %v6237
    %v6494 = vpack.c.b16 %v6246, %v6238
    %v6495 = vpack.c.b16 %v6247, %v6239
    %v6496 = vpack.c.b16 %v6256, %v6248
    %v6497 = vpack.c.b16 %v6257, %v6249
    %v6498 = vpack.c.b16 %v6258, %v6250
    %v6499 = vpack.c.b16 %v6259, %v6251
    %v6500 = vpack.c.b16 %v6260, %v6252
    %v6501 = vpack.c.b16 %v6261, %v6253
    %v6502 = vpack.c.b16 %v6262, %v6254
    %v6503 = vpack.c.b16 %v6263, %v6255
    %v6504 = vpack.c.b16 %v6272, %v6264
    %v6505 = vpack.c.b16 %v6273, %v6265
    %v6506 = vpack.c.b16 %v6274, %v6266
    %v6507 = vpack.c.b16 %v6275, %v6267
    %v6508 = vpack.c.b16 %v6276, %v6268
    %v6509 = vpack.c.b16 %v6277, %v6269
    %v6510 = vpack.c.b16 %v6278, %v6270
    %v6511 = vpack.c.b16 %v6279, %v6271
    %v6512 = vpack.c.b16 %v6288, %v6280
    %v6513 = vpack.c.b16 %v6289, %v6281
    %v6514 = vpack.c.b16 %v6290, %v6282
    %v6515 = vpack.c.b16 %v6291, %v6283
    %v6516 = vpack.c.b16 %v6292, %v6284
    %v6517 = vpack.c.b16 %v6293, %v6285
    %v6518 = vpack.c.b16 %v6294, %v6286
    %v6519 = vpack.c.b16 %v6295, %v6287
    %v6520 = vpack.c.b16 %v6304, %v6296
    %v6521 = vpack.c.b16 %v6305, %v6297
    %v6522 = vpack.c.b16 %v6306, %v6298
    %v6523 = vpack.c.b16 %v6307, %v6299
    %v6524 = vpack.c.b16 %v6308, %v6300
    %v6525 = vpack.c.b16 %v6309, %v6301
    %v6526 = vpack.c.b16 %v6310, %v6302
    %v6527 = vpack.c.b16 %v6311, %v6303
    %v6528 = vpack.c.b16 %v6320, %v6312
    %v6529 = vpack.c.b16 %v6321, %v6313
    %v6530 = vpack.c.b16 %v6322, %v6314
    %v6531 = vpack.c.b16 %v6323, %v6315
    %v6532 = vpack.c.b16 %v6324, %v6316
    %v6533 = vpack.c.b16 %v6325, %v6317
    %v6534 = vpack.c.b16 %v6326, %v6318
    %v6535 = vpack.c.b16 %v6327, %v6319
    %v6536 = vpack.c.b16 %v6336, %v6328
    %v6537 = vpack.c.b16 %v6337, %v6329
    %v6538 = vpack.c.b16 %v6338, %v6330
    %v6539 = vpack.c.b16 %v6339, %v6331
    %v6540 = vpack.c.b16 %v6340, %v6332
    %v6541 = vpack.c.b16 %v6341, %v6333
    %v6542 = vpack.c.b16 %v6342, %v6334
    %v6543 = vpack.c.b16 %v6343, %v6335
    %v6544 = vpack.c.b16 %v6352, %v6344
    %v6545 = vpack.c.b16 %v6353, %v6345
    %v6546 = vpack.c.b16 %v6354, %v6346
    %v6547 = vpack.c.b16 %v6355, %v6347
    %v6548 = vpack.c.b16 %v6356, %v6348
    %v6549 = vpack.c.b16 %v6357, %v6349
    %v6550 = vpack.c.b16 %v6358, %v6350
    %v6551 = vpack.c.b16 %v6359, %v6351
    %v6552 = vpack.c.b16 %v6368, %v6360
    %v6553 = vpack.c.b16 %v6369, %v6361
    %v6554 = vpack.c.b16 %v6370, %v6362
    %v6555 = vpack.c.b16 %v6371, %v6363
    %v6556 = vpack.c.b16 %v6372, %v6364
    %v6557 = vpack.c.b16 %v6373, %v6365
    %v6558 = vpack.c.b16 %v6374, %v6366
    %v6559 = vpack.c.b16 %v6375, %v6367
    %v6560 = vpack.c.b16 %v6384, %v6376
    %v6561 = vpack.c.b16 %v6385, %v6377
    %v6562 = vpack.c.b16 %v6386, %v6378
    %v6563 = vpack.c.b16 %v6387, %v6379
    %v6564 = vpack.c.b16 %v6388, %v6380
    %v6565 = vpack.c.b16 %v6389, %v6381
    %v6566 = vpack.c.b16 %v6390, %v6382
    %v6567 = vpack.c.b16 %v6391, %v6383
    %v6568 = vpack.c.b16 %v6400, %v6392
    %v6569 = vpack.c.b16 %v6401, %v6393
    %v6570 = vpack.c.b16 %v6402, %v6394
    %v6571 = vpack.c.b16 %v6403, %v6395
    %v6572 = vpack.c.b16 %v6404, %v6396
    %v6573 = vpack.c.b16 %v6405, %v6397
    %v6574 = vpack.c.b16 %v6406, %v6398
    %v6575 = vpack.c.b16 %v6407, %v6399
    %v6576 = vpack.c.b16 %v6416, %v6408
    %v6577 = vpack.c.b16 %v6417, %v6409
    %v6578 = vpack.c.b16 %v6418, %v6410
    %v6579 = vpack.c.b16 %v6419, %v6411
    %v6580 = vpack.c.b16 %v6420, %v6412
    %v6581 = vpack.c.b16 %v6421, %v6413
    %v6582 = vpack.c.b16 %v6422, %v6414
    %v6583 = vpack.c.b16 %v6423, %v6415
    %v6584 = vpack.c.b16 %v6432, %v6424
    %v6585 = vpack.c.b16 %v6433, %v6425
    %v6586 = vpack.c.b16 %v6434, %v6426
    %v6587 = vpack.c.b16 %v6435, %v6427
    %v6588 = vpack.c.b16 %v6436, %v6428
    %v6589 = vpack.c.b16 %v6437, %v6429
    %v6590 = vpack.c.b16 %v6438, %v6430
    %v6591 = vpack.c.b16 %v6439, %v6431
    %v6592 = vpack.c.b16 %v6448, %v6440
    %v6593 = vpack.c.b16 %v6449, %v6441
    %v6594 = vpack.c.b16 %v6450, %v6442
    %v6595 = vpack.c.b16 %v6451, %v6443
    %v6596 = vpack.c.b16 %v6452, %v6444
    %v6597 = vpack.c.b16 %v6453, %v6445
    %v6598 = vpack.c.b16 %v6454, %v6446
    %v6599 = vpack.c.b16 %v6455, %v6447
    %v6600 = vpack.c.b16 %v6464, %v6456
    %v6601 = vpack.c.b16 %v6465, %v6457
    %v6602 = vpack.c.b16 %v6466, %v6458
    %v6603 = vpack.c.b16 %v6467, %v6459
    %v6604 = vpack.c.b16 %v6468, %v6460
    %v6605 = vpack.c.b16 %v6469, %v6461
    %v6606 = vpack.c.b16 %v6470, %v6462
    %v6607 = vpack.c.b16 %v6471, %v6463
    %v6608 = vpack.c.b16 %v6480, %v6472
    %v6609 = vpack.c.b16 %v6481, %v6473
    %v6610 = vpack.c.b16 %v6482, %v6474
    %v6611 = vpack.c.b16 %v6483, %v6475
    %v6612 = vpack.c.b16 %v6484, %v6476
    %v6613 = vpack.c.b16 %v6485, %v6477
    %v6614 = vpack.c.b16 %v6486, %v6478
    %v6615 = vpack.c.b16 %v6487, %v6479
    %6744 = vmatpush.bf16.msra.mxu0 %v6544
    %6745 = vmatpush.bf16.msra.mxu0 %v6536
    %6746 = vmatpush.bf16.msra.mxu0 %v6528
    %6747 = vmatpush.bf16.msra.mxu0 %v6520
    %6748 = vmatpush.bf16.msra.mxu0 %v6512
    %6749 = vmatpush.bf16.msra.mxu0 %v6504
    %6750 = vmatpush.bf16.msra.mxu0 %v6496
    %6751 = vmatpush.bf16.msra.mxu0 %v6488
    %6752 = vmatmul.bf16.gmra.mxu0 %v5974
    %v6753 = vpop.f32.mrf.mxu0
    %v6754 = vadd.f32 0.0, %v6753
    %v6755 = vpop.f32.mrf.mxu0
    %6756 = vdwg.mxu0
    %6757 = vmatpush.bf16.msra.mxu0 %v6608
    %6758 = vmatpush.bf16.msra.mxu0 %v6600
    %6759 = vmatpush.bf16.msra.mxu0 %v6592
    %6760 = vmatpush.bf16.msra.mxu0 %v6584
    %6761 = vmatpush.bf16.msra.mxu0 %v6576
    %6762 = vmatpush.bf16.msra.mxu0 %v6568
    %6763 = vmatpush.bf16.msra.mxu0 %v6560
    %6764 = vmatpush.bf16.msra.mxu0 %v6552
    %6765 = vmatmul.bf16.gmra.mxu0 %v5975
    %v6766 = vpop.f32.mrf.mxu0
    %v6767 = vadd.f32 %v6754, %v6766
    %v6768 = vpop.f32.mrf.mxu0
    %6769 = vdwg.mxu0
    %6770 = vmatpush.bf16.msra.mxu0 %v6545
    %6771 = vmatpush.bf16.msra.mxu0 %v6537
    %6772 = vmatpush.bf16.msra.mxu0 %v6529
    %6773 = vmatpush.bf16.msra.mxu0 %v6521
    %6774 = vmatpush.bf16.msra.mxu0 %v6513
    %6775 = vmatpush.bf16.msra.mxu0 %v6505
    %6776 = vmatpush.bf16.msra.mxu0 %v6497
    %6777 = vmatpush.bf16.msra.mxu0 %v6489
    %6778 = vmatmul.bf16.gmra.mxu0 %v5974
    %v6779 = vpop.f32.mrf.mxu0
    %v6780 = vadd.f32 0.0, %v6779
    %v6781 = vpop.f32.mrf.mxu0
    %6782 = vdwg.mxu0
    %6783 = vmatpush.bf16.msra.mxu0 %v6609
    %6784 = vmatpush.bf16.msra.mxu0 %v6601
    %6785 = vmatpush.bf16.msra.mxu0 %v6593
    %6786 = vmatpush.bf16.msra.mxu0 %v6585
    %6787 = vmatpush.bf16.msra.mxu0 %v6577
    %6788 = vmatpush.bf16.msra.mxu0 %v6569
    %6789 = vmatpush.bf16.msra.mxu0 %v6561
    %6790 = vmatpush.bf16.msra.mxu0 %v6553
    %6791 = vmatmul.bf16.gmra.mxu0 %v5975
    %v6792 = vpop.f32.mrf.mxu0
    %v6793 = vadd.f32 %v6780, %v6792
    %v6794 = vpop.f32.mrf.mxu0
    %6795 = vdwg.mxu0
    %6796 = vmatpush.bf16.msra.mxu0 %v6546
    %6797 = vmatpush.bf16.msra.mxu0 %v6538
    %6798 = vmatpush.bf16.msra.mxu0 %v6530
    %6799 = vmatpush.bf16.msra.mxu0 %v6522
    %6800 = vmatpush.bf16.msra.mxu0 %v6514
    %6801 = vmatpush.bf16.msra.mxu0 %v6506
    %6802 = vmatpush.bf16.msra.mxu0 %v6498
    %6803 = vmatpush.bf16.msra.mxu0 %v6490
    %6804 = vmatmul.bf16.gmra.mxu0 %v5974
    %v6805 = vpop.f32.mrf.mxu0
    %v6806 = vadd.f32 0.0, %v6805
    %v6807 = vpop.f32.mrf.mxu0
    %6808 = vdwg.mxu0
    %6809 = vmatpush.bf16.msra.mxu0 %v6610
    %6810 = vmatpush.bf16.msra.mxu0 %v6602
    %6811 = vmatpush.bf16.msra.mxu0 %v6594
    %6812 = vmatpush.bf16.msra.mxu0 %v6586
    %6813 = vmatpush.bf16.msra.mxu0 %v6578
    %6814 = vmatpush.bf16.msra.mxu0 %v6570
    %6815 = vmatpush.bf16.msra.mxu0 %v6562
    %6816 = vmatpush.bf16.msra.mxu0 %v6554
    %6817 = vmatmul.bf16.gmra.mxu0 %v5975
    %v6818 = vpop.f32.mrf.mxu0
    %v6819 = vadd.f32 %v6806, %v6818
    %v6820 = vpop.f32.mrf.mxu0
    %6821 = vdwg.mxu0
    %6822 = vmatpush.bf16.msra.mxu0 %v6547
    %6823 = vmatpush.bf16.msra.mxu0 %v6539
    %6824 = vmatpush.bf16.msra.mxu0 %v6531
    %6825 = vmatpush.bf16.msra.mxu0 %v6523
    %6826 = vmatpush.bf16.msra.mxu0 %v6515
    %6827 = vmatpush.bf16.msra.mxu0 %v6507
    %6828 = vmatpush.bf16.msra.mxu0 %v6499
    %6829 = vmatpush.bf16.msra.mxu0 %v6491
    %6830 = vmatmul.bf16.gmra.mxu0 %v5974
    %v6831 = vpop.f32.mrf.mxu0
    %v6832 = vadd.f32 0.0, %v6831
    %v6833 = vpop.f32.mrf.mxu0
    %6834 = vdwg.mxu0
    %6835 = vmatpush.bf16.msra.mxu0 %v6611
    %6836 = vmatpush.bf16.msra.mxu0 %v6603
    %6837 = vmatpush.bf16.msra.mxu0 %v6595
    %6838 = vmatpush.bf16.msra.mxu0 %v6587
    %6839 = vmatpush.bf16.msra.mxu0 %v6579
    %6840 = vmatpush.bf16.msra.mxu0 %v6571
    %6841 = vmatpush.bf16.msra.mxu0 %v6563
    %6842 = vmatpush.bf16.msra.mxu0 %v6555
    %6843 = vmatmul.bf16.gmra.mxu0 %v5975
    %v6844 = vpop.f32.mrf.mxu0
    %v6845 = vadd.f32 %v6832, %v6844
    %v6846 = vpop.f32.mrf.mxu0
    %6847 = vdwg.mxu0
    %6848 = vmatpush.bf16.msra.mxu0 %v6548
    %6849 = vmatpush.bf16.msra.mxu0 %v6540
    %6850 = vmatpush.bf16.msra.mxu0 %v6532
    %6851 = vmatpush.bf16.msra.mxu0 %v6524
    %6852 = vmatpush.bf16.msra.mxu0 %v6516
    %6853 = vmatpush.bf16.msra.mxu0 %v6508
    %6854 = vmatpush.bf16.msra.mxu0 %v6500
    %6855 = vmatpush.bf16.msra.mxu0 %v6492
    %6856 = vmatmul.bf16.gmra.mxu0 %v5974
    %v6857 = vpop.f32.mrf.mxu0
    %v6858 = vadd.f32 0.0, %v6857
    %v6859 = vpop.f32.mrf.mxu0
    %6860 = vdwg.mxu0
    %6861 = vmatpush.bf16.msra.mxu0 %v6612
    %6862 = vmatpush.bf16.msra.mxu0 %v6604
    %6863 = vmatpush.bf16.msra.mxu0 %v6596
    %6864 = vmatpush.bf16.msra.mxu0 %v6588
    %6865 = vmatpush.bf16.msra.mxu0 %v6580
    %6866 = vmatpush.bf16.msra.mxu0 %v6572
    %6867 = vmatpush.bf16.msra.mxu0 %v6564
    %6868 = vmatpush.bf16.msra.mxu0 %v6556
    %6869 = vmatmul.bf16.gmra.mxu0 %v5975
    %v6870 = vpop.f32.mrf.mxu0
    %v6871 = vadd.f32 %v6858, %v6870
    %v6872 = vpop.f32.mrf.mxu0
    %6873 = vdwg.mxu0
    %6874 = vmatpush.bf16.msra.mxu0 %v6549
    %6875 = vmatpush.bf16.msra.mxu0 %v6541
    %6876 = vmatpush.bf16.msra.mxu0 %v6533
    %6877 = vmatpush.bf16.msra.mxu0 %v6525
    %6878 = vmatpush.bf16.msra.mxu0 %v6517
    %6879 = vmatpush.bf16.msra.mxu0 %v6509
    %6880 = vmatpush.bf16.msra.mxu0 %v6501
    %6881 = vmatpush.bf16.msra.mxu0 %v6493
    %6882 = vmatmul.bf16.gmra.mxu0 %v5974
    %v6883 = vpop.f32.mrf.mxu0
    %v6884 = vadd.f32 0.0, %v6883
    %v6885 = vpop.f32.mrf.mxu0
    %6886 = vdwg.mxu0
    %6887 = vmatpush.bf16.msra.mxu0 %v6613
    %6888 = vmatpush.bf16.msra.mxu0 %v6605
    %6889 = vmatpush.bf16.msra.mxu0 %v6597
    %6890 = vmatpush.bf16.msra.mxu0 %v6589
    %6891 = vmatpush.bf16.msra.mxu0 %v6581
    %6892 = vmatpush.bf16.msra.mxu0 %v6573
    %6893 = vmatpush.bf16.msra.mxu0 %v6565
    %6894 = vmatpush.bf16.msra.mxu0 %v6557
    %6895 = vmatmul.bf16.gmra.mxu0 %v5975
    %v6896 = vpop.f32.mrf.mxu0
    %v6897 = vadd.f32 %v6884, %v6896
    %v6898 = vpop.f32.mrf.mxu0
    %6899 = vdwg.mxu0
    %6900 = vmatpush.bf16.msra.mxu0 %v6550
    %6901 = vmatpush.bf16.msra.mxu0 %v6542
    %6902 = vmatpush.bf16.msra.mxu0 %v6534
    %6903 = vmatpush.bf16.msra.mxu0 %v6526
    %6904 = vmatpush.bf16.msra.mxu0 %v6518
    %6905 = vmatpush.bf16.msra.mxu0 %v6510
    %6906 = vmatpush.bf16.msra.mxu0 %v6502
    %6907 = vmatpush.bf16.msra.mxu0 %v6494
    %6908 = vmatmul.bf16.gmra.mxu0 %v5974
    %v6909 = vpop.f32.mrf.mxu0
    %v6910 = vadd.f32 0.0, %v6909
    %v6911 = vpop.f32.mrf.mxu0
    %6912 = vdwg.mxu0
    %6913 = vmatpush.bf16.msra.mxu0 %v6614
    %6914 = vmatpush.bf16.msra.mxu0 %v6606
    %6915 = vmatpush.bf16.msra.mxu0 %v6598
    %6916 = vmatpush.bf16.msra.mxu0 %v6590
    %6917 = vmatpush.bf16.msra.mxu0 %v6582
    %6918 = vmatpush.bf16.msra.mxu0 %v6574
    %6919 = vmatpush.bf16.msra.mxu0 %v6566
    %6920 = vmatpush.bf16.msra.mxu0 %v6558
    %6921 = vmatmul.bf16.gmra.mxu0 %v5975
    %v6922 = vpop.f32.mrf.mxu0
    %v6923 = vadd.f32 %v6910, %v6922
    %v6924 = vpop.f32.mrf.mxu0
    %6925 = vdwg.mxu0
    %6926 = vmatpush.bf16.msra.mxu0 %v6551
    %6927 = vmatpush.bf16.msra.mxu0 %v6543
    %6928 = vmatpush.bf16.msra.mxu0 %v6535
    %6929 = vmatpush.bf16.msra.mxu0 %v6527
    %6930 = vmatpush.bf16.msra.mxu0 %v6519
    %6931 = vmatpush.bf16.msra.mxu0 %v6511
    %6932 = vmatpush.bf16.msra.mxu0 %v6503
    %6933 = vmatpush.bf16.msra.mxu0 %v6495
    %6934 = vmatmul.bf16.gmra.mxu0 %v5974
    %v6935 = vpop.f32.mrf.mxu0
    %v6936 = vadd.f32 0.0, %v6935
    %v6937 = vpop.f32.mrf.mxu0
    %6938 = vdwg.mxu0
    %6939 = vmatpush.bf16.msra.mxu0 %v6615
    %6940 = vmatpush.bf16.msra.mxu0 %v6607
    %6941 = vmatpush.bf16.msra.mxu0 %v6599
    %6942 = vmatpush.bf16.msra.mxu0 %v6591
    %6943 = vmatpush.bf16.msra.mxu0 %v6583
    %6944 = vmatpush.bf16.msra.mxu0 %v6575
    %6945 = vmatpush.bf16.msra.mxu0 %v6567
    %6946 = vmatpush.bf16.msra.mxu0 %v6559
    %6947 = vmatmul.bf16.gmra.mxu0 %v5975
    %v6948 = vpop.f32.mrf.mxu0
    %v6949 = vadd.f32 %v6936, %v6948
    %v6950 = vpop.f32.mrf.mxu0
    %6951 = vdwg.mxu0
    %v6960 = vrot.slane %v6793, 7
    %v6961 = vrot.slane %v6819, 6
    %v6962 = vrot.slane %v6845, 5
    %v6963 = vrot.slane %v6871, 4
    %v6964 = vrot.slane %v6897, 3
    %v6965 = vrot.slane %v6923, 2
    %v6966 = vrot.slane %v6949, 1
    %v6967 = vsel %vm893, %v6767, %v6960
    %v6968 = vsel %vm895, %v6961, %v6962
    %v6969 = vsel %vm897, %v6967, %v6968
    %v6970 = vsel %vm4795, %v6963, %v6964
    %v6971 = vsel %vm4797, %v6965, %v6966
    %v6972 = vsel %vm4799, %v6970, %v6971
    %v6973 = vsel %vm4801, %v6969, %v6972
    %v6975 = vadd.f32 %v5968, %v6973
    %v6976 = vxor.u32 %v6975, 2147483648
    %v6977 = vmul.f32 %v6976, 1.442695
    %v6978 = vpow.pop %v6977
    %v6979 = vadd.f32 %v6978, 1.0
    %v6980 = vrcp.pop %v6979
    %v6981 = vmul.f32 %v6979, %v6980
    %v6982 = vsub.f32 1.0, %v6981
    %v6983 = vmul.f32 %v6980, %v6982
    %v6984 = vadd.f32 %v6980, %v6983
    %vm6985 = vweird.f32 %v6979
    %vm6986 = vweird.f32 %v6980
    %vm6987 = vmor %vm6985, %vm6986
    %v6988 = vsel %vm6987, %v6980, %v6984
    %v6989 = vand.u32 2147483647, %v6979
    %vm6990 = vcmp.eq.f32.partialorder %v6989, 8.507059e+37
    %v6991 = vand.u32 %v6979, 2147483648
    %v6992 = vor.u32 1.1754944e-38, %v6991
    %v6993 = vsel %vm6990, %v6992, %v6988
    %v6994 = vmul.f32 1.0, %v6993
    %v6996 = vrot.slane %v6975, 2
    %v6998 = vxor.u32 %v6996, 2147483648
    %v6999 = vmul.f32 %v6998, 1.442695
    %v7000 = vpow.pop %v6999
    %v7001 = vadd.f32 %v7000, 1.0
    %v7002 = vrcp.pop %v7001
    %v7003 = vmul.f32 %v7001, %v7002
    %v7004 = vsub.f32 1.0, %v7003
    %v7005 = vmul.f32 %v7002, %v7004
    %v7006 = vadd.f32 %v7002, %v7005
    %vm7007 = vweird.f32 %v7001
    %vm7008 = vweird.f32 %v7002
    %vm7009 = vmor %vm7007, %vm7008
    %v7010 = vsel %vm7009, %v7002, %v7006
    %v7011 = vand.u32 2147483647, %v7001
    %vm7012 = vcmp.eq.f32.partialorder %v7011, 8.507059e+37
    %v7013 = vand.u32 %v7001, 2147483648
    %v7014 = vor.u32 1.1754944e-38, %v7013
    %v7015 = vsel %vm7012, %v7014, %v7010
    %v7016 = vmul.f32 1.0, %v7015
    %v7017 = vrot.slane %v6975, 4
    %v7019 = vtanh.pop %v7017
    %v7020 = vrot.slane %v6975, 6
    %v7022 = vxor.u32 %v7020, 2147483648
    %v7023 = vmul.f32 %v7022, 1.442695
    %v7024 = vpow.pop %v7023
    %v7025 = vadd.f32 %v7024, 1.0
    %v7026 = vrcp.pop %v7025
    %v7027 = vmul.f32 %v7025, %v7026
    %v7028 = vsub.f32 1.0, %v7027
    %v7029 = vmul.f32 %v7026, %v7028
    %v7030 = vadd.f32 %v7026, %v7029
    %vm7031 = vweird.f32 %v7025
    %vm7032 = vweird.f32 %v7026
    %vm7033 = vmor %vm7031, %vm7032
    %v7034 = vsel %vm7033, %v7026, %v7030
    %v7035 = vand.u32 2147483647, %v7025
    %vm7036 = vcmp.eq.f32.partialorder %v7035, 8.507059e+37
    %v7037 = vand.u32 %v7025, 2147483648
    %v7038 = vor.u32 1.1754944e-38, %v7037
    %v7039 = vsel %vm7036, %v7038, %v7034
    %v7040 = vmul.f32 1.0, %v7039
    %v7041 = vmul.f32 %v7016, %v5959
    %v7042 = vmul.f32 %v6994, %v7019
    %v7043 = vadd.f32 %v7041, %v7042
    %v7044 = vtanh.pop %v7043
    %v7045 = vmul.f32 %v7040, %v7044
    %s7046 = scalar_lea.vmem [#allocation5], 2
    %7047 = vst.msk [vmem:[%s7046] ss:$8 sm:$0x3] %vm4878, %v7045
    %7048 = vst.msk [vmem:[%s7046] ss:$8 sm:$0x0] %vm4878, %v7045
    %s7049 = scalar_lea.vmem [#allocation4], 3
    %v7050 = vld [vmem:[%s7049] ss:$8 sm:$0xf]
    %v7051 = vld [vmem:[%s7049] ss:$8 sm:$0xf0]
    %v7052 = vor.u32 %v7050, %v7051
    %v7054 = vperm.slane %v7045, 0
    %v7055 = vperm.slane %v7045, 1
    %v7058 = vpack.c.bf16 %v7054, %v7054
    %v7059 = vpack.c.bf16 %v7055, %v7055
    %v7060 = vld [vmem:[#allocation15] sm:$0xff]
    %v7061 = vld [vmem:[#allocation15 + $0x8] sm:$0xff]
    %v7062 = vld [vmem:[#allocation15 + $0x10] sm:$0xff]
    %v7063 = vld [vmem:[#allocation15 + $0x18] sm:$0xff]
    %v7064 = vld [vmem:[#allocation15 + $0x20] sm:$0xff]
    %v7065 = vld [vmem:[#allocation15 + $0x28] sm:$0xff]
    %v7066 = vld [vmem:[#allocation15 + $0x30] sm:$0xff]
    %v7067 = vld [vmem:[#allocation15 + $0x38] sm:$0xff]
    %v7068 = vld [vmem:[#allocation15 + $0x40] sm:$0xff]
    %v7069 = vld [vmem:[#allocation15 + $0x48] sm:$0xff]
    %v7070 = vld [vmem:[#allocation15 + $0x50] sm:$0xff]
    %v7071 = vld [vmem:[#allocation15 + $0x58] sm:$0xff]
    %v7072 = vld [vmem:[#allocation15 + $0x60] sm:$0xff]
    %v7073 = vld [vmem:[#allocation15 + $0x68] sm:$0xff]
    %v7074 = vld [vmem:[#allocation15 + $0x70] sm:$0xff]
    %v7075 = vld [vmem:[#allocation15 + $0x78] sm:$0xff]
    %v7076 = vld [vmem:[#allocation15 + $0x80] sm:$0xff]
    %v7077 = vld [vmem:[#allocation15 + $0x88] sm:$0xff]
    %v7078 = vld [vmem:[#allocation15 + $0x90] sm:$0xff]
    %v7079 = vld [vmem:[#allocation15 + $0x98] sm:$0xff]
    %v7080 = vld [vmem:[#allocation15 + $0xa0] sm:$0xff]
    %v7081 = vld [vmem:[#allocation15 + $0xa8] sm:$0xff]
    %v7082 = vld [vmem:[#allocation15 + $0xb0] sm:$0xff]
    %v7083 = vld [vmem:[#allocation15 + $0xb8] sm:$0xff]
    %v7084 = vld [vmem:[#allocation15 + $0xc0] sm:$0xff]
    %v7085 = vld [vmem:[#allocation15 + $0xc8] sm:$0xff]
    %v7086 = vld [vmem:[#allocation15 + $0xd0] sm:$0xff]
    %v7087 = vld [vmem:[#allocation15 + $0xd8] sm:$0xff]
    %v7088 = vld [vmem:[#allocation15 + $0xe0] sm:$0xff]
    %v7089 = vld [vmem:[#allocation15 + $0xe8] sm:$0xff]
    %v7090 = vld [vmem:[#allocation15 + $0xf0] sm:$0xff]
    %v7091 = vld [vmem:[#allocation15 + $0xf8] sm:$0xff]
    %v7092 = vld [vmem:[#allocation15 + $0x100] sm:$0xff]
    %v7093 = vld [vmem:[#allocation15 + $0x108] sm:$0xff]
    %v7094 = vld [vmem:[#allocation15 + $0x110] sm:$0xff]
    %v7095 = vld [vmem:[#allocation15 + $0x118] sm:$0xff]
    %v7096 = vld [vmem:[#allocation15 + $0x120] sm:$0xff]
    %v7097 = vld [vmem:[#allocation15 + $0x128] sm:$0xff]
    %v7098 = vld [vmem:[#allocation15 + $0x130] sm:$0xff]
    %v7099 = vld [vmem:[#allocation15 + $0x138] sm:$0xff]
    %v7100 = vld [vmem:[#allocation15 + $0x140] sm:$0xff]
    %v7101 = vld [vmem:[#allocation15 + $0x148] sm:$0xff]
    %v7102 = vld [vmem:[#allocation15 + $0x150] sm:$0xff]
    %v7103 = vld [vmem:[#allocation15 + $0x158] sm:$0xff]
    %v7104 = vld [vmem:[#allocation15 + $0x160] sm:$0xff]
    %v7105 = vld [vmem:[#allocation15 + $0x168] sm:$0xff]
    %v7106 = vld [vmem:[#allocation15 + $0x170] sm:$0xff]
    %v7107 = vld [vmem:[#allocation15 + $0x178] sm:$0xff]
    %v7108 = vld [vmem:[#allocation15 + $0x180] sm:$0xff]
    %v7109 = vld [vmem:[#allocation15 + $0x188] sm:$0xff]
    %v7110 = vld [vmem:[#allocation15 + $0x190] sm:$0xff]
    %v7111 = vld [vmem:[#allocation15 + $0x198] sm:$0xff]
    %v7112 = vld [vmem:[#allocation15 + $0x1a0] sm:$0xff]
    %v7113 = vld [vmem:[#allocation15 + $0x1a8] sm:$0xff]
    %v7114 = vld [vmem:[#allocation15 + $0x1b0] sm:$0xff]
    %v7115 = vld [vmem:[#allocation15 + $0x1b8] sm:$0xff]
    %v7116 = vld [vmem:[#allocation15 + $0x1c0] sm:$0xff]
    %v7117 = vld [vmem:[#allocation15 + $0x1c8] sm:$0xff]
    %v7118 = vld [vmem:[#allocation15 + $0x1d0] sm:$0xff]
    %v7119 = vld [vmem:[#allocation15 + $0x1d8] sm:$0xff]
    %v7120 = vld [vmem:[#allocation15 + $0x1e0] sm:$0xff]
    %v7121 = vld [vmem:[#allocation15 + $0x1e8] sm:$0xff]
    %v7122 = vld [vmem:[#allocation15 + $0x1f0] sm:$0xff]
    %v7123 = vld [vmem:[#allocation15 + $0x1f8] sm:$0xff]
    %v7124 = vld [vmem:[#allocation15 + $0x200] sm:$0xff]
    %v7125 = vld [vmem:[#allocation15 + $0x208] sm:$0xff]
    %v7126 = vld [vmem:[#allocation15 + $0x210] sm:$0xff]
    %v7127 = vld [vmem:[#allocation15 + $0x218] sm:$0xff]
    %v7128 = vld [vmem:[#allocation15 + $0x220] sm:$0xff]
    %v7129 = vld [vmem:[#allocation15 + $0x228] sm:$0xff]
    %v7130 = vld [vmem:[#allocation15 + $0x230] sm:$0xff]
    %v7131 = vld [vmem:[#allocation15 + $0x238] sm:$0xff]
    %v7132 = vld [vmem:[#allocation15 + $0x240] sm:$0xff]
    %v7133 = vld [vmem:[#allocation15 + $0x248] sm:$0xff]
    %v7134 = vld [vmem:[#allocation15 + $0x250] sm:$0xff]
    %v7135 = vld [vmem:[#allocation15 + $0x258] sm:$0xff]
    %v7136 = vld [vmem:[#allocation15 + $0x260] sm:$0xff]
    %v7137 = vld [vmem:[#allocation15 + $0x268] sm:$0xff]
    %v7138 = vld [vmem:[#allocation15 + $0x270] sm:$0xff]
    %v7139 = vld [vmem:[#allocation15 + $0x278] sm:$0xff]
    %v7140 = vld [vmem:[#allocation15 + $0x280] sm:$0xff]
    %v7141 = vld [vmem:[#allocation15 + $0x288] sm:$0xff]
    %v7142 = vld [vmem:[#allocation15 + $0x290] sm:$0xff]
    %v7143 = vld [vmem:[#allocation15 + $0x298] sm:$0xff]
    %v7144 = vld [vmem:[#allocation15 + $0x2a0] sm:$0xff]
    %v7145 = vld [vmem:[#allocation15 + $0x2a8] sm:$0xff]
    %v7146 = vld [vmem:[#allocation15 + $0x2b0] sm:$0xff]
    %v7147 = vld [vmem:[#allocation15 + $0x2b8] sm:$0xff]
    %v7148 = vld [vmem:[#allocation15 + $0x2c0] sm:$0xff]
    %v7149 = vld [vmem:[#allocation15 + $0x2c8] sm:$0xff]
    %v7150 = vld [vmem:[#allocation15 + $0x2d0] sm:$0xff]
    %v7151 = vld [vmem:[#allocation15 + $0x2d8] sm:$0xff]
    %v7152 = vld [vmem:[#allocation15 + $0x2e0] sm:$0xff]
    %v7153 = vld [vmem:[#allocation15 + $0x2e8] sm:$0xff]
    %v7154 = vld [vmem:[#allocation15 + $0x2f0] sm:$0xff]
    %v7155 = vld [vmem:[#allocation15 + $0x2f8] sm:$0xff]
    %v7156 = vld [vmem:[#allocation15 + $0x300] sm:$0xff]
    %v7157 = vld [vmem:[#allocation15 + $0x308] sm:$0xff]
    %v7158 = vld [vmem:[#allocation15 + $0x310] sm:$0xff]
    %v7159 = vld [vmem:[#allocation15 + $0x318] sm:$0xff]
    %v7160 = vld [vmem:[#allocation15 + $0x320] sm:$0xff]
    %v7161 = vld [vmem:[#allocation15 + $0x328] sm:$0xff]
    %v7162 = vld [vmem:[#allocation15 + $0x330] sm:$0xff]
    %v7163 = vld [vmem:[#allocation15 + $0x338] sm:$0xff]
    %v7164 = vld [vmem:[#allocation15 + $0x340] sm:$0xff]
    %v7165 = vld [vmem:[#allocation15 + $0x348] sm:$0xff]
    %v7166 = vld [vmem:[#allocation15 + $0x350] sm:$0xff]
    %v7167 = vld [vmem:[#allocation15 + $0x358] sm:$0xff]
    %v7168 = vld [vmem:[#allocation15 + $0x360] sm:$0xff]
    %v7169 = vld [vmem:[#allocation15 + $0x368] sm:$0xff]
    %v7170 = vld [vmem:[#allocation15 + $0x370] sm:$0xff]
    %v7171 = vld [vmem:[#allocation15 + $0x378] sm:$0xff]
    %v7172 = vld [vmem:[#allocation15 + $0x380] sm:$0xff]
    %v7173 = vld [vmem:[#allocation15 + $0x388] sm:$0xff]
    %v7174 = vld [vmem:[#allocation15 + $0x390] sm:$0xff]
    %v7175 = vld [vmem:[#allocation15 + $0x398] sm:$0xff]
    %v7176 = vld [vmem:[#allocation15 + $0x3a0] sm:$0xff]
    %v7177 = vld [vmem:[#allocation15 + $0x3a8] sm:$0xff]
    %v7178 = vld [vmem:[#allocation15 + $0x3b0] sm:$0xff]
    %v7179 = vld [vmem:[#allocation15 + $0x3b8] sm:$0xff]
    %v7180 = vld [vmem:[#allocation15 + $0x3c0] sm:$0xff]
    %v7181 = vld [vmem:[#allocation15 + $0x3c8] sm:$0xff]
    %v7182 = vld [vmem:[#allocation15 + $0x3d0] sm:$0xff]
    %v7183 = vld [vmem:[#allocation15 + $0x3d8] sm:$0xff]
    %v7184 = vld [vmem:[#allocation15 + $0x3e0] sm:$0xff]
    %v7185 = vld [vmem:[#allocation15 + $0x3e8] sm:$0xff]
    %v7186 = vld [vmem:[#allocation15 + $0x3f0] sm:$0xff]
    %v7187 = vld [vmem:[#allocation15 + $0x3f8] sm:$0xff]
    %v7316 = vunpack.c.l.b16 %v7060
    %v7317 = vunpack.c.h.b16 %v7060
    %v7318 = vunpack.c.l.b16 %v7061
    %v7319 = vunpack.c.h.b16 %v7061
    %v7320 = vunpack.c.l.b16 %v7062
    %v7321 = vunpack.c.h.b16 %v7062
    %v7322 = vunpack.c.l.b16 %v7063
    %v7323 = vunpack.c.h.b16 %v7063
    %v7324 = vunpack.c.l.b16 %v7064
    %v7325 = vunpack.c.h.b16 %v7064
    %v7326 = vunpack.c.l.b16 %v7065
    %v7327 = vunpack.c.h.b16 %v7065
    %v7328 = vunpack.c.l.b16 %v7066
    %v7329 = vunpack.c.h.b16 %v7066
    %v7330 = vunpack.c.l.b16 %v7067
    %v7331 = vunpack.c.h.b16 %v7067
    %v7332 = vunpack.c.l.b16 %v7068
    %v7333 = vunpack.c.h.b16 %v7068
    %v7334 = vunpack.c.l.b16 %v7069
    %v7335 = vunpack.c.h.b16 %v7069
    %v7336 = vunpack.c.l.b16 %v7070
    %v7337 = vunpack.c.h.b16 %v7070
    %v7338 = vunpack.c.l.b16 %v7071
    %v7339 = vunpack.c.h.b16 %v7071
    %v7340 = vunpack.c.l.b16 %v7072
    %v7341 = vunpack.c.h.b16 %v7072
    %v7342 = vunpack.c.l.b16 %v7073
    %v7343 = vunpack.c.h.b16 %v7073
    %v7344 = vunpack.c.l.b16 %v7074
    %v7345 = vunpack.c.h.b16 %v7074
    %v7346 = vunpack.c.l.b16 %v7075
    %v7347 = vunpack.c.h.b16 %v7075
    %v7348 = vunpack.c.l.b16 %v7076
    %v7349 = vunpack.c.h.b16 %v7076
    %v7350 = vunpack.c.l.b16 %v7077
    %v7351 = vunpack.c.h.b16 %v7077
    %v7352 = vunpack.c.l.b16 %v7078
    %v7353 = vunpack.c.h.b16 %v7078
    %v7354 = vunpack.c.l.b16 %v7079
    %v7355 = vunpack.c.h.b16 %v7079
    %v7356 = vunpack.c.l.b16 %v7080
    %v7357 = vunpack.c.h.b16 %v7080
    %v7358 = vunpack.c.l.b16 %v7081
    %v7359 = vunpack.c.h.b16 %v7081
    %v7360 = vunpack.c.l.b16 %v7082
    %v7361 = vunpack.c.h.b16 %v7082
    %v7362 = vunpack.c.l.b16 %v7083
    %v7363 = vunpack.c.h.b16 %v7083
    %v7364 = vunpack.c.l.b16 %v7084
    %v7365 = vunpack.c.h.b16 %v7084
    %v7366 = vunpack.c.l.b16 %v7085
    %v7367 = vunpack.c.h.b16 %v7085
    %v7368 = vunpack.c.l.b16 %v7086
    %v7369 = vunpack.c.h.b16 %v7086
    %v7370 = vunpack.c.l.b16 %v7087
    %v7371 = vunpack.c.h.b16 %v7087
    %v7372 = vunpack.c.l.b16 %v7088
    %v7373 = vunpack.c.h.b16 %v7088
    %v7374 = vunpack.c.l.b16 %v7089
    %v7375 = vunpack.c.h.b16 %v7089
    %v7376 = vunpack.c.l.b16 %v7090
    %v7377 = vunpack.c.h.b16 %v7090
    %v7378 = vunpack.c.l.b16 %v7091
    %v7379 = vunpack.c.h.b16 %v7091
    %v7380 = vunpack.c.l.b16 %v7092
    %v7381 = vunpack.c.h.b16 %v7092
    %v7382 = vunpack.c.l.b16 %v7093
    %v7383 = vunpack.c.h.b16 %v7093
    %v7384 = vunpack.c.l.b16 %v7094
    %v7385 = vunpack.c.h.b16 %v7094
    %v7386 = vunpack.c.l.b16 %v7095
    %v7387 = vunpack.c.h.b16 %v7095
    %v7388 = vunpack.c.l.b16 %v7096
    %v7389 = vunpack.c.h.b16 %v7096
    %v7390 = vunpack.c.l.b16 %v7097
    %v7391 = vunpack.c.h.b16 %v7097
    %v7392 = vunpack.c.l.b16 %v7098
    %v7393 = vunpack.c.h.b16 %v7098
    %v7394 = vunpack.c.l.b16 %v7099
    %v7395 = vunpack.c.h.b16 %v7099
    %v7396 = vunpack.c.l.b16 %v7100
    %v7397 = vunpack.c.h.b16 %v7100
    %v7398 = vunpack.c.l.b16 %v7101
    %v7399 = vunpack.c.h.b16 %v7101
    %v7400 = vunpack.c.l.b16 %v7102
    %v7401 = vunpack.c.h.b16 %v7102
    %v7402 = vunpack.c.l.b16 %v7103
    %v7403 = vunpack.c.h.b16 %v7103
    %v7404 = vunpack.c.l.b16 %v7104
    %v7405 = vunpack.c.h.b16 %v7104
    %v7406 = vunpack.c.l.b16 %v7105
    %v7407 = vunpack.c.h.b16 %v7105
    %v7408 = vunpack.c.l.b16 %v7106
    %v7409 = vunpack.c.h.b16 %v7106
    %v7410 = vunpack.c.l.b16 %v7107
    %v7411 = vunpack.c.h.b16 %v7107
    %v7412 = vunpack.c.l.b16 %v7108
    %v7413 = vunpack.c.h.b16 %v7108
    %v7414 = vunpack.c.l.b16 %v7109
    %v7415 = vunpack.c.h.b16 %v7109
    %v7416 = vunpack.c.l.b16 %v7110
    %v7417 = vunpack.c.h.b16 %v7110
    %v7418 = vunpack.c.l.b16 %v7111
    %v7419 = vunpack.c.h.b16 %v7111
    %v7420 = vunpack.c.l.b16 %v7112
    %v7421 = vunpack.c.h.b16 %v7112
    %v7422 = vunpack.c.l.b16 %v7113
    %v7423 = vunpack.c.h.b16 %v7113
    %v7424 = vunpack.c.l.b16 %v7114
    %v7425 = vunpack.c.h.b16 %v7114
    %v7426 = vunpack.c.l.b16 %v7115
    %v7427 = vunpack.c.h.b16 %v7115
    %v7428 = vunpack.c.l.b16 %v7116
    %v7429 = vunpack.c.h.b16 %v7116
    %v7430 = vunpack.c.l.b16 %v7117
    %v7431 = vunpack.c.h.b16 %v7117
    %v7432 = vunpack.c.l.b16 %v7118
    %v7433 = vunpack.c.h.b16 %v7118
    %v7434 = vunpack.c.l.b16 %v7119
    %v7435 = vunpack.c.h.b16 %v7119
    %v7436 = vunpack.c.l.b16 %v7120
    %v7437 = vunpack.c.h.b16 %v7120
    %v7438 = vunpack.c.l.b16 %v7121
    %v7439 = vunpack.c.h.b16 %v7121
    %v7440 = vunpack.c.l.b16 %v7122
    %v7441 = vunpack.c.h.b16 %v7122
    %v7442 = vunpack.c.l.b16 %v7123
    %v7443 = vunpack.c.h.b16 %v7123
    %v7444 = vunpack.c.l.b16 %v7124
    %v7445 = vunpack.c.h.b16 %v7124
    %v7446 = vunpack.c.l.b16 %v7125
    %v7447 = vunpack.c.h.b16 %v7125
    %v7448 = vunpack.c.l.b16 %v7126
    %v7449 = vunpack.c.h.b16 %v7126
    %v7450 = vunpack.c.l.b16 %v7127
    %v7451 = vunpack.c.h.b16 %v7127
    %v7452 = vunpack.c.l.b16 %v7128
    %v7453 = vunpack.c.h.b16 %v7128
    %v7454 = vunpack.c.l.b16 %v7129
    %v7455 = vunpack.c.h.b16 %v7129
    %v7456 = vunpack.c.l.b16 %v7130
    %v7457 = vunpack.c.h.b16 %v7130
    %v7458 = vunpack.c.l.b16 %v7131
    %v7459 = vunpack.c.h.b16 %v7131
    %v7460 = vunpack.c.l.b16 %v7132
    %v7461 = vunpack.c.h.b16 %v7132
    %v7462 = vunpack.c.l.b16 %v7133
    %v7463 = vunpack.c.h.b16 %v7133
    %v7464 = vunpack.c.l.b16 %v7134
    %v7465 = vunpack.c.h.b16 %v7134
    %v7466 = vunpack.c.l.b16 %v7135
    %v7467 = vunpack.c.h.b16 %v7135
    %v7468 = vunpack.c.l.b16 %v7136
    %v7469 = vunpack.c.h.b16 %v7136
    %v7470 = vunpack.c.l.b16 %v7137
    %v7471 = vunpack.c.h.b16 %v7137
    %v7472 = vunpack.c.l.b16 %v7138
    %v7473 = vunpack.c.h.b16 %v7138
    %v7474 = vunpack.c.l.b16 %v7139
    %v7475 = vunpack.c.h.b16 %v7139
    %v7476 = vunpack.c.l.b16 %v7140
    %v7477 = vunpack.c.h.b16 %v7140
    %v7478 = vunpack.c.l.b16 %v7141
    %v7479 = vunpack.c.h.b16 %v7141
    %v7480 = vunpack.c.l.b16 %v7142
    %v7481 = vunpack.c.h.b16 %v7142
    %v7482 = vunpack.c.l.b16 %v7143
    %v7483 = vunpack.c.h.b16 %v7143
    %v7484 = vunpack.c.l.b16 %v7144
    %v7485 = vunpack.c.h.b16 %v7144
    %v7486 = vunpack.c.l.b16 %v7145
    %v7487 = vunpack.c.h.b16 %v7145
    %v7488 = vunpack.c.l.b16 %v7146
    %v7489 = vunpack.c.h.b16 %v7146
    %v7490 = vunpack.c.l.b16 %v7147
    %v7491 = vunpack.c.h.b16 %v7147
    %v7492 = vunpack.c.l.b16 %v7148
    %v7493 = vunpack.c.h.b16 %v7148
    %v7494 = vunpack.c.l.b16 %v7149
    %v7495 = vunpack.c.h.b16 %v7149
    %v7496 = vunpack.c.l.b16 %v7150
    %v7497 = vunpack.c.h.b16 %v7150
    %v7498 = vunpack.c.l.b16 %v7151
    %v7499 = vunpack.c.h.b16 %v7151
    %v7500 = vunpack.c.l.b16 %v7152
    %v7501 = vunpack.c.h.b16 %v7152
    %v7502 = vunpack.c.l.b16 %v7153
    %v7503 = vunpack.c.h.b16 %v7153
    %v7504 = vunpack.c.l.b16 %v7154
    %v7505 = vunpack.c.h.b16 %v7154
    %v7506 = vunpack.c.l.b16 %v7155
    %v7507 = vunpack.c.h.b16 %v7155
    %v7508 = vunpack.c.l.b16 %v7156
    %v7509 = vunpack.c.h.b16 %v7156
    %v7510 = vunpack.c.l.b16 %v7157
    %v7511 = vunpack.c.h.b16 %v7157
    %v7512 = vunpack.c.l.b16 %v7158
    %v7513 = vunpack.c.h.b16 %v7158
    %v7514 = vunpack.c.l.b16 %v7159
    %v7515 = vunpack.c.h.b16 %v7159
    %v7516 = vunpack.c.l.b16 %v7160
    %v7517 = vunpack.c.h.b16 %v7160
    %v7518 = vunpack.c.l.b16 %v7161
    %v7519 = vunpack.c.h.b16 %v7161
    %v7520 = vunpack.c.l.b16 %v7162
    %v7521 = vunpack.c.h.b16 %v7162
    %v7522 = vunpack.c.l.b16 %v7163
    %v7523 = vunpack.c.h.b16 %v7163
    %v7524 = vunpack.c.l.b16 %v7164
    %v7525 = vunpack.c.h.b16 %v7164
    %v7526 = vunpack.c.l.b16 %v7165
    %v7527 = vunpack.c.h.b16 %v7165
    %v7528 = vunpack.c.l.b16 %v7166
    %v7529 = vunpack.c.h.b16 %v7166
    %v7530 = vunpack.c.l.b16 %v7167
    %v7531 = vunpack.c.h.b16 %v7167
    %v7532 = vunpack.c.l.b16 %v7168
    %v7533 = vunpack.c.h.b16 %v7168
    %v7534 = vunpack.c.l.b16 %v7169
    %v7535 = vunpack.c.h.b16 %v7169
    %v7536 = vunpack.c.l.b16 %v7170
    %v7537 = vunpack.c.h.b16 %v7170
    %v7538 = vunpack.c.l.b16 %v7171
    %v7539 = vunpack.c.h.b16 %v7171
    %v7540 = vunpack.c.l.b16 %v7172
    %v7541 = vunpack.c.h.b16 %v7172
    %v7542 = vunpack.c.l.b16 %v7173
    %v7543 = vunpack.c.h.b16 %v7173
    %v7544 = vunpack.c.l.b16 %v7174
    %v7545 = vunpack.c.h.b16 %v7174
    %v7546 = vunpack.c.l.b16 %v7175
    %v7547 = vunpack.c.h.b16 %v7175
    %v7548 = vunpack.c.l.b16 %v7176
    %v7549 = vunpack.c.h.b16 %v7176
    %v7550 = vunpack.c.l.b16 %v7177
    %v7551 = vunpack.c.h.b16 %v7177
    %v7552 = vunpack.c.l.b16 %v7178
    %v7553 = vunpack.c.h.b16 %v7178
    %v7554 = vunpack.c.l.b16 %v7179
    %v7555 = vunpack.c.h.b16 %v7179
    %v7556 = vunpack.c.l.b16 %v7180
    %v7557 = vunpack.c.h.b16 %v7180
    %v7558 = vunpack.c.l.b16 %v7181
    %v7559 = vunpack.c.h.b16 %v7181
    %v7560 = vunpack.c.l.b16 %v7182
    %v7561 = vunpack.c.h.b16 %v7182
    %v7562 = vunpack.c.l.b16 %v7183
    %v7563 = vunpack.c.h.b16 %v7183
    %v7564 = vunpack.c.l.b16 %v7184
    %v7565 = vunpack.c.h.b16 %v7184
    %v7566 = vunpack.c.l.b16 %v7185
    %v7567 = vunpack.c.h.b16 %v7185
    %v7568 = vunpack.c.l.b16 %v7186
    %v7569 = vunpack.c.h.b16 %v7186
    %v7570 = vunpack.c.l.b16 %v7187
    %v7571 = vunpack.c.h.b16 %v7187
    %v7572 = vpack.c.b16 %v7324, %v7316
    %v7573 = vpack.c.b16 %v7325, %v7317
    %v7574 = vpack.c.b16 %v7326, %v7318
    %v7575 = vpack.c.b16 %v7327, %v7319
    %v7576 = vpack.c.b16 %v7328, %v7320
    %v7577 = vpack.c.b16 %v7329, %v7321
    %v7578 = vpack.c.b16 %v7330, %v7322
    %v7579 = vpack.c.b16 %v7331, %v7323
    %v7580 = vpack.c.b16 %v7340, %v7332
    %v7581 = vpack.c.b16 %v7341, %v7333
    %v7582 = vpack.c.b16 %v7342, %v7334
    %v7583 = vpack.c.b16 %v7343, %v7335
    %v7584 = vpack.c.b16 %v7344, %v7336
    %v7585 = vpack.c.b16 %v7345, %v7337
    %v7586 = vpack.c.b16 %v7346, %v7338
    %v7587 = vpack.c.b16 %v7347, %v7339
    %v7588 = vpack.c.b16 %v7356, %v7348
    %v7589 = vpack.c.b16 %v7357, %v7349
    %v7590 = vpack.c.b16 %v7358, %v7350
    %v7591 = vpack.c.b16 %v7359, %v7351
    %v7592 = vpack.c.b16 %v7360, %v7352
    %v7593 = vpack.c.b16 %v7361, %v7353
    %v7594 = vpack.c.b16 %v7362, %v7354
    %v7595 = vpack.c.b16 %v7363, %v7355
    %v7596 = vpack.c.b16 %v7372, %v7364
    %v7597 = vpack.c.b16 %v7373, %v7365
    %v7598 = vpack.c.b16 %v7374, %v7366
    %v7599 = vpack.c.b16 %v7375, %v7367
    %v7600 = vpack.c.b16 %v7376, %v7368
    %v7601 = vpack.c.b16 %v7377, %v7369
    %v7602 = vpack.c.b16 %v7378, %v7370
    %v7603 = vpack.c.b16 %v7379, %v7371
    %v7604 = vpack.c.b16 %v7388, %v7380
    %v7605 = vpack.c.b16 %v7389, %v7381
    %v7606 = vpack.c.b16 %v7390, %v7382
    %v7607 = vpack.c.b16 %v7391, %v7383
    %v7608 = vpack.c.b16 %v7392, %v7384
    %v7609 = vpack.c.b16 %v7393, %v7385
    %v7610 = vpack.c.b16 %v7394, %v7386
    %v7611 = vpack.c.b16 %v7395, %v7387
    %v7612 = vpack.c.b16 %v7404, %v7396
    %v7613 = vpack.c.b16 %v7405, %v7397
    %v7614 = vpack.c.b16 %v7406, %v7398
    %v7615 = vpack.c.b16 %v7407, %v7399
    %v7616 = vpack.c.b16 %v7408, %v7400
    %v7617 = vpack.c.b16 %v7409, %v7401
    %v7618 = vpack.c.b16 %v7410, %v7402
    %v7619 = vpack.c.b16 %v7411, %v7403
    %v7620 = vpack.c.b16 %v7420, %v7412
    %v7621 = vpack.c.b16 %v7421, %v7413
    %v7622 = vpack.c.b16 %v7422, %v7414
    %v7623 = vpack.c.b16 %v7423, %v7415
    %v7624 = vpack.c.b16 %v7424, %v7416
    %v7625 = vpack.c.b16 %v7425, %v7417
    %v7626 = vpack.c.b16 %v7426, %v7418
    %v7627 = vpack.c.b16 %v7427, %v7419
    %v7628 = vpack.c.b16 %v7436, %v7428
    %v7629 = vpack.c.b16 %v7437, %v7429
    %v7630 = vpack.c.b16 %v7438, %v7430
    %v7631 = vpack.c.b16 %v7439, %v7431
    %v7632 = vpack.c.b16 %v7440, %v7432
    %v7633 = vpack.c.b16 %v7441, %v7433
    %v7634 = vpack.c.b16 %v7442, %v7434
    %v7635 = vpack.c.b16 %v7443, %v7435
    %v7636 = vpack.c.b16 %v7452, %v7444
    %v7637 = vpack.c.b16 %v7453, %v7445
    %v7638 = vpack.c.b16 %v7454, %v7446
    %v7639 = vpack.c.b16 %v7455, %v7447
    %v7640 = vpack.c.b16 %v7456, %v7448
    %v7641 = vpack.c.b16 %v7457, %v7449
    %v7642 = vpack.c.b16 %v7458, %v7450
    %v7643 = vpack.c.b16 %v7459, %v7451
    %v7644 = vpack.c.b16 %v7468, %v7460
    %v7645 = vpack.c.b16 %v7469, %v7461
    %v7646 = vpack.c.b16 %v7470, %v7462
    %v7647 = vpack.c.b16 %v7471, %v7463
    %v7648 = vpack.c.b16 %v7472, %v7464
    %v7649 = vpack.c.b16 %v7473, %v7465
    %v7650 = vpack.c.b16 %v7474, %v7466
    %v7651 = vpack.c.b16 %v7475, %v7467
    %v7652 = vpack.c.b16 %v7484, %v7476
    %v7653 = vpack.c.b16 %v7485, %v7477
    %v7654 = vpack.c.b16 %v7486, %v7478
    %v7655 = vpack.c.b16 %v7487, %v7479
    %v7656 = vpack.c.b16 %v7488, %v7480
    %v7657 = vpack.c.b16 %v7489, %v7481
    %v7658 = vpack.c.b16 %v7490, %v7482
    %v7659 = vpack.c.b16 %v7491, %v7483
    %v7660 = vpack.c.b16 %v7500, %v7492
    %v7661 = vpack.c.b16 %v7501, %v7493
    %v7662 = vpack.c.b16 %v7502, %v7494
    %v7663 = vpack.c.b16 %v7503, %v7495
    %v7664 = vpack.c.b16 %v7504, %v7496
    %v7665 = vpack.c.b16 %v7505, %v7497
    %v7666 = vpack.c.b16 %v7506, %v7498
    %v7667 = vpack.c.b16 %v7507, %v7499
    %v7668 = vpack.c.b16 %v7516, %v7508
    %v7669 = vpack.c.b16 %v7517, %v7509
    %v7670 = vpack.c.b16 %v7518, %v7510
    %v7671 = vpack.c.b16 %v7519, %v7511
    %v7672 = vpack.c.b16 %v7520, %v7512
    %v7673 = vpack.c.b16 %v7521, %v7513
    %v7674 = vpack.c.b16 %v7522, %v7514
    %v7675 = vpack.c.b16 %v7523, %v7515
    %v7676 = vpack.c.b16 %v7532, %v7524
    %v7677 = vpack.c.b16 %v7533, %v7525
    %v7678 = vpack.c.b16 %v7534, %v7526
    %v7679 = vpack.c.b16 %v7535, %v7527
    %v7680 = vpack.c.b16 %v7536, %v7528
    %v7681 = vpack.c.b16 %v7537, %v7529
    %v7682 = vpack.c.b16 %v7538, %v7530
    %v7683 = vpack.c.b16 %v7539, %v7531
    %v7684 = vpack.c.b16 %v7548, %v7540
    %v7685 = vpack.c.b16 %v7549, %v7541
    %v7686 = vpack.c.b16 %v7550, %v7542
    %v7687 = vpack.c.b16 %v7551, %v7543
    %v7688 = vpack.c.b16 %v7552, %v7544
    %v7689 = vpack.c.b16 %v7553, %v7545
    %v7690 = vpack.c.b16 %v7554, %v7546
    %v7691 = vpack.c.b16 %v7555, %v7547
    %v7692 = vpack.c.b16 %v7564, %v7556
    %v7693 = vpack.c.b16 %v7565, %v7557
    %v7694 = vpack.c.b16 %v7566, %v7558
    %v7695 = vpack.c.b16 %v7567, %v7559
    %v7696 = vpack.c.b16 %v7568, %v7560
    %v7697 = vpack.c.b16 %v7569, %v7561
    %v7698 = vpack.c.b16 %v7570, %v7562
    %v7699 = vpack.c.b16 %v7571, %v7563
    %7828 = vmatpush.bf16.msra.mxu0 %v7628
    %7829 = vmatpush.bf16.msra.mxu0 %v7620
    %7830 = vmatpush.bf16.msra.mxu0 %v7612
    %7831 = vmatpush.bf16.msra.mxu0 %v7604
    %7832 = vmatpush.bf16.msra.mxu0 %v7596
    %7833 = vmatpush.bf16.msra.mxu0 %v7588
    %7834 = vmatpush.bf16.msra.mxu0 %v7580
    %7835 = vmatpush.bf16.msra.mxu0 %v7572
    %7836 = vmatmul.bf16.gmra.mxu0 %v7058
    %v7837 = vpop.f32.mrf.mxu0
    %v7838 = vadd.f32 0.0, %v7837
    %v7839 = vpop.f32.mrf.mxu0
    %7840 = vdwg.mxu0
    %7841 = vmatpush.bf16.msra.mxu0 %v7692
    %7842 = vmatpush.bf16.msra.mxu0 %v7684
    %7843 = vmatpush.bf16.msra.mxu0 %v7676
    %7844 = vmatpush.bf16.msra.mxu0 %v7668
    %7845 = vmatpush.bf16.msra.mxu0 %v7660
    %7846 = vmatpush.bf16.msra.mxu0 %v7652
    %7847 = vmatpush.bf16.msra.mxu0 %v7644
    %7848 = vmatpush.bf16.msra.mxu0 %v7636
    %7849 = vmatmul.bf16.gmra.mxu0 %v7059
    %v7850 = vpop.f32.mrf.mxu0
    %v7851 = vadd.f32 %v7838, %v7850
    %v7852 = vpop.f32.mrf.mxu0
    %7853 = vdwg.mxu0
    %7854 = vmatpush.bf16.msra.mxu0 %v7629
    %7855 = vmatpush.bf16.msra.mxu0 %v7621
    %7856 = vmatpush.bf16.msra.mxu0 %v7613
    %7857 = vmatpush.bf16.msra.mxu0 %v7605
    %7858 = vmatpush.bf16.msra.mxu0 %v7597
    %7859 = vmatpush.bf16.msra.mxu0 %v7589
    %7860 = vmatpush.bf16.msra.mxu0 %v7581
    %7861 = vmatpush.bf16.msra.mxu0 %v7573
    %7862 = vmatmul.bf16.gmra.mxu0 %v7058
    %v7863 = vpop.f32.mrf.mxu0
    %v7864 = vadd.f32 0.0, %v7863
    %v7865 = vpop.f32.mrf.mxu0
    %7866 = vdwg.mxu0
    %7867 = vmatpush.bf16.msra.mxu0 %v7693
    %7868 = vmatpush.bf16.msra.mxu0 %v7685
    %7869 = vmatpush.bf16.msra.mxu0 %v7677
    %7870 = vmatpush.bf16.msra.mxu0 %v7669
    %7871 = vmatpush.bf16.msra.mxu0 %v7661
    %7872 = vmatpush.bf16.msra.mxu0 %v7653
    %7873 = vmatpush.bf16.msra.mxu0 %v7645
    %7874 = vmatpush.bf16.msra.mxu0 %v7637
    %7875 = vmatmul.bf16.gmra.mxu0 %v7059
    %v7876 = vpop.f32.mrf.mxu0
    %v7877 = vadd.f32 %v7864, %v7876
    %v7878 = vpop.f32.mrf.mxu0
    %7879 = vdwg.mxu0
    %7880 = vmatpush.bf16.msra.mxu0 %v7630
    %7881 = vmatpush.bf16.msra.mxu0 %v7622
    %7882 = vmatpush.bf16.msra.mxu0 %v7614
    %7883 = vmatpush.bf16.msra.mxu0 %v7606
    %7884 = vmatpush.bf16.msra.mxu0 %v7598
    %7885 = vmatpush.bf16.msra.mxu0 %v7590
    %7886 = vmatpush.bf16.msra.mxu0 %v7582
    %7887 = vmatpush.bf16.msra.mxu0 %v7574
    %7888 = vmatmul.bf16.gmra.mxu0 %v7058
    %v7889 = vpop.f32.mrf.mxu0
    %v7890 = vadd.f32 0.0, %v7889
    %v7891 = vpop.f32.mrf.mxu0
    %7892 = vdwg.mxu0
    %7893 = vmatpush.bf16.msra.mxu0 %v7694
    %7894 = vmatpush.bf16.msra.mxu0 %v7686
    %7895 = vmatpush.bf16.msra.mxu0 %v7678
    %7896 = vmatpush.bf16.msra.mxu0 %v7670
    %7897 = vmatpush.bf16.msra.mxu0 %v7662
    %7898 = vmatpush.bf16.msra.mxu0 %v7654
    %7899 = vmatpush.bf16.msra.mxu0 %v7646
    %7900 = vmatpush.bf16.msra.mxu0 %v7638
    %7901 = vmatmul.bf16.gmra.mxu0 %v7059
    %v7902 = vpop.f32.mrf.mxu0
    %v7903 = vadd.f32 %v7890, %v7902
    %v7904 = vpop.f32.mrf.mxu0
    %7905 = vdwg.mxu0
    %7906 = vmatpush.bf16.msra.mxu0 %v7631
    %7907 = vmatpush.bf16.msra.mxu0 %v7623
    %7908 = vmatpush.bf16.msra.mxu0 %v7615
    %7909 = vmatpush.bf16.msra.mxu0 %v7607
    %7910 = vmatpush.bf16.msra.mxu0 %v7599
    %7911 = vmatpush.bf16.msra.mxu0 %v7591
    %7912 = vmatpush.bf16.msra.mxu0 %v7583
    %7913 = vmatpush.bf16.msra.mxu0 %v7575
    %7914 = vmatmul.bf16.gmra.mxu0 %v7058
    %v7915 = vpop.f32.mrf.mxu0
    %v7916 = vadd.f32 0.0, %v7915
    %v7917 = vpop.f32.mrf.mxu0
    %7918 = vdwg.mxu0
    %7919 = vmatpush.bf16.msra.mxu0 %v7695
    %7920 = vmatpush.bf16.msra.mxu0 %v7687
    %7921 = vmatpush.bf16.msra.mxu0 %v7679
    %7922 = vmatpush.bf16.msra.mxu0 %v7671
    %7923 = vmatpush.bf16.msra.mxu0 %v7663
    %7924 = vmatpush.bf16.msra.mxu0 %v7655
    %7925 = vmatpush.bf16.msra.mxu0 %v7647
    %7926 = vmatpush.bf16.msra.mxu0 %v7639
    %7927 = vmatmul.bf16.gmra.mxu0 %v7059
    %v7928 = vpop.f32.mrf.mxu0
    %v7929 = vadd.f32 %v7916, %v7928
    %v7930 = vpop.f32.mrf.mxu0
    %7931 = vdwg.mxu0
    %7932 = vmatpush.bf16.msra.mxu0 %v7632
    %7933 = vmatpush.bf16.msra.mxu0 %v7624
    %7934 = vmatpush.bf16.msra.mxu0 %v7616
    %7935 = vmatpush.bf16.msra.mxu0 %v7608
    %7936 = vmatpush.bf16.msra.mxu0 %v7600
    %7937 = vmatpush.bf16.msra.mxu0 %v7592
    %7938 = vmatpush.bf16.msra.mxu0 %v7584
    %7939 = vmatpush.bf16.msra.mxu0 %v7576
    %7940 = vmatmul.bf16.gmra.mxu0 %v7058
    %v7941 = vpop.f32.mrf.mxu0
    %v7942 = vadd.f32 0.0, %v7941
    %v7943 = vpop.f32.mrf.mxu0
    %7944 = vdwg.mxu0
    %7945 = vmatpush.bf16.msra.mxu0 %v7696
    %7946 = vmatpush.bf16.msra.mxu0 %v7688
    %7947 = vmatpush.bf16.msra.mxu0 %v7680
    %7948 = vmatpush.bf16.msra.mxu0 %v7672
    %7949 = vmatpush.bf16.msra.mxu0 %v7664
    %7950 = vmatpush.bf16.msra.mxu0 %v7656
    %7951 = vmatpush.bf16.msra.mxu0 %v7648
    %7952 = vmatpush.bf16.msra.mxu0 %v7640
    %7953 = vmatmul.bf16.gmra.mxu0 %v7059
    %v7954 = vpop.f32.mrf.mxu0
    %v7955 = vadd.f32 %v7942, %v7954
    %v7956 = vpop.f32.mrf.mxu0
    %7957 = vdwg.mxu0
    %7958 = vmatpush.bf16.msra.mxu0 %v7633
    %7959 = vmatpush.bf16.msra.mxu0 %v7625
    %7960 = vmatpush.bf16.msra.mxu0 %v7617
    %7961 = vmatpush.bf16.msra.mxu0 %v7609
    %7962 = vmatpush.bf16.msra.mxu0 %v7601
    %7963 = vmatpush.bf16.msra.mxu0 %v7593
    %7964 = vmatpush.bf16.msra.mxu0 %v7585
    %7965 = vmatpush.bf16.msra.mxu0 %v7577
    %7966 = vmatmul.bf16.gmra.mxu0 %v7058
    %v7967 = vpop.f32.mrf.mxu0
    %v7968 = vadd.f32 0.0, %v7967
    %v7969 = vpop.f32.mrf.mxu0
    %7970 = vdwg.mxu0
    %7971 = vmatpush.bf16.msra.mxu0 %v7697
    %7972 = vmatpush.bf16.msra.mxu0 %v7689
    %7973 = vmatpush.bf16.msra.mxu0 %v7681
    %7974 = vmatpush.bf16.msra.mxu0 %v7673
    %7975 = vmatpush.bf16.msra.mxu0 %v7665
    %7976 = vmatpush.bf16.msra.mxu0 %v7657
    %7977 = vmatpush.bf16.msra.mxu0 %v7649
    %7978 = vmatpush.bf16.msra.mxu0 %v7641
    %7979 = vmatmul.bf16.gmra.mxu0 %v7059
    %v7980 = vpop.f32.mrf.mxu0
    %v7981 = vadd.f32 %v7968, %v7980
    %v7982 = vpop.f32.mrf.mxu0
    %7983 = vdwg.mxu0
    %7984 = vmatpush.bf16.msra.mxu0 %v7634
    %7985 = vmatpush.bf16.msra.mxu0 %v7626
    %7986 = vmatpush.bf16.msra.mxu0 %v7618
    %7987 = vmatpush.bf16.msra.mxu0 %v7610
    %7988 = vmatpush.bf16.msra.mxu0 %v7602
    %7989 = vmatpush.bf16.msra.mxu0 %v7594
    %7990 = vmatpush.bf16.msra.mxu0 %v7586
    %7991 = vmatpush.bf16.msra.mxu0 %v7578
    %7992 = vmatmul.bf16.gmra.mxu0 %v7058
    %v7993 = vpop.f32.mrf.mxu0
    %v7994 = vadd.f32 0.0, %v7993
    %v7995 = vpop.f32.mrf.mxu0
    %7996 = vdwg.mxu0
    %7997 = vmatpush.bf16.msra.mxu0 %v7698
    %7998 = vmatpush.bf16.msra.mxu0 %v7690
    %7999 = vmatpush.bf16.msra.mxu0 %v7682
    %8000 = vmatpush.bf16.msra.mxu0 %v7674
    %8001 = vmatpush.bf16.msra.mxu0 %v7666
    %8002 = vmatpush.bf16.msra.mxu0 %v7658
    %8003 = vmatpush.bf16.msra.mxu0 %v7650
    %8004 = vmatpush.bf16.msra.mxu0 %v7642
    %8005 = vmatmul.bf16.gmra.mxu0 %v7059
    %v8006 = vpop.f32.mrf.mxu0
    %v8007 = vadd.f32 %v7994, %v8006
    %v8008 = vpop.f32.mrf.mxu0
    %8009 = vdwg.mxu0
    %8010 = vmatpush.bf16.msra.mxu0 %v7635
    %8011 = vmatpush.bf16.msra.mxu0 %v7627
    %8012 = vmatpush.bf16.msra.mxu0 %v7619
    %8013 = vmatpush.bf16.msra.mxu0 %v7611
    %8014 = vmatpush.bf16.msra.mxu0 %v7603
    %8015 = vmatpush.bf16.msra.mxu0 %v7595
    %8016 = vmatpush.bf16.msra.mxu0 %v7587
    %8017 = vmatpush.bf16.msra.mxu0 %v7579
    %8018 = vmatmul.bf16.gmra.mxu0 %v7058
    %v8019 = vpop.f32.mrf.mxu0
    %v8020 = vadd.f32 0.0, %v8019
    %v8021 = vpop.f32.mrf.mxu0
    %8022 = vdwg.mxu0
    %8023 = vmatpush.bf16.msra.mxu0 %v7699
    %8024 = vmatpush.bf16.msra.mxu0 %v7691
    %8025 = vmatpush.bf16.msra.mxu0 %v7683
    %8026 = vmatpush.bf16.msra.mxu0 %v7675
    %8027 = vmatpush.bf16.msra.mxu0 %v7667
    %8028 = vmatpush.bf16.msra.mxu0 %v7659
    %8029 = vmatpush.bf16.msra.mxu0 %v7651
    %8030 = vmatpush.bf16.msra.mxu0 %v7643
    %8031 = vmatmul.bf16.gmra.mxu0 %v7059
    %v8032 = vpop.f32.mrf.mxu0
    %v8033 = vadd.f32 %v8020, %v8032
    %v8034 = vpop.f32.mrf.mxu0
    %8035 = vdwg.mxu0
    %v8044 = vrot.slane %v7877, 7
    %v8045 = vrot.slane %v7903, 6
    %v8046 = vrot.slane %v7929, 5
    %v8047 = vrot.slane %v7955, 4
    %v8048 = vrot.slane %v7981, 3
    %v8049 = vrot.slane %v8007, 2
    %v8050 = vrot.slane %v8033, 1
    %v8051 = vsel %vm893, %v7851, %v8044
    %v8052 = vsel %vm895, %v8045, %v8046
    %v8053 = vsel %vm897, %v8051, %v8052
    %v8054 = vsel %vm4795, %v8047, %v8048
    %v8055 = vsel %vm4797, %v8049, %v8050
    %v8056 = vsel %vm4799, %v8054, %v8055
    %v8057 = vsel %vm4801, %v8053, %v8056
    %v8059 = vadd.f32 %v7052, %v8057
    %v8060 = vxor.u32 %v8059, 2147483648
    %v8061 = vmul.f32 %v8060, 1.442695
    %v8062 = vpow.pop %v8061
    %v8063 = vadd.f32 %v8062, 1.0
    %v8064 = vrcp.pop %v8063
    %v8065 = vmul.f32 %v8063, %v8064
    %v8066 = vsub.f32 1.0, %v8065
    %v8067 = vmul.f32 %v8064, %v8066
    %v8068 = vadd.f32 %v8064, %v8067
    %vm8069 = vweird.f32 %v8063
    %vm8070 = vweird.f32 %v8064
    %vm8071 = vmor %vm8069, %vm8070
    %v8072 = vsel %vm8071, %v8064, %v8068
    %v8073 = vand.u32 2147483647, %v8063
    %vm8074 = vcmp.eq.f32.partialorder %v8073, 8.507059e+37
    %v8075 = vand.u32 %v8063, 2147483648
    %v8076 = vor.u32 1.1754944e-38, %v8075
    %v8077 = vsel %vm8074, %v8076, %v8072
    %v8078 = vmul.f32 1.0, %v8077
    %v8080 = vrot.slane %v8059, 2
    %v8082 = vxor.u32 %v8080, 2147483648
    %v8083 = vmul.f32 %v8082, 1.442695
    %v8084 = vpow.pop %v8083
    %v8085 = vadd.f32 %v8084, 1.0
    %v8086 = vrcp.pop %v8085
    %v8087 = vmul.f32 %v8085, %v8086
    %v8088 = vsub.f32 1.0, %v8087
    %v8089 = vmul.f32 %v8086, %v8088
    %v8090 = vadd.f32 %v8086, %v8089
    %vm8091 = vweird.f32 %v8085
    %vm8092 = vweird.f32 %v8086
    %vm8093 = vmor %vm8091, %vm8092
    %v8094 = vsel %vm8093, %v8086, %v8090
    %v8095 = vand.u32 2147483647, %v8085
    %vm8096 = vcmp.eq.f32.partialorder %v8095, 8.507059e+37
    %v8097 = vand.u32 %v8085, 2147483648
    %v8098 = vor.u32 1.1754944e-38, %v8097
    %v8099 = vsel %vm8096, %v8098, %v8094
    %v8100 = vmul.f32 1.0, %v8099
    %v8101 = vrot.slane %v8059, 4
    %v8103 = vtanh.pop %v8101
    %v8104 = vrot.slane %v8059, 6
    %v8106 = vxor.u32 %v8104, 2147483648
    %v8107 = vmul.f32 %v8106, 1.442695
    %v8108 = vpow.pop %v8107
    %v8109 = vadd.f32 %v8108, 1.0
    %v8110 = vrcp.pop %v8109
    %v8111 = vmul.f32 %v8109, %v8110
    %v8112 = vsub.f32 1.0, %v8111
    %v8113 = vmul.f32 %v8110, %v8112
    %v8114 = vadd.f32 %v8110, %v8113
    %vm8115 = vweird.f32 %v8109
    %vm8116 = vweird.f32 %v8110
    %vm8117 = vmor %vm8115, %vm8116
    %v8118 = vsel %vm8117, %v8110, %v8114
    %v8119 = vand.u32 2147483647, %v8109
    %vm8120 = vcmp.eq.f32.partialorder %v8119, 8.507059e+37
    %v8121 = vand.u32 %v8109, 2147483648
    %v8122 = vor.u32 1.1754944e-38, %v8121
    %v8123 = vsel %vm8120, %v8122, %v8118
    %v8124 = vmul.f32 1.0, %v8123
    %v8125 = vmul.f32 %v8100, %v7043
    %v8126 = vmul.f32 %v8078, %v8103
    %v8127 = vadd.f32 %v8125, %v8126
    %v8128 = vtanh.pop %v8127
    %v8129 = vmul.f32 %v8124, %v8128
    %s8130 = scalar_lea.vmem [#allocation5], 3
    %8131 = vst.msk [vmem:[%s8130] ss:$8 sm:$0x3] %vm4878, %v8129
    %8132 = vst.msk [vmem:[%s8130] ss:$8 sm:$0x0] %vm4878, %v8129
    %s8133 = scalar_lea.vmem [#allocation4], 4
    %v8134 = vld [vmem:[%s8133] ss:$8 sm:$0xf]
    %v8135 = vld [vmem:[%s8133] ss:$8 sm:$0xf0]
    %v8136 = vor.u32 %v8134, %v8135
    %v8138 = vperm.slane %v8129, 0
    %v8139 = vperm.slane %v8129, 1
    %v8142 = vpack.c.bf16 %v8138, %v8138
    %v8143 = vpack.c.bf16 %v8139, %v8139
    %v8144 = vld [vmem:[#allocation15] sm:$0xff]
    %v8145 = vld [vmem:[#allocation15 + $0x8] sm:$0xff]
    %v8146 = vld [vmem:[#allocation15 + $0x10] sm:$0xff]
    %v8147 = vld [vmem:[#allocation15 + $0x18] sm:$0xff]
    %v8148 = vld [vmem:[#allocation15 + $0x20] sm:$0xff]
    %v8149 = vld [vmem:[#allocation15 + $0x28] sm:$0xff]
    %v8150 = vld [vmem:[#allocation15 + $0x30] sm:$0xff]
    %v8151 = vld [vmem:[#allocation15 + $0x38] sm:$0xff]
    %v8152 = vld [vmem:[#allocation15 + $0x40] sm:$0xff]
    %v8153 = vld [vmem:[#allocation15 + $0x48] sm:$0xff]
    %v8154 = vld [vmem:[#allocation15 + $0x50] sm:$0xff]
    %v8155 = vld [vmem:[#allocation15 + $0x58] sm:$0xff]
    %v8156 = vld [vmem:[#allocation15 + $0x60] sm:$0xff]
    %v8157 = vld [vmem:[#allocation15 + $0x68] sm:$0xff]
    %v8158 = vld [vmem:[#allocation15 + $0x70] sm:$0xff]
    %v8159 = vld [vmem:[#allocation15 + $0x78] sm:$0xff]
    %v8160 = vld [vmem:[#allocation15 + $0x80] sm:$0xff]
    %v8161 = vld [vmem:[#allocation15 + $0x88] sm:$0xff]
    %v8162 = vld [vmem:[#allocation15 + $0x90] sm:$0xff]
    %v8163 = vld [vmem:[#allocation15 + $0x98] sm:$0xff]
    %v8164 = vld [vmem:[#allocation15 + $0xa0] sm:$0xff]
    %v8165 = vld [vmem:[#allocation15 + $0xa8] sm:$0xff]
    %v8166 = vld [vmem:[#allocation15 + $0xb0] sm:$0xff]
    %v8167 = vld [vmem:[#allocation15 + $0xb8] sm:$0xff]
    %v8168 = vld [vmem:[#allocation15 + $0xc0] sm:$0xff]
    %v8169 = vld [vmem:[#allocation15 + $0xc8] sm:$0xff]
    %v8170 = vld [vmem:[#allocation15 + $0xd0] sm:$0xff]
    %v8171 = vld [vmem:[#allocation15 + $0xd8] sm:$0xff]
    %v8172 = vld [vmem:[#allocation15 + $0xe0] sm:$0xff]
    %v8173 = vld [vmem:[#allocation15 + $0xe8] sm:$0xff]
    %v8174 = vld [vmem:[#allocation15 + $0xf0] sm:$0xff]
    %v8175 = vld [vmem:[#allocation15 + $0xf8] sm:$0xff]
    %v8176 = vld [vmem:[#allocation15 + $0x100] sm:$0xff]
    %v8177 = vld [vmem:[#allocation15 + $0x108] sm:$0xff]
    %v8178 = vld [vmem:[#allocation15 + $0x110] sm:$0xff]
    %v8179 = vld [vmem:[#allocation15 + $0x118] sm:$0xff]
    %v8180 = vld [vmem:[#allocation15 + $0x120] sm:$0xff]
    %v8181 = vld [vmem:[#allocation15 + $0x128] sm:$0xff]
    %v8182 = vld [vmem:[#allocation15 + $0x130] sm:$0xff]
    %v8183 = vld [vmem:[#allocation15 + $0x138] sm:$0xff]
    %v8184 = vld [vmem:[#allocation15 + $0x140] sm:$0xff]
    %v8185 = vld [vmem:[#allocation15 + $0x148] sm:$0xff]
    %v8186 = vld [vmem:[#allocation15 + $0x150] sm:$0xff]
    %v8187 = vld [vmem:[#allocation15 + $0x158] sm:$0xff]
    %v8188 = vld [vmem:[#allocation15 + $0x160] sm:$0xff]
    %v8189 = vld [vmem:[#allocation15 + $0x168] sm:$0xff]
    %v8190 = vld [vmem:[#allocation15 + $0x170] sm:$0xff]
    %v8191 = vld [vmem:[#allocation15 + $0x178] sm:$0xff]
    %v8192 = vld [vmem:[#allocation15 + $0x180] sm:$0xff]
    %v8193 = vld [vmem:[#allocation15 + $0x188] sm:$0xff]
    %v8194 = vld [vmem:[#allocation15 + $0x190] sm:$0xff]
    %v8195 = vld [vmem:[#allocation15 + $0x198] sm:$0xff]
    %v8196 = vld [vmem:[#allocation15 + $0x1a0] sm:$0xff]
    %v8197 = vld [vmem:[#allocation15 + $0x1a8] sm:$0xff]
    %v8198 = vld [vmem:[#allocation15 + $0x1b0] sm:$0xff]
    %v8199 = vld [vmem:[#allocation15 + $0x1b8] sm:$0xff]
    %v8200 = vld [vmem:[#allocation15 + $0x1c0] sm:$0xff]
    %v8201 = vld [vmem:[#allocation15 + $0x1c8] sm:$0xff]
    %v8202 = vld [vmem:[#allocation15 + $0x1d0] sm:$0xff]
    %v8203 = vld [vmem:[#allocation15 + $0x1d8] sm:$0xff]
    %v8204 = vld [vmem:[#allocation15 + $0x1e0] sm:$0xff]
    %v8205 = vld [vmem:[#allocation15 + $0x1e8] sm:$0xff]
    %v8206 = vld [vmem:[#allocation15 + $0x1f0] sm:$0xff]
    %v8207 = vld [vmem:[#allocation15 + $0x1f8] sm:$0xff]
    %v8208 = vld [vmem:[#allocation15 + $0x200] sm:$0xff]
    %v8209 = vld [vmem:[#allocation15 + $0x208] sm:$0xff]
    %v8210 = vld [vmem:[#allocation15 + $0x210] sm:$0xff]
    %v8211 = vld [vmem:[#allocation15 + $0x218] sm:$0xff]
    %v8212 = vld [vmem:[#allocation15 + $0x220] sm:$0xff]
    %v8213 = vld [vmem:[#allocation15 + $0x228] sm:$0xff]
    %v8214 = vld [vmem:[#allocation15 + $0x230] sm:$0xff]
    %v8215 = vld [vmem:[#allocation15 + $0x238] sm:$0xff]
    %v8216 = vld [vmem:[#allocation15 + $0x240] sm:$0xff]
    %v8217 = vld [vmem:[#allocation15 + $0x248] sm:$0xff]
    %v8218 = vld [vmem:[#allocation15 + $0x250] sm:$0xff]
    %v8219 = vld [vmem:[#allocation15 + $0x258] sm:$0xff]
    %v8220 = vld [vmem:[#allocation15 + $0x260] sm:$0xff]
    %v8221 = vld [vmem:[#allocation15 + $0x268] sm:$0xff]
    %v8222 = vld [vmem:[#allocation15 + $0x270] sm:$0xff]
    %v8223 = vld [vmem:[#allocation15 + $0x278] sm:$0xff]
    %v8224 = vld [vmem:[#allocation15 + $0x280] sm:$0xff]
    %v8225 = vld [vmem:[#allocation15 + $0x288] sm:$0xff]
    %v8226 = vld [vmem:[#allocation15 + $0x290] sm:$0xff]
    %v8227 = vld [vmem:[#allocation15 + $0x298] sm:$0xff]
    %v8228 = vld [vmem:[#allocation15 + $0x2a0] sm:$0xff]
    %v8229 = vld [vmem:[#allocation15 + $0x2a8] sm:$0xff]
    %v8230 = vld [vmem:[#allocation15 + $0x2b0] sm:$0xff]
    %v8231 = vld [vmem:[#allocation15 + $0x2b8] sm:$0xff]
    %v8232 = vld [vmem:[#allocation15 + $0x2c0] sm:$0xff]
    %v8233 = vld [vmem:[#allocation15 + $0x2c8] sm:$0xff]
    %v8234 = vld [vmem:[#allocation15 + $0x2d0] sm:$0xff]
    %v8235 = vld [vmem:[#allocation15 + $0x2d8] sm:$0xff]
    %v8236 = vld [vmem:[#allocation15 + $0x2e0] sm:$0xff]
    %v8237 = vld [vmem:[#allocation15 + $0x2e8] sm:$0xff]
    %v8238 = vld [vmem:[#allocation15 + $0x2f0] sm:$0xff]
    %v8239 = vld [vmem:[#allocation15 + $0x2f8] sm:$0xff]
    %v8240 = vld [vmem:[#allocation15 + $0x300] sm:$0xff]
    %v8241 = vld [vmem:[#allocation15 + $0x308] sm:$0xff]
    %v8242 = vld [vmem:[#allocation15 + $0x310] sm:$0xff]
    %v8243 = vld [vmem:[#allocation15 + $0x318] sm:$0xff]
    %v8244 = vld [vmem:[#allocation15 + $0x320] sm:$0xff]
    %v8245 = vld [vmem:[#allocation15 + $0x328] sm:$0xff]
    %v8246 = vld [vmem:[#allocation15 + $0x330] sm:$0xff]
    %v8247 = vld [vmem:[#allocation15 + $0x338] sm:$0xff]
    %v8248 = vld [vmem:[#allocation15 + $0x340] sm:$0xff]
    %v8249 = vld [vmem:[#allocation15 + $0x348] sm:$0xff]
    %v8250 = vld [vmem:[#allocation15 + $0x350] sm:$0xff]
    %v8251 = vld [vmem:[#allocation15 + $0x358] sm:$0xff]
    %v8252 = vld [vmem:[#allocation15 + $0x360] sm:$0xff]
    %v8253 = vld [vmem:[#allocation15 + $0x368] sm:$0xff]
    %v8254 = vld [vmem:[#allocation15 + $0x370] sm:$0xff]
    %v8255 = vld [vmem:[#allocation15 + $0x378] sm:$0xff]
    %v8256 = vld [vmem:[#allocation15 + $0x380] sm:$0xff]
    %v8257 = vld [vmem:[#allocation15 + $0x388] sm:$0xff]
    %v8258 = vld [vmem:[#allocation15 + $0x390] sm:$0xff]
    %v8259 = vld [vmem:[#allocation15 + $0x398] sm:$0xff]
    %v8260 = vld [vmem:[#allocation15 + $0x3a0] sm:$0xff]
    %v8261 = vld [vmem:[#allocation15 + $0x3a8] sm:$0xff]
    %v8262 = vld [vmem:[#allocation15 + $0x3b0] sm:$0xff]
    %v8263 = vld [vmem:[#allocation15 + $0x3b8] sm:$0xff]
    %v8264 = vld [vmem:[#allocation15 + $0x3c0] sm:$0xff]
    %v8265 = vld [vmem:[#allocation15 + $0x3c8] sm:$0xff]
    %v8266 = vld [vmem:[#allocation15 + $0x3d0] sm:$0xff]
    %v8267 = vld [vmem:[#allocation15 + $0x3d8] sm:$0xff]
    %v8268 = vld [vmem:[#allocation15 + $0x3e0] sm:$0xff]
    %v8269 = vld [vmem:[#allocation15 + $0x3e8] sm:$0xff]
    %v8270 = vld [vmem:[#allocation15 + $0x3f0] sm:$0xff]
    %v8271 = vld [vmem:[#allocation15 + $0x3f8] sm:$0xff]
    %v8400 = vunpack.c.l.b16 %v8144
    %v8401 = vunpack.c.h.b16 %v8144
    %v8402 = vunpack.c.l.b16 %v8145
    %v8403 = vunpack.c.h.b16 %v8145
    %v8404 = vunpack.c.l.b16 %v8146
    %v8405 = vunpack.c.h.b16 %v8146
    %v8406 = vunpack.c.l.b16 %v8147
    %v8407 = vunpack.c.h.b16 %v8147
    %v8408 = vunpack.c.l.b16 %v8148
    %v8409 = vunpack.c.h.b16 %v8148
    %v8410 = vunpack.c.l.b16 %v8149
    %v8411 = vunpack.c.h.b16 %v8149
    %v8412 = vunpack.c.l.b16 %v8150
    %v8413 = vunpack.c.h.b16 %v8150
    %v8414 = vunpack.c.l.b16 %v8151
    %v8415 = vunpack.c.h.b16 %v8151
    %v8416 = vunpack.c.l.b16 %v8152
    %v8417 = vunpack.c.h.b16 %v8152
    %v8418 = vunpack.c.l.b16 %v8153
    %v8419 = vunpack.c.h.b16 %v8153
    %v8420 = vunpack.c.l.b16 %v8154
    %v8421 = vunpack.c.h.b16 %v8154
    %v8422 = vunpack.c.l.b16 %v8155
    %v8423 = vunpack.c.h.b16 %v8155
    %v8424 = vunpack.c.l.b16 %v8156
    %v8425 = vunpack.c.h.b16 %v8156
    %v8426 = vunpack.c.l.b16 %v8157
    %v8427 = vunpack.c.h.b16 %v8157
    %v8428 = vunpack.c.l.b16 %v8158
    %v8429 = vunpack.c.h.b16 %v8158
    %v8430 = vunpack.c.l.b16 %v8159
    %v8431 = vunpack.c.h.b16 %v8159
    %v8432 = vunpack.c.l.b16 %v8160
    %v8433 = vunpack.c.h.b16 %v8160
    %v8434 = vunpack.c.l.b16 %v8161
    %v8435 = vunpack.c.h.b16 %v8161
    %v8436 = vunpack.c.l.b16 %v8162
    %v8437 = vunpack.c.h.b16 %v8162
    %v8438 = vunpack.c.l.b16 %v8163
    %v8439 = vunpack.c.h.b16 %v8163
    %v8440 = vunpack.c.l.b16 %v8164
    %v8441 = vunpack.c.h.b16 %v8164
    %v8442 = vunpack.c.l.b16 %v8165
    %v8443 = vunpack.c.h.b16 %v8165
    %v8444 = vunpack.c.l.b16 %v8166
    %v8445 = vunpack.c.h.b16 %v8166
    %v8446 = vunpack.c.l.b16 %v8167
    %v8447 = vunpack.c.h.b16 %v8167
    %v8448 = vunpack.c.l.b16 %v8168
    %v8449 = vunpack.c.h.b16 %v8168
    %v8450 = vunpack.c.l.b16 %v8169
    %v8451 = vunpack.c.h.b16 %v8169
    %v8452 = vunpack.c.l.b16 %v8170
    %v8453 = vunpack.c.h.b16 %v8170
    %v8454 = vunpack.c.l.b16 %v8171
    %v8455 = vunpack.c.h.b16 %v8171
    %v8456 = vunpack.c.l.b16 %v8172
    %v8457 = vunpack.c.h.b16 %v8172
    %v8458 = vunpack.c.l.b16 %v8173
    %v8459 = vunpack.c.h.b16 %v8173
    %v8460 = vunpack.c.l.b16 %v8174
    %v8461 = vunpack.c.h.b16 %v8174
    %v8462 = vunpack.c.l.b16 %v8175
    %v8463 = vunpack.c.h.b16 %v8175
    %v8464 = vunpack.c.l.b16 %v8176
    %v8465 = vunpack.c.h.b16 %v8176
    %v8466 = vunpack.c.l.b16 %v8177
    %v8467 = vunpack.c.h.b16 %v8177
    %v8468 = vunpack.c.l.b16 %v8178
    %v8469 = vunpack.c.h.b16 %v8178
    %v8470 = vunpack.c.l.b16 %v8179
    %v8471 = vunpack.c.h.b16 %v8179
    %v8472 = vunpack.c.l.b16 %v8180
    %v8473 = vunpack.c.h.b16 %v8180
    %v8474 = vunpack.c.l.b16 %v8181
    %v8475 = vunpack.c.h.b16 %v8181
    %v8476 = vunpack.c.l.b16 %v8182
    %v8477 = vunpack.c.h.b16 %v8182
    %v8478 = vunpack.c.l.b16 %v8183
    %v8479 = vunpack.c.h.b16 %v8183
    %v8480 = vunpack.c.l.b16 %v8184
    %v8481 = vunpack.c.h.b16 %v8184
    %v8482 = vunpack.c.l.b16 %v8185
    %v8483 = vunpack.c.h.b16 %v8185
    %v8484 = vunpack.c.l.b16 %v8186
    %v8485 = vunpack.c.h.b16 %v8186
    %v8486 = vunpack.c.l.b16 %v8187
    %v8487 = vunpack.c.h.b16 %v8187
    %v8488 = vunpack.c.l.b16 %v8188
    %v8489 = vunpack.c.h.b16 %v8188
    %v8490 = vunpack.c.l.b16 %v8189
    %v8491 = vunpack.c.h.b16 %v8189
    %v8492 = vunpack.c.l.b16 %v8190
    %v8493 = vunpack.c.h.b16 %v8190
    %v8494 = vunpack.c.l.b16 %v8191
    %v8495 = vunpack.c.h.b16 %v8191
    %v8496 = vunpack.c.l.b16 %v8192
    %v8497 = vunpack.c.h.b16 %v8192
    %v8498 = vunpack.c.l.b16 %v8193
    %v8499 = vunpack.c.h.b16 %v8193
    %v8500 = vunpack.c.l.b16 %v8194
    %v8501 = vunpack.c.h.b16 %v8194
    %v8502 = vunpack.c.l.b16 %v8195
    %v8503 = vunpack.c.h.b16 %v8195
    %v8504 = vunpack.c.l.b16 %v8196
    %v8505 = vunpack.c.h.b16 %v8196
    %v8506 = vunpack.c.l.b16 %v8197
    %v8507 = vunpack.c.h.b16 %v8197
    %v8508 = vunpack.c.l.b16 %v8198
    %v8509 = vunpack.c.h.b16 %v8198
    %v8510 = vunpack.c.l.b16 %v8199
    %v8511 = vunpack.c.h.b16 %v8199
    %v8512 = vunpack.c.l.b16 %v8200
    %v8513 = vunpack.c.h.b16 %v8200
    %v8514 = vunpack.c.l.b16 %v8201
    %v8515 = vunpack.c.h.b16 %v8201
    %v8516 = vunpack.c.l.b16 %v8202
    %v8517 = vunpack.c.h.b16 %v8202
    %v8518 = vunpack.c.l.b16 %v8203
    %v8519 = vunpack.c.h.b16 %v8203
    %v8520 = vunpack.c.l.b16 %v8204
    %v8521 = vunpack.c.h.b16 %v8204
    %v8522 = vunpack.c.l.b16 %v8205
    %v8523 = vunpack.c.h.b16 %v8205
    %v8524 = vunpack.c.l.b16 %v8206
    %v8525 = vunpack.c.h.b16 %v8206
    %v8526 = vunpack.c.l.b16 %v8207
    %v8527 = vunpack.c.h.b16 %v8207
    %v8528 = vunpack.c.l.b16 %v8208
    %v8529 = vunpack.c.h.b16 %v8208
    %v8530 = vunpack.c.l.b16 %v8209
    %v8531 = vunpack.c.h.b16 %v8209
    %v8532 = vunpack.c.l.b16 %v8210
    %v8533 = vunpack.c.h.b16 %v8210
    %v8534 = vunpack.c.l.b16 %v8211
    %v8535 = vunpack.c.h.b16 %v8211
    %v8536 = vunpack.c.l.b16 %v8212
    %v8537 = vunpack.c.h.b16 %v8212
    %v8538 = vunpack.c.l.b16 %v8213
    %v8539 = vunpack.c.h.b16 %v8213
    %v8540 = vunpack.c.l.b16 %v8214
    %v8541 = vunpack.c.h.b16 %v8214
    %v8542 = vunpack.c.l.b16 %v8215
    %v8543 = vunpack.c.h.b16 %v8215
    %v8544 = vunpack.c.l.b16 %v8216
    %v8545 = vunpack.c.h.b16 %v8216
    %v8546 = vunpack.c.l.b16 %v8217
    %v8547 = vunpack.c.h.b16 %v8217
    %v8548 = vunpack.c.l.b16 %v8218
    %v8549 = vunpack.c.h.b16 %v8218
    %v8550 = vunpack.c.l.b16 %v8219
    %v8551 = vunpack.c.h.b16 %v8219
    %v8552 = vunpack.c.l.b16 %v8220
    %v8553 = vunpack.c.h.b16 %v8220
    %v8554 = vunpack.c.l.b16 %v8221
    %v8555 = vunpack.c.h.b16 %v8221
    %v8556 = vunpack.c.l.b16 %v8222
    %v8557 = vunpack.c.h.b16 %v8222
    %v8558 = vunpack.c.l.b16 %v8223
    %v8559 = vunpack.c.h.b16 %v8223
    %v8560 = vunpack.c.l.b16 %v8224
    %v8561 = vunpack.c.h.b16 %v8224
    %v8562 = vunpack.c.l.b16 %v8225
    %v8563 = vunpack.c.h.b16 %v8225
    %v8564 = vunpack.c.l.b16 %v8226
    %v8565 = vunpack.c.h.b16 %v8226
    %v8566 = vunpack.c.l.b16 %v8227
    %v8567 = vunpack.c.h.b16 %v8227
    %v8568 = vunpack.c.l.b16 %v8228
    %v8569 = vunpack.c.h.b16 %v8228
    %v8570 = vunpack.c.l.b16 %v8229
    %v8571 = vunpack.c.h.b16 %v8229
    %v8572 = vunpack.c.l.b16 %v8230
    %v8573 = vunpack.c.h.b16 %v8230
    %v8574 = vunpack.c.l.b16 %v8231
    %v8575 = vunpack.c.h.b16 %v8231
    %v8576 = vunpack.c.l.b16 %v8232
    %v8577 = vunpack.c.h.b16 %v8232
    %v8578 = vunpack.c.l.b16 %v8233
    %v8579 = vunpack.c.h.b16 %v8233
    %v8580 = vunpack.c.l.b16 %v8234
    %v8581 = vunpack.c.h.b16 %v8234
    %v8582 = vunpack.c.l.b16 %v8235
    %v8583 = vunpack.c.h.b16 %v8235
    %v8584 = vunpack.c.l.b16 %v8236
    %v8585 = vunpack.c.h.b16 %v8236
    %v8586 = vunpack.c.l.b16 %v8237
    %v8587 = vunpack.c.h.b16 %v8237
    %v8588 = vunpack.c.l.b16 %v8238
    %v8589 = vunpack.c.h.b16 %v8238
    %v8590 = vunpack.c.l.b16 %v8239
    %v8591 = vunpack.c.h.b16 %v8239
    %v8592 = vunpack.c.l.b16 %v8240
    %v8593 = vunpack.c.h.b16 %v8240
    %v8594 = vunpack.c.l.b16 %v8241
    %v8595 = vunpack.c.h.b16 %v8241
    %v8596 = vunpack.c.l.b16 %v8242
    %v8597 = vunpack.c.h.b16 %v8242
    %v8598 = vunpack.c.l.b16 %v8243
    %v8599 = vunpack.c.h.b16 %v8243
    %v8600 = vunpack.c.l.b16 %v8244
    %v8601 = vunpack.c.h.b16 %v8244
    %v8602 = vunpack.c.l.b16 %v8245
    %v8603 = vunpack.c.h.b16 %v8245
    %v8604 = vunpack.c.l.b16 %v8246
    %v8605 = vunpack.c.h.b16 %v8246
    %v8606 = vunpack.c.l.b16 %v8247
    %v8607 = vunpack.c.h.b16 %v8247
    %v8608 = vunpack.c.l.b16 %v8248
    %v8609 = vunpack.c.h.b16 %v8248
    %v8610 = vunpack.c.l.b16 %v8249
    %v8611 = vunpack.c.h.b16 %v8249
    %v8612 = vunpack.c.l.b16 %v8250
    %v8613 = vunpack.c.h.b16 %v8250
    %v8614 = vunpack.c.l.b16 %v8251
    %v8615 = vunpack.c.h.b16 %v8251
    %v8616 = vunpack.c.l.b16 %v8252
    %v8617 = vunpack.c.h.b16 %v8252
    %v8618 = vunpack.c.l.b16 %v8253
    %v8619 = vunpack.c.h.b16 %v8253
    %v8620 = vunpack.c.l.b16 %v8254
    %v8621 = vunpack.c.h.b16 %v8254
    %v8622 = vunpack.c.l.b16 %v8255
    %v8623 = vunpack.c.h.b16 %v8255
    %v8624 = vunpack.c.l.b16 %v8256
    %v8625 = vunpack.c.h.b16 %v8256
    %v8626 = vunpack.c.l.b16 %v8257
    %v8627 = vunpack.c.h.b16 %v8257
    %v8628 = vunpack.c.l.b16 %v8258
    %v8629 = vunpack.c.h.b16 %v8258
    %v8630 = vunpack.c.l.b16 %v8259
    %v8631 = vunpack.c.h.b16 %v8259
    %v8632 = vunpack.c.l.b16 %v8260
    %v8633 = vunpack.c.h.b16 %v8260
    %v8634 = vunpack.c.l.b16 %v8261
    %v8635 = vunpack.c.h.b16 %v8261
    %v8636 = vunpack.c.l.b16 %v8262
    %v8637 = vunpack.c.h.b16 %v8262
    %v8638 = vunpack.c.l.b16 %v8263
    %v8639 = vunpack.c.h.b16 %v8263
    %v8640 = vunpack.c.l.b16 %v8264
    %v8641 = vunpack.c.h.b16 %v8264
    %v8642 = vunpack.c.l.b16 %v8265
    %v8643 = vunpack.c.h.b16 %v8265
    %v8644 = vunpack.c.l.b16 %v8266
    %v8645 = vunpack.c.h.b16 %v8266
    %v8646 = vunpack.c.l.b16 %v8267
    %v8647 = vunpack.c.h.b16 %v8267
    %v8648 = vunpack.c.l.b16 %v8268
    %v8649 = vunpack.c.h.b16 %v8268
    %v8650 = vunpack.c.l.b16 %v8269
    %v8651 = vunpack.c.h.b16 %v8269
    %v8652 = vunpack.c.l.b16 %v8270
    %v8653 = vunpack.c.h.b16 %v8270
    %v8654 = vunpack.c.l.b16 %v8271
    %v8655 = vunpack.c.h.b16 %v8271
    %v8656 = vpack.c.b16 %v8408, %v8400
    %v8657 = vpack.c.b16 %v8409, %v8401
    %v8658 = vpack.c.b16 %v8410, %v8402
    %v8659 = vpack.c.b16 %v8411, %v8403
    %v8660 = vpack.c.b16 %v8412, %v8404
    %v8661 = vpack.c.b16 %v8413, %v8405
    %v8662 = vpack.c.b16 %v8414, %v8406
    %v8663 = vpack.c.b16 %v8415, %v8407
    %v8664 = vpack.c.b16 %v8424, %v8416
    %v8665 = vpack.c.b16 %v8425, %v8417
    %v8666 = vpack.c.b16 %v8426, %v8418
    %v8667 = vpack.c.b16 %v8427, %v8419
    %v8668 = vpack.c.b16 %v8428, %v8420
    %v8669 = vpack.c.b16 %v8429, %v8421
    %v8670 = vpack.c.b16 %v8430, %v8422
    %v8671 = vpack.c.b16 %v8431, %v8423
    %v8672 = vpack.c.b16 %v8440, %v8432
    %v8673 = vpack.c.b16 %v8441, %v8433
    %v8674 = vpack.c.b16 %v8442, %v8434
    %v8675 = vpack.c.b16 %v8443, %v8435
    %v8676 = vpack.c.b16 %v8444, %v8436
    %v8677 = vpack.c.b16 %v8445, %v8437
    %v8678 = vpack.c.b16 %v8446, %v8438
    %v8679 = vpack.c.b16 %v8447, %v8439
    %v8680 = vpack.c.b16 %v8456, %v8448
    %v8681 = vpack.c.b16 %v8457, %v8449
    %v8682 = vpack.c.b16 %v8458, %v8450
    %v8683 = vpack.c.b16 %v8459, %v8451
    %v8684 = vpack.c.b16 %v8460, %v8452
    %v8685 = vpack.c.b16 %v8461, %v8453
    %v8686 = vpack.c.b16 %v8462, %v8454
    %v8687 = vpack.c.b16 %v8463, %v8455
    %v8688 = vpack.c.b16 %v8472, %v8464
    %v8689 = vpack.c.b16 %v8473, %v8465
    %v8690 = vpack.c.b16 %v8474, %v8466
    %v8691 = vpack.c.b16 %v8475, %v8467
    %v8692 = vpack.c.b16 %v8476, %v8468
    %v8693 = vpack.c.b16 %v8477, %v8469
    %v8694 = vpack.c.b16 %v8478, %v8470
    %v8695 = vpack.c.b16 %v8479, %v8471
    %v8696 = vpack.c.b16 %v8488, %v8480
    %v8697 = vpack.c.b16 %v8489, %v8481
    %v8698 = vpack.c.b16 %v8490, %v8482
    %v8699 = vpack.c.b16 %v8491, %v8483
    %v8700 = vpack.c.b16 %v8492, %v8484
    %v8701 = vpack.c.b16 %v8493, %v8485
    %v8702 = vpack.c.b16 %v8494, %v8486
    %v8703 = vpack.c.b16 %v8495, %v8487
    %v8704 = vpack.c.b16 %v8504, %v8496
    %v8705 = vpack.c.b16 %v8505, %v8497
    %v8706 = vpack.c.b16 %v8506, %v8498
    %v8707 = vpack.c.b16 %v8507, %v8499
    %v8708 = vpack.c.b16 %v8508, %v8500
    %v8709 = vpack.c.b16 %v8509, %v8501
    %v8710 = vpack.c.b16 %v8510, %v8502
    %v8711 = vpack.c.b16 %v8511, %v8503
    %v8712 = vpack.c.b16 %v8520, %v8512
    %v8713 = vpack.c.b16 %v8521, %v8513
    %v8714 = vpack.c.b16 %v8522, %v8514
    %v8715 = vpack.c.b16 %v8523, %v8515
    %v8716 = vpack.c.b16 %v8524, %v8516
    %v8717 = vpack.c.b16 %v8525, %v8517
    %v8718 = vpack.c.b16 %v8526, %v8518
    %v8719 = vpack.c.b16 %v8527, %v8519
    %v8720 = vpack.c.b16 %v8536, %v8528
    %v8721 = vpack.c.b16 %v8537, %v8529
    %v8722 = vpack.c.b16 %v8538, %v8530
    %v8723 = vpack.c.b16 %v8539, %v8531
    %v8724 = vpack.c.b16 %v8540, %v8532
    %v8725 = vpack.c.b16 %v8541, %v8533
    %v8726 = vpack.c.b16 %v8542, %v8534
    %v8727 = vpack.c.b16 %v8543, %v8535
    %v8728 = vpack.c.b16 %v8552, %v8544
    %v8729 = vpack.c.b16 %v8553, %v8545
    %v8730 = vpack.c.b16 %v8554, %v8546
    %v8731 = vpack.c.b16 %v8555, %v8547
    %v8732 = vpack.c.b16 %v8556, %v8548
    %v8733 = vpack.c.b16 %v8557, %v8549
    %v8734 = vpack.c.b16 %v8558, %v8550
    %v8735 = vpack.c.b16 %v8559, %v8551
    %v8736 = vpack.c.b16 %v8568, %v8560
    %v8737 = vpack.c.b16 %v8569, %v8561
    %v8738 = vpack.c.b16 %v8570, %v8562
    %v8739 = vpack.c.b16 %v8571, %v8563
    %v8740 = vpack.c.b16 %v8572, %v8564
    %v8741 = vpack.c.b16 %v8573, %v8565
    %v8742 = vpack.c.b16 %v8574, %v8566
    %v8743 = vpack.c.b16 %v8575, %v8567
    %v8744 = vpack.c.b16 %v8584, %v8576
    %v8745 = vpack.c.b16 %v8585, %v8577
    %v8746 = vpack.c.b16 %v8586, %v8578
    %v8747 = vpack.c.b16 %v8587, %v8579
    %v8748 = vpack.c.b16 %v8588, %v8580
    %v8749 = vpack.c.b16 %v8589, %v8581
    %v8750 = vpack.c.b16 %v8590, %v8582
    %v8751 = vpack.c.b16 %v8591, %v8583
    %v8752 = vpack.c.b16 %v8600, %v8592
    %v8753 = vpack.c.b16 %v8601, %v8593
    %v8754 = vpack.c.b16 %v8602, %v8594
    %v8755 = vpack.c.b16 %v8603, %v8595
    %v8756 = vpack.c.b16 %v8604, %v8596
    %v8757 = vpack.c.b16 %v8605, %v8597
    %v8758 = vpack.c.b16 %v8606, %v8598
    %v8759 = vpack.c.b16 %v8607, %v8599
    %v8760 = vpack.c.b16 %v8616, %v8608
    %v8761 = vpack.c.b16 %v8617, %v8609
    %v8762 = vpack.c.b16 %v8618, %v8610
    %v8763 = vpack.c.b16 %v8619, %v8611
    %v8764 = vpack.c.b16 %v8620, %v8612
    %v8765 = vpack.c.b16 %v8621, %v8613
    %v8766 = vpack.c.b16 %v8622, %v8614
    %v8767 = vpack.c.b16 %v8623, %v8615
    %v8768 = vpack.c.b16 %v8632, %v8624
    %v8769 = vpack.c.b16 %v8633, %v8625
    %v8770 = vpack.c.b16 %v8634, %v8626
    %v8771 = vpack.c.b16 %v8635, %v8627
    %v8772 = vpack.c.b16 %v8636, %v8628
    %v8773 = vpack.c.b16 %v8637, %v8629
    %v8774 = vpack.c.b16 %v8638, %v8630
    %v8775 = vpack.c.b16 %v8639, %v8631
    %v8776 = vpack.c.b16 %v8648, %v8640
    %v8777 = vpack.c.b16 %v8649, %v8641
    %v8778 = vpack.c.b16 %v8650, %v8642
    %v8779 = vpack.c.b16 %v8651, %v8643
    %v8780 = vpack.c.b16 %v8652, %v8644
    %v8781 = vpack.c.b16 %v8653, %v8645
    %v8782 = vpack.c.b16 %v8654, %v8646
    %v8783 = vpack.c.b16 %v8655, %v8647
    %8912 = vmatpush.bf16.msra.mxu0 %v8712
    %8913 = vmatpush.bf16.msra.mxu0 %v8704
    %8914 = vmatpush.bf16.msra.mxu0 %v8696
    %8915 = vmatpush.bf16.msra.mxu0 %v8688
    %8916 = vmatpush.bf16.msra.mxu0 %v8680
    %8917 = vmatpush.bf16.msra.mxu0 %v8672
    %8918 = vmatpush.bf16.msra.mxu0 %v8664
    %8919 = vmatpush.bf16.msra.mxu0 %v8656
    %8920 = vmatmul.bf16.gmra.mxu0 %v8142
    %v8921 = vpop.f32.mrf.mxu0
    %v8922 = vadd.f32 0.0, %v8921
    %v8923 = vpop.f32.mrf.mxu0
    %8924 = vdwg.mxu0
    %8925 = vmatpush.bf16.msra.mxu0 %v8776
    %8926 = vmatpush.bf16.msra.mxu0 %v8768
    %8927 = vmatpush.bf16.msra.mxu0 %v8760
    %8928 = vmatpush.bf16.msra.mxu0 %v8752
    %8929 = vmatpush.bf16.msra.mxu0 %v8744
    %8930 = vmatpush.bf16.msra.mxu0 %v8736
    %8931 = vmatpush.bf16.msra.mxu0 %v8728
    %8932 = vmatpush.bf16.msra.mxu0 %v8720
    %8933 = vmatmul.bf16.gmra.mxu0 %v8143
    %v8934 = vpop.f32.mrf.mxu0
    %v8935 = vadd.f32 %v8922, %v8934
    %v8936 = vpop.f32.mrf.mxu0
    %8937 = vdwg.mxu0
    %8938 = vmatpush.bf16.msra.mxu0 %v8713
    %8939 = vmatpush.bf16.msra.mxu0 %v8705
    %8940 = vmatpush.bf16.msra.mxu0 %v8697
    %8941 = vmatpush.bf16.msra.mxu0 %v8689
    %8942 = vmatpush.bf16.msra.mxu0 %v8681
    %8943 = vmatpush.bf16.msra.mxu0 %v8673
    %8944 = vmatpush.bf16.msra.mxu0 %v8665
    %8945 = vmatpush.bf16.msra.mxu0 %v8657
    %8946 = vmatmul.bf16.gmra.mxu0 %v8142
    %v8947 = vpop.f32.mrf.mxu0
    %v8948 = vadd.f32 0.0, %v8947
    %v8949 = vpop.f32.mrf.mxu0
    %8950 = vdwg.mxu0
    %8951 = vmatpush.bf16.msra.mxu0 %v8777
    %8952 = vmatpush.bf16.msra.mxu0 %v8769
    %8953 = vmatpush.bf16.msra.mxu0 %v8761
    %8954 = vmatpush.bf16.msra.mxu0 %v8753
    %8955 = vmatpush.bf16.msra.mxu0 %v8745
    %8956 = vmatpush.bf16.msra.mxu0 %v8737
    %8957 = vmatpush.bf16.msra.mxu0 %v8729
    %8958 = vmatpush.bf16.msra.mxu0 %v8721
    %8959 = vmatmul.bf16.gmra.mxu0 %v8143
    %v8960 = vpop.f32.mrf.mxu0
    %v8961 = vadd.f32 %v8948, %v8960
    %v8962 = vpop.f32.mrf.mxu0
    %8963 = vdwg.mxu0
    %8964 = vmatpush.bf16.msra.mxu0 %v8714
    %8965 = vmatpush.bf16.msra.mxu0 %v8706
    %8966 = vmatpush.bf16.msra.mxu0 %v8698
    %8967 = vmatpush.bf16.msra.mxu0 %v8690
    %8968 = vmatpush.bf16.msra.mxu0 %v8682
    %8969 = vmatpush.bf16.msra.mxu0 %v8674
    %8970 = vmatpush.bf16.msra.mxu0 %v8666
    %8971 = vmatpush.bf16.msra.mxu0 %v8658
    %8972 = vmatmul.bf16.gmra.mxu0 %v8142
    %v8973 = vpop.f32.mrf.mxu0
    %v8974 = vadd.f32 0.0, %v8973
    %v8975 = vpop.f32.mrf.mxu0
    %8976 = vdwg.mxu0
    %8977 = vmatpush.bf16.msra.mxu0 %v8778
    %8978 = vmatpush.bf16.msra.mxu0 %v8770
    %8979 = vmatpush.bf16.msra.mxu0 %v8762
    %8980 = vmatpush.bf16.msra.mxu0 %v8754
    %8981 = vmatpush.bf16.msra.mxu0 %v8746
    %8982 = vmatpush.bf16.msra.mxu0 %v8738
    %8983 = vmatpush.bf16.msra.mxu0 %v8730
    %8984 = vmatpush.bf16.msra.mxu0 %v8722
    %8985 = vmatmul.bf16.gmra.mxu0 %v8143
    %v8986 = vpop.f32.mrf.mxu0
    %v8987 = vadd.f32 %v8974, %v8986
    %v8988 = vpop.f32.mrf.mxu0
    %8989 = vdwg.mxu0
    %8990 = vmatpush.bf16.msra.mxu0 %v8715
    %8991 = vmatpush.bf16.msra.mxu0 %v8707
    %8992 = vmatpush.bf16.msra.mxu0 %v8699
    %8993 = vmatpush.bf16.msra.mxu0 %v8691
    %8994 = vmatpush.bf16.msra.mxu0 %v8683
    %8995 = vmatpush.bf16.msra.mxu0 %v8675
    %8996 = vmatpush.bf16.msra.mxu0 %v8667
    %8997 = vmatpush.bf16.msra.mxu0 %v8659
    %8998 = vmatmul.bf16.gmra.mxu0 %v8142
    %v8999 = vpop.f32.mrf.mxu0
    %v9000 = vadd.f32 0.0, %v8999
    %v9001 = vpop.f32.mrf.mxu0
    %9002 = vdwg.mxu0
    %9003 = vmatpush.bf16.msra.mxu0 %v8779
    %9004 = vmatpush.bf16.msra.mxu0 %v8771
    %9005 = vmatpush.bf16.msra.mxu0 %v8763
    %9006 = vmatpush.bf16.msra.mxu0 %v8755
    %9007 = vmatpush.bf16.msra.mxu0 %v8747
    %9008 = vmatpush.bf16.msra.mxu0 %v8739
    %9009 = vmatpush.bf16.msra.mxu0 %v8731
    %9010 = vmatpush.bf16.msra.mxu0 %v8723
    %9011 = vmatmul.bf16.gmra.mxu0 %v8143
    %v9012 = vpop.f32.mrf.mxu0
    %v9013 = vadd.f32 %v9000, %v9012
    %v9014 = vpop.f32.mrf.mxu0
    %9015 = vdwg.mxu0
    %9016 = vmatpush.bf16.msra.mxu0 %v8716
    %9017 = vmatpush.bf16.msra.mxu0 %v8708
    %9018 = vmatpush.bf16.msra.mxu0 %v8700
    %9019 = vmatpush.bf16.msra.mxu0 %v8692
    %9020 = vmatpush.bf16.msra.mxu0 %v8684
    %9021 = vmatpush.bf16.msra.mxu0 %v8676
    %9022 = vmatpush.bf16.msra.mxu0 %v8668
    %9023 = vmatpush.bf16.msra.mxu0 %v8660
    %9024 = vmatmul.bf16.gmra.mxu0 %v8142
    %v9025 = vpop.f32.mrf.mxu0
    %v9026 = vadd.f32 0.0, %v9025
    %v9027 = vpop.f32.mrf.mxu0
    %9028 = vdwg.mxu0
    %9029 = vmatpush.bf16.msra.mxu0 %v8780
    %9030 = vmatpush.bf16.msra.mxu0 %v8772
    %9031 = vmatpush.bf16.msra.mxu0 %v8764
    %9032 = vmatpush.bf16.msra.mxu0 %v8756
    %9033 = vmatpush.bf16.msra.mxu0 %v8748
    %9034 = vmatpush.bf16.msra.mxu0 %v8740
    %9035 = vmatpush.bf16.msra.mxu0 %v8732
    %9036 = vmatpush.bf16.msra.mxu0 %v8724
    %9037 = vmatmul.bf16.gmra.mxu0 %v8143
    %v9038 = vpop.f32.mrf.mxu0
    %v9039 = vadd.f32 %v9026, %v9038
    %v9040 = vpop.f32.mrf.mxu0
    %9041 = vdwg.mxu0
    %9042 = vmatpush.bf16.msra.mxu0 %v8717
    %9043 = vmatpush.bf16.msra.mxu0 %v8709
    %9044 = vmatpush.bf16.msra.mxu0 %v8701
    %9045 = vmatpush.bf16.msra.mxu0 %v8693
    %9046 = vmatpush.bf16.msra.mxu0 %v8685
    %9047 = vmatpush.bf16.msra.mxu0 %v8677
    %9048 = vmatpush.bf16.msra.mxu0 %v8669
    %9049 = vmatpush.bf16.msra.mxu0 %v8661
    %9050 = vmatmul.bf16.gmra.mxu0 %v8142
    %v9051 = vpop.f32.mrf.mxu0
    %v9052 = vadd.f32 0.0, %v9051
    %v9053 = vpop.f32.mrf.mxu0
    %9054 = vdwg.mxu0
    %9055 = vmatpush.bf16.msra.mxu0 %v8781
    %9056 = vmatpush.bf16.msra.mxu0 %v8773
    %9057 = vmatpush.bf16.msra.mxu0 %v8765
    %9058 = vmatpush.bf16.msra.mxu0 %v8757
    %9059 = vmatpush.bf16.msra.mxu0 %v8749
    %9060 = vmatpush.bf16.msra.mxu0 %v8741
    %9061 = vmatpush.bf16.msra.mxu0 %v8733
    %9062 = vmatpush.bf16.msra.mxu0 %v8725
    %9063 = vmatmul.bf16.gmra.mxu0 %v8143
    %v9064 = vpop.f32.mrf.mxu0
    %v9065 = vadd.f32 %v9052, %v9064
    %v9066 = vpop.f32.mrf.mxu0
    %9067 = vdwg.mxu0
    %9068 = vmatpush.bf16.msra.mxu0 %v8718
    %9069 = vmatpush.bf16.msra.mxu0 %v8710
    %9070 = vmatpush.bf16.msra.mxu0 %v8702
    %9071 = vmatpush.bf16.msra.mxu0 %v8694
    %9072 = vmatpush.bf16.msra.mxu0 %v8686
    %9073 = vmatpush.bf16.msra.mxu0 %v8678
    %9074 = vmatpush.bf16.msra.mxu0 %v8670
    %9075 = vmatpush.bf16.msra.mxu0 %v8662
    %9076 = vmatmul.bf16.gmra.mxu0 %v8142
    %v9077 = vpop.f32.mrf.mxu0
    %v9078 = vadd.f32 0.0, %v9077
    %v9079 = vpop.f32.mrf.mxu0
    %9080 = vdwg.mxu0
    %9081 = vmatpush.bf16.msra.mxu0 %v8782
    %9082 = vmatpush.bf16.msra.mxu0 %v8774
    %9083 = vmatpush.bf16.msra.mxu0 %v8766
    %9084 = vmatpush.bf16.msra.mxu0 %v8758
    %9085 = vmatpush.bf16.msra.mxu0 %v8750
    %9086 = vmatpush.bf16.msra.mxu0 %v8742
    %9087 = vmatpush.bf16.msra.mxu0 %v8734
    %9088 = vmatpush.bf16.msra.mxu0 %v8726
    %9089 = vmatmul.bf16.gmra.mxu0 %v8143
    %v9090 = vpop.f32.mrf.mxu0
    %v9091 = vadd.f32 %v9078, %v9090
    %v9092 = vpop.f32.mrf.mxu0
    %9093 = vdwg.mxu0
    %9094 = vmatpush.bf16.msra.mxu0 %v8719
    %9095 = vmatpush.bf16.msra.mxu0 %v8711
    %9096 = vmatpush.bf16.msra.mxu0 %v8703
    %9097 = vmatpush.bf16.msra.mxu0 %v8695
    %9098 = vmatpush.bf16.msra.mxu0 %v8687
    %9099 = vmatpush.bf16.msra.mxu0 %v8679
    %9100 = vmatpush.bf16.msra.mxu0 %v8671
    %9101 = vmatpush.bf16.msra.mxu0 %v8663
    %9102 = vmatmul.bf16.gmra.mxu0 %v8142
    %v9103 = vpop.f32.mrf.mxu0
    %v9104 = vadd.f32 0.0, %v9103
    %v9105 = vpop.f32.mrf.mxu0
    %9106 = vdwg.mxu0
    %9107 = vmatpush.bf16.msra.mxu0 %v8783
    %9108 = vmatpush.bf16.msra.mxu0 %v8775
    %9109 = vmatpush.bf16.msra.mxu0 %v8767
    %9110 = vmatpush.bf16.msra.mxu0 %v8759
    %9111 = vmatpush.bf16.msra.mxu0 %v8751
    %9112 = vmatpush.bf16.msra.mxu0 %v8743
    %9113 = vmatpush.bf16.msra.mxu0 %v8735
    %9114 = vmatpush.bf16.msra.mxu0 %v8727
    %9115 = vmatmul.bf16.gmra.mxu0 %v8143
    %v9116 = vpop.f32.mrf.mxu0
    %v9117 = vadd.f32 %v9104, %v9116
    %v9118 = vpop.f32.mrf.mxu0
    %9119 = vdwg.mxu0
    %v9128 = vrot.slane %v8961, 7
    %v9129 = vrot.slane %v8987, 6
    %v9130 = vrot.slane %v9013, 5
    %v9131 = vrot.slane %v9039, 4
    %v9132 = vrot.slane %v9065, 3
    %v9133 = vrot.slane %v9091, 2
    %v9134 = vrot.slane %v9117, 1
    %v9135 = vsel %vm893, %v8935, %v9128
    %v9136 = vsel %vm895, %v9129, %v9130
    %v9137 = vsel %vm897, %v9135, %v9136
    %v9138 = vsel %vm4795, %v9131, %v9132
    %v9139 = vsel %vm4797, %v9133, %v9134
    %v9140 = vsel %vm4799, %v9138, %v9139
    %v9141 = vsel %vm4801, %v9137, %v9140
    %v9143 = vadd.f32 %v8136, %v9141
    %v9144 = vxor.u32 %v9143, 2147483648
    %v9145 = vmul.f32 %v9144, 1.442695
    %v9146 = vpow.pop %v9145
    %v9147 = vadd.f32 %v9146, 1.0
    %v9148 = vrcp.pop %v9147
    %v9149 = vmul.f32 %v9147, %v9148
    %v9150 = vsub.f32 1.0, %v9149
    %v9151 = vmul.f32 %v9148, %v9150
    %v9152 = vadd.f32 %v9148, %v9151
    %vm9153 = vweird.f32 %v9147
    %vm9154 = vweird.f32 %v9148
    %vm9155 = vmor %vm9153, %vm9154
    %v9156 = vsel %vm9155, %v9148, %v9152
    %v9157 = vand.u32 2147483647, %v9147
    %vm9158 = vcmp.eq.f32.partialorder %v9157, 8.507059e+37
    %v9159 = vand.u32 %v9147, 2147483648
    %v9160 = vor.u32 1.1754944e-38, %v9159
    %v9161 = vsel %vm9158, %v9160, %v9156
    %v9162 = vmul.f32 1.0, %v9161
    %v9164 = vrot.slane %v9143, 2
    %v9166 = vxor.u32 %v9164, 2147483648
    %v9167 = vmul.f32 %v9166, 1.442695
    %v9168 = vpow.pop %v9167
    %v9169 = vadd.f32 %v9168, 1.0
    %v9170 = vrcp.pop %v9169
    %v9171 = vmul.f32 %v9169, %v9170
    %v9172 = vsub.f32 1.0, %v9171
    %v9173 = vmul.f32 %v9170, %v9172
    %v9174 = vadd.f32 %v9170, %v9173
    %vm9175 = vweird.f32 %v9169
    %vm9176 = vweird.f32 %v9170
    %vm9177 = vmor %vm9175, %vm9176
    %v9178 = vsel %vm9177, %v9170, %v9174
    %v9179 = vand.u32 2147483647, %v9169
    %vm9180 = vcmp.eq.f32.partialorder %v9179, 8.507059e+37
    %v9181 = vand.u32 %v9169, 2147483648
    %v9182 = vor.u32 1.1754944e-38, %v9181
    %v9183 = vsel %vm9180, %v9182, %v9178
    %v9184 = vmul.f32 1.0, %v9183
    %v9185 = vrot.slane %v9143, 4
    %v9187 = vtanh.pop %v9185
    %v9188 = vrot.slane %v9143, 6
    %v9190 = vxor.u32 %v9188, 2147483648
    %v9191 = vmul.f32 %v9190, 1.442695
    %v9192 = vpow.pop %v9191
    %v9193 = vadd.f32 %v9192, 1.0
    %v9194 = vrcp.pop %v9193
    %v9195 = vmul.f32 %v9193, %v9194
    %v9196 = vsub.f32 1.0, %v9195
    %v9197 = vmul.f32 %v9194, %v9196
    %v9198 = vadd.f32 %v9194, %v9197
    %vm9199 = vweird.f32 %v9193
    %vm9200 = vweird.f32 %v9194
    %vm9201 = vmor %vm9199, %vm9200
    %v9202 = vsel %vm9201, %v9194, %v9198
    %v9203 = vand.u32 2147483647, %v9193
    %vm9204 = vcmp.eq.f32.partialorder %v9203, 8.507059e+37
    %v9205 = vand.u32 %v9193, 2147483648
    %v9206 = vor.u32 1.1754944e-38, %v9205
    %v9207 = vsel %vm9204, %v9206, %v9202
    %v9208 = vmul.f32 1.0, %v9207
    %v9209 = vmul.f32 %v9184, %v8127
    %v9210 = vmul.f32 %v9162, %v9187
    %v9211 = vadd.f32 %v9209, %v9210
    %v9212 = vtanh.pop %v9211
    %v9213 = vmul.f32 %v9208, %v9212
    %s9214 = scalar_lea.vmem [#allocation5], 4
    %9215 = vst.msk [vmem:[%s9214] ss:$8 sm:$0x3] %vm4878, %v9213
    %9216 = vst.msk [vmem:[%s9214] ss:$8 sm:$0x0] %vm4878, %v9213
    %s9217 = scalar_lea.vmem [#allocation4], 5
    %v9218 = vld [vmem:[%s9217] ss:$8 sm:$0xf]
    %v9219 = vld [vmem:[%s9217] ss:$8 sm:$0xf0]
    %v9220 = vor.u32 %v9218, %v9219
    %v9222 = vperm.slane %v9213, 0
    %v9223 = vperm.slane %v9213, 1
    %v9226 = vpack.c.bf16 %v9222, %v9222
    %v9227 = vpack.c.bf16 %v9223, %v9223
    %v9228 = vld [vmem:[#allocation15] sm:$0xff]
    %v9229 = vld [vmem:[#allocation15 + $0x8] sm:$0xff]
    %v9230 = vld [vmem:[#allocation15 + $0x10] sm:$0xff]
    %v9231 = vld [vmem:[#allocation15 + $0x18] sm:$0xff]
    %v9232 = vld [vmem:[#allocation15 + $0x20] sm:$0xff]
    %v9233 = vld [vmem:[#allocation15 + $0x28] sm:$0xff]
    %v9234 = vld [vmem:[#allocation15 + $0x30] sm:$0xff]
    %v9235 = vld [vmem:[#allocation15 + $0x38] sm:$0xff]
    %v9236 = vld [vmem:[#allocation15 + $0x40] sm:$0xff]
    %v9237 = vld [vmem:[#allocation15 + $0x48] sm:$0xff]
    %v9238 = vld [vmem:[#allocation15 + $0x50] sm:$0xff]
    %v9239 = vld [vmem:[#allocation15 + $0x58] sm:$0xff]
    %v9240 = vld [vmem:[#allocation15 + $0x60] sm:$0xff]
    %v9241 = vld [vmem:[#allocation15 + $0x68] sm:$0xff]
    %v9242 = vld [vmem:[#allocation15 + $0x70] sm:$0xff]
    %v9243 = vld [vmem:[#allocation15 + $0x78] sm:$0xff]
    %v9244 = vld [vmem:[#allocation15 + $0x80] sm:$0xff]
    %v9245 = vld [vmem:[#allocation15 + $0x88] sm:$0xff]
    %v9246 = vld [vmem:[#allocation15 + $0x90] sm:$0xff]
    %v9247 = vld [vmem:[#allocation15 + $0x98] sm:$0xff]
    %v9248 = vld [vmem:[#allocation15 + $0xa0] sm:$0xff]
    %v9249 = vld [vmem:[#allocation15 + $0xa8] sm:$0xff]
    %v9250 = vld [vmem:[#allocation15 + $0xb0] sm:$0xff]
    %v9251 = vld [vmem:[#allocation15 + $0xb8] sm:$0xff]
    %v9252 = vld [vmem:[#allocation15 + $0xc0] sm:$0xff]
    %v9253 = vld [vmem:[#allocation15 + $0xc8] sm:$0xff]
    %v9254 = vld [vmem:[#allocation15 + $0xd0] sm:$0xff]
    %v9255 = vld [vmem:[#allocation15 + $0xd8] sm:$0xff]
    %v9256 = vld [vmem:[#allocation15 + $0xe0] sm:$0xff]
    %v9257 = vld [vmem:[#allocation15 + $0xe8] sm:$0xff]
    %v9258 = vld [vmem:[#allocation15 + $0xf0] sm:$0xff]
    %v9259 = vld [vmem:[#allocation15 + $0xf8] sm:$0xff]
    %v9260 = vld [vmem:[#allocation15 + $0x100] sm:$0xff]
    %v9261 = vld [vmem:[#allocation15 + $0x108] sm:$0xff]
    %v9262 = vld [vmem:[#allocation15 + $0x110] sm:$0xff]
    %v9263 = vld [vmem:[#allocation15 + $0x118] sm:$0xff]
    %v9264 = vld [vmem:[#allocation15 + $0x120] sm:$0xff]
    %v9265 = vld [vmem:[#allocation15 + $0x128] sm:$0xff]
    %v9266 = vld [vmem:[#allocation15 + $0x130] sm:$0xff]
    %v9267 = vld [vmem:[#allocation15 + $0x138] sm:$0xff]
    %v9268 = vld [vmem:[#allocation15 + $0x140] sm:$0xff]
    %v9269 = vld [vmem:[#allocation15 + $0x148] sm:$0xff]
    %v9270 = vld [vmem:[#allocation15 + $0x150] sm:$0xff]
    %v9271 = vld [vmem:[#allocation15 + $0x158] sm:$0xff]
    %v9272 = vld [vmem:[#allocation15 + $0x160] sm:$0xff]
    %v9273 = vld [vmem:[#allocation15 + $0x168] sm:$0xff]
    %v9274 = vld [vmem:[#allocation15 + $0x170] sm:$0xff]
    %v9275 = vld [vmem:[#allocation15 + $0x178] sm:$0xff]
    %v9276 = vld [vmem:[#allocation15 + $0x180] sm:$0xff]
    %v9277 = vld [vmem:[#allocation15 + $0x188] sm:$0xff]
    %v9278 = vld [vmem:[#allocation15 + $0x190] sm:$0xff]
    %v9279 = vld [vmem:[#allocation15 + $0x198] sm:$0xff]
    %v9280 = vld [vmem:[#allocation15 + $0x1a0] sm:$0xff]
    %v9281 = vld [vmem:[#allocation15 + $0x1a8] sm:$0xff]
    %v9282 = vld [vmem:[#allocation15 + $0x1b0] sm:$0xff]
    %v9283 = vld [vmem:[#allocation15 + $0x1b8] sm:$0xff]
    %v9284 = vld [vmem:[#allocation15 + $0x1c0] sm:$0xff]
    %v9285 = vld [vmem:[#allocation15 + $0x1c8] sm:$0xff]
    %v9286 = vld [vmem:[#allocation15 + $0x1d0] sm:$0xff]
    %v9287 = vld [vmem:[#allocation15 + $0x1d8] sm:$0xff]
    %v9288 = vld [vmem:[#allocation15 + $0x1e0] sm:$0xff]
    %v9289 = vld [vmem:[#allocation15 + $0x1e8] sm:$0xff]
    %v9290 = vld [vmem:[#allocation15 + $0x1f0] sm:$0xff]
    %v9291 = vld [vmem:[#allocation15 + $0x1f8] sm:$0xff]
    %v9292 = vld [vmem:[#allocation15 + $0x200] sm:$0xff]
    %v9293 = vld [vmem:[#allocation15 + $0x208] sm:$0xff]
    %v9294 = vld [vmem:[#allocation15 + $0x210] sm:$0xff]
    %v9295 = vld [vmem:[#allocation15 + $0x218] sm:$0xff]
    %v9296 = vld [vmem:[#allocation15 + $0x220] sm:$0xff]
    %v9297 = vld [vmem:[#allocation15 + $0x228] sm:$0xff]
    %v9298 = vld [vmem:[#allocation15 + $0x230] sm:$0xff]
    %v9299 = vld [vmem:[#allocation15 + $0x238] sm:$0xff]
    %v9300 = vld [vmem:[#allocation15 + $0x240] sm:$0xff]
    %v9301 = vld [vmem:[#allocation15 + $0x248] sm:$0xff]
    %v9302 = vld [vmem:[#allocation15 + $0x250] sm:$0xff]
    %v9303 = vld [vmem:[#allocation15 + $0x258] sm:$0xff]
    %v9304 = vld [vmem:[#allocation15 + $0x260] sm:$0xff]
    %v9305 = vld [vmem:[#allocation15 + $0x268] sm:$0xff]
    %v9306 = vld [vmem:[#allocation15 + $0x270] sm:$0xff]
    %v9307 = vld [vmem:[#allocation15 + $0x278] sm:$0xff]
    %v9308 = vld [vmem:[#allocation15 + $0x280] sm:$0xff]
    %v9309 = vld [vmem:[#allocation15 + $0x288] sm:$0xff]
    %v9310 = vld [vmem:[#allocation15 + $0x290] sm:$0xff]
    %v9311 = vld [vmem:[#allocation15 + $0x298] sm:$0xff]
    %v9312 = vld [vmem:[#allocation15 + $0x2a0] sm:$0xff]
    %v9313 = vld [vmem:[#allocation15 + $0x2a8] sm:$0xff]
    %v9314 = vld [vmem:[#allocation15 + $0x2b0] sm:$0xff]
    %v9315 = vld [vmem:[#allocation15 + $0x2b8] sm:$0xff]
    %v9316 = vld [vmem:[#allocation15 + $0x2c0] sm:$0xff]
    %v9317 = vld [vmem:[#allocation15 + $0x2c8] sm:$0xff]
    %v9318 = vld [vmem:[#allocation15 + $0x2d0] sm:$0xff]
    %v9319 = vld [vmem:[#allocation15 + $0x2d8] sm:$0xff]
    %v9320 = vld [vmem:[#allocation15 + $0x2e0] sm:$0xff]
    %v9321 = vld [vmem:[#allocation15 + $0x2e8] sm:$0xff]
    %v9322 = vld [vmem:[#allocation15 + $0x2f0] sm:$0xff]
    %v9323 = vld [vmem:[#allocation15 + $0x2f8] sm:$0xff]
    %v9324 = vld [vmem:[#allocation15 + $0x300] sm:$0xff]
    %v9325 = vld [vmem:[#allocation15 + $0x308] sm:$0xff]
    %v9326 = vld [vmem:[#allocation15 + $0x310] sm:$0xff]
    %v9327 = vld [vmem:[#allocation15 + $0x318] sm:$0xff]
    %v9328 = vld [vmem:[#allocation15 + $0x320] sm:$0xff]
    %v9329 = vld [vmem:[#allocation15 + $0x328] sm:$0xff]
    %v9330 = vld [vmem:[#allocation15 + $0x330] sm:$0xff]
    %v9331 = vld [vmem:[#allocation15 + $0x338] sm:$0xff]
    %v9332 = vld [vmem:[#allocation15 + $0x340] sm:$0xff]
    %v9333 = vld [vmem:[#allocation15 + $0x348] sm:$0xff]
    %v9334 = vld [vmem:[#allocation15 + $0x350] sm:$0xff]
    %v9335 = vld [vmem:[#allocation15 + $0x358] sm:$0xff]
    %v9336 = vld [vmem:[#allocation15 + $0x360] sm:$0xff]
    %v9337 = vld [vmem:[#allocation15 + $0x368] sm:$0xff]
    %v9338 = vld [vmem:[#allocation15 + $0x370] sm:$0xff]
    %v9339 = vld [vmem:[#allocation15 + $0x378] sm:$0xff]
    %v9340 = vld [vmem:[#allocation15 + $0x380] sm:$0xff]
    %v9341 = vld [vmem:[#allocation15 + $0x388] sm:$0xff]
    %v9342 = vld [vmem:[#allocation15 + $0x390] sm:$0xff]
    %v9343 = vld [vmem:[#allocation15 + $0x398] sm:$0xff]
    %v9344 = vld [vmem:[#allocation15 + $0x3a0] sm:$0xff]
    %v9345 = vld [vmem:[#allocation15 + $0x3a8] sm:$0xff]
    %v9346 = vld [vmem:[#allocation15 + $0x3b0] sm:$0xff]
    %v9347 = vld [vmem:[#allocation15 + $0x3b8] sm:$0xff]
    %v9348 = vld [vmem:[#allocation15 + $0x3c0] sm:$0xff]
    %v9349 = vld [vmem:[#allocation15 + $0x3c8] sm:$0xff]
    %v9350 = vld [vmem:[#allocation15 + $0x3d0] sm:$0xff]
    %v9351 = vld [vmem:[#allocation15 + $0x3d8] sm:$0xff]
    %v9352 = vld [vmem:[#allocation15 + $0x3e0] sm:$0xff]
    %v9353 = vld [vmem:[#allocation15 + $0x3e8] sm:$0xff]
    %v9354 = vld [vmem:[#allocation15 + $0x3f0] sm:$0xff]
    %v9355 = vld [vmem:[#allocation15 + $0x3f8] sm:$0xff]
    %v9484 = vunpack.c.l.b16 %v9228
    %v9485 = vunpack.c.h.b16 %v9228
    %v9486 = vunpack.c.l.b16 %v9229
    %v9487 = vunpack.c.h.b16 %v9229
    %v9488 = vunpack.c.l.b16 %v9230
    %v9489 = vunpack.c.h.b16 %v9230
    %v9490 = vunpack.c.l.b16 %v9231
    %v9491 = vunpack.c.h.b16 %v9231
    %v9492 = vunpack.c.l.b16 %v9232
    %v9493 = vunpack.c.h.b16 %v9232
    %v9494 = vunpack.c.l.b16 %v9233
    %v9495 = vunpack.c.h.b16 %v9233
    %v9496 = vunpack.c.l.b16 %v9234
    %v9497 = vunpack.c.h.b16 %v9234
    %v9498 = vunpack.c.l.b16 %v9235
    %v9499 = vunpack.c.h.b16 %v9235
    %v9500 = vunpack.c.l.b16 %v9236
    %v9501 = vunpack.c.h.b16 %v9236
    %v9502 = vunpack.c.l.b16 %v9237
    %v9503 = vunpack.c.h.b16 %v9237
    %v9504 = vunpack.c.l.b16 %v9238
    %v9505 = vunpack.c.h.b16 %v9238
    %v9506 = vunpack.c.l.b16 %v9239
    %v9507 = vunpack.c.h.b16 %v9239
    %v9508 = vunpack.c.l.b16 %v9240
    %v9509 = vunpack.c.h.b16 %v9240
    %v9510 = vunpack.c.l.b16 %v9241
    %v9511 = vunpack.c.h.b16 %v9241
    %v9512 = vunpack.c.l.b16 %v9242
    %v9513 = vunpack.c.h.b16 %v9242
    %v9514 = vunpack.c.l.b16 %v9243
    %v9515 = vunpack.c.h.b16 %v9243
    %v9516 = vunpack.c.l.b16 %v9244
    %v9517 = vunpack.c.h.b16 %v9244
    %v9518 = vunpack.c.l.b16 %v9245
    %v9519 = vunpack.c.h.b16 %v9245
    %v9520 = vunpack.c.l.b16 %v9246
    %v9521 = vunpack.c.h.b16 %v9246
    %v9522 = vunpack.c.l.b16 %v9247
    %v9523 = vunpack.c.h.b16 %v9247
    %v9524 = vunpack.c.l.b16 %v9248
    %v9525 = vunpack.c.h.b16 %v9248
    %v9526 = vunpack.c.l.b16 %v9249
    %v9527 = vunpack.c.h.b16 %v9249
    %v9528 = vunpack.c.l.b16 %v9250
    %v9529 = vunpack.c.h.b16 %v9250
    %v9530 = vunpack.c.l.b16 %v9251
    %v9531 = vunpack.c.h.b16 %v9251
    %v9532 = vunpack.c.l.b16 %v9252
    %v9533 = vunpack.c.h.b16 %v9252
    %v9534 = vunpack.c.l.b16 %v9253
    %v9535 = vunpack.c.h.b16 %v9253
    %v9536 = vunpack.c.l.b16 %v9254
    %v9537 = vunpack.c.h.b16 %v9254
    %v9538 = vunpack.c.l.b16 %v9255
    %v9539 = vunpack.c.h.b16 %v9255
    %v9540 = vunpack.c.l.b16 %v9256
    %v9541 = vunpack.c.h.b16 %v9256
    %v9542 = vunpack.c.l.b16 %v9257
    %v9543 = vunpack.c.h.b16 %v9257
    %v9544 = vunpack.c.l.b16 %v9258
    %v9545 = vunpack.c.h.b16 %v9258
    %v9546 = vunpack.c.l.b16 %v9259
    %v9547 = vunpack.c.h.b16 %v9259
    %v9548 = vunpack.c.l.b16 %v9260
    %v9549 = vunpack.c.h.b16 %v9260
    %v9550 = vunpack.c.l.b16 %v9261
    %v9551 = vunpack.c.h.b16 %v9261
    %v9552 = vunpack.c.l.b16 %v9262
    %v9553 = vunpack.c.h.b16 %v9262
    %v9554 = vunpack.c.l.b16 %v9263
    %v9555 = vunpack.c.h.b16 %v9263
    %v9556 = vunpack.c.l.b16 %v9264
    %v9557 = vunpack.c.h.b16 %v9264
    %v9558 = vunpack.c.l.b16 %v9265
    %v9559 = vunpack.c.h.b16 %v9265
    %v9560 = vunpack.c.l.b16 %v9266
    %v9561 = vunpack.c.h.b16 %v9266
    %v9562 = vunpack.c.l.b16 %v9267
    %v9563 = vunpack.c.h.b16 %v9267
    %v9564 = vunpack.c.l.b16 %v9268
    %v9565 = vunpack.c.h.b16 %v9268
    %v9566 = vunpack.c.l.b16 %v9269
    %v9567 = vunpack.c.h.b16 %v9269
    %v9568 = vunpack.c.l.b16 %v9270
    %v9569 = vunpack.c.h.b16 %v9270
    %v9570 = vunpack.c.l.b16 %v9271
    %v9571 = vunpack.c.h.b16 %v9271
    %v9572 = vunpack.c.l.b16 %v9272
    %v9573 = vunpack.c.h.b16 %v9272
    %v9574 = vunpack.c.l.b16 %v9273
    %v9575 = vunpack.c.h.b16 %v9273
    %v9576 = vunpack.c.l.b16 %v9274
    %v9577 = vunpack.c.h.b16 %v9274
    %v9578 = vunpack.c.l.b16 %v9275
    %v9579 = vunpack.c.h.b16 %v9275
    %v9580 = vunpack.c.l.b16 %v9276
    %v9581 = vunpack.c.h.b16 %v9276
    %v9582 = vunpack.c.l.b16 %v9277
    %v9583 = vunpack.c.h.b16 %v9277
    %v9584 = vunpack.c.l.b16 %v9278
    %v9585 = vunpack.c.h.b16 %v9278
    %v9586 = vunpack.c.l.b16 %v9279
    %v9587 = vunpack.c.h.b16 %v9279
    %v9588 = vunpack.c.l.b16 %v9280
    %v9589 = vunpack.c.h.b16 %v9280
    %v9590 = vunpack.c.l.b16 %v9281
    %v9591 = vunpack.c.h.b16 %v9281
    %v9592 = vunpack.c.l.b16 %v9282
    %v9593 = vunpack.c.h.b16 %v9282
    %v9594 = vunpack.c.l.b16 %v9283
    %v9595 = vunpack.c.h.b16 %v9283
    %v9596 = vunpack.c.l.b16 %v9284
    %v9597 = vunpack.c.h.b16 %v9284
    %v9598 = vunpack.c.l.b16 %v9285
    %v9599 = vunpack.c.h.b16 %v9285
    %v9600 = vunpack.c.l.b16 %v9286
    %v9601 = vunpack.c.h.b16 %v9286
    %v9602 = vunpack.c.l.b16 %v9287
    %v9603 = vunpack.c.h.b16 %v9287
    %v9604 = vunpack.c.l.b16 %v9288
    %v9605 = vunpack.c.h.b16 %v9288
    %v9606 = vunpack.c.l.b16 %v9289
    %v9607 = vunpack.c.h.b16 %v9289
    %v9608 = vunpack.c.l.b16 %v9290
    %v9609 = vunpack.c.h.b16 %v9290
    %v9610 = vunpack.c.l.b16 %v9291
    %v9611 = vunpack.c.h.b16 %v9291
    %v9612 = vunpack.c.l.b16 %v9292
    %v9613 = vunpack.c.h.b16 %v9292
    %v9614 = vunpack.c.l.b16 %v9293
    %v9615 = vunpack.c.h.b16 %v9293
    %v9616 = vunpack.c.l.b16 %v9294
    %v9617 = vunpack.c.h.b16 %v9294
    %v9618 = vunpack.c.l.b16 %v9295
    %v9619 = vunpack.c.h.b16 %v9295
    %v9620 = vunpack.c.l.b16 %v9296
    %v9621 = vunpack.c.h.b16 %v9296
    %v9622 = vunpack.c.l.b16 %v9297
    %v9623 = vunpack.c.h.b16 %v9297
    %v9624 = vunpack.c.l.b16 %v9298
    %v9625 = vunpack.c.h.b16 %v9298
    %v9626 = vunpack.c.l.b16 %v9299
    %v9627 = vunpack.c.h.b16 %v9299
    %v9628 = vunpack.c.l.b16 %v9300
    %v9629 = vunpack.c.h.b16 %v9300
    %v9630 = vunpack.c.l.b16 %v9301
    %v9631 = vunpack.c.h.b16 %v9301
    %v9632 = vunpack.c.l.b16 %v9302
    %v9633 = vunpack.c.h.b16 %v9302
    %v9634 = vunpack.c.l.b16 %v9303
    %v9635 = vunpack.c.h.b16 %v9303
    %v9636 = vunpack.c.l.b16 %v9304
    %v9637 = vunpack.c.h.b16 %v9304
    %v9638 = vunpack.c.l.b16 %v9305
    %v9639 = vunpack.c.h.b16 %v9305
    %v9640 = vunpack.c.l.b16 %v9306
    %v9641 = vunpack.c.h.b16 %v9306
    %v9642 = vunpack.c.l.b16 %v9307
    %v9643 = vunpack.c.h.b16 %v9307
    %v9644 = vunpack.c.l.b16 %v9308
    %v9645 = vunpack.c.h.b16 %v9308
    %v9646 = vunpack.c.l.b16 %v9309
    %v9647 = vunpack.c.h.b16 %v9309
    %v9648 = vunpack.c.l.b16 %v9310
    %v9649 = vunpack.c.h.b16 %v9310
    %v9650 = vunpack.c.l.b16 %v9311
    %v9651 = vunpack.c.h.b16 %v9311
    %v9652 = vunpack.c.l.b16 %v9312
    %v9653 = vunpack.c.h.b16 %v9312
    %v9654 = vunpack.c.l.b16 %v9313
    %v9655 = vunpack.c.h.b16 %v9313
    %v9656 = vunpack.c.l.b16 %v9314
    %v9657 = vunpack.c.h.b16 %v9314
    %v9658 = vunpack.c.l.b16 %v9315
    %v9659 = vunpack.c.h.b16 %v9315
    %v9660 = vunpack.c.l.b16 %v9316
    %v9661 = vunpack.c.h.b16 %v9316
    %v9662 = vunpack.c.l.b16 %v9317
    %v9663 = vunpack.c.h.b16 %v9317
    %v9664 = vunpack.c.l.b16 %v9318
    %v9665 = vunpack.c.h.b16 %v9318
    %v9666 = vunpack.c.l.b16 %v9319
    %v9667 = vunpack.c.h.b16 %v9319
    %v9668 = vunpack.c.l.b16 %v9320
    %v9669 = vunpack.c.h.b16 %v9320
    %v9670 = vunpack.c.l.b16 %v9321
    %v9671 = vunpack.c.h.b16 %v9321
    %v9672 = vunpack.c.l.b16 %v9322
    %v9673 = vunpack.c.h.b16 %v9322
    %v9674 = vunpack.c.l.b16 %v9323
    %v9675 = vunpack.c.h.b16 %v9323
    %v9676 = vunpack.c.l.b16 %v9324
    %v9677 = vunpack.c.h.b16 %v9324
    %v9678 = vunpack.c.l.b16 %v9325
    %v9679 = vunpack.c.h.b16 %v9325
    %v9680 = vunpack.c.l.b16 %v9326
    %v9681 = vunpack.c.h.b16 %v9326
    %v9682 = vunpack.c.l.b16 %v9327
    %v9683 = vunpack.c.h.b16 %v9327
    %v9684 = vunpack.c.l.b16 %v9328
    %v9685 = vunpack.c.h.b16 %v9328
    %v9686 = vunpack.c.l.b16 %v9329
    %v9687 = vunpack.c.h.b16 %v9329
    %v9688 = vunpack.c.l.b16 %v9330
    %v9689 = vunpack.c.h.b16 %v9330
    %v9690 = vunpack.c.l.b16 %v9331
    %v9691 = vunpack.c.h.b16 %v9331
    %v9692 = vunpack.c.l.b16 %v9332
    %v9693 = vunpack.c.h.b16 %v9332
    %v9694 = vunpack.c.l.b16 %v9333
    %v9695 = vunpack.c.h.b16 %v9333
    %v9696 = vunpack.c.l.b16 %v9334
    %v9697 = vunpack.c.h.b16 %v9334
    %v9698 = vunpack.c.l.b16 %v9335
    %v9699 = vunpack.c.h.b16 %v9335
    %v9700 = vunpack.c.l.b16 %v9336
    %v9701 = vunpack.c.h.b16 %v9336
    %v9702 = vunpack.c.l.b16 %v9337
    %v9703 = vunpack.c.h.b16 %v9337
    %v9704 = vunpack.c.l.b16 %v9338
    %v9705 = vunpack.c.h.b16 %v9338
    %v9706 = vunpack.c.l.b16 %v9339
    %v9707 = vunpack.c.h.b16 %v9339
    %v9708 = vunpack.c.l.b16 %v9340
    %v9709 = vunpack.c.h.b16 %v9340
    %v9710 = vunpack.c.l.b16 %v9341
    %v9711 = vunpack.c.h.b16 %v9341
    %v9712 = vunpack.c.l.b16 %v9342
    %v9713 = vunpack.c.h.b16 %v9342
    %v9714 = vunpack.c.l.b16 %v9343
    %v9715 = vunpack.c.h.b16 %v9343
    %v9716 = vunpack.c.l.b16 %v9344
    %v9717 = vunpack.c.h.b16 %v9344
    %v9718 = vunpack.c.l.b16 %v9345
    %v9719 = vunpack.c.h.b16 %v9345
    %v9720 = vunpack.c.l.b16 %v9346
    %v9721 = vunpack.c.h.b16 %v9346
    %v9722 = vunpack.c.l.b16 %v9347
    %v9723 = vunpack.c.h.b16 %v9347
    %v9724 = vunpack.c.l.b16 %v9348
    %v9725 = vunpack.c.h.b16 %v9348
    %v9726 = vunpack.c.l.b16 %v9349
    %v9727 = vunpack.c.h.b16 %v9349
    %v9728 = vunpack.c.l.b16 %v9350
    %v9729 = vunpack.c.h.b16 %v9350
    %v9730 = vunpack.c.l.b16 %v9351
    %v9731 = vunpack.c.h.b16 %v9351
    %v9732 = vunpack.c.l.b16 %v9352
    %v9733 = vunpack.c.h.b16 %v9352
    %v9734 = vunpack.c.l.b16 %v9353
    %v9735 = vunpack.c.h.b16 %v9353
    %v9736 = vunpack.c.l.b16 %v9354
    %v9737 = vunpack.c.h.b16 %v9354
    %v9738 = vunpack.c.l.b16 %v9355
    %v9739 = vunpack.c.h.b16 %v9355
    %v9740 = vpack.c.b16 %v9492, %v9484
    %v9741 = vpack.c.b16 %v9493, %v9485
    %v9742 = vpack.c.b16 %v9494, %v9486
    %v9743 = vpack.c.b16 %v9495, %v9487
    %v9744 = vpack.c.b16 %v9496, %v9488
    %v9745 = vpack.c.b16 %v9497, %v9489
    %v9746 = vpack.c.b16 %v9498, %v9490
    %v9747 = vpack.c.b16 %v9499, %v9491
    %v9748 = vpack.c.b16 %v9508, %v9500
    %v9749 = vpack.c.b16 %v9509, %v9501
    %v9750 = vpack.c.b16 %v9510, %v9502
    %v9751 = vpack.c.b16 %v9511, %v9503
    %v9752 = vpack.c.b16 %v9512, %v9504
    %v9753 = vpack.c.b16 %v9513, %v9505
    %v9754 = vpack.c.b16 %v9514, %v9506
    %v9755 = vpack.c.b16 %v9515, %v9507
    %v9756 = vpack.c.b16 %v9524, %v9516
    %v9757 = vpack.c.b16 %v9525, %v9517
    %v9758 = vpack.c.b16 %v9526, %v9518
    %v9759 = vpack.c.b16 %v9527, %v9519
    %v9760 = vpack.c.b16 %v9528, %v9520
    %v9761 = vpack.c.b16 %v9529, %v9521
    %v9762 = vpack.c.b16 %v9530, %v9522
    %v9763 = vpack.c.b16 %v9531, %v9523
    %v9764 = vpack.c.b16 %v9540, %v9532
    %v9765 = vpack.c.b16 %v9541, %v9533
    %v9766 = vpack.c.b16 %v9542, %v9534
    %v9767 = vpack.c.b16 %v9543, %v9535
    %v9768 = vpack.c.b16 %v9544, %v9536
    %v9769 = vpack.c.b16 %v9545, %v9537
    %v9770 = vpack.c.b16 %v9546, %v9538
    %v9771 = vpack.c.b16 %v9547, %v9539
    %v9772 = vpack.c.b16 %v9556, %v9548
    %v9773 = vpack.c.b16 %v9557, %v9549
    %v9774 = vpack.c.b16 %v9558, %v9550
    %v9775 = vpack.c.b16 %v9559, %v9551
    %v9776 = vpack.c.b16 %v9560, %v9552
    %v9777 = vpack.c.b16 %v9561, %v9553
    %v9778 = vpack.c.b16 %v9562, %v9554
    %v9779 = vpack.c.b16 %v9563, %v9555
    %v9780 = vpack.c.b16 %v9572, %v9564
    %v9781 = vpack.c.b16 %v9573, %v9565
    %v9782 = vpack.c.b16 %v9574, %v9566
    %v9783 = vpack.c.b16 %v9575, %v9567
    %v9784 = vpack.c.b16 %v9576, %v9568
    %v9785 = vpack.c.b16 %v9577, %v9569
    %v9786 = vpack.c.b16 %v9578, %v9570
    %v9787 = vpack.c.b16 %v9579, %v9571
    %v9788 = vpack.c.b16 %v9588, %v9580
    %v9789 = vpack.c.b16 %v9589, %v9581
    %v9790 = vpack.c.b16 %v9590, %v9582
    %v9791 = vpack.c.b16 %v9591, %v9583
    %v9792 = vpack.c.b16 %v9592, %v9584
    %v9793 = vpack.c.b16 %v9593, %v9585
    %v9794 = vpack.c.b16 %v9594, %v9586
    %v9795 = vpack.c.b16 %v9595, %v9587
    %v9796 = vpack.c.b16 %v9604, %v9596
    %v9797 = vpack.c.b16 %v9605, %v9597
    %v9798 = vpack.c.b16 %v9606, %v9598
    %v9799 = vpack.c.b16 %v9607, %v9599
    %v9800 = vpack.c.b16 %v9608, %v9600
    %v9801 = vpack.c.b16 %v9609, %v9601
    %v9802 = vpack.c.b16 %v9610, %v9602
    %v9803 = vpack.c.b16 %v9611, %v9603
    %v9804 = vpack.c.b16 %v9620, %v9612
    %v9805 = vpack.c.b16 %v9621, %v9613
    %v9806 = vpack.c.b16 %v9622, %v9614
    %v9807 = vpack.c.b16 %v9623, %v9615
    %v9808 = vpack.c.b16 %v9624, %v9616
    %v9809 = vpack.c.b16 %v9625, %v9617
    %v9810 = vpack.c.b16 %v9626, %v9618
    %v9811 = vpack.c.b16 %v9627, %v9619
    %v9812 = vpack.c.b16 %v9636, %v9628
    %v9813 = vpack.c.b16 %v9637, %v9629
    %v9814 = vpack.c.b16 %v9638, %v9630
    %v9815 = vpack.c.b16 %v9639, %v9631
    %v9816 = vpack.c.b16 %v9640, %v9632
    %v9817 = vpack.c.b16 %v9641, %v9633
    %v9818 = vpack.c.b16 %v9642, %v9634
    %v9819 = vpack.c.b16 %v9643, %v9635
    %v9820 = vpack.c.b16 %v9652, %v9644
    %v9821 = vpack.c.b16 %v9653, %v9645
    %v9822 = vpack.c.b16 %v9654, %v9646
    %v9823 = vpack.c.b16 %v9655, %v9647
    %v9824 = vpack.c.b16 %v9656, %v9648
    %v9825 = vpack.c.b16 %v9657, %v9649
    %v9826 = vpack.c.b16 %v9658, %v9650
    %v9827 = vpack.c.b16 %v9659, %v9651
    %v9828 = vpack.c.b16 %v9668, %v9660
    %v9829 = vpack.c.b16 %v9669, %v9661
    %v9830 = vpack.c.b16 %v9670, %v9662
    %v9831 = vpack.c.b16 %v9671, %v9663
    %v9832 = vpack.c.b16 %v9672, %v9664
    %v9833 = vpack.c.b16 %v9673, %v9665
    %v9834 = vpack.c.b16 %v9674, %v9666
    %v9835 = vpack.c.b16 %v9675, %v9667
    %v9836 = vpack.c.b16 %v9684, %v9676
    %v9837 = vpack.c.b16 %v9685, %v9677
    %v9838 = vpack.c.b16 %v9686, %v9678
    %v9839 = vpack.c.b16 %v9687, %v9679
    %v9840 = vpack.c.b16 %v9688, %v9680
    %v9841 = vpack.c.b16 %v9689, %v9681
    %v9842 = vpack.c.b16 %v9690, %v9682
    %v9843 = vpack.c.b16 %v9691, %v9683
    %v9844 = vpack.c.b16 %v9700, %v9692
    %v9845 = vpack.c.b16 %v9701, %v9693
    %v9846 = vpack.c.b16 %v9702, %v9694
    %v9847 = vpack.c.b16 %v9703, %v9695
    %v9848 = vpack.c.b16 %v9704, %v9696
    %v9849 = vpack.c.b16 %v9705, %v9697
    %v9850 = vpack.c.b16 %v9706, %v9698
    %v9851 = vpack.c.b16 %v9707, %v9699
    %v9852 = vpack.c.b16 %v9716, %v9708
    %v9853 = vpack.c.b16 %v9717, %v9709
    %v9854 = vpack.c.b16 %v9718, %v9710
    %v9855 = vpack.c.b16 %v9719, %v9711
    %v9856 = vpack.c.b16 %v9720, %v9712
    %v9857 = vpack.c.b16 %v9721, %v9713
    %v9858 = vpack.c.b16 %v9722, %v9714
    %v9859 = vpack.c.b16 %v9723, %v9715
    %v9860 = vpack.c.b16 %v9732, %v9724
    %v9861 = vpack.c.b16 %v9733, %v9725
    %v9862 = vpack.c.b16 %v9734, %v9726
    %v9863 = vpack.c.b16 %v9735, %v9727
    %v9864 = vpack.c.b16 %v9736, %v9728
    %v9865 = vpack.c.b16 %v9737, %v9729
    %v9866 = vpack.c.b16 %v9738, %v9730
    %v9867 = vpack.c.b16 %v9739, %v9731
    %9996 = vmatpush.bf16.msra.mxu0 %v9796
    %9997 = vmatpush.bf16.msra.mxu0 %v9788
    %9998 = vmatpush.bf16.msra.mxu0 %v9780
    %9999 = vmatpush.bf16.msra.mxu0 %v9772
    %10000 = vmatpush.bf16.msra.mxu0 %v9764
    %10001 = vmatpush.bf16.msra.mxu0 %v9756
    %10002 = vmatpush.bf16.msra.mxu0 %v9748
    %10003 = vmatpush.bf16.msra.mxu0 %v9740
    %10004 = vmatmul.bf16.gmra.mxu0 %v9226
    %v10005 = vpop.f32.mrf.mxu0
    %v10006 = vadd.f32 0.0, %v10005
    %v10007 = vpop.f32.mrf.mxu0
    %10008 = vdwg.mxu0
    %10009 = vmatpush.bf16.msra.mxu0 %v9860
    %10010 = vmatpush.bf16.msra.mxu0 %v9852
    %10011 = vmatpush.bf16.msra.mxu0 %v9844
    %10012 = vmatpush.bf16.msra.mxu0 %v9836
    %10013 = vmatpush.bf16.msra.mxu0 %v9828
    %10014 = vmatpush.bf16.msra.mxu0 %v9820
    %10015 = vmatpush.bf16.msra.mxu0 %v9812
    %10016 = vmatpush.bf16.msra.mxu0 %v9804
    %10017 = vmatmul.bf16.gmra.mxu0 %v9227
    %v10018 = vpop.f32.mrf.mxu0
    %v10019 = vadd.f32 %v10006, %v10018
    %v10020 = vpop.f32.mrf.mxu0
    %10021 = vdwg.mxu0
    %10022 = vmatpush.bf16.msra.mxu0 %v9797
    %10023 = vmatpush.bf16.msra.mxu0 %v9789
    %10024 = vmatpush.bf16.msra.mxu0 %v9781
    %10025 = vmatpush.bf16.msra.mxu0 %v9773
    %10026 = vmatpush.bf16.msra.mxu0 %v9765
    %10027 = vmatpush.bf16.msra.mxu0 %v9757
    %10028 = vmatpush.bf16.msra.mxu0 %v9749
    %10029 = vmatpush.bf16.msra.mxu0 %v9741
    %10030 = vmatmul.bf16.gmra.mxu0 %v9226
    %v10031 = vpop.f32.mrf.mxu0
    %v10032 = vadd.f32 0.0, %v10031
    %v10033 = vpop.f32.mrf.mxu0
    %10034 = vdwg.mxu0
    %10035 = vmatpush.bf16.msra.mxu0 %v9861
    %10036 = vmatpush.bf16.msra.mxu0 %v9853
    %10037 = vmatpush.bf16.msra.mxu0 %v9845
    %10038 = vmatpush.bf16.msra.mxu0 %v9837
    %10039 = vmatpush.bf16.msra.mxu0 %v9829
    %10040 = vmatpush.bf16.msra.mxu0 %v9821
    %10041 = vmatpush.bf16.msra.mxu0 %v9813
    %10042 = vmatpush.bf16.msra.mxu0 %v9805
    %10043 = vmatmul.bf16.gmra.mxu0 %v9227
    %v10044 = vpop.f32.mrf.mxu0
    %v10045 = vadd.f32 %v10032, %v10044
    %v10046 = vpop.f32.mrf.mxu0
    %10047 = vdwg.mxu0
    %10048 = vmatpush.bf16.msra.mxu0 %v9798
    %10049 = vmatpush.bf16.msra.mxu0 %v9790
    %10050 = vmatpush.bf16.msra.mxu0 %v9782
    %10051 = vmatpush.bf16.msra.mxu0 %v9774
    %10052 = vmatpush.bf16.msra.mxu0 %v9766
    %10053 = vmatpush.bf16.msra.mxu0 %v9758
    %10054 = vmatpush.bf16.msra.mxu0 %v9750
    %10055 = vmatpush.bf16.msra.mxu0 %v9742
    %10056 = vmatmul.bf16.gmra.mxu0 %v9226
    %v10057 = vpop.f32.mrf.mxu0
    %v10058 = vadd.f32 0.0, %v10057
    %v10059 = vpop.f32.mrf.mxu0
    %10060 = vdwg.mxu0
    %10061 = vmatpush.bf16.msra.mxu0 %v9862
    %10062 = vmatpush.bf16.msra.mxu0 %v9854
    %10063 = vmatpush.bf16.msra.mxu0 %v9846
    %10064 = vmatpush.bf16.msra.mxu0 %v9838
    %10065 = vmatpush.bf16.msra.mxu0 %v9830
    %10066 = vmatpush.bf16.msra.mxu0 %v9822
    %10067 = vmatpush.bf16.msra.mxu0 %v9814
    %10068 = vmatpush.bf16.msra.mxu0 %v9806
    %10069 = vmatmul.bf16.gmra.mxu0 %v9227
    %v10070 = vpop.f32.mrf.mxu0
    %v10071 = vadd.f32 %v10058, %v10070
    %v10072 = vpop.f32.mrf.mxu0
    %10073 = vdwg.mxu0
    %10074 = vmatpush.bf16.msra.mxu0 %v9799
    %10075 = vmatpush.bf16.msra.mxu0 %v9791
    %10076 = vmatpush.bf16.msra.mxu0 %v9783
    %10077 = vmatpush.bf16.msra.mxu0 %v9775
    %10078 = vmatpush.bf16.msra.mxu0 %v9767
    %10079 = vmatpush.bf16.msra.mxu0 %v9759
    %10080 = vmatpush.bf16.msra.mxu0 %v9751
    %10081 = vmatpush.bf16.msra.mxu0 %v9743
    %10082 = vmatmul.bf16.gmra.mxu0 %v9226
    %v10083 = vpop.f32.mrf.mxu0
    %v10084 = vadd.f32 0.0, %v10083
    %v10085 = vpop.f32.mrf.mxu0
    %10086 = vdwg.mxu0
    %10087 = vmatpush.bf16.msra.mxu0 %v9863
    %10088 = vmatpush.bf16.msra.mxu0 %v9855
    %10089 = vmatpush.bf16.msra.mxu0 %v9847
    %10090 = vmatpush.bf16.msra.mxu0 %v9839
    %10091 = vmatpush.bf16.msra.mxu0 %v9831
    %10092 = vmatpush.bf16.msra.mxu0 %v9823
    %10093 = vmatpush.bf16.msra.mxu0 %v9815
    %10094 = vmatpush.bf16.msra.mxu0 %v9807
    %10095 = vmatmul.bf16.gmra.mxu0 %v9227
    %v10096 = vpop.f32.mrf.mxu0
    %v10097 = vadd.f32 %v10084, %v10096
    %v10098 = vpop.f32.mrf.mxu0
    %10099 = vdwg.mxu0
    %10100 = vmatpush.bf16.msra.mxu0 %v9800
    %10101 = vmatpush.bf16.msra.mxu0 %v9792
    %10102 = vmatpush.bf16.msra.mxu0 %v9784
    %10103 = vmatpush.bf16.msra.mxu0 %v9776
    %10104 = vmatpush.bf16.msra.mxu0 %v9768
    %10105 = vmatpush.bf16.msra.mxu0 %v9760
    %10106 = vmatpush.bf16.msra.mxu0 %v9752
    %10107 = vmatpush.bf16.msra.mxu0 %v9744
    %10108 = vmatmul.bf16.gmra.mxu0 %v9226
    %v10109 = vpop.f32.mrf.mxu0
    %v10110 = vadd.f32 0.0, %v10109
    %v10111 = vpop.f32.mrf.mxu0
    %10112 = vdwg.mxu0
    %10113 = vmatpush.bf16.msra.mxu0 %v9864
    %10114 = vmatpush.bf16.msra.mxu0 %v9856
    %10115 = vmatpush.bf16.msra.mxu0 %v9848
    %10116 = vmatpush.bf16.msra.mxu0 %v9840
    %10117 = vmatpush.bf16.msra.mxu0 %v9832
    %10118 = vmatpush.bf16.msra.mxu0 %v9824
    %10119 = vmatpush.bf16.msra.mxu0 %v9816
    %10120 = vmatpush.bf16.msra.mxu0 %v9808
    %10121 = vmatmul.bf16.gmra.mxu0 %v9227
    %v10122 = vpop.f32.mrf.mxu0
    %v10123 = vadd.f32 %v10110, %v10122
    %v10124 = vpop.f32.mrf.mxu0
    %10125 = vdwg.mxu0
    %10126 = vmatpush.bf16.msra.mxu0 %v9801
    %10127 = vmatpush.bf16.msra.mxu0 %v9793
    %10128 = vmatpush.bf16.msra.mxu0 %v9785
    %10129 = vmatpush.bf16.msra.mxu0 %v9777
    %10130 = vmatpush.bf16.msra.mxu0 %v9769
    %10131 = vmatpush.bf16.msra.mxu0 %v9761
    %10132 = vmatpush.bf16.msra.mxu0 %v9753
    %10133 = vmatpush.bf16.msra.mxu0 %v9745
    %10134 = vmatmul.bf16.gmra.mxu0 %v9226
    %v10135 = vpop.f32.mrf.mxu0
    %v10136 = vadd.f32 0.0, %v10135
    %v10137 = vpop.f32.mrf.mxu0
    %10138 = vdwg.mxu0
    %10139 = vmatpush.bf16.msra.mxu0 %v9865
    %10140 = vmatpush.bf16.msra.mxu0 %v9857
    %10141 = vmatpush.bf16.msra.mxu0 %v9849
    %10142 = vmatpush.bf16.msra.mxu0 %v9841
    %10143 = vmatpush.bf16.msra.mxu0 %v9833
    %10144 = vmatpush.bf16.msra.mxu0 %v9825
    %10145 = vmatpush.bf16.msra.mxu0 %v9817
    %10146 = vmatpush.bf16.msra.mxu0 %v9809
    %10147 = vmatmul.bf16.gmra.mxu0 %v9227
    %v10148 = vpop.f32.mrf.mxu0
    %v10149 = vadd.f32 %v10136, %v10148
    %v10150 = vpop.f32.mrf.mxu0
    %10151 = vdwg.mxu0
    %10152 = vmatpush.bf16.msra.mxu0 %v9802
    %10153 = vmatpush.bf16.msra.mxu0 %v9794
    %10154 = vmatpush.bf16.msra.mxu0 %v9786
    %10155 = vmatpush.bf16.msra.mxu0 %v9778
    %10156 = vmatpush.bf16.msra.mxu0 %v9770
    %10157 = vmatpush.bf16.msra.mxu0 %v9762
    %10158 = vmatpush.bf16.msra.mxu0 %v9754
    %10159 = vmatpush.bf16.msra.mxu0 %v9746
    %10160 = vmatmul.bf16.gmra.mxu0 %v9226
    %v10161 = vpop.f32.mrf.mxu0
    %v10162 = vadd.f32 0.0, %v10161
    %v10163 = vpop.f32.mrf.mxu0
    %10164 = vdwg.mxu0
    %10165 = vmatpush.bf16.msra.mxu0 %v9866
    %10166 = vmatpush.bf16.msra.mxu0 %v9858
    %10167 = vmatpush.bf16.msra.mxu0 %v9850
    %10168 = vmatpush.bf16.msra.mxu0 %v9842
    %10169 = vmatpush.bf16.msra.mxu0 %v9834
    %10170 = vmatpush.bf16.msra.mxu0 %v9826
    %10171 = vmatpush.bf16.msra.mxu0 %v9818
    %10172 = vmatpush.bf16.msra.mxu0 %v9810
    %10173 = vmatmul.bf16.gmra.mxu0 %v9227
    %v10174 = vpop.f32.mrf.mxu0
    %v10175 = vadd.f32 %v10162, %v10174
    %v10176 = vpop.f32.mrf.mxu0
    %10177 = vdwg.mxu0
    %10178 = vmatpush.bf16.msra.mxu0 %v9803
    %10179 = vmatpush.bf16.msra.mxu0 %v9795
    %10180 = vmatpush.bf16.msra.mxu0 %v9787
    %10181 = vmatpush.bf16.msra.mxu0 %v9779
    %10182 = vmatpush.bf16.msra.mxu0 %v9771
    %10183 = vmatpush.bf16.msra.mxu0 %v9763
    %10184 = vmatpush.bf16.msra.mxu0 %v9755
    %10185 = vmatpush.bf16.msra.mxu0 %v9747
    %10186 = vmatmul.bf16.gmra.mxu0 %v9226
    %v10187 = vpop.f32.mrf.mxu0
    %v10188 = vadd.f32 0.0, %v10187
    %v10189 = vpop.f32.mrf.mxu0
    %10190 = vdwg.mxu0
    %10191 = vmatpush.bf16.msra.mxu0 %v9867
    %10192 = vmatpush.bf16.msra.mxu0 %v9859
    %10193 = vmatpush.bf16.msra.mxu0 %v9851
    %10194 = vmatpush.bf16.msra.mxu0 %v9843
    %10195 = vmatpush.bf16.msra.mxu0 %v9835
    %10196 = vmatpush.bf16.msra.mxu0 %v9827
    %10197 = vmatpush.bf16.msra.mxu0 %v9819
    %10198 = vmatpush.bf16.msra.mxu0 %v9811
    %10199 = vmatmul.bf16.gmra.mxu0 %v9227
    %v10200 = vpop.f32.mrf.mxu0
    %v10201 = vadd.f32 %v10188, %v10200
    %v10202 = vpop.f32.mrf.mxu0
    %10203 = vdwg.mxu0
    %v10212 = vrot.slane %v10045, 7
    %v10213 = vrot.slane %v10071, 6
    %v10214 = vrot.slane %v10097, 5
    %v10215 = vrot.slane %v10123, 4
    %v10216 = vrot.slane %v10149, 3
    %v10217 = vrot.slane %v10175, 2
    %v10218 = vrot.slane %v10201, 1
    %v10219 = vsel %vm893, %v10019, %v10212
    %v10220 = vsel %vm895, %v10213, %v10214
    %v10221 = vsel %vm897, %v10219, %v10220
    %v10222 = vsel %vm4795, %v10215, %v10216
    %v10223 = vsel %vm4797, %v10217, %v10218
    %v10224 = vsel %vm4799, %v10222, %v10223
    %v10225 = vsel %vm4801, %v10221, %v10224
    %v10227 = vadd.f32 %v9220, %v10225
    %v10228 = vxor.u32 %v10227, 2147483648
    %v10229 = vmul.f32 %v10228, 1.442695
    %v10230 = vpow.pop %v10229
    %v10231 = vadd.f32 %v10230, 1.0
    %v10232 = vrcp.pop %v10231
    %v10233 = vmul.f32 %v10231, %v10232
    %v10234 = vsub.f32 1.0, %v10233
    %v10235 = vmul.f32 %v10232, %v10234
    %v10236 = vadd.f32 %v10232, %v10235
    %vm10237 = vweird.f32 %v10231
    %vm10238 = vweird.f32 %v10232
    %vm10239 = vmor %vm10237, %vm10238
    %v10240 = vsel %vm10239, %v10232, %v10236
    %v10241 = vand.u32 2147483647, %v10231
    %vm10242 = vcmp.eq.f32.partialorder %v10241, 8.507059e+37
    %v10243 = vand.u32 %v10231, 2147483648
    %v10244 = vor.u32 1.1754944e-38, %v10243
    %v10245 = vsel %vm10242, %v10244, %v10240
    %v10246 = vmul.f32 1.0, %v10245
    %v10248 = vrot.slane %v10227, 2
    %v10250 = vxor.u32 %v10248, 2147483648
    %v10251 = vmul.f32 %v10250, 1.442695
    %v10252 = vpow.pop %v10251
    %v10253 = vadd.f32 %v10252, 1.0
    %v10254 = vrcp.pop %v10253
    %v10255 = vmul.f32 %v10253, %v10254
    %v10256 = vsub.f32 1.0, %v10255
    %v10257 = vmul.f32 %v10254, %v10256
    %v10258 = vadd.f32 %v10254, %v10257
    %vm10259 = vweird.f32 %v10253
    %vm10260 = vweird.f32 %v10254
    %vm10261 = vmor %vm10259, %vm10260
    %v10262 = vsel %vm10261, %v10254, %v10258
    %v10263 = vand.u32 2147483647, %v10253
    %vm10264 = vcmp.eq.f32.partialorder %v10263, 8.507059e+37
    %v10265 = vand.u32 %v10253, 2147483648
    %v10266 = vor.u32 1.1754944e-38, %v10265
    %v10267 = vsel %vm10264, %v10266, %v10262
    %v10268 = vmul.f32 1.0, %v10267
    %v10269 = vrot.slane %v10227, 4
    %v10271 = vtanh.pop %v10269
    %v10272 = vrot.slane %v10227, 6
    %v10274 = vxor.u32 %v10272, 2147483648
    %v10275 = vmul.f32 %v10274, 1.442695
    %v10276 = vpow.pop %v10275
    %v10277 = vadd.f32 %v10276, 1.0
    %v10278 = vrcp.pop %v10277
    %v10279 = vmul.f32 %v10277, %v10278
    %v10280 = vsub.f32 1.0, %v10279
    %v10281 = vmul.f32 %v10278, %v10280
    %v10282 = vadd.f32 %v10278, %v10281
    %vm10283 = vweird.f32 %v10277
    %vm10284 = vweird.f32 %v10278
    %vm10285 = vmor %vm10283, %vm10284
    %v10286 = vsel %vm10285, %v10278, %v10282
    %v10287 = vand.u32 2147483647, %v10277
    %vm10288 = vcmp.eq.f32.partialorder %v10287, 8.507059e+37
    %v10289 = vand.u32 %v10277, 2147483648
    %v10290 = vor.u32 1.1754944e-38, %v10289
    %v10291 = vsel %vm10288, %v10290, %v10286
    %v10292 = vmul.f32 1.0, %v10291
    %v10293 = vmul.f32 %v10268, %v9211
    %v10294 = vmul.f32 %v10246, %v10271
    %v10295 = vadd.f32 %v10293, %v10294
    %v10296 = vtanh.pop %v10295
    %v10297 = vmul.f32 %v10292, %v10296
    %s10298 = scalar_lea.vmem [#allocation5], 5
    %10299 = vst.msk [vmem:[%s10298] ss:$8 sm:$0x3] %vm4878, %v10297
    %10300 = vst.msk [vmem:[%s10298] ss:$8 sm:$0x0] %vm4878, %v10297
    %s10301 = scalar_lea.vmem [#allocation4], 6
    %v10302 = vld [vmem:[%s10301] ss:$8 sm:$0xf]
    %v10303 = vld [vmem:[%s10301] ss:$8 sm:$0xf0]
    %v10304 = vor.u32 %v10302, %v10303
    %v10306 = vperm.slane %v10297, 0
    %v10307 = vperm.slane %v10297, 1
    %v10310 = vpack.c.bf16 %v10306, %v10306
    %v10311 = vpack.c.bf16 %v10307, %v10307
    %v10312 = vld [vmem:[#allocation15] sm:$0xff]
    %v10313 = vld [vmem:[#allocation15 + $0x8] sm:$0xff]
    %v10314 = vld [vmem:[#allocation15 + $0x10] sm:$0xff]
    %v10315 = vld [vmem:[#allocation15 + $0x18] sm:$0xff]
    %v10316 = vld [vmem:[#allocation15 + $0x20] sm:$0xff]
    %v10317 = vld [vmem:[#allocation15 + $0x28] sm:$0xff]
    %v10318 = vld [vmem:[#allocation15 + $0x30] sm:$0xff]
    %v10319 = vld [vmem:[#allocation15 + $0x38] sm:$0xff]
    %v10320 = vld [vmem:[#allocation15 + $0x40] sm:$0xff]
    %v10321 = vld [vmem:[#allocation15 + $0x48] sm:$0xff]
    %v10322 = vld [vmem:[#allocation15 + $0x50] sm:$0xff]
    %v10323 = vld [vmem:[#allocation15 + $0x58] sm:$0xff]
    %v10324 = vld [vmem:[#allocation15 + $0x60] sm:$0xff]
    %v10325 = vld [vmem:[#allocation15 + $0x68] sm:$0xff]
    %v10326 = vld [vmem:[#allocation15 + $0x70] sm:$0xff]
    %v10327 = vld [vmem:[#allocation15 + $0x78] sm:$0xff]
    %v10328 = vld [vmem:[#allocation15 + $0x80] sm:$0xff]
    %v10329 = vld [vmem:[#allocation15 + $0x88] sm:$0xff]
    %v10330 = vld [vmem:[#allocation15 + $0x90] sm:$0xff]
    %v10331 = vld [vmem:[#allocation15 + $0x98] sm:$0xff]
    %v10332 = vld [vmem:[#allocation15 + $0xa0] sm:$0xff]
    %v10333 = vld [vmem:[#allocation15 + $0xa8] sm:$0xff]
    %v10334 = vld [vmem:[#allocation15 + $0xb0] sm:$0xff]
    %v10335 = vld [vmem:[#allocation15 + $0xb8] sm:$0xff]
    %v10336 = vld [vmem:[#allocation15 + $0xc0] sm:$0xff]
    %v10337 = vld [vmem:[#allocation15 + $0xc8] sm:$0xff]
    %v10338 = vld [vmem:[#allocation15 + $0xd0] sm:$0xff]
    %v10339 = vld [vmem:[#allocation15 + $0xd8] sm:$0xff]
    %v10340 = vld [vmem:[#allocation15 + $0xe0] sm:$0xff]
    %v10341 = vld [vmem:[#allocation15 + $0xe8] sm:$0xff]
    %v10342 = vld [vmem:[#allocation15 + $0xf0] sm:$0xff]
    %v10343 = vld [vmem:[#allocation15 + $0xf8] sm:$0xff]
    %v10344 = vld [vmem:[#allocation15 + $0x100] sm:$0xff]
    %v10345 = vld [vmem:[#allocation15 + $0x108] sm:$0xff]
    %v10346 = vld [vmem:[#allocation15 + $0x110] sm:$0xff]
    %v10347 = vld [vmem:[#allocation15 + $0x118] sm:$0xff]
    %v10348 = vld [vmem:[#allocation15 + $0x120] sm:$0xff]
    %v10349 = vld [vmem:[#allocation15 + $0x128] sm:$0xff]
    %v10350 = vld [vmem:[#allocation15 + $0x130] sm:$0xff]
    %v10351 = vld [vmem:[#allocation15 + $0x138] sm:$0xff]
    %v10352 = vld [vmem:[#allocation15 + $0x140] sm:$0xff]
    %v10353 = vld [vmem:[#allocation15 + $0x148] sm:$0xff]
    %v10354 = vld [vmem:[#allocation15 + $0x150] sm:$0xff]
    %v10355 = vld [vmem:[#allocation15 + $0x158] sm:$0xff]
    %v10356 = vld [vmem:[#allocation15 + $0x160] sm:$0xff]
    %v10357 = vld [vmem:[#allocation15 + $0x168] sm:$0xff]
    %v10358 = vld [vmem:[#allocation15 + $0x170] sm:$0xff]
    %v10359 = vld [vmem:[#allocation15 + $0x178] sm:$0xff]
    %v10360 = vld [vmem:[#allocation15 + $0x180] sm:$0xff]
    %v10361 = vld [vmem:[#allocation15 + $0x188] sm:$0xff]
    %v10362 = vld [vmem:[#allocation15 + $0x190] sm:$0xff]
    %v10363 = vld [vmem:[#allocation15 + $0x198] sm:$0xff]
    %v10364 = vld [vmem:[#allocation15 + $0x1a0] sm:$0xff]
    %v10365 = vld [vmem:[#allocation15 + $0x1a8] sm:$0xff]
    %v10366 = vld [vmem:[#allocation15 + $0x1b0] sm:$0xff]
    %v10367 = vld [vmem:[#allocation15 + $0x1b8] sm:$0xff]
    %v10368 = vld [vmem:[#allocation15 + $0x1c0] sm:$0xff]
    %v10369 = vld [vmem:[#allocation15 + $0x1c8] sm:$0xff]
    %v10370 = vld [vmem:[#allocation15 + $0x1d0] sm:$0xff]
    %v10371 = vld [vmem:[#allocation15 + $0x1d8] sm:$0xff]
    %v10372 = vld [vmem:[#allocation15 + $0x1e0] sm:$0xff]
    %v10373 = vld [vmem:[#allocation15 + $0x1e8] sm:$0xff]
    %v10374 = vld [vmem:[#allocation15 + $0x1f0] sm:$0xff]
    %v10375 = vld [vmem:[#allocation15 + $0x1f8] sm:$0xff]
    %v10376 = vld [vmem:[#allocation15 + $0x200] sm:$0xff]
    %v10377 = vld [vmem:[#allocation15 + $0x208] sm:$0xff]
    %v10378 = vld [vmem:[#allocation15 + $0x210] sm:$0xff]
    %v10379 = vld [vmem:[#allocation15 + $0x218] sm:$0xff]
    %v10380 = vld [vmem:[#allocation15 + $0x220] sm:$0xff]
    %v10381 = vld [vmem:[#allocation15 + $0x228] sm:$0xff]
    %v10382 = vld [vmem:[#allocation15 + $0x230] sm:$0xff]
    %v10383 = vld [vmem:[#allocation15 + $0x238] sm:$0xff]
    %v10384 = vld [vmem:[#allocation15 + $0x240] sm:$0xff]
    %v10385 = vld [vmem:[#allocation15 + $0x248] sm:$0xff]
    %v10386 = vld [vmem:[#allocation15 + $0x250] sm:$0xff]
    %v10387 = vld [vmem:[#allocation15 + $0x258] sm:$0xff]
    %v10388 = vld [vmem:[#allocation15 + $0x260] sm:$0xff]
    %v10389 = vld [vmem:[#allocation15 + $0x268] sm:$0xff]
    %v10390 = vld [vmem:[#allocation15 + $0x270] sm:$0xff]
    %v10391 = vld [vmem:[#allocation15 + $0x278] sm:$0xff]
    %v10392 = vld [vmem:[#allocation15 + $0x280] sm:$0xff]
    %v10393 = vld [vmem:[#allocation15 + $0x288] sm:$0xff]
    %v10394 = vld [vmem:[#allocation15 + $0x290] sm:$0xff]
    %v10395 = vld [vmem:[#allocation15 + $0x298] sm:$0xff]
    %v10396 = vld [vmem:[#allocation15 + $0x2a0] sm:$0xff]
    %v10397 = vld [vmem:[#allocation15 + $0x2a8] sm:$0xff]
    %v10398 = vld [vmem:[#allocation15 + $0x2b0] sm:$0xff]
    %v10399 = vld [vmem:[#allocation15 + $0x2b8] sm:$0xff]
    %v10400 = vld [vmem:[#allocation15 + $0x2c0] sm:$0xff]
    %v10401 = vld [vmem:[#allocation15 + $0x2c8] sm:$0xff]
    %v10402 = vld [vmem:[#allocation15 + $0x2d0] sm:$0xff]
    %v10403 = vld [vmem:[#allocation15 + $0x2d8] sm:$0xff]
    %v10404 = vld [vmem:[#allocation15 + $0x2e0] sm:$0xff]
    %v10405 = vld [vmem:[#allocation15 + $0x2e8] sm:$0xff]
    %v10406 = vld [vmem:[#allocation15 + $0x2f0] sm:$0xff]
    %v10407 = vld [vmem:[#allocation15 + $0x2f8] sm:$0xff]
    %v10408 = vld [vmem:[#allocation15 + $0x300] sm:$0xff]
    %v10409 = vld [vmem:[#allocation15 + $0x308] sm:$0xff]
    %v10410 = vld [vmem:[#allocation15 + $0x310] sm:$0xff]
    %v10411 = vld [vmem:[#allocation15 + $0x318] sm:$0xff]
    %v10412 = vld [vmem:[#allocation15 + $0x320] sm:$0xff]
    %v10413 = vld [vmem:[#allocation15 + $0x328] sm:$0xff]
    %v10414 = vld [vmem:[#allocation15 + $0x330] sm:$0xff]
    %v10415 = vld [vmem:[#allocation15 + $0x338] sm:$0xff]
    %v10416 = vld [vmem:[#allocation15 + $0x340] sm:$0xff]
    %v10417 = vld [vmem:[#allocation15 + $0x348] sm:$0xff]
    %v10418 = vld [vmem:[#allocation15 + $0x350] sm:$0xff]
    %v10419 = vld [vmem:[#allocation15 + $0x358] sm:$0xff]
    %v10420 = vld [vmem:[#allocation15 + $0x360] sm:$0xff]
    %v10421 = vld [vmem:[#allocation15 + $0x368] sm:$0xff]
    %v10422 = vld [vmem:[#allocation15 + $0x370] sm:$0xff]
    %v10423 = vld [vmem:[#allocation15 + $0x378] sm:$0xff]
    %v10424 = vld [vmem:[#allocation15 + $0x380] sm:$0xff]
    %v10425 = vld [vmem:[#allocation15 + $0x388] sm:$0xff]
    %v10426 = vld [vmem:[#allocation15 + $0x390] sm:$0xff]
    %v10427 = vld [vmem:[#allocation15 + $0x398] sm:$0xff]
    %v10428 = vld [vmem:[#allocation15 + $0x3a0] sm:$0xff]
    %v10429 = vld [vmem:[#allocation15 + $0x3a8] sm:$0xff]
    %v10430 = vld [vmem:[#allocation15 + $0x3b0] sm:$0xff]
    %v10431 = vld [vmem:[#allocation15 + $0x3b8] sm:$0xff]
    %v10432 = vld [vmem:[#allocation15 + $0x3c0] sm:$0xff]
    %v10433 = vld [vmem:[#allocation15 + $0x3c8] sm:$0xff]
    %v10434 = vld [vmem:[#allocation15 + $0x3d0] sm:$0xff]
    %v10435 = vld [vmem:[#allocation15 + $0x3d8] sm:$0xff]
    %v10436 = vld [vmem:[#allocation15 + $0x3e0] sm:$0xff]
    %v10437 = vld [vmem:[#allocation15 + $0x3e8] sm:$0xff]
    %v10438 = vld [vmem:[#allocation15 + $0x3f0] sm:$0xff]
    %v10439 = vld [vmem:[#allocation15 + $0x3f8] sm:$0xff]
    %v10568 = vunpack.c.l.b16 %v10312
    %v10569 = vunpack.c.h.b16 %v10312
    %v10570 = vunpack.c.l.b16 %v10313
    %v10571 = vunpack.c.h.b16 %v10313
    %v10572 = vunpack.c.l.b16 %v10314
    %v10573 = vunpack.c.h.b16 %v10314
    %v10574 = vunpack.c.l.b16 %v10315
    %v10575 = vunpack.c.h.b16 %v10315
    %v10576 = vunpack.c.l.b16 %v10316
    %v10577 = vunpack.c.h.b16 %v10316
    %v10578 = vunpack.c.l.b16 %v10317
    %v10579 = vunpack.c.h.b16 %v10317
    %v10580 = vunpack.c.l.b16 %v10318
    %v10581 = vunpack.c.h.b16 %v10318
    %v10582 = vunpack.c.l.b16 %v10319
    %v10583 = vunpack.c.h.b16 %v10319
    %v10584 = vunpack.c.l.b16 %v10320
    %v10585 = vunpack.c.h.b16 %v10320
    %v10586 = vunpack.c.l.b16 %v10321
    %v10587 = vunpack.c.h.b16 %v10321
    %v10588 = vunpack.c.l.b16 %v10322
    %v10589 = vunpack.c.h.b16 %v10322
    %v10590 = vunpack.c.l.b16 %v10323
    %v10591 = vunpack.c.h.b16 %v10323
    %v10592 = vunpack.c.l.b16 %v10324
    %v10593 = vunpack.c.h.b16 %v10324
    %v10594 = vunpack.c.l.b16 %v10325
    %v10595 = vunpack.c.h.b16 %v10325
    %v10596 = vunpack.c.l.b16 %v10326
    %v10597 = vunpack.c.h.b16 %v10326
    %v10598 = vunpack.c.l.b16 %v10327
    %v10599 = vunpack.c.h.b16 %v10327
    %v10600 = vunpack.c.l.b16 %v10328
    %v10601 = vunpack.c.h.b16 %v10328
    %v10602 = vunpack.c.l.b16 %v10329
    %v10603 = vunpack.c.h.b16 %v10329
    %v10604 = vunpack.c.l.b16 %v10330
    %v10605 = vunpack.c.h.b16 %v10330
    %v10606 = vunpack.c.l.b16 %v10331
    %v10607 = vunpack.c.h.b16 %v10331
    %v10608 = vunpack.c.l.b16 %v10332
    %v10609 = vunpack.c.h.b16 %v10332
    %v10610 = vunpack.c.l.b16 %v10333
    %v10611 = vunpack.c.h.b16 %v10333
    %v10612 = vunpack.c.l.b16 %v10334
    %v10613 = vunpack.c.h.b16 %v10334
    %v10614 = vunpack.c.l.b16 %v10335
    %v10615 = vunpack.c.h.b16 %v10335
    %v10616 = vunpack.c.l.b16 %v10336
    %v10617 = vunpack.c.h.b16 %v10336
    %v10618 = vunpack.c.l.b16 %v10337
    %v10619 = vunpack.c.h.b16 %v10337
    %v10620 = vunpack.c.l.b16 %v10338
    %v10621 = vunpack.c.h.b16 %v10338
    %v10622 = vunpack.c.l.b16 %v10339
    %v10623 = vunpack.c.h.b16 %v10339
    %v10624 = vunpack.c.l.b16 %v10340
    %v10625 = vunpack.c.h.b16 %v10340
    %v10626 = vunpack.c.l.b16 %v10341
    %v10627 = vunpack.c.h.b16 %v10341
    %v10628 = vunpack.c.l.b16 %v10342
    %v10629 = vunpack.c.h.b16 %v10342
    %v10630 = vunpack.c.l.b16 %v10343
    %v10631 = vunpack.c.h.b16 %v10343
    %v10632 = vunpack.c.l.b16 %v10344
    %v10633 = vunpack.c.h.b16 %v10344
    %v10634 = vunpack.c.l.b16 %v10345
    %v10635 = vunpack.c.h.b16 %v10345
    %v10636 = vunpack.c.l.b16 %v10346
    %v10637 = vunpack.c.h.b16 %v10346
    %v10638 = vunpack.c.l.b16 %v10347
    %v10639 = vunpack.c.h.b16 %v10347
    %v10640 = vunpack.c.l.b16 %v10348
    %v10641 = vunpack.c.h.b16 %v10348
    %v10642 = vunpack.c.l.b16 %v10349
    %v10643 = vunpack.c.h.b16 %v10349
    %v10644 = vunpack.c.l.b16 %v10350
    %v10645 = vunpack.c.h.b16 %v10350
    %v10646 = vunpack.c.l.b16 %v10351
    %v10647 = vunpack.c.h.b16 %v10351
    %v10648 = vunpack.c.l.b16 %v10352
    %v10649 = vunpack.c.h.b16 %v10352
    %v10650 = vunpack.c.l.b16 %v10353
    %v10651 = vunpack.c.h.b16 %v10353
    %v10652 = vunpack.c.l.b16 %v10354
    %v10653 = vunpack.c.h.b16 %v10354
    %v10654 = vunpack.c.l.b16 %v10355
    %v10655 = vunpack.c.h.b16 %v10355
    %v10656 = vunpack.c.l.b16 %v10356
    %v10657 = vunpack.c.h.b16 %v10356
    %v10658 = vunpack.c.l.b16 %v10357
    %v10659 = vunpack.c.h.b16 %v10357
    %v10660 = vunpack.c.l.b16 %v10358
    %v10661 = vunpack.c.h.b16 %v10358
    %v10662 = vunpack.c.l.b16 %v10359
    %v10663 = vunpack.c.h.b16 %v10359
    %v10664 = vunpack.c.l.b16 %v10360
    %v10665 = vunpack.c.h.b16 %v10360
    %v10666 = vunpack.c.l.b16 %v10361
    %v10667 = vunpack.c.h.b16 %v10361
    %v10668 = vunpack.c.l.b16 %v10362
    %v10669 = vunpack.c.h.b16 %v10362
    %v10670 = vunpack.c.l.b16 %v10363
    %v10671 = vunpack.c.h.b16 %v10363
    %v10672 = vunpack.c.l.b16 %v10364
    %v10673 = vunpack.c.h.b16 %v10364
    %v10674 = vunpack.c.l.b16 %v10365
    %v10675 = vunpack.c.h.b16 %v10365
    %v10676 = vunpack.c.l.b16 %v10366
    %v10677 = vunpack.c.h.b16 %v10366
    %v10678 = vunpack.c.l.b16 %v10367
    %v10679 = vunpack.c.h.b16 %v10367
    %v10680 = vunpack.c.l.b16 %v10368
    %v10681 = vunpack.c.h.b16 %v10368
    %v10682 = vunpack.c.l.b16 %v10369
    %v10683 = vunpack.c.h.b16 %v10369
    %v10684 = vunpack.c.l.b16 %v10370
    %v10685 = vunpack.c.h.b16 %v10370
    %v10686 = vunpack.c.l.b16 %v10371
    %v10687 = vunpack.c.h.b16 %v10371
    %v10688 = vunpack.c.l.b16 %v10372
    %v10689 = vunpack.c.h.b16 %v10372
    %v10690 = vunpack.c.l.b16 %v10373
    %v10691 = vunpack.c.h.b16 %v10373
    %v10692 = vunpack.c.l.b16 %v10374
    %v10693 = vunpack.c.h.b16 %v10374
    %v10694 = vunpack.c.l.b16 %v10375
    %v10695 = vunpack.c.h.b16 %v10375
    %v10696 = vunpack.c.l.b16 %v10376
    %v10697 = vunpack.c.h.b16 %v10376
    %v10698 = vunpack.c.l.b16 %v10377
    %v10699 = vunpack.c.h.b16 %v10377
    %v10700 = vunpack.c.l.b16 %v10378
    %v10701 = vunpack.c.h.b16 %v10378
    %v10702 = vunpack.c.l.b16 %v10379
    %v10703 = vunpack.c.h.b16 %v10379
    %v10704 = vunpack.c.l.b16 %v10380
    %v10705 = vunpack.c.h.b16 %v10380
    %v10706 = vunpack.c.l.b16 %v10381
    %v10707 = vunpack.c.h.b16 %v10381
    %v10708 = vunpack.c.l.b16 %v10382
    %v10709 = vunpack.c.h.b16 %v10382
    %v10710 = vunpack.c.l.b16 %v10383
    %v10711 = vunpack.c.h.b16 %v10383
    %v10712 = vunpack.c.l.b16 %v10384
    %v10713 = vunpack.c.h.b16 %v10384
    %v10714 = vunpack.c.l.b16 %v10385
    %v10715 = vunpack.c.h.b16 %v10385
    %v10716 = vunpack.c.l.b16 %v10386
    %v10717 = vunpack.c.h.b16 %v10386
    %v10718 = vunpack.c.l.b16 %v10387
    %v10719 = vunpack.c.h.b16 %v10387
    %v10720 = vunpack.c.l.b16 %v10388
    %v10721 = vunpack.c.h.b16 %v10388
    %v10722 = vunpack.c.l.b16 %v10389
    %v10723 = vunpack.c.h.b16 %v10389
    %v10724 = vunpack.c.l.b16 %v10390
    %v10725 = vunpack.c.h.b16 %v10390
    %v10726 = vunpack.c.l.b16 %v10391
    %v10727 = vunpack.c.h.b16 %v10391
    %v10728 = vunpack.c.l.b16 %v10392
    %v10729 = vunpack.c.h.b16 %v10392
    %v10730 = vunpack.c.l.b16 %v10393
    %v10731 = vunpack.c.h.b16 %v10393
    %v10732 = vunpack.c.l.b16 %v10394
    %v10733 = vunpack.c.h.b16 %v10394
    %v10734 = vunpack.c.l.b16 %v10395
    %v10735 = vunpack.c.h.b16 %v10395
    %v10736 = vunpack.c.l.b16 %v10396
    %v10737 = vunpack.c.h.b16 %v10396
    %v10738 = vunpack.c.l.b16 %v10397
    %v10739 = vunpack.c.h.b16 %v10397
    %v10740 = vunpack.c.l.b16 %v10398
    %v10741 = vunpack.c.h.b16 %v10398
    %v10742 = vunpack.c.l.b16 %v10399
    %v10743 = vunpack.c.h.b16 %v10399
    %v10744 = vunpack.c.l.b16 %v10400
    %v10745 = vunpack.c.h.b16 %v10400
    %v10746 = vunpack.c.l.b16 %v10401
    %v10747 = vunpack.c.h.b16 %v10401
    %v10748 = vunpack.c.l.b16 %v10402
    %v10749 = vunpack.c.h.b16 %v10402
    %v10750 = vunpack.c.l.b16 %v10403
    %v10751 = vunpack.c.h.b16 %v10403
    %v10752 = vunpack.c.l.b16 %v10404
    %v10753 = vunpack.c.h.b16 %v10404
    %v10754 = vunpack.c.l.b16 %v10405
    %v10755 = vunpack.c.h.b16 %v10405
    %v10756 = vunpack.c.l.b16 %v10406
    %v10757 = vunpack.c.h.b16 %v10406
    %v10758 = vunpack.c.l.b16 %v10407
    %v10759 = vunpack.c.h.b16 %v10407
    %v10760 = vunpack.c.l.b16 %v10408
    %v10761 = vunpack.c.h.b16 %v10408
    %v10762 = vunpack.c.l.b16 %v10409
    %v10763 = vunpack.c.h.b16 %v10409
    %v10764 = vunpack.c.l.b16 %v10410
    %v10765 = vunpack.c.h.b16 %v10410
    %v10766 = vunpack.c.l.b16 %v10411
    %v10767 = vunpack.c.h.b16 %v10411
    %v10768 = vunpack.c.l.b16 %v10412
    %v10769 = vunpack.c.h.b16 %v10412
    %v10770 = vunpack.c.l.b16 %v10413
    %v10771 = vunpack.c.h.b16 %v10413
    %v10772 = vunpack.c.l.b16 %v10414
    %v10773 = vunpack.c.h.b16 %v10414
    %v10774 = vunpack.c.l.b16 %v10415
    %v10775 = vunpack.c.h.b16 %v10415
    %v10776 = vunpack.c.l.b16 %v10416
    %v10777 = vunpack.c.h.b16 %v10416
    %v10778 = vunpack.c.l.b16 %v10417
    %v10779 = vunpack.c.h.b16 %v10417
    %v10780 = vunpack.c.l.b16 %v10418
    %v10781 = vunpack.c.h.b16 %v10418
    %v10782 = vunpack.c.l.b16 %v10419
    %v10783 = vunpack.c.h.b16 %v10419
    %v10784 = vunpack.c.l.b16 %v10420
    %v10785 = vunpack.c.h.b16 %v10420
    %v10786 = vunpack.c.l.b16 %v10421
    %v10787 = vunpack.c.h.b16 %v10421
    %v10788 = vunpack.c.l.b16 %v10422
    %v10789 = vunpack.c.h.b16 %v10422
    %v10790 = vunpack.c.l.b16 %v10423
    %v10791 = vunpack.c.h.b16 %v10423
    %v10792 = vunpack.c.l.b16 %v10424
    %v10793 = vunpack.c.h.b16 %v10424
    %v10794 = vunpack.c.l.b16 %v10425
    %v10795 = vunpack.c.h.b16 %v10425
    %v10796 = vunpack.c.l.b16 %v10426
    %v10797 = vunpack.c.h.b16 %v10426
    %v10798 = vunpack.c.l.b16 %v10427
    %v10799 = vunpack.c.h.b16 %v10427
    %v10800 = vunpack.c.l.b16 %v10428
    %v10801 = vunpack.c.h.b16 %v10428
    %v10802 = vunpack.c.l.b16 %v10429
    %v10803 = vunpack.c.h.b16 %v10429
    %v10804 = vunpack.c.l.b16 %v10430
    %v10805 = vunpack.c.h.b16 %v10430
    %v10806 = vunpack.c.l.b16 %v10431
    %v10807 = vunpack.c.h.b16 %v10431
    %v10808 = vunpack.c.l.b16 %v10432
    %v10809 = vunpack.c.h.b16 %v10432
    %v10810 = vunpack.c.l.b16 %v10433
    %v10811 = vunpack.c.h.b16 %v10433
    %v10812 = vunpack.c.l.b16 %v10434
    %v10813 = vunpack.c.h.b16 %v10434
    %v10814 = vunpack.c.l.b16 %v10435
    %v10815 = vunpack.c.h.b16 %v10435
    %v10816 = vunpack.c.l.b16 %v10436
    %v10817 = vunpack.c.h.b16 %v10436
    %v10818 = vunpack.c.l.b16 %v10437
    %v10819 = vunpack.c.h.b16 %v10437
    %v10820 = vunpack.c.l.b16 %v10438
    %v10821 = vunpack.c.h.b16 %v10438
    %v10822 = vunpack.c.l.b16 %v10439
    %v10823 = vunpack.c.h.b16 %v10439
    %v10824 = vpack.c.b16 %v10576, %v10568
    %v10825 = vpack.c.b16 %v10577, %v10569
    %v10826 = vpack.c.b16 %v10578, %v10570
    %v10827 = vpack.c.b16 %v10579, %v10571
    %v10828 = vpack.c.b16 %v10580, %v10572
    %v10829 = vpack.c.b16 %v10581, %v10573
    %v10830 = vpack.c.b16 %v10582, %v10574
    %v10831 = vpack.c.b16 %v10583, %v10575
    %v10832 = vpack.c.b16 %v10592, %v10584
    %v10833 = vpack.c.b16 %v10593, %v10585
    %v10834 = vpack.c.b16 %v10594, %v10586
    %v10835 = vpack.c.b16 %v10595, %v10587
    %v10836 = vpack.c.b16 %v10596, %v10588
    %v10837 = vpack.c.b16 %v10597, %v10589
    %v10838 = vpack.c.b16 %v10598, %v10590
    %v10839 = vpack.c.b16 %v10599, %v10591
    %v10840 = vpack.c.b16 %v10608, %v10600
    %v10841 = vpack.c.b16 %v10609, %v10601
    %v10842 = vpack.c.b16 %v10610, %v10602
    %v10843 = vpack.c.b16 %v10611, %v10603
    %v10844 = vpack.c.b16 %v10612, %v10604
    %v10845 = vpack.c.b16 %v10613, %v10605
    %v10846 = vpack.c.b16 %v10614, %v10606
    %v10847 = vpack.c.b16 %v10615, %v10607
    %v10848 = vpack.c.b16 %v10624, %v10616
    %v10849 = vpack.c.b16 %v10625, %v10617
    %v10850 = vpack.c.b16 %v10626, %v10618
    %v10851 = vpack.c.b16 %v10627, %v10619
    %v10852 = vpack.c.b16 %v10628, %v10620
    %v10853 = vpack.c.b16 %v10629, %v10621
    %v10854 = vpack.c.b16 %v10630, %v10622
    %v10855 = vpack.c.b16 %v10631, %v10623
    %v10856 = vpack.c.b16 %v10640, %v10632
    %v10857 = vpack.c.b16 %v10641, %v10633
    %v10858 = vpack.c.b16 %v10642, %v10634
    %v10859 = vpack.c.b16 %v10643, %v10635
    %v10860 = vpack.c.b16 %v10644, %v10636
    %v10861 = vpack.c.b16 %v10645, %v10637
    %v10862 = vpack.c.b16 %v10646, %v10638
    %v10863 = vpack.c.b16 %v10647, %v10639
    %v10864 = vpack.c.b16 %v10656, %v10648
    %v10865 = vpack.c.b16 %v10657, %v10649
    %v10866 = vpack.c.b16 %v10658, %v10650
    %v10867 = vpack.c.b16 %v10659, %v10651
    %v10868 = vpack.c.b16 %v10660, %v10652
    %v10869 = vpack.c.b16 %v10661, %v10653
    %v10870 = vpack.c.b16 %v10662, %v10654
    %v10871 = vpack.c.b16 %v10663, %v10655
    %v10872 = vpack.c.b16 %v10672, %v10664
    %v10873 = vpack.c.b16 %v10673, %v10665
    %v10874 = vpack.c.b16 %v10674, %v10666
    %v10875 = vpack.c.b16 %v10675, %v10667
    %v10876 = vpack.c.b16 %v10676, %v10668
    %v10877 = vpack.c.b16 %v10677, %v10669
    %v10878 = vpack.c.b16 %v10678, %v10670
    %v10879 = vpack.c.b16 %v10679, %v10671
    %v10880 = vpack.c.b16 %v10688, %v10680
    %v10881 = vpack.c.b16 %v10689, %v10681
    %v10882 = vpack.c.b16 %v10690, %v10682
    %v10883 = vpack.c.b16 %v10691, %v10683
    %v10884 = vpack.c.b16 %v10692, %v10684
    %v10885 = vpack.c.b16 %v10693, %v10685
    %v10886 = vpack.c.b16 %v10694, %v10686
    %v10887 = vpack.c.b16 %v10695, %v10687
    %v10888 = vpack.c.b16 %v10704, %v10696
    %v10889 = vpack.c.b16 %v10705, %v10697
    %v10890 = vpack.c.b16 %v10706, %v10698
    %v10891 = vpack.c.b16 %v10707, %v10699
    %v10892 = vpack.c.b16 %v10708, %v10700
    %v10893 = vpack.c.b16 %v10709, %v10701
    %v10894 = vpack.c.b16 %v10710, %v10702
    %v10895 = vpack.c.b16 %v10711, %v10703
    %v10896 = vpack.c.b16 %v10720, %v10712
    %v10897 = vpack.c.b16 %v10721, %v10713
    %v10898 = vpack.c.b16 %v10722, %v10714
    %v10899 = vpack.c.b16 %v10723, %v10715
    %v10900 = vpack.c.b16 %v10724, %v10716
    %v10901 = vpack.c.b16 %v10725, %v10717
    %v10902 = vpack.c.b16 %v10726, %v10718
    %v10903 = vpack.c.b16 %v10727, %v10719
    %v10904 = vpack.c.b16 %v10736, %v10728
    %v10905 = vpack.c.b16 %v10737, %v10729
    %v10906 = vpack.c.b16 %v10738, %v10730
    %v10907 = vpack.c.b16 %v10739, %v10731
    %v10908 = vpack.c.b16 %v10740, %v10732
    %v10909 = vpack.c.b16 %v10741, %v10733
    %v10910 = vpack.c.b16 %v10742, %v10734
    %v10911 = vpack.c.b16 %v10743, %v10735
    %v10912 = vpack.c.b16 %v10752, %v10744
    %v10913 = vpack.c.b16 %v10753, %v10745
    %v10914 = vpack.c.b16 %v10754, %v10746
    %v10915 = vpack.c.b16 %v10755, %v10747
    %v10916 = vpack.c.b16 %v10756, %v10748
    %v10917 = vpack.c.b16 %v10757, %v10749
    %v10918 = vpack.c.b16 %v10758, %v10750
    %v10919 = vpack.c.b16 %v10759, %v10751
    %v10920 = vpack.c.b16 %v10768, %v10760
    %v10921 = vpack.c.b16 %v10769, %v10761
    %v10922 = vpack.c.b16 %v10770, %v10762
    %v10923 = vpack.c.b16 %v10771, %v10763
    %v10924 = vpack.c.b16 %v10772, %v10764
    %v10925 = vpack.c.b16 %v10773, %v10765
    %v10926 = vpack.c.b16 %v10774, %v10766
    %v10927 = vpack.c.b16 %v10775, %v10767
    %v10928 = vpack.c.b16 %v10784, %v10776
    %v10929 = vpack.c.b16 %v10785, %v10777
    %v10930 = vpack.c.b16 %v10786, %v10778
    %v10931 = vpack.c.b16 %v10787, %v10779
    %v10932 = vpack.c.b16 %v10788, %v10780
    %v10933 = vpack.c.b16 %v10789, %v10781
    %v10934 = vpack.c.b16 %v10790, %v10782
    %v10935 = vpack.c.b16 %v10791, %v10783
    %v10936 = vpack.c.b16 %v10800, %v10792
    %v10937 = vpack.c.b16 %v10801, %v10793
    %v10938 = vpack.c.b16 %v10802, %v10794
    %v10939 = vpack.c.b16 %v10803, %v10795
    %v10940 = vpack.c.b16 %v10804, %v10796
    %v10941 = vpack.c.b16 %v10805, %v10797
    %v10942 = vpack.c.b16 %v10806, %v10798
    %v10943 = vpack.c.b16 %v10807, %v10799
    %v10944 = vpack.c.b16 %v10816, %v10808
    %v10945 = vpack.c.b16 %v10817, %v10809
    %v10946 = vpack.c.b16 %v10818, %v10810
    %v10947 = vpack.c.b16 %v10819, %v10811
    %v10948 = vpack.c.b16 %v10820, %v10812
    %v10949 = vpack.c.b16 %v10821, %v10813
    %v10950 = vpack.c.b16 %v10822, %v10814
    %v10951 = vpack.c.b16 %v10823, %v10815
    %11080 = vmatpush.bf16.msra.mxu0 %v10880
    %11081 = vmatpush.bf16.msra.mxu0 %v10872
    %11082 = vmatpush.bf16.msra.mxu0 %v10864
    %11083 = vmatpush.bf16.msra.mxu0 %v10856
    %11084 = vmatpush.bf16.msra.mxu0 %v10848
    %11085 = vmatpush.bf16.msra.mxu0 %v10840
    %11086 = vmatpush.bf16.msra.mxu0 %v10832
    %11087 = vmatpush.bf16.msra.mxu0 %v10824
    %11088 = vmatmul.bf16.gmra.mxu0 %v10310
    %v11089 = vpop.f32.mrf.mxu0
    %v11090 = vadd.f32 0.0, %v11089
    %v11091 = vpop.f32.mrf.mxu0
    %11092 = vdwg.mxu0
    %11093 = vmatpush.bf16.msra.mxu0 %v10944
    %11094 = vmatpush.bf16.msra.mxu0 %v10936
    %11095 = vmatpush.bf16.msra.mxu0 %v10928
    %11096 = vmatpush.bf16.msra.mxu0 %v10920
    %11097 = vmatpush.bf16.msra.mxu0 %v10912
    %11098 = vmatpush.bf16.msra.mxu0 %v10904
    %11099 = vmatpush.bf16.msra.mxu0 %v10896
    %11100 = vmatpush.bf16.msra.mxu0 %v10888
    %11101 = vmatmul.bf16.gmra.mxu0 %v10311
    %v11102 = vpop.f32.mrf.mxu0
    %v11103 = vadd.f32 %v11090, %v11102
    %v11104 = vpop.f32.mrf.mxu0
    %11105 = vdwg.mxu0
    %11106 = vmatpush.bf16.msra.mxu0 %v10881
    %11107 = vmatpush.bf16.msra.mxu0 %v10873
    %11108 = vmatpush.bf16.msra.mxu0 %v10865
    %11109 = vmatpush.bf16.msra.mxu0 %v10857
    %11110 = vmatpush.bf16.msra.mxu0 %v10849
    %11111 = vmatpush.bf16.msra.mxu0 %v10841
    %11112 = vmatpush.bf16.msra.mxu0 %v10833
    %11113 = vmatpush.bf16.msra.mxu0 %v10825
    %11114 = vmatmul.bf16.gmra.mxu0 %v10310
    %v11115 = vpop.f32.mrf.mxu0
    %v11116 = vadd.f32 0.0, %v11115
    %v11117 = vpop.f32.mrf.mxu0
    %11118 = vdwg.mxu0
    %11119 = vmatpush.bf16.msra.mxu0 %v10945
    %11120 = vmatpush.bf16.msra.mxu0 %v10937
    %11121 = vmatpush.bf16.msra.mxu0 %v10929
    %11122 = vmatpush.bf16.msra.mxu0 %v10921
    %11123 = vmatpush.bf16.msra.mxu0 %v10913
    %11124 = vmatpush.bf16.msra.mxu0 %v10905
    %11125 = vmatpush.bf16.msra.mxu0 %v10897
    %11126 = vmatpush.bf16.msra.mxu0 %v10889
    %11127 = vmatmul.bf16.gmra.mxu0 %v10311
    %v11128 = vpop.f32.mrf.mxu0
    %v11129 = vadd.f32 %v11116, %v11128
    %v11130 = vpop.f32.mrf.mxu0
    %11131 = vdwg.mxu0
    %11132 = vmatpush.bf16.msra.mxu0 %v10882
    %11133 = vmatpush.bf16.msra.mxu0 %v10874
    %11134 = vmatpush.bf16.msra.mxu0 %v10866
    %11135 = vmatpush.bf16.msra.mxu0 %v10858
    %11136 = vmatpush.bf16.msra.mxu0 %v10850
    %11137 = vmatpush.bf16.msra.mxu0 %v10842
    %11138 = vmatpush.bf16.msra.mxu0 %v10834
    %11139 = vmatpush.bf16.msra.mxu0 %v10826
    %11140 = vmatmul.bf16.gmra.mxu0 %v10310
    %v11141 = vpop.f32.mrf.mxu0
    %v11142 = vadd.f32 0.0, %v11141
    %v11143 = vpop.f32.mrf.mxu0
    %11144 = vdwg.mxu0
    %11145 = vmatpush.bf16.msra.mxu0 %v10946
    %11146 = vmatpush.bf16.msra.mxu0 %v10938
    %11147 = vmatpush.bf16.msra.mxu0 %v10930
    %11148 = vmatpush.bf16.msra.mxu0 %v10922
    %11149 = vmatpush.bf16.msra.mxu0 %v10914
    %11150 = vmatpush.bf16.msra.mxu0 %v10906
    %11151 = vmatpush.bf16.msra.mxu0 %v10898
    %11152 = vmatpush.bf16.msra.mxu0 %v10890
    %11153 = vmatmul.bf16.gmra.mxu0 %v10311
    %v11154 = vpop.f32.mrf.mxu0
    %v11155 = vadd.f32 %v11142, %v11154
    %v11156 = vpop.f32.mrf.mxu0
    %11157 = vdwg.mxu0
    %11158 = vmatpush.bf16.msra.mxu0 %v10883
    %11159 = vmatpush.bf16.msra.mxu0 %v10875
    %11160 = vmatpush.bf16.msra.mxu0 %v10867
    %11161 = vmatpush.bf16.msra.mxu0 %v10859
    %11162 = vmatpush.bf16.msra.mxu0 %v10851
    %11163 = vmatpush.bf16.msra.mxu0 %v10843
    %11164 = vmatpush.bf16.msra.mxu0 %v10835
    %11165 = vmatpush.bf16.msra.mxu0 %v10827
    %11166 = vmatmul.bf16.gmra.mxu0 %v10310
    %v11167 = vpop.f32.mrf.mxu0
    %v11168 = vadd.f32 0.0, %v11167
    %v11169 = vpop.f32.mrf.mxu0
    %11170 = vdwg.mxu0
    %11171 = vmatpush.bf16.msra.mxu0 %v10947
    %11172 = vmatpush.bf16.msra.mxu0 %v10939
    %11173 = vmatpush.bf16.msra.mxu0 %v10931
    %11174 = vmatpush.bf16.msra.mxu0 %v10923
    %11175 = vmatpush.bf16.msra.mxu0 %v10915
    %11176 = vmatpush.bf16.msra.mxu0 %v10907
    %11177 = vmatpush.bf16.msra.mxu0 %v10899
    %11178 = vmatpush.bf16.msra.mxu0 %v10891
    %11179 = vmatmul.bf16.gmra.mxu0 %v10311
    %v11180 = vpop.f32.mrf.mxu0
    %v11181 = vadd.f32 %v11168, %v11180
    %v11182 = vpop.f32.mrf.mxu0
    %11183 = vdwg.mxu0
    %11184 = vmatpush.bf16.msra.mxu0 %v10884
    %11185 = vmatpush.bf16.msra.mxu0 %v10876
    %11186 = vmatpush.bf16.msra.mxu0 %v10868
    %11187 = vmatpush.bf16.msra.mxu0 %v10860
    %11188 = vmatpush.bf16.msra.mxu0 %v10852
    %11189 = vmatpush.bf16.msra.mxu0 %v10844
    %11190 = vmatpush.bf16.msra.mxu0 %v10836
    %11191 = vmatpush.bf16.msra.mxu0 %v10828
    %11192 = vmatmul.bf16.gmra.mxu0 %v10310
    %v11193 = vpop.f32.mrf.mxu0
    %v11194 = vadd.f32 0.0, %v11193
    %v11195 = vpop.f32.mrf.mxu0
    %11196 = vdwg.mxu0
    %11197 = vmatpush.bf16.msra.mxu0 %v10948
    %11198 = vmatpush.bf16.msra.mxu0 %v10940
    %11199 = vmatpush.bf16.msra.mxu0 %v10932
    %11200 = vmatpush.bf16.msra.mxu0 %v10924
    %11201 = vmatpush.bf16.msra.mxu0 %v10916
    %11202 = vmatpush.bf16.msra.mxu0 %v10908
    %11203 = vmatpush.bf16.msra.mxu0 %v10900
    %11204 = vmatpush.bf16.msra.mxu0 %v10892
    %11205 = vmatmul.bf16.gmra.mxu0 %v10311
    %v11206 = vpop.f32.mrf.mxu0
    %v11207 = vadd.f32 %v11194, %v11206
    %v11208 = vpop.f32.mrf.mxu0
    %11209 = vdwg.mxu0
    %11210 = vmatpush.bf16.msra.mxu0 %v10885
    %11211 = vmatpush.bf16.msra.mxu0 %v10877
    %11212 = vmatpush.bf16.msra.mxu0 %v10869
    %11213 = vmatpush.bf16.msra.mxu0 %v10861
    %11214 = vmatpush.bf16.msra.mxu0 %v10853
    %11215 = vmatpush.bf16.msra.mxu0 %v10845
    %11216 = vmatpush.bf16.msra.mxu0 %v10837
    %11217 = vmatpush.bf16.msra.mxu0 %v10829
    %11218 = vmatmul.bf16.gmra.mxu0 %v10310
    %v11219 = vpop.f32.mrf.mxu0
    %v11220 = vadd.f32 0.0, %v11219
    %v11221 = vpop.f32.mrf.mxu0
    %11222 = vdwg.mxu0
    %11223 = vmatpush.bf16.msra.mxu0 %v10949
    %11224 = vmatpush.bf16.msra.mxu0 %v10941
    %11225 = vmatpush.bf16.msra.mxu0 %v10933
    %11226 = vmatpush.bf16.msra.mxu0 %v10925
    %11227 = vmatpush.bf16.msra.mxu0 %v10917
    %11228 = vmatpush.bf16.msra.mxu0 %v10909
    %11229 = vmatpush.bf16.msra.mxu0 %v10901
    %11230 = vmatpush.bf16.msra.mxu0 %v10893
    %11231 = vmatmul.bf16.gmra.mxu0 %v10311
    %v11232 = vpop.f32.mrf.mxu0
    %v11233 = vadd.f32 %v11220, %v11232
    %v11234 = vpop.f32.mrf.mxu0
    %11235 = vdwg.mxu0
    %11236 = vmatpush.bf16.msra.mxu0 %v10886
    %11237 = vmatpush.bf16.msra.mxu0 %v10878
    %11238 = vmatpush.bf16.msra.mxu0 %v10870
    %11239 = vmatpush.bf16.msra.mxu0 %v10862
    %11240 = vmatpush.bf16.msra.mxu0 %v10854
    %11241 = vmatpush.bf16.msra.mxu0 %v10846
    %11242 = vmatpush.bf16.msra.mxu0 %v10838
    %11243 = vmatpush.bf16.msra.mxu0 %v10830
    %11244 = vmatmul.bf16.gmra.mxu0 %v10310
    %v11245 = vpop.f32.mrf.mxu0
    %v11246 = vadd.f32 0.0, %v11245
    %v11247 = vpop.f32.mrf.mxu0
    %11248 = vdwg.mxu0
    %11249 = vmatpush.bf16.msra.mxu0 %v10950
    %11250 = vmatpush.bf16.msra.mxu0 %v10942
    %11251 = vmatpush.bf16.msra.mxu0 %v10934
    %11252 = vmatpush.bf16.msra.mxu0 %v10926
    %11253 = vmatpush.bf16.msra.mxu0 %v10918
    %11254 = vmatpush.bf16.msra.mxu0 %v10910
    %11255 = vmatpush.bf16.msra.mxu0 %v10902
    %11256 = vmatpush.bf16.msra.mxu0 %v10894
    %11257 = vmatmul.bf16.gmra.mxu0 %v10311
    %v11258 = vpop.f32.mrf.mxu0
    %v11259 = vadd.f32 %v11246, %v11258
    %v11260 = vpop.f32.mrf.mxu0
    %11261 = vdwg.mxu0
    %11262 = vmatpush.bf16.msra.mxu0 %v10887
    %11263 = vmatpush.bf16.msra.mxu0 %v10879
    %11264 = vmatpush.bf16.msra.mxu0 %v10871
    %11265 = vmatpush.bf16.msra.mxu0 %v10863
    %11266 = vmatpush.bf16.msra.mxu0 %v10855
    %11267 = vmatpush.bf16.msra.mxu0 %v10847
    %11268 = vmatpush.bf16.msra.mxu0 %v10839
    %11269 = vmatpush.bf16.msra.mxu0 %v10831
    %11270 = vmatmul.bf16.gmra.mxu0 %v10310
    %v11271 = vpop.f32.mrf.mxu0
    %v11272 = vadd.f32 0.0, %v11271
    %v11273 = vpop.f32.mrf.mxu0
    %11274 = vdwg.mxu0
    %11275 = vmatpush.bf16.msra.mxu0 %v10951
    %11276 = vmatpush.bf16.msra.mxu0 %v10943
    %11277 = vmatpush.bf16.msra.mxu0 %v10935
    %11278 = vmatpush.bf16.msra.mxu0 %v10927
    %11279 = vmatpush.bf16.msra.mxu0 %v10919
    %11280 = vmatpush.bf16.msra.mxu0 %v10911
    %11281 = vmatpush.bf16.msra.mxu0 %v10903
    %11282 = vmatpush.bf16.msra.mxu0 %v10895
    %11283 = vmatmul.bf16.gmra.mxu0 %v10311
    %v11284 = vpop.f32.mrf.mxu0
    %v11285 = vadd.f32 %v11272, %v11284
    %v11286 = vpop.f32.mrf.mxu0
    %11287 = vdwg.mxu0
    %v11296 = vrot.slane %v11129, 7
    %v11297 = vrot.slane %v11155, 6
    %v11298 = vrot.slane %v11181, 5
    %v11299 = vrot.slane %v11207, 4
    %v11300 = vrot.slane %v11233, 3
    %v11301 = vrot.slane %v11259, 2
    %v11302 = vrot.slane %v11285, 1
    %v11303 = vsel %vm893, %v11103, %v11296
    %v11304 = vsel %vm895, %v11297, %v11298
    %v11305 = vsel %vm897, %v11303, %v11304
    %v11306 = vsel %vm4795, %v11299, %v11300
    %v11307 = vsel %vm4797, %v11301, %v11302
    %v11308 = vsel %vm4799, %v11306, %v11307
    %v11309 = vsel %vm4801, %v11305, %v11308
    %v11311 = vadd.f32 %v10304, %v11309
    %v11312 = vxor.u32 %v11311, 2147483648
    %v11313 = vmul.f32 %v11312, 1.442695
    %v11314 = vpow.pop %v11313
    %v11315 = vadd.f32 %v11314, 1.0
    %v11316 = vrcp.pop %v11315
    %v11317 = vmul.f32 %v11315, %v11316
    %v11318 = vsub.f32 1.0, %v11317
    %v11319 = vmul.f32 %v11316, %v11318
    %v11320 = vadd.f32 %v11316, %v11319
    %vm11321 = vweird.f32 %v11315
    %vm11322 = vweird.f32 %v11316
    %vm11323 = vmor %vm11321, %vm11322
    %v11324 = vsel %vm11323, %v11316, %v11320
    %v11325 = vand.u32 2147483647, %v11315
    %vm11326 = vcmp.eq.f32.partialorder %v11325, 8.507059e+37
    %v11327 = vand.u32 %v11315, 2147483648
    %v11328 = vor.u32 1.1754944e-38, %v11327
    %v11329 = vsel %vm11326, %v11328, %v11324
    %v11330 = vmul.f32 1.0, %v11329
    %v11332 = vrot.slane %v11311, 2
    %v11334 = vxor.u32 %v11332, 2147483648
    %v11335 = vmul.f32 %v11334, 1.442695
    %v11336 = vpow.pop %v11335
    %v11337 = vadd.f32 %v11336, 1.0
    %v11338 = vrcp.pop %v11337
    %v11339 = vmul.f32 %v11337, %v11338
    %v11340 = vsub.f32 1.0, %v11339
    %v11341 = vmul.f32 %v11338, %v11340
    %v11342 = vadd.f32 %v11338, %v11341
    %vm11343 = vweird.f32 %v11337
    %vm11344 = vweird.f32 %v11338
    %vm11345 = vmor %vm11343, %vm11344
    %v11346 = vsel %vm11345, %v11338, %v11342
    %v11347 = vand.u32 2147483647, %v11337
    %vm11348 = vcmp.eq.f32.partialorder %v11347, 8.507059e+37
    %v11349 = vand.u32 %v11337, 2147483648
    %v11350 = vor.u32 1.1754944e-38, %v11349
    %v11351 = vsel %vm11348, %v11350, %v11346
    %v11352 = vmul.f32 1.0, %v11351
    %v11353 = vrot.slane %v11311, 4
    %v11355 = vtanh.pop %v11353
    %v11356 = vrot.slane %v11311, 6
    %v11358 = vxor.u32 %v11356, 2147483648
    %v11359 = vmul.f32 %v11358, 1.442695
    %v11360 = vpow.pop %v11359
    %v11361 = vadd.f32 %v11360, 1.0
    %v11362 = vrcp.pop %v11361
    %v11363 = vmul.f32 %v11361, %v11362
    %v11364 = vsub.f32 1.0, %v11363
    %v11365 = vmul.f32 %v11362, %v11364
    %v11366 = vadd.f32 %v11362, %v11365
    %vm11367 = vweird.f32 %v11361
    %vm11368 = vweird.f32 %v11362
    %vm11369 = vmor %vm11367, %vm11368
    %v11370 = vsel %vm11369, %v11362, %v11366
    %v11371 = vand.u32 2147483647, %v11361
    %vm11372 = vcmp.eq.f32.partialorder %v11371, 8.507059e+37
    %v11373 = vand.u32 %v11361, 2147483648
    %v11374 = vor.u32 1.1754944e-38, %v11373
    %v11375 = vsel %vm11372, %v11374, %v11370
    %v11376 = vmul.f32 1.0, %v11375
    %v11377 = vmul.f32 %v11352, %v10295
    %v11378 = vmul.f32 %v11330, %v11355
    %v11379 = vadd.f32 %v11377, %v11378
    %v11380 = vtanh.pop %v11379
    %v11381 = vmul.f32 %v11376, %v11380
    %s11382 = scalar_lea.vmem [#allocation5], 6
    %11383 = vst.msk [vmem:[%s11382] ss:$8 sm:$0x3] %vm4878, %v11381
    %11384 = vst.msk [vmem:[%s11382] ss:$8 sm:$0x0] %vm4878, %v11381
    %s11385 = scalar_lea.vmem [#allocation4], 7
    %v11386 = vld [vmem:[%s11385] ss:$8 sm:$0xf]
    %v11387 = vld [vmem:[%s11385] ss:$8 sm:$0xf0]
    %v11388 = vor.u32 %v11386, %v11387
    %v11390 = vperm.slane %v11381, 0
    %v11391 = vperm.slane %v11381, 1
    %v11394 = vpack.c.bf16 %v11390, %v11390
    %v11395 = vpack.c.bf16 %v11391, %v11391
    %v11396 = vld [vmem:[#allocation15] sm:$0xff]
    %v11397 = vld [vmem:[#allocation15 + $0x8] sm:$0xff]
    %v11398 = vld [vmem:[#allocation15 + $0x10] sm:$0xff]
    %v11399 = vld [vmem:[#allocation15 + $0x18] sm:$0xff]
    %v11400 = vld [vmem:[#allocation15 + $0x20] sm:$0xff]
    %v11401 = vld [vmem:[#allocation15 + $0x28] sm:$0xff]
    %v11402 = vld [vmem:[#allocation15 + $0x30] sm:$0xff]
    %v11403 = vld [vmem:[#allocation15 + $0x38] sm:$0xff]
    %v11404 = vld [vmem:[#allocation15 + $0x40] sm:$0xff]
    %v11405 = vld [vmem:[#allocation15 + $0x48] sm:$0xff]
    %v11406 = vld [vmem:[#allocation15 + $0x50] sm:$0xff]
    %v11407 = vld [vmem:[#allocation15 + $0x58] sm:$0xff]
    %v11408 = vld [vmem:[#allocation15 + $0x60] sm:$0xff]
    %v11409 = vld [vmem:[#allocation15 + $0x68] sm:$0xff]
    %v11410 = vld [vmem:[#allocation15 + $0x70] sm:$0xff]
    %v11411 = vld [vmem:[#allocation15 + $0x78] sm:$0xff]
    %v11412 = vld [vmem:[#allocation15 + $0x80] sm:$0xff]
    %v11413 = vld [vmem:[#allocation15 + $0x88] sm:$0xff]
    %v11414 = vld [vmem:[#allocation15 + $0x90] sm:$0xff]
    %v11415 = vld [vmem:[#allocation15 + $0x98] sm:$0xff]
    %v11416 = vld [vmem:[#allocation15 + $0xa0] sm:$0xff]
    %v11417 = vld [vmem:[#allocation15 + $0xa8] sm:$0xff]
    %v11418 = vld [vmem:[#allocation15 + $0xb0] sm:$0xff]
    %v11419 = vld [vmem:[#allocation15 + $0xb8] sm:$0xff]
    %v11420 = vld [vmem:[#allocation15 + $0xc0] sm:$0xff]
    %v11421 = vld [vmem:[#allocation15 + $0xc8] sm:$0xff]
    %v11422 = vld [vmem:[#allocation15 + $0xd0] sm:$0xff]
    %v11423 = vld [vmem:[#allocation15 + $0xd8] sm:$0xff]
    %v11424 = vld [vmem:[#allocation15 + $0xe0] sm:$0xff]
    %v11425 = vld [vmem:[#allocation15 + $0xe8] sm:$0xff]
    %v11426 = vld [vmem:[#allocation15 + $0xf0] sm:$0xff]
    %v11427 = vld [vmem:[#allocation15 + $0xf8] sm:$0xff]
    %v11428 = vld [vmem:[#allocation15 + $0x100] sm:$0xff]
    %v11429 = vld [vmem:[#allocation15 + $0x108] sm:$0xff]
    %v11430 = vld [vmem:[#allocation15 + $0x110] sm:$0xff]
    %v11431 = vld [vmem:[#allocation15 + $0x118] sm:$0xff]
    %v11432 = vld [vmem:[#allocation15 + $0x120] sm:$0xff]
    %v11433 = vld [vmem:[#allocation15 + $0x128] sm:$0xff]
    %v11434 = vld [vmem:[#allocation15 + $0x130] sm:$0xff]
    %v11435 = vld [vmem:[#allocation15 + $0x138] sm:$0xff]
    %v11436 = vld [vmem:[#allocation15 + $0x140] sm:$0xff]
    %v11437 = vld [vmem:[#allocation15 + $0x148] sm:$0xff]
    %v11438 = vld [vmem:[#allocation15 + $0x150] sm:$0xff]
    %v11439 = vld [vmem:[#allocation15 + $0x158] sm:$0xff]
    %v11440 = vld [vmem:[#allocation15 + $0x160] sm:$0xff]
    %v11441 = vld [vmem:[#allocation15 + $0x168] sm:$0xff]
    %v11442 = vld [vmem:[#allocation15 + $0x170] sm:$0xff]
    %v11443 = vld [vmem:[#allocation15 + $0x178] sm:$0xff]
    %v11444 = vld [vmem:[#allocation15 + $0x180] sm:$0xff]
    %v11445 = vld [vmem:[#allocation15 + $0x188] sm:$0xff]
    %v11446 = vld [vmem:[#allocation15 + $0x190] sm:$0xff]
    %v11447 = vld [vmem:[#allocation15 + $0x198] sm:$0xff]
    %v11448 = vld [vmem:[#allocation15 + $0x1a0] sm:$0xff]
    %v11449 = vld [vmem:[#allocation15 + $0x1a8] sm:$0xff]
    %v11450 = vld [vmem:[#allocation15 + $0x1b0] sm:$0xff]
    %v11451 = vld [vmem:[#allocation15 + $0x1b8] sm:$0xff]
    %v11452 = vld [vmem:[#allocation15 + $0x1c0] sm:$0xff]
    %v11453 = vld [vmem:[#allocation15 + $0x1c8] sm:$0xff]
    %v11454 = vld [vmem:[#allocation15 + $0x1d0] sm:$0xff]
    %v11455 = vld [vmem:[#allocation15 + $0x1d8] sm:$0xff]
    %v11456 = vld [vmem:[#allocation15 + $0x1e0] sm:$0xff]
    %v11457 = vld [vmem:[#allocation15 + $0x1e8] sm:$0xff]
    %v11458 = vld [vmem:[#allocation15 + $0x1f0] sm:$0xff]
    %v11459 = vld [vmem:[#allocation15 + $0x1f8] sm:$0xff]
    %v11460 = vld [vmem:[#allocation15 + $0x200] sm:$0xff]
    %v11461 = vld [vmem:[#allocation15 + $0x208] sm:$0xff]
    %v11462 = vld [vmem:[#allocation15 + $0x210] sm:$0xff]
    %v11463 = vld [vmem:[#allocation15 + $0x218] sm:$0xff]
    %v11464 = vld [vmem:[#allocation15 + $0x220] sm:$0xff]
    %v11465 = vld [vmem:[#allocation15 + $0x228] sm:$0xff]
    %v11466 = vld [vmem:[#allocation15 + $0x230] sm:$0xff]
    %v11467 = vld [vmem:[#allocation15 + $0x238] sm:$0xff]
    %v11468 = vld [vmem:[#allocation15 + $0x240] sm:$0xff]
    %v11469 = vld [vmem:[#allocation15 + $0x248] sm:$0xff]
    %v11470 = vld [vmem:[#allocation15 + $0x250] sm:$0xff]
    %v11471 = vld [vmem:[#allocation15 + $0x258] sm:$0xff]
    %v11472 = vld [vmem:[#allocation15 + $0x260] sm:$0xff]
    %v11473 = vld [vmem:[#allocation15 + $0x268] sm:$0xff]
    %v11474 = vld [vmem:[#allocation15 + $0x270] sm:$0xff]
    %v11475 = vld [vmem:[#allocation15 + $0x278] sm:$0xff]
    %v11476 = vld [vmem:[#allocation15 + $0x280] sm:$0xff]
    %v11477 = vld [vmem:[#allocation15 + $0x288] sm:$0xff]
    %v11478 = vld [vmem:[#allocation15 + $0x290] sm:$0xff]
    %v11479 = vld [vmem:[#allocation15 + $0x298] sm:$0xff]
    %v11480 = vld [vmem:[#allocation15 + $0x2a0] sm:$0xff]
    %v11481 = vld [vmem:[#allocation15 + $0x2a8] sm:$0xff]
    %v11482 = vld [vmem:[#allocation15 + $0x2b0] sm:$0xff]
    %v11483 = vld [vmem:[#allocation15 + $0x2b8] sm:$0xff]
    %v11484 = vld [vmem:[#allocation15 + $0x2c0] sm:$0xff]
    %v11485 = vld [vmem:[#allocation15 + $0x2c8] sm:$0xff]
    %v11486 = vld [vmem:[#allocation15 + $0x2d0] sm:$0xff]
    %v11487 = vld [vmem:[#allocation15 + $0x2d8] sm:$0xff]
    %v11488 = vld [vmem:[#allocation15 + $0x2e0] sm:$0xff]
    %v11489 = vld [vmem:[#allocation15 + $0x2e8] sm:$0xff]
    %v11490 = vld [vmem:[#allocation15 + $0x2f0] sm:$0xff]
    %v11491 = vld [vmem:[#allocation15 + $0x2f8] sm:$0xff]
    %v11492 = vld [vmem:[#allocation15 + $0x300] sm:$0xff]
    %v11493 = vld [vmem:[#allocation15 + $0x308] sm:$0xff]
    %v11494 = vld [vmem:[#allocation15 + $0x310] sm:$0xff]
    %v11495 = vld [vmem:[#allocation15 + $0x318] sm:$0xff]
    %v11496 = vld [vmem:[#allocation15 + $0x320] sm:$0xff]
    %v11497 = vld [vmem:[#allocation15 + $0x328] sm:$0xff]
    %v11498 = vld [vmem:[#allocation15 + $0x330] sm:$0xff]
    %v11499 = vld [vmem:[#allocation15 + $0x338] sm:$0xff]
    %v11500 = vld [vmem:[#allocation15 + $0x340] sm:$0xff]
    %v11501 = vld [vmem:[#allocation15 + $0x348] sm:$0xff]
    %v11502 = vld [vmem:[#allocation15 + $0x350] sm:$0xff]
    %v11503 = vld [vmem:[#allocation15 + $0x358] sm:$0xff]
    %v11504 = vld [vmem:[#allocation15 + $0x360] sm:$0xff]
    %v11505 = vld [vmem:[#allocation15 + $0x368] sm:$0xff]
    %v11506 = vld [vmem:[#allocation15 + $0x370] sm:$0xff]
    %v11507 = vld [vmem:[#allocation15 + $0x378] sm:$0xff]
    %v11508 = vld [vmem:[#allocation15 + $0x380] sm:$0xff]
    %v11509 = vld [vmem:[#allocation15 + $0x388] sm:$0xff]
    %v11510 = vld [vmem:[#allocation15 + $0x390] sm:$0xff]
    %v11511 = vld [vmem:[#allocation15 + $0x398] sm:$0xff]
    %v11512 = vld [vmem:[#allocation15 + $0x3a0] sm:$0xff]
    %v11513 = vld [vmem:[#allocation15 + $0x3a8] sm:$0xff]
    %v11514 = vld [vmem:[#allocation15 + $0x3b0] sm:$0xff]
    %v11515 = vld [vmem:[#allocation15 + $0x3b8] sm:$0xff]
    %v11516 = vld [vmem:[#allocation15 + $0x3c0] sm:$0xff]
    %v11517 = vld [vmem:[#allocation15 + $0x3c8] sm:$0xff]
    %v11518 = vld [vmem:[#allocation15 + $0x3d0] sm:$0xff]
    %v11519 = vld [vmem:[#allocation15 + $0x3d8] sm:$0xff]
    %v11520 = vld [vmem:[#allocation15 + $0x3e0] sm:$0xff]
    %v11521 = vld [vmem:[#allocation15 + $0x3e8] sm:$0xff]
    %v11522 = vld [vmem:[#allocation15 + $0x3f0] sm:$0xff]
    %v11523 = vld [vmem:[#allocation15 + $0x3f8] sm:$0xff]
    %v11652 = vunpack.c.l.b16 %v11396
    %v11653 = vunpack.c.h.b16 %v11396
    %v11654 = vunpack.c.l.b16 %v11397
    %v11655 = vunpack.c.h.b16 %v11397
    %v11656 = vunpack.c.l.b16 %v11398
    %v11657 = vunpack.c.h.b16 %v11398
    %v11658 = vunpack.c.l.b16 %v11399
    %v11659 = vunpack.c.h.b16 %v11399
    %v11660 = vunpack.c.l.b16 %v11400
    %v11661 = vunpack.c.h.b16 %v11400
    %v11662 = vunpack.c.l.b16 %v11401
    %v11663 = vunpack.c.h.b16 %v11401
    %v11664 = vunpack.c.l.b16 %v11402
    %v11665 = vunpack.c.h.b16 %v11402
    %v11666 = vunpack.c.l.b16 %v11403
    %v11667 = vunpack.c.h.b16 %v11403
    %v11668 = vunpack.c.l.b16 %v11404
    %v11669 = vunpack.c.h.b16 %v11404
    %v11670 = vunpack.c.l.b16 %v11405
    %v11671 = vunpack.c.h.b16 %v11405
    %v11672 = vunpack.c.l.b16 %v11406
    %v11673 = vunpack.c.h.b16 %v11406
    %v11674 = vunpack.c.l.b16 %v11407
    %v11675 = vunpack.c.h.b16 %v11407
    %v11676 = vunpack.c.l.b16 %v11408
    %v11677 = vunpack.c.h.b16 %v11408
    %v11678 = vunpack.c.l.b16 %v11409
    %v11679 = vunpack.c.h.b16 %v11409
    %v11680 = vunpack.c.l.b16 %v11410
    %v11681 = vunpack.c.h.b16 %v11410
    %v11682 = vunpack.c.l.b16 %v11411
    %v11683 = vunpack.c.h.b16 %v11411
    %v11684 = vunpack.c.l.b16 %v11412
    %v11685 = vunpack.c.h.b16 %v11412
    %v11686 = vunpack.c.l.b16 %v11413
    %v11687 = vunpack.c.h.b16 %v11413
    %v11688 = vunpack.c.l.b16 %v11414
    %v11689 = vunpack.c.h.b16 %v11414
    %v11690 = vunpack.c.l.b16 %v11415
    %v11691 = vunpack.c.h.b16 %v11415
    %v11692 = vunpack.c.l.b16 %v11416
    %v11693 = vunpack.c.h.b16 %v11416
    %v11694 = vunpack.c.l.b16 %v11417
    %v11695 = vunpack.c.h.b16 %v11417
    %v11696 = vunpack.c.l.b16 %v11418
    %v11697 = vunpack.c.h.b16 %v11418
    %v11698 = vunpack.c.l.b16 %v11419
    %v11699 = vunpack.c.h.b16 %v11419
    %v11700 = vunpack.c.l.b16 %v11420
    %v11701 = vunpack.c.h.b16 %v11420
    %v11702 = vunpack.c.l.b16 %v11421
    %v11703 = vunpack.c.h.b16 %v11421
    %v11704 = vunpack.c.l.b16 %v11422
    %v11705 = vunpack.c.h.b16 %v11422
    %v11706 = vunpack.c.l.b16 %v11423
    %v11707 = vunpack.c.h.b16 %v11423
    %v11708 = vunpack.c.l.b16 %v11424
    %v11709 = vunpack.c.h.b16 %v11424
    %v11710 = vunpack.c.l.b16 %v11425
    %v11711 = vunpack.c.h.b16 %v11425
    %v11712 = vunpack.c.l.b16 %v11426
    %v11713 = vunpack.c.h.b16 %v11426
    %v11714 = vunpack.c.l.b16 %v11427
    %v11715 = vunpack.c.h.b16 %v11427
    %v11716 = vunpack.c.l.b16 %v11428
    %v11717 = vunpack.c.h.b16 %v11428
    %v11718 = vunpack.c.l.b16 %v11429
    %v11719 = vunpack.c.h.b16 %v11429
    %v11720 = vunpack.c.l.b16 %v11430
    %v11721 = vunpack.c.h.b16 %v11430
    %v11722 = vunpack.c.l.b16 %v11431
    %v11723 = vunpack.c.h.b16 %v11431
    %v11724 = vunpack.c.l.b16 %v11432
    %v11725 = vunpack.c.h.b16 %v11432
    %v11726 = vunpack.c.l.b16 %v11433
    %v11727 = vunpack.c.h.b16 %v11433
    %v11728 = vunpack.c.l.b16 %v11434
    %v11729 = vunpack.c.h.b16 %v11434
    %v11730 = vunpack.c.l.b16 %v11435
    %v11731 = vunpack.c.h.b16 %v11435
    %v11732 = vunpack.c.l.b16 %v11436
    %v11733 = vunpack.c.h.b16 %v11436
    %v11734 = vunpack.c.l.b16 %v11437
    %v11735 = vunpack.c.h.b16 %v11437
    %v11736 = vunpack.c.l.b16 %v11438
    %v11737 = vunpack.c.h.b16 %v11438
    %v11738 = vunpack.c.l.b16 %v11439
    %v11739 = vunpack.c.h.b16 %v11439
    %v11740 = vunpack.c.l.b16 %v11440
    %v11741 = vunpack.c.h.b16 %v11440
    %v11742 = vunpack.c.l.b16 %v11441
    %v11743 = vunpack.c.h.b16 %v11441
    %v11744 = vunpack.c.l.b16 %v11442
    %v11745 = vunpack.c.h.b16 %v11442
    %v11746 = vunpack.c.l.b16 %v11443
    %v11747 = vunpack.c.h.b16 %v11443
    %v11748 = vunpack.c.l.b16 %v11444
    %v11749 = vunpack.c.h.b16 %v11444
    %v11750 = vunpack.c.l.b16 %v11445
    %v11751 = vunpack.c.h.b16 %v11445
    %v11752 = vunpack.c.l.b16 %v11446
    %v11753 = vunpack.c.h.b16 %v11446
    %v11754 = vunpack.c.l.b16 %v11447
    %v11755 = vunpack.c.h.b16 %v11447
    %v11756 = vunpack.c.l.b16 %v11448
    %v11757 = vunpack.c.h.b16 %v11448
    %v11758 = vunpack.c.l.b16 %v11449
    %v11759 = vunpack.c.h.b16 %v11449
    %v11760 = vunpack.c.l.b16 %v11450
    %v11761 = vunpack.c.h.b16 %v11450
    %v11762 = vunpack.c.l.b16 %v11451
    %v11763 = vunpack.c.h.b16 %v11451
    %v11764 = vunpack.c.l.b16 %v11452
    %v11765 = vunpack.c.h.b16 %v11452
    %v11766 = vunpack.c.l.b16 %v11453
    %v11767 = vunpack.c.h.b16 %v11453
    %v11768 = vunpack.c.l.b16 %v11454
    %v11769 = vunpack.c.h.b16 %v11454
    %v11770 = vunpack.c.l.b16 %v11455
    %v11771 = vunpack.c.h.b16 %v11455
    %v11772 = vunpack.c.l.b16 %v11456
    %v11773 = vunpack.c.h.b16 %v11456
    %v11774 = vunpack.c.l.b16 %v11457
    %v11775 = vunpack.c.h.b16 %v11457
    %v11776 = vunpack.c.l.b16 %v11458
    %v11777 = vunpack.c.h.b16 %v11458
    %v11778 = vunpack.c.l.b16 %v11459
    %v11779 = vunpack.c.h.b16 %v11459
    %v11780 = vunpack.c.l.b16 %v11460
    %v11781 = vunpack.c.h.b16 %v11460
    %v11782 = vunpack.c.l.b16 %v11461
    %v11783 = vunpack.c.h.b16 %v11461
    %v11784 = vunpack.c.l.b16 %v11462
    %v11785 = vunpack.c.h.b16 %v11462
    %v11786 = vunpack.c.l.b16 %v11463
    %v11787 = vunpack.c.h.b16 %v11463
    %v11788 = vunpack.c.l.b16 %v11464
    %v11789 = vunpack.c.h.b16 %v11464
    %v11790 = vunpack.c.l.b16 %v11465
    %v11791 = vunpack.c.h.b16 %v11465
    %v11792 = vunpack.c.l.b16 %v11466
    %v11793 = vunpack.c.h.b16 %v11466
    %v11794 = vunpack.c.l.b16 %v11467
    %v11795 = vunpack.c.h.b16 %v11467
    %v11796 = vunpack.c.l.b16 %v11468
    %v11797 = vunpack.c.h.b16 %v11468
    %v11798 = vunpack.c.l.b16 %v11469
    %v11799 = vunpack.c.h.b16 %v11469
    %v11800 = vunpack.c.l.b16 %v11470
    %v11801 = vunpack.c.h.b16 %v11470
    %v11802 = vunpack.c.l.b16 %v11471
    %v11803 = vunpack.c.h.b16 %v11471
    %v11804 = vunpack.c.l.b16 %v11472
    %v11805 = vunpack.c.h.b16 %v11472
    %v11806 = vunpack.c.l.b16 %v11473
    %v11807 = vunpack.c.h.b16 %v11473
    %v11808 = vunpack.c.l.b16 %v11474
    %v11809 = vunpack.c.h.b16 %v11474
    %v11810 = vunpack.c.l.b16 %v11475
    %v11811 = vunpack.c.h.b16 %v11475
    %v11812 = vunpack.c.l.b16 %v11476
    %v11813 = vunpack.c.h.b16 %v11476
    %v11814 = vunpack.c.l.b16 %v11477
    %v11815 = vunpack.c.h.b16 %v11477
    %v11816 = vunpack.c.l.b16 %v11478
    %v11817 = vunpack.c.h.b16 %v11478
    %v11818 = vunpack.c.l.b16 %v11479
    %v11819 = vunpack.c.h.b16 %v11479
    %v11820 = vunpack.c.l.b16 %v11480
    %v11821 = vunpack.c.h.b16 %v11480
    %v11822 = vunpack.c.l.b16 %v11481
    %v11823 = vunpack.c.h.b16 %v11481
    %v11824 = vunpack.c.l.b16 %v11482
    %v11825 = vunpack.c.h.b16 %v11482
    %v11826 = vunpack.c.l.b16 %v11483
    %v11827 = vunpack.c.h.b16 %v11483
    %v11828 = vunpack.c.l.b16 %v11484
    %v11829 = vunpack.c.h.b16 %v11484
    %v11830 = vunpack.c.l.b16 %v11485
    %v11831 = vunpack.c.h.b16 %v11485
    %v11832 = vunpack.c.l.b16 %v11486
    %v11833 = vunpack.c.h.b16 %v11486
    %v11834 = vunpack.c.l.b16 %v11487
    %v11835 = vunpack.c.h.b16 %v11487
    %v11836 = vunpack.c.l.b16 %v11488
    %v11837 = vunpack.c.h.b16 %v11488
    %v11838 = vunpack.c.l.b16 %v11489
    %v11839 = vunpack.c.h.b16 %v11489
    %v11840 = vunpack.c.l.b16 %v11490
    %v11841 = vunpack.c.h.b16 %v11490
    %v11842 = vunpack.c.l.b16 %v11491
    %v11843 = vunpack.c.h.b16 %v11491
    %v11844 = vunpack.c.l.b16 %v11492
    %v11845 = vunpack.c.h.b16 %v11492
    %v11846 = vunpack.c.l.b16 %v11493
    %v11847 = vunpack.c.h.b16 %v11493
    %v11848 = vunpack.c.l.b16 %v11494
    %v11849 = vunpack.c.h.b16 %v11494
    %v11850 = vunpack.c.l.b16 %v11495
    %v11851 = vunpack.c.h.b16 %v11495
    %v11852 = vunpack.c.l.b16 %v11496
    %v11853 = vunpack.c.h.b16 %v11496
    %v11854 = vunpack.c.l.b16 %v11497
    %v11855 = vunpack.c.h.b16 %v11497
    %v11856 = vunpack.c.l.b16 %v11498
    %v11857 = vunpack.c.h.b16 %v11498
    %v11858 = vunpack.c.l.b16 %v11499
    %v11859 = vunpack.c.h.b16 %v11499
    %v11860 = vunpack.c.l.b16 %v11500
    %v11861 = vunpack.c.h.b16 %v11500
    %v11862 = vunpack.c.l.b16 %v11501
    %v11863 = vunpack.c.h.b16 %v11501
    %v11864 = vunpack.c.l.b16 %v11502
    %v11865 = vunpack.c.h.b16 %v11502
    %v11866 = vunpack.c.l.b16 %v11503
    %v11867 = vunpack.c.h.b16 %v11503
    %v11868 = vunpack.c.l.b16 %v11504
    %v11869 = vunpack.c.h.b16 %v11504
    %v11870 = vunpack.c.l.b16 %v11505
    %v11871 = vunpack.c.h.b16 %v11505
    %v11872 = vunpack.c.l.b16 %v11506
    %v11873 = vunpack.c.h.b16 %v11506
    %v11874 = vunpack.c.l.b16 %v11507
    %v11875 = vunpack.c.h.b16 %v11507
    %v11876 = vunpack.c.l.b16 %v11508
    %v11877 = vunpack.c.h.b16 %v11508
    %v11878 = vunpack.c.l.b16 %v11509
    %v11879 = vunpack.c.h.b16 %v11509
    %v11880 = vunpack.c.l.b16 %v11510
    %v11881 = vunpack.c.h.b16 %v11510
    %v11882 = vunpack.c.l.b16 %v11511
    %v11883 = vunpack.c.h.b16 %v11511
    %v11884 = vunpack.c.l.b16 %v11512
    %v11885 = vunpack.c.h.b16 %v11512
    %v11886 = vunpack.c.l.b16 %v11513
    %v11887 = vunpack.c.h.b16 %v11513
    %v11888 = vunpack.c.l.b16 %v11514
    %v11889 = vunpack.c.h.b16 %v11514
    %v11890 = vunpack.c.l.b16 %v11515
    %v11891 = vunpack.c.h.b16 %v11515
    %v11892 = vunpack.c.l.b16 %v11516
    %v11893 = vunpack.c.h.b16 %v11516
    %v11894 = vunpack.c.l.b16 %v11517
    %v11895 = vunpack.c.h.b16 %v11517
    %v11896 = vunpack.c.l.b16 %v11518
    %v11897 = vunpack.c.h.b16 %v11518
    %v11898 = vunpack.c.l.b16 %v11519
    %v11899 = vunpack.c.h.b16 %v11519
    %v11900 = vunpack.c.l.b16 %v11520
    %v11901 = vunpack.c.h.b16 %v11520
    %v11902 = vunpack.c.l.b16 %v11521
    %v11903 = vunpack.c.h.b16 %v11521
    %v11904 = vunpack.c.l.b16 %v11522
    %v11905 = vunpack.c.h.b16 %v11522
    %v11906 = vunpack.c.l.b16 %v11523
    %v11907 = vunpack.c.h.b16 %v11523
    %v11908 = vpack.c.b16 %v11660, %v11652
    %v11909 = vpack.c.b16 %v11661, %v11653
    %v11910 = vpack.c.b16 %v11662, %v11654
    %v11911 = vpack.c.b16 %v11663, %v11655
    %v11912 = vpack.c.b16 %v11664, %v11656
    %v11913 = vpack.c.b16 %v11665, %v11657
    %v11914 = vpack.c.b16 %v11666, %v11658
    %v11915 = vpack.c.b16 %v11667, %v11659
    %v11916 = vpack.c.b16 %v11676, %v11668
    %v11917 = vpack.c.b16 %v11677, %v11669
    %v11918 = vpack.c.b16 %v11678, %v11670
    %v11919 = vpack.c.b16 %v11679, %v11671
    %v11920 = vpack.c.b16 %v11680, %v11672
    %v11921 = vpack.c.b16 %v11681, %v11673
    %v11922 = vpack.c.b16 %v11682, %v11674
    %v11923 = vpack.c.b16 %v11683, %v11675
    %v11924 = vpack.c.b16 %v11692, %v11684
    %v11925 = vpack.c.b16 %v11693, %v11685
    %v11926 = vpack.c.b16 %v11694, %v11686
    %v11927 = vpack.c.b16 %v11695, %v11687
    %v11928 = vpack.c.b16 %v11696, %v11688
    %v11929 = vpack.c.b16 %v11697, %v11689
    %v11930 = vpack.c.b16 %v11698, %v11690
    %v11931 = vpack.c.b16 %v11699, %v11691
    %v11932 = vpack.c.b16 %v11708, %v11700
    %v11933 = vpack.c.b16 %v11709, %v11701
    %v11934 = vpack.c.b16 %v11710, %v11702
    %v11935 = vpack.c.b16 %v11711, %v11703
    %v11936 = vpack.c.b16 %v11712, %v11704
    %v11937 = vpack.c.b16 %v11713, %v11705
    %v11938 = vpack.c.b16 %v11714, %v11706
    %v11939 = vpack.c.b16 %v11715, %v11707
    %v11940 = vpack.c.b16 %v11724, %v11716
    %v11941 = vpack.c.b16 %v11725, %v11717
    %v11942 = vpack.c.b16 %v11726, %v11718
    %v11943 = vpack.c.b16 %v11727, %v11719
    %v11944 = vpack.c.b16 %v11728, %v11720
    %v11945 = vpack.c.b16 %v11729, %v11721
    %v11946 = vpack.c.b16 %v11730, %v11722
    %v11947 = vpack.c.b16 %v11731, %v11723
    %v11948 = vpack.c.b16 %v11740, %v11732
    %v11949 = vpack.c.b16 %v11741, %v11733
    %v11950 = vpack.c.b16 %v11742, %v11734
    %v11951 = vpack.c.b16 %v11743, %v11735
    %v11952 = vpack.c.b16 %v11744, %v11736
    %v11953 = vpack.c.b16 %v11745, %v11737
    %v11954 = vpack.c.b16 %v11746, %v11738
    %v11955 = vpack.c.b16 %v11747, %v11739
    %v11956 = vpack.c.b16 %v11756, %v11748
    %v11957 = vpack.c.b16 %v11757, %v11749
    %v11958 = vpack.c.b16 %v11758, %v11750
    %v11959 = vpack.c.b16 %v11759, %v11751
    %v11960 = vpack.c.b16 %v11760, %v11752
    %v11961 = vpack.c.b16 %v11761, %v11753
    %v11962 = vpack.c.b16 %v11762, %v11754
    %v11963 = vpack.c.b16 %v11763, %v11755
    %v11964 = vpack.c.b16 %v11772, %v11764
    %v11965 = vpack.c.b16 %v11773, %v11765
    %v11966 = vpack.c.b16 %v11774, %v11766
    %v11967 = vpack.c.b16 %v11775, %v11767
    %v11968 = vpack.c.b16 %v11776, %v11768
    %v11969 = vpack.c.b16 %v11777, %v11769
    %v11970 = vpack.c.b16 %v11778, %v11770
    %v11971 = vpack.c.b16 %v11779, %v11771
    %v11972 = vpack.c.b16 %v11788, %v11780
    %v11973 = vpack.c.b16 %v11789, %v11781
    %v11974 = vpack.c.b16 %v11790, %v11782
    %v11975 = vpack.c.b16 %v11791, %v11783
    %v11976 = vpack.c.b16 %v11792, %v11784
    %v11977 = vpack.c.b16 %v11793, %v11785
    %v11978 = vpack.c.b16 %v11794, %v11786
    %v11979 = vpack.c.b16 %v11795, %v11787
    %v11980 = vpack.c.b16 %v11804, %v11796
    %v11981 = vpack.c.b16 %v11805, %v11797
    %v11982 = vpack.c.b16 %v11806, %v11798
    %v11983 = vpack.c.b16 %v11807, %v11799
    %v11984 = vpack.c.b16 %v11808, %v11800
    %v11985 = vpack.c.b16 %v11809, %v11801
    %v11986 = vpack.c.b16 %v11810, %v11802
    %v11987 = vpack.c.b16 %v11811, %v11803
    %v11988 = vpack.c.b16 %v11820, %v11812
    %v11989 = vpack.c.b16 %v11821, %v11813
    %v11990 = vpack.c.b16 %v11822, %v11814
    %v11991 = vpack.c.b16 %v11823, %v11815
    %v11992 = vpack.c.b16 %v11824, %v11816
    %v11993 = vpack.c.b16 %v11825, %v11817
    %v11994 = vpack.c.b16 %v11826, %v11818
    %v11995 = vpack.c.b16 %v11827, %v11819
    %v11996 = vpack.c.b16 %v11836, %v11828
    %v11997 = vpack.c.b16 %v11837, %v11829
    %v11998 = vpack.c.b16 %v11838, %v11830
    %v11999 = vpack.c.b16 %v11839, %v11831
    %v12000 = vpack.c.b16 %v11840, %v11832
    %v12001 = vpack.c.b16 %v11841, %v11833
    %v12002 = vpack.c.b16 %v11842, %v11834
    %v12003 = vpack.c.b16 %v11843, %v11835
    %v12004 = vpack.c.b16 %v11852, %v11844
    %v12005 = vpack.c.b16 %v11853, %v11845
    %v12006 = vpack.c.b16 %v11854, %v11846
    %v12007 = vpack.c.b16 %v11855, %v11847
    %v12008 = vpack.c.b16 %v11856, %v11848
    %v12009 = vpack.c.b16 %v11857, %v11849
    %v12010 = vpack.c.b16 %v11858, %v11850
    %v12011 = vpack.c.b16 %v11859, %v11851
    %v12012 = vpack.c.b16 %v11868, %v11860
    %v12013 = vpack.c.b16 %v11869, %v11861
    %v12014 = vpack.c.b16 %v11870, %v11862
    %v12015 = vpack.c.b16 %v11871, %v11863
    %v12016 = vpack.c.b16 %v11872, %v11864
    %v12017 = vpack.c.b16 %v11873, %v11865
    %v12018 = vpack.c.b16 %v11874, %v11866
    %v12019 = vpack.c.b16 %v11875, %v11867
    %v12020 = vpack.c.b16 %v11884, %v11876
    %v12021 = vpack.c.b16 %v11885, %v11877
    %v12022 = vpack.c.b16 %v11886, %v11878
    %v12023 = vpack.c.b16 %v11887, %v11879
    %v12024 = vpack.c.b16 %v11888, %v11880
    %v12025 = vpack.c.b16 %v11889, %v11881
    %v12026 = vpack.c.b16 %v11890, %v11882
    %v12027 = vpack.c.b16 %v11891, %v11883
    %v12028 = vpack.c.b16 %v11900, %v11892
    %v12029 = vpack.c.b16 %v11901, %v11893
    %v12030 = vpack.c.b16 %v11902, %v11894
    %v12031 = vpack.c.b16 %v11903, %v11895
    %v12032 = vpack.c.b16 %v11904, %v11896
    %v12033 = vpack.c.b16 %v11905, %v11897
    %v12034 = vpack.c.b16 %v11906, %v11898
    %v12035 = vpack.c.b16 %v11907, %v11899
    %12164 = vmatpush.bf16.msra.mxu0 %v11964
    %12165 = vmatpush.bf16.msra.mxu0 %v11956
    %12166 = vmatpush.bf16.msra.mxu0 %v11948
    %12167 = vmatpush.bf16.msra.mxu0 %v11940
    %12168 = vmatpush.bf16.msra.mxu0 %v11932
    %12169 = vmatpush.bf16.msra.mxu0 %v11924
    %12170 = vmatpush.bf16.msra.mxu0 %v11916
    %12171 = vmatpush.bf16.msra.mxu0 %v11908
    %12172 = vmatmul.bf16.gmra.mxu0 %v11394
    %v12173 = vpop.f32.mrf.mxu0
    %v12174 = vadd.f32 0.0, %v12173
    %v12175 = vpop.f32.mrf.mxu0
    %12176 = vdwg.mxu0
    %12177 = vmatpush.bf16.msra.mxu0 %v12028
    %12178 = vmatpush.bf16.msra.mxu0 %v12020
    %12179 = vmatpush.bf16.msra.mxu0 %v12012
    %12180 = vmatpush.bf16.msra.mxu0 %v12004
    %12181 = vmatpush.bf16.msra.mxu0 %v11996
    %12182 = vmatpush.bf16.msra.mxu0 %v11988
    %12183 = vmatpush.bf16.msra.mxu0 %v11980
    %12184 = vmatpush.bf16.msra.mxu0 %v11972
    %12185 = vmatmul.bf16.gmra.mxu0 %v11395
    %v12186 = vpop.f32.mrf.mxu0
    %v12187 = vadd.f32 %v12174, %v12186
    %v12188 = vpop.f32.mrf.mxu0
    %12189 = vdwg.mxu0
    %12190 = vmatpush.bf16.msra.mxu0 %v11965
    %12191 = vmatpush.bf16.msra.mxu0 %v11957
    %12192 = vmatpush.bf16.msra.mxu0 %v11949
    %12193 = vmatpush.bf16.msra.mxu0 %v11941
    %12194 = vmatpush.bf16.msra.mxu0 %v11933
    %12195 = vmatpush.bf16.msra.mxu0 %v11925
    %12196 = vmatpush.bf16.msra.mxu0 %v11917
    %12197 = vmatpush.bf16.msra.mxu0 %v11909
    %12198 = vmatmul.bf16.gmra.mxu0 %v11394
    %v12199 = vpop.f32.mrf.mxu0
    %v12200 = vadd.f32 0.0, %v12199
    %v12201 = vpop.f32.mrf.mxu0
    %12202 = vdwg.mxu0
    %12203 = vmatpush.bf16.msra.mxu0 %v12029
    %12204 = vmatpush.bf16.msra.mxu0 %v12021
    %12205 = vmatpush.bf16.msra.mxu0 %v12013
    %12206 = vmatpush.bf16.msra.mxu0 %v12005
    %12207 = vmatpush.bf16.msra.mxu0 %v11997
    %12208 = vmatpush.bf16.msra.mxu0 %v11989
    %12209 = vmatpush.bf16.msra.mxu0 %v11981
    %12210 = vmatpush.bf16.msra.mxu0 %v11973
    %12211 = vmatmul.bf16.gmra.mxu0 %v11395
    %v12212 = vpop.f32.mrf.mxu0
    %v12213 = vadd.f32 %v12200, %v12212
    %v12214 = vpop.f32.mrf.mxu0
    %12215 = vdwg.mxu0
    %12216 = vmatpush.bf16.msra.mxu0 %v11966
    %12217 = vmatpush.bf16.msra.mxu0 %v11958
    %12218 = vmatpush.bf16.msra.mxu0 %v11950
    %12219 = vmatpush.bf16.msra.mxu0 %v11942
    %12220 = vmatpush.bf16.msra.mxu0 %v11934
    %12221 = vmatpush.bf16.msra.mxu0 %v11926
    %12222 = vmatpush.bf16.msra.mxu0 %v11918
    %12223 = vmatpush.bf16.msra.mxu0 %v11910
    %12224 = vmatmul.bf16.gmra.mxu0 %v11394
    %v12225 = vpop.f32.mrf.mxu0
    %v12226 = vadd.f32 0.0, %v12225
    %v12227 = vpop.f32.mrf.mxu0
    %12228 = vdwg.mxu0
    %12229 = vmatpush.bf16.msra.mxu0 %v12030
    %12230 = vmatpush.bf16.msra.mxu0 %v12022
    %12231 = vmatpush.bf16.msra.mxu0 %v12014
    %12232 = vmatpush.bf16.msra.mxu0 %v12006
    %12233 = vmatpush.bf16.msra.mxu0 %v11998
    %12234 = vmatpush.bf16.msra.mxu0 %v11990
    %12235 = vmatpush.bf16.msra.mxu0 %v11982
    %12236 = vmatpush.bf16.msra.mxu0 %v11974
    %12237 = vmatmul.bf16.gmra.mxu0 %v11395
    %v12238 = vpop.f32.mrf.mxu0
    %v12239 = vadd.f32 %v12226, %v12238
    %v12240 = vpop.f32.mrf.mxu0
    %12241 = vdwg.mxu0
    %12242 = vmatpush.bf16.msra.mxu0 %v11967
    %12243 = vmatpush.bf16.msra.mxu0 %v11959
    %12244 = vmatpush.bf16.msra.mxu0 %v11951
    %12245 = vmatpush.bf16.msra.mxu0 %v11943
    %12246 = vmatpush.bf16.msra.mxu0 %v11935
    %12247 = vmatpush.bf16.msra.mxu0 %v11927
    %12248 = vmatpush.bf16.msra.mxu0 %v11919
    %12249 = vmatpush.bf16.msra.mxu0 %v11911
    %12250 = vmatmul.bf16.gmra.mxu0 %v11394
    %v12251 = vpop.f32.mrf.mxu0
    %v12252 = vadd.f32 0.0, %v12251
    %v12253 = vpop.f32.mrf.mxu0
    %12254 = vdwg.mxu0
    %12255 = vmatpush.bf16.msra.mxu0 %v12031
    %12256 = vmatpush.bf16.msra.mxu0 %v12023
    %12257 = vmatpush.bf16.msra.mxu0 %v12015
    %12258 = vmatpush.bf16.msra.mxu0 %v12007
    %12259 = vmatpush.bf16.msra.mxu0 %v11999
    %12260 = vmatpush.bf16.msra.mxu0 %v11991
    %12261 = vmatpush.bf16.msra.mxu0 %v11983
    %12262 = vmatpush.bf16.msra.mxu0 %v11975
    %12263 = vmatmul.bf16.gmra.mxu0 %v11395
    %v12264 = vpop.f32.mrf.mxu0
    %v12265 = vadd.f32 %v12252, %v12264
    %v12266 = vpop.f32.mrf.mxu0
    %12267 = vdwg.mxu0
    %12268 = vmatpush.bf16.msra.mxu0 %v11968
    %12269 = vmatpush.bf16.msra.mxu0 %v11960
    %12270 = vmatpush.bf16.msra.mxu0 %v11952
    %12271 = vmatpush.bf16.msra.mxu0 %v11944
    %12272 = vmatpush.bf16.msra.mxu0 %v11936
    %12273 = vmatpush.bf16.msra.mxu0 %v11928
    %12274 = vmatpush.bf16.msra.mxu0 %v11920
    %12275 = vmatpush.bf16.msra.mxu0 %v11912
    %12276 = vmatmul.bf16.gmra.mxu0 %v11394
    %v12277 = vpop.f32.mrf.mxu0
    %v12278 = vadd.f32 0.0, %v12277
    %v12279 = vpop.f32.mrf.mxu0
    %12280 = vdwg.mxu0
    %12281 = vmatpush.bf16.msra.mxu0 %v12032
    %12282 = vmatpush.bf16.msra.mxu0 %v12024
    %12283 = vmatpush.bf16.msra.mxu0 %v12016
    %12284 = vmatpush.bf16.msra.mxu0 %v12008
    %12285 = vmatpush.bf16.msra.mxu0 %v12000
    %12286 = vmatpush.bf16.msra.mxu0 %v11992
    %12287 = vmatpush.bf16.msra.mxu0 %v11984
    %12288 = vmatpush.bf16.msra.mxu0 %v11976
    %12289 = vmatmul.bf16.gmra.mxu0 %v11395
    %v12290 = vpop.f32.mrf.mxu0
    %v12291 = vadd.f32 %v12278, %v12290
    %v12292 = vpop.f32.mrf.mxu0
    %12293 = vdwg.mxu0
    %12294 = vmatpush.bf16.msra.mxu0 %v11969
    %12295 = vmatpush.bf16.msra.mxu0 %v11961
    %12296 = vmatpush.bf16.msra.mxu0 %v11953
    %12297 = vmatpush.bf16.msra.mxu0 %v11945
    %12298 = vmatpush.bf16.msra.mxu0 %v11937
    %12299 = vmatpush.bf16.msra.mxu0 %v11929
    %12300 = vmatpush.bf16.msra.mxu0 %v11921
    %12301 = vmatpush.bf16.msra.mxu0 %v11913
    %12302 = vmatmul.bf16.gmra.mxu0 %v11394
    %v12303 = vpop.f32.mrf.mxu0
    %v12304 = vadd.f32 0.0, %v12303
    %v12305 = vpop.f32.mrf.mxu0
    %12306 = vdwg.mxu0
    %12307 = vmatpush.bf16.msra.mxu0 %v12033
    %12308 = vmatpush.bf16.msra.mxu0 %v12025
    %12309 = vmatpush.bf16.msra.mxu0 %v12017
    %12310 = vmatpush.bf16.msra.mxu0 %v12009
    %12311 = vmatpush.bf16.msra.mxu0 %v12001
    %12312 = vmatpush.bf16.msra.mxu0 %v11993
    %12313 = vmatpush.bf16.msra.mxu0 %v11985
    %12314 = vmatpush.bf16.msra.mxu0 %v11977
    %12315 = vmatmul.bf16.gmra.mxu0 %v11395
    %v12316 = vpop.f32.mrf.mxu0
    %v12317 = vadd.f32 %v12304, %v12316
    %v12318 = vpop.f32.mrf.mxu0
    %12319 = vdwg.mxu0
    %12320 = vmatpush.bf16.msra.mxu0 %v11970
    %12321 = vmatpush.bf16.msra.mxu0 %v11962
    %12322 = vmatpush.bf16.msra.mxu0 %v11954
    %12323 = vmatpush.bf16.msra.mxu0 %v11946
    %12324 = vmatpush.bf16.msra.mxu0 %v11938
    %12325 = vmatpush.bf16.msra.mxu0 %v11930
    %12326 = vmatpush.bf16.msra.mxu0 %v11922
    %12327 = vmatpush.bf16.msra.mxu0 %v11914
    %12328 = vmatmul.bf16.gmra.mxu0 %v11394
    %v12329 = vpop.f32.mrf.mxu0
    %v12330 = vadd.f32 0.0, %v12329
    %v12331 = vpop.f32.mrf.mxu0
    %12332 = vdwg.mxu0
    %12333 = vmatpush.bf16.msra.mxu0 %v12034
    %12334 = vmatpush.bf16.msra.mxu0 %v12026
    %12335 = vmatpush.bf16.msra.mxu0 %v12018
    %12336 = vmatpush.bf16.msra.mxu0 %v12010
    %12337 = vmatpush.bf16.msra.mxu0 %v12002
    %12338 = vmatpush.bf16.msra.mxu0 %v11994
    %12339 = vmatpush.bf16.msra.mxu0 %v11986
    %12340 = vmatpush.bf16.msra.mxu0 %v11978
    %12341 = vmatmul.bf16.gmra.mxu0 %v11395
    %v12342 = vpop.f32.mrf.mxu0
    %v12343 = vadd.f32 %v12330, %v12342
    %v12344 = vpop.f32.mrf.mxu0
    %12345 = vdwg.mxu0
    %12346 = vmatpush.bf16.msra.mxu0 %v11971
    %12347 = vmatpush.bf16.msra.mxu0 %v11963
    %12348 = vmatpush.bf16.msra.mxu0 %v11955
    %12349 = vmatpush.bf16.msra.mxu0 %v11947
    %12350 = vmatpush.bf16.msra.mxu0 %v11939
    %12351 = vmatpush.bf16.msra.mxu0 %v11931
    %12352 = vmatpush.bf16.msra.mxu0 %v11923
    %12353 = vmatpush.bf16.msra.mxu0 %v11915
    %12354 = vmatmul.bf16.gmra.mxu0 %v11394
    %v12355 = vpop.f32.mrf.mxu0
    %v12356 = vadd.f32 0.0, %v12355
    %v12357 = vpop.f32.mrf.mxu0
    %12358 = vdwg.mxu0
    %12359 = vmatpush.bf16.msra.mxu0 %v12035
    %12360 = vmatpush.bf16.msra.mxu0 %v12027
    %12361 = vmatpush.bf16.msra.mxu0 %v12019
    %12362 = vmatpush.bf16.msra.mxu0 %v12011
    %12363 = vmatpush.bf16.msra.mxu0 %v12003
    %12364 = vmatpush.bf16.msra.mxu0 %v11995
    %12365 = vmatpush.bf16.msra.mxu0 %v11987
    %12366 = vmatpush.bf16.msra.mxu0 %v11979
    %12367 = vmatmul.bf16.gmra.mxu0 %v11395
    %v12368 = vpop.f32.mrf.mxu0
    %v12369 = vadd.f32 %v12356, %v12368
    %v12370 = vpop.f32.mrf.mxu0
    %12371 = vdwg.mxu0
    %v12380 = vrot.slane %v12213, 7
    %v12381 = vrot.slane %v12239, 6
    %v12382 = vrot.slane %v12265, 5
    %v12383 = vrot.slane %v12291, 4
    %v12384 = vrot.slane %v12317, 3
    %v12385 = vrot.slane %v12343, 2
    %v12386 = vrot.slane %v12369, 1
    %v12387 = vsel %vm893, %v12187, %v12380
    %v12388 = vsel %vm895, %v12381, %v12382
    %v12389 = vsel %vm897, %v12387, %v12388
    %v12390 = vsel %vm4795, %v12383, %v12384
    %v12391 = vsel %vm4797, %v12385, %v12386
    %v12392 = vsel %vm4799, %v12390, %v12391
    %v12393 = vsel %vm4801, %v12389, %v12392
    %v12395 = vadd.f32 %v11388, %v12393
    %v12396 = vxor.u32 %v12395, 2147483648
    %v12397 = vmul.f32 %v12396, 1.442695
    %v12398 = vpow.pop %v12397
    %v12399 = vadd.f32 %v12398, 1.0
    %v12400 = vrcp.pop %v12399
    %v12401 = vmul.f32 %v12399, %v12400
    %v12402 = vsub.f32 1.0, %v12401
    %v12403 = vmul.f32 %v12400, %v12402
    %v12404 = vadd.f32 %v12400, %v12403
    %vm12405 = vweird.f32 %v12399
    %vm12406 = vweird.f32 %v12400
    %vm12407 = vmor %vm12405, %vm12406
    %v12408 = vsel %vm12407, %v12400, %v12404
    %v12409 = vand.u32 2147483647, %v12399
    %vm12410 = vcmp.eq.f32.partialorder %v12409, 8.507059e+37
    %v12411 = vand.u32 %v12399, 2147483648
    %v12412 = vor.u32 1.1754944e-38, %v12411
    %v12413 = vsel %vm12410, %v12412, %v12408
    %v12414 = vmul.f32 1.0, %v12413
    %v12416 = vrot.slane %v12395, 2
    %v12418 = vxor.u32 %v12416, 2147483648
    %v12419 = vmul.f32 %v12418, 1.442695
    %v12420 = vpow.pop %v12419
    %v12421 = vadd.f32 %v12420, 1.0
    %v12422 = vrcp.pop %v12421
    %v12423 = vmul.f32 %v12421, %v12422
    %v12424 = vsub.f32 1.0, %v12423
    %v12425 = vmul.f32 %v12422, %v12424
    %v12426 = vadd.f32 %v12422, %v12425
    %vm12427 = vweird.f32 %v12421
    %vm12428 = vweird.f32 %v12422
    %vm12429 = vmor %vm12427, %vm12428
    %v12430 = vsel %vm12429, %v12422, %v12426
    %v12431 = vand.u32 2147483647, %v12421
    %vm12432 = vcmp.eq.f32.partialorder %v12431, 8.507059e+37
    %v12433 = vand.u32 %v12421, 2147483648
    %v12434 = vor.u32 1.1754944e-38, %v12433
    %v12435 = vsel %vm12432, %v12434, %v12430
    %v12436 = vmul.f32 1.0, %v12435
    %v12437 = vrot.slane %v12395, 4
    %v12439 = vtanh.pop %v12437
    %v12440 = vrot.slane %v12395, 6
    %v12442 = vxor.u32 %v12440, 2147483648
    %v12443 = vmul.f32 %v12442, 1.442695
    %v12444 = vpow.pop %v12443
    %v12445 = vadd.f32 %v12444, 1.0
    %v12446 = vrcp.pop %v12445
    %v12447 = vmul.f32 %v12445, %v12446
    %v12448 = vsub.f32 1.0, %v12447
    %v12449 = vmul.f32 %v12446, %v12448
    %v12450 = vadd.f32 %v12446, %v12449
    %vm12451 = vweird.f32 %v12445
    %vm12452 = vweird.f32 %v12446
    %vm12453 = vmor %vm12451, %vm12452
    %v12454 = vsel %vm12453, %v12446, %v12450
    %v12455 = vand.u32 2147483647, %v12445
    %vm12456 = vcmp.eq.f32.partialorder %v12455, 8.507059e+37
    %v12457 = vand.u32 %v12445, 2147483648
    %v12458 = vor.u32 1.1754944e-38, %v12457
    %v12459 = vsel %vm12456, %v12458, %v12454
    %v12460 = vmul.f32 1.0, %v12459
    %v12461 = vmul.f32 %v12436, %v11379
    %v12462 = vmul.f32 %v12414, %v12439
    %v12463 = vadd.f32 %v12461, %v12462
    %v12464 = vtanh.pop %v12463
    %v12465 = vmul.f32 %v12460, %v12464
    %s12466 = scalar_lea.vmem [#allocation5], 7
    %12467 = vst.msk [vmem:[%s12466] ss:$8 sm:$0x3] %vm4878, %v12465
    %12468 = vst.msk [vmem:[%s12466] ss:$8 sm:$0x0] %vm4878, %v12465
    %v12469 = vld [vmem:[#allocation5] sm:$0xff]
    %v12470 = vld [vmem:[#allocation5 + $0x8] sm:$0xff]
    %12471 = vst [vmem:[#allocation18] sm:$0xff] %v12469
    %12472 = vst [vmem:[#allocation18 + $0x8] sm:$0xff] %v12470
    // Predicated region
    $region58: #{tpu_custom_call.1} parent=1 // pred_check
      _
    $region59: #{tpu_custom_call.1} parent=1 // pred_check_branch
      %12474 = sbr.rel (0) target = $region61
    $region60: #{tpu_custom_call.1} parent=1 // pred_region
      %12476 = vsyncadd [#allocation8], 0
      %s12478 = sshll.u32 [#allocation18], 4
      %s12479 = int_to_ptr.vmem [resolvable:$true] %s12478
      %s12480 = sshll.u32 %s7, 4
      %s12481 = int_to_ptr.hbm [resolvable:$true] %s12480
      %12483 = dma.vmem_to_hbm [thread:$0]  %s12479, 256, %s12481, [#allocation8]
    $region61: #{tpu_custom_call.1} parent=1 // pred_fallthru
      _
    // Predicated region
    $region62: #{tpu_custom_call.1} parent=1 // pred_check
      _
    $region63: #{tpu_custom_call.1} parent=1 // pred_check_branch
      %12485 = sbr.rel (0) target = $region65
    $region64: #{tpu_custom_call.1} parent=1 // pred_region
      %12487 = dma.done [#allocation8], 256
    $region65: #{tpu_custom_call.1} parent=1 // pred_fallthru
      _
    %12488 = vsyncpa [#allocation7], 1
    %12489 = vsyncpa [#allocation10], 1
    %12490 = vsyncpa [#allocation13], 1
    %12491 = vsyncpa [#allocation16], 1
    %12492 = vsyncpa [#allocation8], 1

</llo_original>
